<compile_context>
chip_gen: v6e
topology: v6e:2x2x1
jax: 0.10.0
libtpu: 0.0.40
codegen_flags: <defaults>
</compile_context>

<pallas_src>
import functools

import numpy as np
import jax
import jax.numpy as jnp
from jax.experimental import pallas as pl
from jax.experimental.pallas import tpu as pltpu

NUM_CLASSES = 6
CP = 128  # class channels padded to a full lane width inside the head


# ----------------------------- Pallas kernels ------------------------------

def _conv1x1_relu_kernel(x_ref, w_ref, b_ref, o_ref):
    # x: [tm, Cin], w: [Cin, Cout], b: [1, Cout]  ->  o: [tm, Cout]
    y = jnp.dot(x_ref[...], w_ref[...],
                preferred_element_type=jnp.float32) + b_ref[...]
    o_ref[...] = jnp.maximum(y, 0.0)


def _fcn_head_kernel(s3_ref, s2_ref, w1_ref, b1_ref, w2_ref, b2_ref,
                     g3_ref, g2_ref, o_ref):
    """Fused FCN head for one batch item; everything stays in VMEM.

    s3_ref: [1, H3*W3, 512]   /32 backbone features
    s2_ref: [1, H2*W2, 256]   /16 backbone features
    w1/b1, w2/b2: score convs (class dim zero-padded to CP=128 lanes)
    g3: [H0*W0, H3*W3] = kron(Uh8@Uh4@Uh2, Uw8@Uw4@Uw2)
    g2: [H0*W0, H2*W2] = kron(Uh8@Uh4,     Uw8@Uw4)
    o : [1, H0*W0, CP]
    """
    s3 = jnp.dot(s3_ref[0], w1_ref[...],
                 preferred_element_type=jnp.float32) + b1_ref[...]
    s2 = jnp.dot(s2_ref[0], w2_ref[...],
                 preferred_element_type=jnp.float32) + b2_ref[...]
    # up8(up4(scores2(s2) + up2(scores1(s3))))  ==  g2 @ s2 + g3 @ s3
    o_ref[0] = (jnp.dot(g2_ref[...], s2, preferred_element_type=jnp.float32) +
                jnp.dot(g3_ref[...], s3, preferred_element_type=jnp.float32))


# ------------------------------ Pallas wrappers -----------------------------

def conv1x1_relu(x_nhwc, w, b, tile_m=512):
    """1x1 conv + ReLU as a gridded Pallas matmul over flattened spatial rows."""
    N, H, W, Cin = x_nhwc.shape
    Cout = w.shape[1]
    M = N * H * W
    tm = M if M <= tile_m else tile_m
    x2 = x_nhwc.reshape(M, Cin)
    out = pl.pallas_call(
        _conv1x1_relu_kernel,
        out_shape=jax.ShapeDtypeStruct((M, Cout), jnp.float32),
        grid=(pl.cdiv(M, tm),),
        in_specs=[pl.BlockSpec((tm, Cin), lambda i: (i, 0)),
                  pl.BlockSpec((Cin, Cout), lambda i: (0, 0)),
                  pl.BlockSpec((1, Cout), lambda i: (0, 0))],
        out_specs=pl.BlockSpec((tm, Cout), lambda i: (i, 0)),
        compiler_params=pltpu.CompilerParams(
            dimension_semantics=("parallel",)),
    )(x2, w, b.reshape(1, Cout))
    return out.reshape(N, H, W, Cout)


def fcn_head(s3f, s2f, w1p, b1p, w2p, b2p, G3, G2):
    """One fused pallas_call for the whole head; grid is parallel over batch."""
    N, P3, C3 = s3f.shape
    _, P2, C2 = s2f.shape
    HW0 = G3.shape[0]
    return pl.pallas_call(
        _fcn_head_kernel,
        out_shape=jax.ShapeDtypeStruct((N, HW0, CP), jnp.float32),
        grid=(N,),
        in_specs=[pl.BlockSpec((1, P3, C3), lambda b: (b, 0, 0)),
                  pl.BlockSpec((1, P2, C2), lambda b: (b, 0, 0)),
                  pl.BlockSpec((C3, CP), lambda b: (0, 0)),
                  pl.BlockSpec((1, CP), lambda b: (0, 0)),
                  pl.BlockSpec((C2, CP), lambda b: (0, 0)),
                  pl.BlockSpec((1, CP), lambda b: (0, 0)),
                  pl.BlockSpec((HW0, P3), lambda b: (0, 0)),
                  pl.BlockSpec((HW0, P2), lambda b: (0, 0))],
        out_specs=pl.BlockSpec((1, HW0, CP), lambda b: (b, 0, 0)),
        compiler_params=pltpu.CompilerParams(
            dimension_semantics=("parallel",),
            vmem_limit_bytes=40 * 1024 * 1024),
    )(s3f, s2f, w1p, b1p, w2p, b2p, G3, G2)


# -------------------- bilinear ConvTranspose2d (collapsed) ------------------

def _bilinear_1d(k):
    factor = (k + 1) // 2
    center = factor - 1 if k % 2 == 1 else factor - 0.5
    return 1.0 - np.abs(np.arange(k, dtype=np.float64) - center) / factor


def _upsample_matrix(n_in, k, s, p):
    """U such that ConvTranspose1d(bilinear kernel, stride=s, padding=p)(x) == U @ x."""
    f = _bilinear_1d(k)
    n_out = (n_in - 1) * s - 2 * p + k
    U = np.zeros((n_out, n_in), dtype=np.float64)
    for o in range(n_out):
        for i in range(n_in):
            kk = o + p - i * s
            if 0 <= kk < k:
                U[o, i] += f[kk]
    return U


@functools.lru_cache(maxsize=None)
def _combined_upsample_mats(h3, w3, h2, w2):
    """Collapse upsample_2x -> upsample_4x -> upsample_8x into two matrices."""
    Uh2, Uw2 = _upsample_matrix(h3, 4, 2, 1), _upsample_matrix(w3, 4, 2, 1)
    Uh4, Uw4 = _upsample_matrix(h2, 4, 2, 1), _upsample_matrix(w2, 4, 2, 1)
    Uh8 = _upsample_matrix(Uh4.shape[0], 16, 8, 4)
    Uw8 = _upsample_matrix(Uw4.shape[0], 16, 8, 4)
    Vh, Vw = Uh8 @ Uh4, Uw8 @ Uw4          # /16 grid -> full resolution
    Wh, Ww = Vh @ Uh2, Vw @ Uw2            # /32 grid -> full resolution
    G2 = np.kron(Vh, Vw).astype(np.float32)   # [H0*W0, h2*w2]
    G3 = np.kron(Wh, Ww).astype(np.float32)   # [H0*W0, h3*w3]
    return jnp.asarray(G3), jnp.asarray(G2)


# -------------------------------- FCN forward -------------------------------

def init_params(key):
    ks = jax.random.split(key, 12)
    n = lambda k, sh: 0.05 * jax.random.normal(k, sh, jnp.float32)
    return dict(
        # emulated backbone stages (see TODO above)
        w_s1=n(ks[0], (3, 128)),   b_s1=n(ks[1], (128,)),
        w_s2=n(ks[2], (128, 256)), b_s2=n(ks[3], (256,)),
        w_s3=n(ks[4], (256, 512)), b_s3=n(ks[5], (512,)),
        # FCN head score convs (PyTorch-shaped, 6 classes)
        w_sc1=n(ks[6], (512, NUM_CLASSES)),  b_sc1=n(ks[7], (NUM_CLASSES,)),
        w_sc2=n(ks[8], (256, NUM_CLASSES)),  b_sc2=n(ks[9], (NUM_CLASSES,)),
        w_sc3=n(ks[10], (128, NUM_CLASSES)), b_sc3=n(ks[11], (NUM_CLASSES,)),
    )


def _pad_classes(w, b):
    cin = w.shape[0]
    wp = jnp.zeros((cin, CP), jnp.float32).at[:, :NUM_CLASSES].set(w)
    bp = jnp.zeros((1, CP), jnp.float32).at[:, :NUM_CLASSES].set(b)
    return wp, bp


@jax.jit
def fcn_forward(x_nchw, p):
    N, _, H, W = x_nchw.shape
    x = jnp.transpose(x_nchw, (0, 2, 3, 1))            # NCHW -> NHWC (channels on lanes)

    # --- emulated pretrained backbone (strided 1x1 conv + ReLU) ---
    # TODO(synk): strided subsampling kept as XLA slices (tiny, under jit);
    # could be folded into the conv BlockSpec index_map for real backbones.
    s1 = conv1x1_relu(x[:, ::8, ::8, :], p["w_s1"], p["b_s1"])     # [N, H/8,  W/8,  128]
    s2f = conv1x1_relu(s1[:, ::2, ::2, :], p["w_s2"], p["b_s2"])   # [N, H/16, W/16, 256]
    s3f = conv1x1_relu(s2f[:, ::2, ::2, :], p["w_s3"], p["b_s3"])  # [N, H/32, W/32, 512]
    # NB: scores3(s1) in the reference forward is dead code (its result is never
    # used in the returned value), so it is omitted (jit would DCE it anyway).

    # --- fused FCN head (scores1/2, skip add, all three bilinear upsamples) ---
    H3, W3 = s3f.shape[1], s3f.shape[2]
    H2, W2 = s2f.shape[1], s2f.shape[2]
    G3, G2 = _combined_upsample_mats(H3, W3, H2, W2)
    w1p, b1p = _pad_classes(p["w_sc1"], p["b_sc1"])
    w2p, b2p = _pad_classes(p["w_sc2"], p["b_sc2"])
    out = fcn_head(s3f.reshape(N, H3 * W3, 512),
                   s2f.reshape(N, H2 * W2, 256),
                   w1p, b1p, w2p, b2p, G3, G2)          # [N, H*W, CP]
    out = out[:, :, :NUM_CLASSES].reshape(N, H, W, NUM_CLASSES)
    return jnp.transpose(out, (0, 3, 1, 2))             # NHWC -> NCHW


if __name__ == "__main__":
    key = jax.random.PRNGKey(0)
    kx, kp = jax.random.split(key)
    x = jax.random.normal(kx, (2, 3, 64, 64), jnp.float32)   # NCHW, like the PyTorch module
    params = init_params(kp)

    out = jax.block_until_ready(fcn_forward(x, params))

    assert out.shape == (2, NUM_CLASSES, 64, 64), out.shape
    assert out.dtype == jnp.float32
    assert bool(jnp.all(jnp.isfinite(out)))
    print("KERNEL_OK")
</pallas_src>

<mosaic_0001>
module attributes {stable_mosaic.version = 11 : i64} {
  func.func @_conv1x1_relu_kernel(%arg0: i32, %arg1: memref<128x3xf32, #tpu.memory_space<vmem>>, %arg2: memref<3x128xf32, #tpu.memory_space<vmem>>, %arg3: memref<1x128xf32, #tpu.memory_space<vmem>>, %arg4: memref<128x128xf32, #tpu.memory_space<vmem>>) attributes {dimension_semantics = [#tpu.dimension_semantics<parallel>], iteration_bounds = array<i64: 1>, scalar_prefetch = 0 : i64, scratch_operands = 0 : i64, tpu.core_type = #tpu.core_type<tc>, window_params = [{transform_indices = @transform_0, window_bounds = array<i64: 128, 3>}, {pipeline_mode = #tpu.pipeline_mode<synchronous>, transform_indices = @transform_1, window_bounds = array<i64: 3, 128>}, {pipeline_mode = #tpu.pipeline_mode<synchronous>, transform_indices = @transform_2, window_bounds = array<i64: 1, 128>}, {transform_indices = @transform_3, window_bounds = array<i64: 128, 128>}]} {
    %c0 = arith.constant 0 : index
    %c0_0 = arith.constant 0 : index
    %0 = vector.load %arg1[%c0, %c0_0] : memref<128x3xf32, #tpu.memory_space<vmem>>, vector<128x3xf32>
    %c0_1 = arith.constant 0 : index
    %c0_2 = arith.constant 0 : index
    %1 = vector.load %arg2[%c0_1, %c0_2] : memref<3x128xf32, #tpu.memory_space<vmem>>, vector<3x128xf32>
    %cst = arith.constant dense<0.000000e+00> : vector<128x128xf32>
    %2 = tpu.matmul %0, %1, %cst {dimension_numbers = #tpu.dot_dimension_numbers<[1], [0], [0], [1], [0, 0, 1, 1], [], []>} : vector<128x3xf32>, vector<3x128xf32>, vector<128x128xf32> -> vector<128x128xf32>
    %c0_3 = arith.constant 0 : index
    %c0_4 = arith.constant 0 : index
    %3 = vector.load %arg3[%c0_3, %c0_4] : memref<1x128xf32, #tpu.memory_space<vmem>>, vector<1x128xf32>
    %4 = vector.broadcast %3 : vector<1x128xf32> to vector<128x128xf32>
    %5 = arith.addf %2, %4 : vector<128x128xf32>
    %cst_5 = arith.constant 0.000000e+00 : f32
    %6 = vector.broadcast %cst_5 : f32 to vector<128x128xf32>
    %7 = arith.maximumf %5, %6 : vector<128x128xf32>
    %c0_6 = arith.constant 0 : index
    %c0_7 = arith.constant 0 : index
    %8 = vector.load %arg4[%c0_6, %c0_7] : memref<128x128xf32, #tpu.memory_space<vmem>>, vector<128x128xf32>
    tpu.vector_store %arg4[%c0_6, %c0_7], %7 {strides = array<i32>} : memref<128x128xf32, #tpu.memory_space<vmem>>, vector<128x128xf32>,
    return
  }
  func.func @transform_0(%arg0: i32) -> (i32, i32) {
    %c0_i32 = arith.constant 0 : i32
    %c0_i32_0 = arith.constant 0 : i32
    return %arg0, %c0_i32 : i32, i32
  }
  func.func @transform_1(%arg0: i32) -> (i32, i32) {
    %c0_i32 = arith.constant 0 : i32
    %c0_i32_0 = arith.constant 0 : i32
    %c0_i32_1 = arith.constant 0 : i32
    return %c0_i32, %c0_i32_0 : i32, i32
  }
  func.func @transform_2(%arg0: i32) -> (i32, i32) {
    %c0_i32 = arith.constant 0 : i32
    %c0_i32_0 = arith.constant 0 : i32
    %c0_i32_1 = arith.constant 0 : i32
    return %c0_i32, %c0_i32_0 : i32, i32
  }
  func.func @transform_3(%arg0: i32) -> (i32, i32) {
    %c0_i32 = arith.constant 0 : i32
    %c0_i32_0 = arith.constant 0 : i32
    return %arg0, %c0_i32 : i32, i32
  }
}

module attributes {stable_mosaic.version = 11 : i64} {
  func.func @_conv1x1_relu_kernel(%arg0: i32, %arg1: memref<8x256xf32, #tpu.memory_space<vmem>>, %arg2: memref<256x512xf32, #tpu.memory_space<vmem>>, %arg3: memref<1x512xf32, #tpu.memory_space<vmem>>, %arg4: memref<8x512xf32, #tpu.memory_space<vmem>>) attributes {dimension_semantics = [#tpu.dimension_semantics<parallel>], iteration_bounds = array<i64: 1>, scalar_prefetch = 0 : i64, scratch_operands = 0 : i64, tpu.core_type = #tpu.core_type<tc>, window_params = [{transform_indices = @transform_0, window_bounds = array<i64: 8, 256>}, {pipeline_mode = #tpu.pipeline_mode<synchronous>, transform_indices = @transform_1, window_bounds = array<i64: 256, 512>}, {pipeline_mode = #tpu.pipeline_mode<synchronous>, transform_indices = @transform_2, window_bounds = array<i64: 1, 512>}, {transform_indices = @transform_3, window_bounds = array<i64: 8, 512>}]} {
    %c0 = arith.constant 0 : index
    %c0_0 = arith.constant 0 : index
    %0 = vector.load %arg1[%c0, %c0_0] : memref<8x256xf32, #tpu.memory_space<vmem>>, vector<8x256xf32>
    %c0_1 = arith.constant 0 : index
    %c0_2 = arith.constant 0 : index
    %1 = vector.load %arg2[%c0_1, %c0_2] : memref<256x512xf32, #tpu.memory_space<vmem>>, vector<256x512xf32>
    %cst = arith.constant dense<0.000000e+00> : vector<8x512xf32>
    %2 = tpu.matmul %0, %1, %cst {dimension_numbers = #tpu.dot_dimension_numbers<[1], [0], [0], [1], [0, 0, 1, 1], [], []>} : vector<8x256xf32>, vector<256x512xf32>, vector<8x512xf32> -> vector<8x512xf32>
    %c0_3 = arith.constant 0 : index
    %c0_4 = arith.constant 0 : index
    %3 = vector.load %arg3[%c0_3, %c0_4] : memref<1x512xf32, #tpu.memory_space<vmem>>, vector<1x512xf32>
    %4 = vector.broadcast %3 : vector<1x512xf32> to vector<8x512xf32>
    %5 = arith.addf %2, %4 : vector<8x512xf32>
    %cst_5 = arith.constant 0.000000e+00 : f32
    %6 = vector.broadcast %cst_5 : f32 to vector<8x512xf32>
    %7 = arith.maximumf %5, %6 : vector<8x512xf32>
    %c0_6 = arith.constant 0 : index
    %c0_7 = arith.constant 0 : index
    %8 = vector.load %arg4[%c0_6, %c0_7] : memref<8x512xf32, #tpu.memory_space<vmem>>, vector<8x512xf32>
    tpu.vector_store %arg4[%c0_6, %c0_7], %7 {strides = array<i32>} : memref<8x512xf32, #tpu.memory_space<vmem>>, vector<8x512xf32>,
    return
  }
  func.func @transform_0(%arg0: i32) -> (i32, i32) {
    %c0_i32 = arith.constant 0 : i32
    %c0_i32_0 = arith.constant 0 : i32
    return %arg0, %c0_i32 : i32, i32
  }
  func.func @transform_1(%arg0: i32) -> (i32, i32) {
    %c0_i32 = arith.constant 0 : i32
    %c0_i32_0 = arith.constant 0 : i32
    %c0_i32_1 = arith.constant 0 : i32
    return %c0_i32, %c0_i32_0 : i32, i32
  }
  func.func @transform_2(%arg0: i32) -> (i32, i32) {
    %c0_i32 = arith.constant 0 : i32
    %c0_i32_0 = arith.constant 0 : i32
    %c0_i32_1 = arith.constant 0 : i32
    return %c0_i32, %c0_i32_0 : i32, i32
  }
  func.func @transform_3(%arg0: i32) -> (i32, i32) {
    %c0_i32 = arith.constant 0 : i32
    %c0_i32_0 = arith.constant 0 : i32
    return %arg0, %c0_i32 : i32, i32
  }
}

module attributes {stable_mosaic.version = 11 : i64} {
  func.func @_conv1x1_relu_kernel(%arg0: i32, %arg1: memref<32x128xf32, #tpu.memory_space<vmem>>, %arg2: memref<128x256xf32, #tpu.memory_space<vmem>>, %arg3: memref<1x256xf32, #tpu.memory_space<vmem>>, %arg4: memref<32x256xf32, #tpu.memory_space<vmem>>) attributes {dimension_semantics = [#tpu.dimension_semantics<parallel>], iteration_bounds = array<i64: 1>, scalar_prefetch = 0 : i64, scratch_operands = 0 : i64, tpu.core_type = #tpu.core_type<tc>, window_params = [{transform_indices = @transform_0, window_bounds = array<i64: 32, 128>}, {pipeline_mode = #tpu.pipeline_mode<synchronous>, transform_indices = @transform_1, window_bounds = array<i64: 128, 256>}, {pipeline_mode = #tpu.pipeline_mode<synchronous>, transform_indices = @transform_2, window_bounds = array<i64: 1, 256>}, {transform_indices = @transform_3, window_bounds = array<i64: 32, 256>}]} {
    %c0 = arith.constant 0 : index
    %c0_0 = arith.constant 0 : index
    %0 = vector.load %arg1[%c0, %c0_0] : memref<32x128xf32, #tpu.memory_space<vmem>>, vector<32x128xf32>
    %c0_1 = arith.constant 0 : index
    %c0_2 = arith.constant 0 : index
    %1 = vector.load %arg2[%c0_1, %c0_2] : memref<128x256xf32, #tpu.memory_space<vmem>>, vector<128x256xf32>
    %cst = arith.constant dense<0.000000e+00> : vector<32x256xf32>
    %2 = tpu.matmul %0, %1, %cst {dimension_numbers = #tpu.dot_dimension_numbers<[1], [0], [0], [1], [0, 0, 1, 1], [], []>} : vector<32x128xf32>, vector<128x256xf32>, vector<32x256xf32> -> vector<32x256xf32>
    %c0_3 = arith.constant 0 : index
    %c0_4 = arith.constant 0 : index
    %3 = vector.load %arg3[%c0_3, %c0_4] : memref<1x256xf32, #tpu.memory_space<vmem>>, vector<1x256xf32>
    %4 = vector.broadcast %3 : vector<1x256xf32> to vector<32x256xf32>
    %5 = arith.addf %2, %4 : vector<32x256xf32>
    %cst_5 = arith.constant 0.000000e+00 : f32
    %6 = vector.broadcast %cst_5 : f32 to vector<32x256xf32>
    %7 = arith.maximumf %5, %6 : vector<32x256xf32>
    %c0_6 = arith.constant 0 : index
    %c0_7 = arith.constant 0 : index
    %8 = vector.load %arg4[%c0_6, %c0_7] : memref<32x256xf32, #tpu.memory_space<vmem>>, vector<32x256xf32>
    tpu.vector_store %arg4[%c0_6, %c0_7], %7 {strides = array<i32>} : memref<32x256xf32, #tpu.memory_space<vmem>>, vector<32x256xf32>,
    return
  }
  func.func @transform_0(%arg0: i32) -> (i32, i32) {
    %c0_i32 = arith.constant 0 : i32
    %c0_i32_0 = arith.constant 0 : i32
    return %arg0, %c0_i32 : i32, i32
  }
  func.func @transform_1(%arg0: i32) -> (i32, i32) {
    %c0_i32 = arith.constant 0 : i32
    %c0_i32_0 = arith.constant 0 : i32
    %c0_i32_1 = arith.constant 0 : i32
    return %c0_i32, %c0_i32_0 : i32, i32
  }
  func.func @transform_2(%arg0: i32) -> (i32, i32) {
    %c0_i32 = arith.constant 0 : i32
    %c0_i32_0 = arith.constant 0 : i32
    %c0_i32_1 = arith.constant 0 : i32
    return %c0_i32, %c0_i32_0 : i32, i32
  }
  func.func @transform_3(%arg0: i32) -> (i32, i32) {
    %c0_i32 = arith.constant 0 : i32
    %c0_i32_0 = arith.constant 0 : i32
    return %arg0, %c0_i32 : i32, i32
  }
}

module attributes {stable_mosaic.version = 11 : i64} {
  func.func @_fcn_head_kernel(%arg0: i32, %arg1: memref<1x4x512xf32, #tpu.memory_space<vmem>>, %arg2: memref<1x16x256xf32, #tpu.memory_space<vmem>>, %arg3: memref<512x128xf32, #tpu.memory_space<vmem>>, %arg4: memref<1x128xf32, #tpu.memory_space<vmem>>, %arg5: memref<256x128xf32, #tpu.memory_space<vmem>>, %arg6: memref<1x128xf32, #tpu.memory_space<vmem>>, %arg7: memref<4096x4xf32, #tpu.memory_space<vmem>>, %arg8: memref<4096x16xf32, #tpu.memory_space<vmem>>, %arg9: memref<1x4096x128xf32, #tpu.memory_space<vmem>>) attributes {dimension_semantics = [#tpu.dimension_semantics<parallel>], iteration_bounds = array<i64: 2>, scalar_prefetch = 0 : i64, scratch_operands = 0 : i64, tpu.core_type = #tpu.core_type<tc>, window_params = [{transform_indices = @transform_0, window_bounds = array<i64: 1, 4, 512>}, {transform_indices = @transform_1, window_bounds = array<i64: 1, 16, 256>}, {pipeline_mode = #tpu.pipeline_mode<synchronous>, transform_indices = @transform_2, window_bounds = array<i64: 512, 128>}, {pipeline_mode = #tpu.pipeline_mode<synchronous>, transform_indices = @transform_3, window_bounds = array<i64: 1, 128>}, {pipeline_mode = #tpu.pipeline_mode<synchronous>, transform_indices = @transform_4, window_bounds = array<i64: 256, 128>}, {pipeline_mode = #tpu.pipeline_mode<synchronous>, transform_indices = @transform_5, window_bounds = array<i64: 1, 128>}, {pipeline_mode = #tpu.pipeline_mode<synchronous>, transform_indices = @transform_6, window_bounds = array<i64: 4096, 4>}, {pipeline_mode = #tpu.pipeline_mode<synchronous>, transform_indices = @transform_7, window_bounds = array<i64: 4096, 16>}, {transform_indices = @transform_8, window_bounds = array<i64: 1, 4096, 128>}]} {
    %c0 = arith.constant 0 : index
    %c0_0 = arith.constant 0 : index
    %c0_1 = arith.constant 0 : index
    %0 = vector.load %arg1[%c0, %c0_0, %c0_1] : memref<1x4x512xf32, #tpu.memory_space<vmem>>, vector<1x4x512xf32>
    %1 = vector.shape_cast %0 : vector<1x4x512xf32> to vector<4x512xf32>
    %c0_2 = arith.constant 0 : index
    %c0_3 = arith.constant 0 : index
    %2 = vector.load %arg3[%c0_2, %c0_3] : memref<512x128xf32, #tpu.memory_space<vmem>>, vector<512x128xf32>
    %cst = arith.constant dense<0.000000e+00> : vector<4x128xf32>
    %3 = tpu.matmul %1, %2, %cst {dimension_numbers = #tpu.dot_dimension_numbers<[1], [0], [0], [1], [0, 0, 1, 1], [], []>} : vector<4x512xf32>, vector<512x128xf32>, vector<4x128xf32> -> vector<4x128xf32>
    %c0_4 = arith.constant 0 : index
    %c0_5 = arith.constant 0 : index
    %4 = vector.load %arg4[%c0_4, %c0_5] : memref<1x128xf32, #tpu.memory_space<vmem>>, vector<1x128xf32>
    %5 = vector.broadcast %4 : vector<1x128xf32> to vector<4x128xf32>
    %6 = arith.addf %3, %5 : vector<4x128xf32>
    %c0_6 = arith.constant 0 : index
    %c0_7 = arith.constant 0 : index
    %c0_8 = arith.constant 0 : index
    %7 = vector.load %arg2[%c0_6, %c0_7, %c0_8] : memref<1x16x256xf32, #tpu.memory_space<vmem>>, vector<1x16x256xf32>
    %8 = vector.shape_cast %7 : vector<1x16x256xf32> to vector<16x256xf32>
    %c0_9 = arith.constant 0 : index
    %c0_10 = arith.constant 0 : index
    %9 = vector.load %arg5[%c0_9, %c0_10] : memref<256x128xf32, #tpu.memory_space<vmem>>, vector<256x128xf32>
    %cst_11 = arith.constant dense<0.000000e+00> : vector<16x128xf32>
    %10 = tpu.matmul %8, %9, %cst_11 {dimension_numbers = #tpu.dot_dimension_numbers<[1], [0], [0], [1], [0, 0, 1, 1], [], []>} : vector<16x256xf32>, vector<256x128xf32>, vector<16x128xf32> -> vector<16x128xf32>
    %c0_12 = arith.constant 0 : index
    %c0_13 = arith.constant 0 : index
    %11 = vector.load %arg6[%c0_12, %c0_13] : memref<1x128xf32, #tpu.memory_space<vmem>>, vector<1x128xf32>
    %12 = vector.broadcast %11 : vector<1x128xf32> to vector<16x128xf32>
    %13 = arith.addf %10, %12 : vector<16x128xf32>
    %c0_14 = arith.constant 0 : index
    %c0_15 = arith.constant 0 : index
    %14 = vector.load %arg8[%c0_14, %c0_15] : memref<4096x16xf32, #tpu.memory_space<vmem>>, vector<4096x16xf32>
    %cst_16 = arith.constant dense<0.000000e+00> : vector<4096x128xf32>
    %15 = tpu.matmul %14, %13, %cst_16 {dimension_numbers = #tpu.dot_dimension_numbers<[1], [0], [0], [1], [0, 0, 1, 1], [], []>} : vector<4096x16xf32>, vector<16x128xf32>, vector<4096x128xf32> -> vector<4096x128xf32>
    %c0_17 = arith.constant 0 : index
    %c0_18 = arith.constant 0 : index
    %16 = vector.load %arg7[%c0_17, %c0_18] : memref<4096x4xf32, #tpu.memory_space<vmem>>, vector<4096x4xf32>
    %cst_19 = arith.constant dense<0.000000e+00> : vector<4096x128xf32>
    %17 = tpu.matmul %16, %6, %cst_19 {dimension_numbers = #tpu.dot_dimension_numbers<[1], [0], [0], [1], [0, 0, 1, 1], [], []>} : vector<4096x4xf32>, vector<4x128xf32>, vector<4096x128xf32> -> vector<4096x128xf32>
    %18 = arith.addf %15, %17 : vector<4096x128xf32>
    %c0_20 = arith.constant 0 : index
    %c0_21 = arith.constant 0 : index
    %c0_22 = arith.constant 0 : index
    %19 = vector.load %arg9[%c0_20, %c0_21, %c0_22] : memref<1x4096x128xf32, #tpu.memory_space<vmem>>, vector<1x4096x128xf32>
    %20 = vector.shape_cast %19 : vector<1x4096x128xf32> to vector<4096x128xf32>
    %21 = vector.shape_cast %18 : vector<4096x128xf32> to vector<1x4096x128xf32>
    tpu.vector_store %arg9[%c0_20, %c0_21, %c0_22], %21 {strides = array<i32>} : memref<1x4096x128xf32, #tpu.memory_space<vmem>>, vector<1x4096x128xf32>,
    return
  }
  func.func @transform_0(%arg0: i32) -> (i32, i32, i32) {
    %c0_i32 = arith.constant 0 : i32
    %c0_i32_0 = arith.constant 0 : i32
    %c0_i32_1 = arith.constant 0 : i32
    return %arg0, %c0_i32, %c0_i32_0 : i32, i32, i32
  }
  func.func @transform_1(%arg0: i32) -> (i32, i32, i32) {
    %c0_i32 = arith.constant 0 : i32
    %c0_i32_0 = arith.constant 0 : i32
    %c0_i32_1 = arith.constant 0 : i32
    return %arg0, %c0_i32, %c0_i32_0 : i32, i32, i32
  }
  func.func @transform_2(%arg0: i32) -> (i32, i32) {
    %c0_i32 = arith.constant 0 : i32
    %c0_i32_0 = arith.constant 0 : i32
    %c0_i32_1 = arith.constant 0 : i32
    return %c0_i32, %c0_i32_0 : i32, i32
  }
  func.func @transform_3(%arg0: i32) -> (i32, i32) {
    %c0_i32 = arith.constant 0 : i32
    %c0_i32_0 = arith.constant 0 : i32
    %c0_i32_1 = arith.constant 0 : i32
    return %c0_i32, %c0_i32_0 : i32, i32
  }
  func.func @transform_4(%arg0: i32) -> (i32, i32) {
    %c0_i32 = arith.constant 0 : i32
    %c0_i32_0 = arith.constant 0 : i32
    %c0_i32_1 = arith.constant 0 : i32
    return %c0_i32, %c0_i32_0 : i32, i32
  }
  func.func @transform_5(%arg0: i32) -> (i32, i32) {
    %c0_i32 = arith.constant 0 : i32
    %c0_i32_0 = arith.constant 0 : i32
    %c0_i32_1 = arith.constant 0 : i32
    return %c0_i32, %c0_i32_0 : i32, i32
  }
  func.func @transform_6(%arg0: i32) -> (i32, i32) {
    %c0_i32 = arith.constant 0 : i32
    %c0_i32_0 = arith.constant 0 : i32
    %c0_i32_1 = arith.constant 0 : i32
    return %c0_i32, %c0_i32_0 : i32, i32
  }
  func.func @transform_7(%arg0: i32) -> (i32, i32) {
    %c0_i32 = arith.constant 0 : i32
    %c0_i32_0 = arith.constant 0 : i32
    %c0_i32_1 = arith.constant 0 : i32
    return %c0_i32, %c0_i32_0 : i32, i32
  }
  func.func @transform_8(%arg0: i32) -> (i32, i32, i32) {
    %c0_i32 = arith.constant 0 : i32
    %c0_i32_0 = arith.constant 0 : i32
    %c0_i32_1 = arith.constant 0 : i32
    return %arg0, %c0_i32, %c0_i32_0 : i32, i32, i32
  }
}

</mosaic_0001>

<llo_original>
// kernel: fcn_forward.5
$region0: #{fcn_forward.5}
  #allocation0 [shape = 'u32[]', space=smem, size = 0x4, offset = 0x4, fixed_abs, tag = 'smem constant byte address 0x4 - core index']
  #allocation1 [shape = 'u32[144,128]{1,0:T(1,128)}', space=vmem, size = 0x12000, scoped, tag = 'internal scratch']
  %s0 = inlined_call_operand.vmem [shape: f32[32,128], index: 0, kind: input, shape index: {}]
  %s1 = inlined_call_operand.hbm [shape: f32[128,256], index: 1, kind: input, shape index: {}]
  %s2 = inlined_call_operand.hbm [shape: f32[1,256], index: 2, kind: input, shape index: {}]
  %s3 = inlined_call_operand.vmem [shape: f32[32,256], index: 3, kind: output, shape index: {}]
  %s4 = sld [smem:[#allocation0]]
  $region30: #{fcn_forward.5} parent=0
    _
  %s6 = ssub.s32 1, %s4
  %s7 = scalar_select 0, %s6, %s4
  $region1: #{fcn_forward.5} parent=0
    #allocation2 [shape = 'u8[131072]{0}', space=vmem, size = 0x20000, scoped, tag = 'input window, operand 1, single buffered']
    #allocation3 [shape = 's32[1]{0}', space=sflag, size = 0x4, scoped, tag = 'scoped memory for fcn_forward.5']
    #allocation4 [shape = 'u8[1024]{0}', space=vmem, size = 0x400, scoped, tag = 'input window, operand 2, single buffered']
    #allocation5 [shape = 's32[1]{0}', space=sflag, size = 0x4, scoped, tag = 'scoped memory for fcn_forward.5']
    %8 = vsyncpa [#allocation3], 0
    %9 = vsyncpa [#allocation5], 0
    // Predicated region
    $region2: #{fcn_forward.5} parent=1 // pred_check
      _
    $region3: #{fcn_forward.5} parent=1 // pred_check_branch
      %11 = sbr.rel (0) target = $region5
    $region4: #{fcn_forward.5} parent=1 // pred_region
      _
    $region5: #{fcn_forward.5} parent=1 // pred_fallthru
      _
    // Predicated region
    $region6: #{fcn_forward.5} parent=1 // pred_check
      _
    $region7: #{fcn_forward.5} parent=1 // pred_check_branch
      %13 = sbr.rel (0) target = $region9
    $region8: #{fcn_forward.5} parent=1 // pred_region
      %s15 = ssub.s32 4096, 4096
      %16 = vsyncadd [#allocation3], %s15
      %s17 = sshll.u32 [#allocation2], 4
      %s18 = int_to_ptr.vmem [resolvable:$true] %s17
      %23 = dma.hbm_to_vmem [thread:$0]  %s1, 4096, %s18, [#allocation3], 256, 256, 16
    $region9: #{fcn_forward.5} parent=1 // pred_fallthru
      _
    // Predicated region
    $region10: #{fcn_forward.5} parent=1 // pred_check
      _
    $region11: #{fcn_forward.5} parent=1 // pred_check_branch
      %25 = sbr.rel (0) target = $region13
    $region12: #{fcn_forward.5} parent=1 // pred_region
      %s27 = ssub.s32 32, 32
      %28 = vsyncadd [#allocation5], %s27
      %s30 = sshll.u32 [#allocation4], 4
      %s31 = int_to_ptr.vmem [resolvable:$true] %s30
      %33 = dma.hbm_to_vmem [thread:$0]  %s2, 32, %s31, [#allocation5]
    $region13: #{fcn_forward.5} parent=1 // pred_fallthru
      _
    // Predicated region
    $region14: #{fcn_forward.5} parent=1 // pred_check
      _
    $region15: #{fcn_forward.5} parent=1 // pred_check_branch
      %35 = sbr.rel (0) target = $region17
    $region16: #{fcn_forward.5} parent=1 // pred_region
      %36 = dma.done [#allocation3], 4096
    $region17: #{fcn_forward.5} parent=1 // pred_fallthru
      _
    // Predicated region
    $region18: #{fcn_forward.5} parent=1 // pred_check
      _
    $region19: #{fcn_forward.5} parent=1 // pred_check_branch
      %38 = sbr.rel (0) target = $region21
    $region20: #{fcn_forward.5} parent=1 // pred_region
      %39 = dma.done [#allocation5], 32
    $region21: #{fcn_forward.5} parent=1 // pred_fallthru
      _
    %v40 = vld [vmem:[%s0] sm:$0xff]
    %v41 = vld [vmem:[%s0 + $0x8] sm:$0xff]
    %v42 = vld [vmem:[%s0 + $0x10] sm:$0xff]
    %v43 = vld [vmem:[%s0 + $0x18] sm:$0xff]
    %v44 = vld [vmem:[#allocation2] sm:$0xff]
    %v45 = vld [vmem:[#allocation2 + $0x8] sm:$0xff]
    %v46 = vld [vmem:[#allocation2 + $0x10] sm:$0xff]
    %v47 = vld [vmem:[#allocation2 + $0x18] sm:$0xff]
    %v48 = vld [vmem:[#allocation2 + $0x20] sm:$0xff]
    %v49 = vld [vmem:[#allocation2 + $0x28] sm:$0xff]
    %v50 = vld [vmem:[#allocation2 + $0x30] sm:$0xff]
    %v51 = vld [vmem:[#allocation2 + $0x38] sm:$0xff]
    %v52 = vld [vmem:[#allocation2 + $0x40] sm:$0xff]
    %v53 = vld [vmem:[#allocation2 + $0x48] sm:$0xff]
    %v54 = vld [vmem:[#allocation2 + $0x50] sm:$0xff]
    %v55 = vld [vmem:[#allocation2 + $0x58] sm:$0xff]
    %v56 = vld [vmem:[#allocation2 + $0x60] sm:$0xff]
    %v57 = vld [vmem:[#allocation2 + $0x68] sm:$0xff]
    %v58 = vld [vmem:[#allocation2 + $0x70] sm:$0xff]
    %v59 = vld [vmem:[#allocation2 + $0x78] sm:$0xff]
    %v60 = vld [vmem:[#allocation2 + $0x80] sm:$0xff]
    %v61 = vld [vmem:[#allocation2 + $0x88] sm:$0xff]
    %v62 = vld [vmem:[#allocation2 + $0x90] sm:$0xff]
    %v63 = vld [vmem:[#allocation2 + $0x98] sm:$0xff]
    %v64 = vld [vmem:[#allocation2 + $0xa0] sm:$0xff]
    %v65 = vld [vmem:[#allocation2 + $0xa8] sm:$0xff]
    %v66 = vld [vmem:[#allocation2 + $0xb0] sm:$0xff]
    %v67 = vld [vmem:[#allocation2 + $0xb8] sm:$0xff]
    %v68 = vld [vmem:[#allocation2 + $0xc0] sm:$0xff]
    %v69 = vld [vmem:[#allocation2 + $0xc8] sm:$0xff]
    %v70 = vld [vmem:[#allocation2 + $0xd0] sm:$0xff]
    %v71 = vld [vmem:[#allocation2 + $0xd8] sm:$0xff]
    %v72 = vld [vmem:[#allocation2 + $0xe0] sm:$0xff]
    %v73 = vld [vmem:[#allocation2 + $0xe8] sm:$0xff]
    %v74 = vld [vmem:[#allocation2 + $0xf0] sm:$0xff]
    %v75 = vld [vmem:[#allocation2 + $0xf8] sm:$0xff]
    %v76 = vld [vmem:[#allocation4] sm:$0x3]
    %v78 = vlaneseq
    %v79 = vshrl.u32 %v78, 7
    %v80 = vsub.s32 0, %v79
    %v81 = vrot.slane %v76, %v80
    %v82 = vlaneseq
    %v83 = vshrl.u32 %v82, 7
    %v84 = vsub.s32 1, %v83
    %v85 = vrot.slane %v76, %v84
    %88 = vmatprep.subr.mxu0 %v75
    %89 = vmatpush1.msra.mxu0 %v74
    %90 = vmatprep.subr.mxu0 %v73
    %91 = vmatpush1.msra.mxu0 %v72
    %92 = vmatprep.subr.mxu0 %v71
    %93 = vmatpush1.msra.mxu0 %v70
    %94 = vmatprep.subr.mxu0 %v69
    %95 = vmatpush1.msra.mxu0 %v68
    %96 = vmatprep.subr.mxu0 %v67
    %97 = vmatpush1.msra.mxu0 %v66
    %98 = vmatprep.subr.mxu0 %v65
    %99 = vmatpush1.msra.mxu0 %v64
    %100 = vmatprep.subr.mxu0 %v63
    %101 = vmatpush1.msra.mxu0 %v62
    %102 = vmatprep.subr.mxu0 %v61
    %103 = vmatpush1.msra.mxu0 %v60
    %104 = vmatprep.subr.mxu0 %v59
    %105 = vmatpush1.msra.mxu0 %v58
    %106 = vmatprep.subr.mxu0 %v57
    %107 = vmatpush1.msra.mxu0 %v56
    %108 = vmatprep.subr.mxu0 %v55
    %109 = vmatpush1.msra.mxu0 %v54
    %110 = vmatprep.subr.mxu0 %v53
    %111 = vmatpush1.msra.mxu0 %v52
    %112 = vmatprep.subr.mxu0 %v51
    %113 = vmatpush1.msra.mxu0 %v50
    %114 = vmatprep.subr.mxu0 %v49
    %115 = vmatpush1.msra.mxu0 %v48
    %116 = vmatprep.subr.mxu0 %v47
    %117 = vmatpush1.msra.mxu0 %v46
    %118 = vmatprep.subr.mxu0 %v45
    %119 = vmatpush1.msra.mxu0 %v44
    %120 = vmatprep.subr.mxu0 0.0
    %121 = vmatpush2.msra.mxu0 0.0
    %122 = vmatprep.subr.mxu0 0.0
    %123 = vmatpush2.msra.mxu0 0.0
    %124 = vmatprep.subr.mxu0 0.0
    %125 = vmatpush2.msra.mxu0 0.0
    %126 = vmatprep.subr.mxu0 0.0
    %127 = vmatpush2.msra.mxu0 0.0
    %128 = vmatprep.subr.mxu0 0.0
    %129 = vmatpush2.msra.mxu0 0.0
    %130 = vmatprep.subr.mxu0 0.0
    %131 = vmatpush2.msra.mxu0 0.0
    %132 = vmatprep.subr.mxu0 0.0
    %133 = vmatpush2.msra.mxu0 0.0
    %134 = vmatprep.subr.mxu0 0.0
    %135 = vmatpush2.msra.mxu0 0.0
    %136 = vmatprep.subr.mxu0 0.0
    %137 = vmatpush2.msra.mxu0 0.0
    %138 = vmatprep.subr.mxu0 0.0
    %139 = vmatpush2.msra.mxu0 0.0
    %140 = vmatprep.subr.mxu0 0.0
    %141 = vmatpush2.msra.mxu0 0.0
    %142 = vmatprep.subr.mxu0 0.0
    %143 = vmatpush2.msra.mxu0 0.0
    %144 = vmatprep.subr.mxu0 0.0
    %145 = vmatpush2.msra.mxu0 0.0
    %146 = vmatprep.subr.mxu0 0.0
    %147 = vmatpush2.msra.mxu0 0.0
    %148 = vmatprep.subr.mxu0 0.0
    %149 = vmatpush2.msra.mxu0 0.0
    %150 = vmatprep.subr.mxu0 0.0
    %151 = vmatpush2.msra.mxu0 0.0
    %152 = vmatprep.mubr.f32.mxu0 0.0
    %153 = vmatmul.mubr.f32.gmra.mxu0 %v40
    %v154 = vpop.f32.mrf.mxu0
    %v155 = vadd.f32 %v81, %v154
    %v156 = vpop.f32.mrf.mxu0
    %v157 = vadd.f32 %v85, %v156
    %158 = vmatprep.mubr.f32.mxu0 0.0
    %159 = vmatmul.mubr.f32.gmra.mxu0 %v41
    %v160 = vpop.f32.mrf.mxu0
    %v161 = vadd.f32 %v81, %v160
    %v162 = vpop.f32.mrf.mxu0
    %v163 = vadd.f32 %v85, %v162
    %164 = vmatprep.mubr.f32.mxu0 0.0
    %165 = vmatmul.mubr.f32.gmra.mxu0 %v42
    %v166 = vpop.f32.mrf.mxu0
    %v167 = vadd.f32 %v81, %v166
    %v168 = vpop.f32.mrf.mxu0
    %v169 = vadd.f32 %v85, %v168
    %170 = vmatprep.mubr.f32.mxu0 0.0
    %171 = vmatmul.mubr.f32.gmra.mxu0 %v43
    %v172 = vpop.f32.mrf.mxu0
    %v173 = vadd.f32 %v81, %v172
    %v174 = vpop.f32.mrf.mxu0
    %v175 = vadd.f32 %v85, %v174
    %176 = vdwg.mxu0
    %v177 = vmax.f32 %v155, 0.0
    %v178 = vmax.f32 %v157, 0.0
    %v179 = vmax.f32 %v161, 0.0
    %v180 = vmax.f32 %v163, 0.0
    %v181 = vmax.f32 %v167, 0.0
    %v182 = vmax.f32 %v169, 0.0
    %v183 = vmax.f32 %v173, 0.0
    %v184 = vmax.f32 %v175, 0.0
    %185 = vst [vmem:[%s3] sm:$0xff] %v177
    %186 = vst [vmem:[%s3 + $0x8] sm:$0xff] %v178
    %187 = vst [vmem:[%s3 + $0x10] sm:$0xff] %v179
    %188 = vst [vmem:[%s3 + $0x18] sm:$0xff] %v180
    %189 = vst [vmem:[%s3 + $0x20] sm:$0xff] %v181
    %190 = vst [vmem:[%s3 + $0x28] sm:$0xff] %v182
    %191 = vst [vmem:[%s3 + $0x30] sm:$0xff] %v183
    %192 = vst [vmem:[%s3 + $0x38] sm:$0xff] %v184
    // Predicated region
    $region22: #{fcn_forward.5} parent=1 // pred_check
      _
    $region23: #{fcn_forward.5} parent=1 // pred_check_branch
      %194 = sbr.rel (0) target = $region25
    $region24: #{fcn_forward.5} parent=1 // pred_region
      _
    $region25: #{fcn_forward.5} parent=1 // pred_fallthru
      _
    // Predicated region
    $region26: #{fcn_forward.5} parent=1 // pred_check
      _
    $region27: #{fcn_forward.5} parent=1 // pred_check_branch
      %196 = sbr.rel (0) target = $region29
    $region28: #{fcn_forward.5} parent=1 // pred_region
      _
    $region29: #{fcn_forward.5} parent=1 // pred_fallthru
      _
    %197 = vsyncpa [#allocation3], 1
    %198 = vsyncpa [#allocation5], 1

// kernel: fcn_forward.4
$region0: #{fcn_forward.4}
  #allocation0 [shape = 'u32[]', space=smem, size = 0x4, offset = 0x4, fixed_abs, tag = 'smem constant byte address 0x4 - core index']
  #allocation1 [shape = 'u32[144,128]{1,0:T(1,128)}', space=vmem, size = 0x12000, scoped, tag = 'internal scratch']
  %s0 = inlined_call_operand.vmem [shape: f32[128,3], index: 0, kind: input, shape index: {}]
  %s1 = inlined_call_operand.hbm [shape: f32[3,128], index: 1, kind: input, shape index: {}]
  %s2 = inlined_call_operand.hbm [shape: f32[1,128], index: 2, kind: input, shape index: {}]
  %s3 = inlined_call_operand.vmem [shape: f32[128,128], index: 3, kind: output, shape index: {}]
  %s4 = sld [smem:[#allocation0]]
  $region30: #{fcn_forward.4} parent=0
    _
  %s6 = ssub.s32 1, %s4
  %s7 = scalar_select 0, %s6, %s4
  $region1: #{fcn_forward.4} parent=0
    #allocation2 [shape = 'u8[2048]{0}', space=vmem, size = 0x800, scoped, tag = 'input window, operand 1, single buffered']
    #allocation3 [shape = 's32[1]{0}', space=sflag, size = 0x4, scoped, tag = 'scoped memory for fcn_forward.4']
    #allocation4 [shape = 'u8[512]{0}', space=vmem, size = 0x400, scoped, tag = 'input window, operand 2, single buffered']
    #allocation5 [shape = 's32[1]{0}', space=sflag, size = 0x4, scoped, tag = 'scoped memory for fcn_forward.4']
    %8 = vsyncpa [#allocation3], 0
    %9 = vsyncpa [#allocation5], 0
    // Predicated region
    $region2: #{fcn_forward.4} parent=1 // pred_check
      _
    $region3: #{fcn_forward.4} parent=1 // pred_check_branch
      %11 = sbr.rel (0) target = $region5
    $region4: #{fcn_forward.4} parent=1 // pred_region
      _
    $region5: #{fcn_forward.4} parent=1 // pred_fallthru
      _
    // Predicated region
    $region6: #{fcn_forward.4} parent=1 // pred_check
      _
    $region7: #{fcn_forward.4} parent=1 // pred_check_branch
      %13 = sbr.rel (0) target = $region9
    $region8: #{fcn_forward.4} parent=1 // pred_region
      %s15 = ssub.s32 64, 64
      %16 = vsyncadd [#allocation3], %s15
      %s18 = sshll.u32 [#allocation2], 4
      %s19 = int_to_ptr.vmem [resolvable:$true] %s18
      %21 = dma.hbm_to_vmem [thread:$0]  %s1, 64, %s19, [#allocation3]
    $region9: #{fcn_forward.4} parent=1 // pred_fallthru
      _
    // Predicated region
    $region10: #{fcn_forward.4} parent=1 // pred_check
      _
    $region11: #{fcn_forward.4} parent=1 // pred_check_branch
      %23 = sbr.rel (0) target = $region13
    $region12: #{fcn_forward.4} parent=1 // pred_region
      %s25 = ssub.s32 16, 16
      %26 = vsyncadd [#allocation5], %s25
      %s28 = sshll.u32 [#allocation4], 4
      %s29 = int_to_ptr.vmem [resolvable:$true] %s28
      %31 = dma.hbm_to_vmem [thread:$0]  %s2, 16, %s29, [#allocation5]
    $region13: #{fcn_forward.4} parent=1 // pred_fallthru
      _
    // Predicated region
    $region14: #{fcn_forward.4} parent=1 // pred_check
      _
    $region15: #{fcn_forward.4} parent=1 // pred_check_branch
      %33 = sbr.rel (0) target = $region17
    $region16: #{fcn_forward.4} parent=1 // pred_region
      %34 = dma.done [#allocation3], 64
    $region17: #{fcn_forward.4} parent=1 // pred_fallthru
      _
    // Predicated region
    $region18: #{fcn_forward.4} parent=1 // pred_check
      _
    $region19: #{fcn_forward.4} parent=1 // pred_check_branch
      %36 = sbr.rel (0) target = $region21
    $region20: #{fcn_forward.4} parent=1 // pred_region
      %37 = dma.done [#allocation5], 16
    $region21: #{fcn_forward.4} parent=1 // pred_fallthru
      _
    %v38 = vld [vmem:[%s0] sm:$0xff]
    %v39 = vld [vmem:[%s0 + $0x8] sm:$0xff]
    %v40 = vld [vmem:[%s0 + $0x10] sm:$0xff]
    %v41 = vld [vmem:[%s0 + $0x18] sm:$0xff]
    %v42 = vld [vmem:[%s0 + $0x20] sm:$0xff]
    %v43 = vld [vmem:[%s0 + $0x28] sm:$0xff]
    %v44 = vld [vmem:[%s0 + $0x30] sm:$0xff]
    %v45 = vld [vmem:[%s0 + $0x38] sm:$0xff]
    %v46 = vld [vmem:[%s0 + $0x40] sm:$0xff]
    %v47 = vld [vmem:[%s0 + $0x48] sm:$0xff]
    %v48 = vld [vmem:[%s0 + $0x50] sm:$0xff]
    %v49 = vld [vmem:[%s0 + $0x58] sm:$0xff]
    %v50 = vld [vmem:[%s0 + $0x60] sm:$0xff]
    %v51 = vld [vmem:[%s0 + $0x68] sm:$0xff]
    %v52 = vld [vmem:[%s0 + $0x70] sm:$0xff]
    %v53 = vld [vmem:[%s0 + $0x78] sm:$0xff]
    %v54 = vld [vmem:[#allocation2] sm:$0x7]
    %v55 = vld [vmem:[#allocation4] sm:$0x1]
    %v57 = vlaneseq
    %v58 = vshrl.u32 %v57, 7
    %v59 = vsub.s32 0, %v58
    %v60 = vrot.slane %v55, %v59
    %vm62 = vcmask 23552
    %v64 = vsel %vm62, %v38, 0
    %v67 = vsel %vm62, %v39, 0
    %v70 = vsel %vm62, %v40, 0
    %v73 = vsel %vm62, %v41, 0
    %v76 = vsel %vm62, %v42, 0
    %v79 = vsel %vm62, %v43, 0
    %v82 = vsel %vm62, %v44, 0
    %v85 = vsel %vm62, %v45, 0
    %v88 = vsel %vm62, %v46, 0
    %v91 = vsel %vm62, %v47, 0
    %v94 = vsel %vm62, %v48, 0
    %v97 = vsel %vm62, %v49, 0
    %v100 = vsel %vm62, %v50, 0
    %v103 = vsel %vm62, %v51, 0
    %v106 = vsel %vm62, %v52, 0
    %v109 = vsel %vm62, %v53, 0
    %vm111 = vcmask 1042432
    %v113 = vsel %vm111, %v54, 0
    %115 = vmatprep.subr.mxu0 0.0
    %116 = vmatpush1.msra.mxu0 0.0
    %117 = vmatprep.subr.mxu0 0.0
    %118 = vmatpush1.msra.mxu0 0.0
    %119 = vmatprep.subr.mxu0 0.0
    %120 = vmatpush1.msra.mxu0 0.0
    %121 = vmatprep.subr.mxu0 0.0
    %122 = vmatpush1.msra.mxu0 0.0
    %123 = vmatprep.subr.mxu0 0.0
    %124 = vmatpush1.msra.mxu0 0.0
    %125 = vmatprep.subr.mxu0 0.0
    %126 = vmatpush1.msra.mxu0 0.0
    %127 = vmatprep.subr.mxu0 0.0
    %128 = vmatpush1.msra.mxu0 0.0
    %129 = vmatprep.subr.mxu0 0.0
    %130 = vmatpush1.msra.mxu0 0.0
    %131 = vmatprep.subr.mxu0 0.0
    %132 = vmatpush1.msra.mxu0 0.0
    %133 = vmatprep.subr.mxu0 0.0
    %134 = vmatpush1.msra.mxu0 0.0
    %135 = vmatprep.subr.mxu0 0.0
    %136 = vmatpush1.msra.mxu0 0.0
    %137 = vmatprep.subr.mxu0 0.0
    %138 = vmatpush1.msra.mxu0 0.0
    %139 = vmatprep.subr.mxu0 0.0
    %140 = vmatpush1.msra.mxu0 0.0
    %141 = vmatprep.subr.mxu0 0.0
    %142 = vmatpush1.msra.mxu0 0.0
    %143 = vmatprep.subr.mxu0 0.0
    %144 = vmatpush1.msra.mxu0 0.0
    %145 = vmatprep.subr.mxu0 0.0
    %146 = vmatpush1.msra.mxu0 %v113
    %147 = vmatprep.subr.mxu0 0.0
    %148 = vmatpush2.msra.mxu0 0.0
    %149 = vmatprep.subr.mxu0 0.0
    %150 = vmatpush2.msra.mxu0 0.0
    %151 = vmatprep.subr.mxu0 0.0
    %152 = vmatpush2.msra.mxu0 0.0
    %153 = vmatprep.subr.mxu0 0.0
    %154 = vmatpush2.msra.mxu0 0.0
    %155 = vmatprep.subr.mxu0 0.0
    %156 = vmatpush2.msra.mxu0 0.0
    %157 = vmatprep.subr.mxu0 0.0
    %158 = vmatpush2.msra.mxu0 0.0
    %159 = vmatprep.subr.mxu0 0.0
    %160 = vmatpush2.msra.mxu0 0.0
    %161 = vmatprep.subr.mxu0 0.0
    %162 = vmatpush2.msra.mxu0 0.0
    %163 = vmatprep.subr.mxu0 0.0
    %164 = vmatpush2.msra.mxu0 0.0
    %165 = vmatprep.subr.mxu0 0.0
    %166 = vmatpush2.msra.mxu0 0.0
    %167 = vmatprep.subr.mxu0 0.0
    %168 = vmatpush2.msra.mxu0 0.0
    %169 = vmatprep.subr.mxu0 0.0
    %170 = vmatpush2.msra.mxu0 0.0
    %171 = vmatprep.subr.mxu0 0.0
    %172 = vmatpush2.msra.mxu0 0.0
    %173 = vmatprep.subr.mxu0 0.0
    %174 = vmatpush2.msra.mxu0 0.0
    %175 = vmatprep.subr.mxu0 0.0
    %176 = vmatpush2.msra.mxu0 0.0
    %177 = vmatprep.subr.mxu0 0.0
    %178 = vmatpush2.msra.mxu0 0.0
    %179 = vmatprep.mubr.f32.mxu0 0.0
    %180 = vmatmul.mubr.f32.gmra.mxu0 %v64
    %v181 = vpop.f32.mrf.mxu0
    %v182 = vadd.f32 %v60, %v181
    %v183 = vpop.f32.mrf.mxu0
    %184 = vmatprep.mubr.f32.mxu0 0.0
    %185 = vmatmul.mubr.f32.gmra.mxu0 %v67
    %v186 = vpop.f32.mrf.mxu0
    %v187 = vadd.f32 %v60, %v186
    %v188 = vpop.f32.mrf.mxu0
    %189 = vmatprep.mubr.f32.mxu0 0.0
    %190 = vmatmul.mubr.f32.gmra.mxu0 %v70
    %v191 = vpop.f32.mrf.mxu0
    %v192 = vadd.f32 %v60, %v191
    %v193 = vpop.f32.mrf.mxu0
    %194 = vmatprep.mubr.f32.mxu0 0.0
    %195 = vmatmul.mubr.f32.gmra.mxu0 %v73
    %v196 = vpop.f32.mrf.mxu0
    %v197 = vadd.f32 %v60, %v196
    %v198 = vpop.f32.mrf.mxu0
    %199 = vmatprep.mubr.f32.mxu0 0.0
    %200 = vmatmul.mubr.f32.gmra.mxu0 %v76
    %v201 = vpop.f32.mrf.mxu0
    %v202 = vadd.f32 %v60, %v201
    %v203 = vpop.f32.mrf.mxu0
    %204 = vmatprep.mubr.f32.mxu0 0.0
    %205 = vmatmul.mubr.f32.gmra.mxu0 %v79
    %v206 = vpop.f32.mrf.mxu0
    %v207 = vadd.f32 %v60, %v206
    %v208 = vpop.f32.mrf.mxu0
    %209 = vmatprep.mubr.f32.mxu0 0.0
    %210 = vmatmul.mubr.f32.gmra.mxu0 %v82
    %v211 = vpop.f32.mrf.mxu0
    %v212 = vadd.f32 %v60, %v211
    %v213 = vpop.f32.mrf.mxu0
    %214 = vmatprep.mubr.f32.mxu0 0.0
    %215 = vmatmul.mubr.f32.gmra.mxu0 %v85
    %v216 = vpop.f32.mrf.mxu0
    %v217 = vadd.f32 %v60, %v216
    %v218 = vpop.f32.mrf.mxu0
    %219 = vmatprep.mubr.f32.mxu0 0.0
    %220 = vmatmul.mubr.f32.gmra.mxu0 %v88
    %v221 = vpop.f32.mrf.mxu0
    %v222 = vadd.f32 %v60, %v221
    %v223 = vpop.f32.mrf.mxu0
    %224 = vmatprep.mubr.f32.mxu0 0.0
    %225 = vmatmul.mubr.f32.gmra.mxu0 %v91
    %v226 = vpop.f32.mrf.mxu0
    %v227 = vadd.f32 %v60, %v226
    %v228 = vpop.f32.mrf.mxu0
    %229 = vmatprep.mubr.f32.mxu0 0.0
    %230 = vmatmul.mubr.f32.gmra.mxu0 %v94
    %v231 = vpop.f32.mrf.mxu0
    %v232 = vadd.f32 %v60, %v231
    %v233 = vpop.f32.mrf.mxu0
    %234 = vmatprep.mubr.f32.mxu0 0.0
    %235 = vmatmul.mubr.f32.gmra.mxu0 %v97
    %v236 = vpop.f32.mrf.mxu0
    %v237 = vadd.f32 %v60, %v236
    %v238 = vpop.f32.mrf.mxu0
    %239 = vmatprep.mubr.f32.mxu0 0.0
    %240 = vmatmul.mubr.f32.gmra.mxu0 %v100
    %v241 = vpop.f32.mrf.mxu0
    %v242 = vadd.f32 %v60, %v241
    %v243 = vpop.f32.mrf.mxu0
    %244 = vmatprep.mubr.f32.mxu0 0.0
    %245 = vmatmul.mubr.f32.gmra.mxu0 %v103
    %v246 = vpop.f32.mrf.mxu0
    %v247 = vadd.f32 %v60, %v246
    %v248 = vpop.f32.mrf.mxu0
    %249 = vmatprep.mubr.f32.mxu0 0.0
    %250 = vmatmul.mubr.f32.gmra.mxu0 %v106
    %v251 = vpop.f32.mrf.mxu0
    %v252 = vadd.f32 %v60, %v251
    %v253 = vpop.f32.mrf.mxu0
    %254 = vmatprep.mubr.f32.mxu0 0.0
    %255 = vmatmul.mubr.f32.gmra.mxu0 %v109
    %v256 = vpop.f32.mrf.mxu0
    %v257 = vadd.f32 %v60, %v256
    %v258 = vpop.f32.mrf.mxu0
    %259 = vdwg.mxu0
    %v260 = vmax.f32 %v182, 0.0
    %v261 = vmax.f32 %v187, 0.0
    %v262 = vmax.f32 %v192, 0.0
    %v263 = vmax.f32 %v197, 0.0
    %v264 = vmax.f32 %v202, 0.0
    %v265 = vmax.f32 %v207, 0.0
    %v266 = vmax.f32 %v212, 0.0
    %v267 = vmax.f32 %v217, 0.0
    %v268 = vmax.f32 %v222, 0.0
    %v269 = vmax.f32 %v227, 0.0
    %v270 = vmax.f32 %v232, 0.0
    %v271 = vmax.f32 %v237, 0.0
    %v272 = vmax.f32 %v242, 0.0
    %v273 = vmax.f32 %v247, 0.0
    %v274 = vmax.f32 %v252, 0.0
    %v275 = vmax.f32 %v257, 0.0
    %276 = vst [vmem:[%s3] sm:$0xff] %v260
    %277 = vst [vmem:[%s3 + $0x8] sm:$0xff] %v261
    %278 = vst [vmem:[%s3 + $0x10] sm:$0xff] %v262
    %279 = vst [vmem:[%s3 + $0x18] sm:$0xff] %v263
    %280 = vst [vmem:[%s3 + $0x20] sm:$0xff] %v264
    %281 = vst [vmem:[%s3 + $0x28] sm:$0xff] %v265
    %282 = vst [vmem:[%s3 + $0x30] sm:$0xff] %v266
    %283 = vst [vmem:[%s3 + $0x38] sm:$0xff] %v267
    %284 = vst [vmem:[%s3 + $0x40] sm:$0xff] %v268
    %285 = vst [vmem:[%s3 + $0x48] sm:$0xff] %v269
    %286 = vst [vmem:[%s3 + $0x50] sm:$0xff] %v270
    %287 = vst [vmem:[%s3 + $0x58] sm:$0xff] %v271
    %288 = vst [vmem:[%s3 + $0x60] sm:$0xff] %v272
    %289 = vst [vmem:[%s3 + $0x68] sm:$0xff] %v273
    %290 = vst [vmem:[%s3 + $0x70] sm:$0xff] %v274
    %291 = vst [vmem:[%s3 + $0x78] sm:$0xff] %v275
    // Predicated region
    $region22: #{fcn_forward.4} parent=1 // pred_check
      _
    $region23: #{fcn_forward.4} parent=1 // pred_check_branch
      %293 = sbr.rel (0) target = $region25
    $region24: #{fcn_forward.4} parent=1 // pred_region
      _
    $region25: #{fcn_forward.4} parent=1 // pred_fallthru
      _
    // Predicated region
    $region26: #{fcn_forward.4} parent=1 // pred_check
      _
    $region27: #{fcn_forward.4} parent=1 // pred_check_branch
      %295 = sbr.rel (0) target = $region29
    $region28: #{fcn_forward.4} parent=1 // pred_region
      _
    $region29: #{fcn_forward.4} parent=1 // pred_fallthru
      _
    %296 = vsyncpa [#allocation3], 1
    %297 = vsyncpa [#allocation5], 1

// kernel: fcn_forward.6
$region0: #{fcn_forward.6}
  #allocation0 [shape = 'u32[]', space=smem, size = 0x4, offset = 0x4, fixed_abs, tag = 'smem constant byte address 0x4 - core index']
  #allocation1 [shape = 'u32[144,128]{1,0:T(1,128)}', space=vmem, size = 0x12000, scoped, tag = 'internal scratch']
  %s0 = inlined_call_operand.vmem [shape: f32[8,256], index: 0, kind: input, shape index: {}]
  %s1 = inlined_call_operand.hbm [shape: f32[256,512], index: 1, kind: input, shape index: {}]
  %s2 = inlined_call_operand.hbm [shape: f32[1,512], index: 2, kind: input, shape index: {}]
  %s3 = inlined_call_operand.vmem [shape: f32[8,512], index: 3, kind: output, shape index: {}]
  %s4 = sld [smem:[#allocation0]]
  $region30: #{fcn_forward.6} parent=0
    _
  %s6 = ssub.s32 1, %s4
  %s7 = scalar_select 0, %s6, %s4
  $region1: #{fcn_forward.6} parent=0
    #allocation2 [shape = 'u8[524288]{0}', space=vmem, size = 0x80000, scoped, tag = 'input window, operand 1, single buffered']
    #allocation3 [shape = 's32[1]{0}', space=sflag, size = 0x4, scoped, tag = 'scoped memory for fcn_forward.6']
    #allocation4 [shape = 'u8[2048]{0}', space=vmem, size = 0x800, scoped, tag = 'input window, operand 2, single buffered']
    #allocation5 [shape = 's32[1]{0}', space=sflag, size = 0x4, scoped, tag = 'scoped memory for fcn_forward.6']
    %8 = vsyncpa [#allocation3], 0
    %9 = vsyncpa [#allocation5], 0
    // Predicated region
    $region2: #{fcn_forward.6} parent=1 // pred_check
      _
    $region3: #{fcn_forward.6} parent=1 // pred_check_branch
      %11 = sbr.rel (0) target = $region5
    $region4: #{fcn_forward.6} parent=1 // pred_region
      _
    $region5: #{fcn_forward.6} parent=1 // pred_fallthru
      _
    // Predicated region
    $region6: #{fcn_forward.6} parent=1 // pred_check
      _
    $region7: #{fcn_forward.6} parent=1 // pred_check_branch
      %13 = sbr.rel (0) target = $region9
    $region8: #{fcn_forward.6} parent=1 // pred_region
      %s15 = ssub.s32 16384, 16384
      %16 = vsyncadd [#allocation3], %s15
      %s17 = sshll.u32 [#allocation2], 4
      %s18 = int_to_ptr.vmem [resolvable:$true] %s17
      %23 = dma.hbm_to_vmem [thread:$0]  %s1, 16384, %s18, [#allocation3], 512, 512, 32
    $region9: #{fcn_forward.6} parent=1 // pred_fallthru
      _
    // Predicated region
    $region10: #{fcn_forward.6} parent=1 // pred_check
      _
    $region11: #{fcn_forward.6} parent=1 // pred_check_branch
      %25 = sbr.rel (0) target = $region13
    $region12: #{fcn_forward.6} parent=1 // pred_region
      %s27 = ssub.s32 64, 64
      %28 = vsyncadd [#allocation5], %s27
      %s30 = sshll.u32 [#allocation4], 4
      %s31 = int_to_ptr.vmem [resolvable:$true] %s30
      %33 = dma.hbm_to_vmem [thread:$0]  %s2, 64, %s31, [#allocation5]
    $region13: #{fcn_forward.6} parent=1 // pred_fallthru
      _
    // Predicated region
    $region14: #{fcn_forward.6} parent=1 // pred_check
      _
    $region15: #{fcn_forward.6} parent=1 // pred_check_branch
      %35 = sbr.rel (0) target = $region17
    $region16: #{fcn_forward.6} parent=1 // pred_region
      %36 = dma.done [#allocation3], 16384
    $region17: #{fcn_forward.6} parent=1 // pred_fallthru
      _
    // Predicated region
    $region18: #{fcn_forward.6} parent=1 // pred_check
      _
    $region19: #{fcn_forward.6} parent=1 // pred_check_branch
      %38 = sbr.rel (0) target = $region21
    $region20: #{fcn_forward.6} parent=1 // pred_region
      %39 = dma.done [#allocation5], 64
    $region21: #{fcn_forward.6} parent=1 // pred_fallthru
      _
    %v40 = vld [vmem:[%s0] sm:$0xff]
    %v41 = vld [vmem:[%s0 + $0x8] sm:$0xff]
    %v42 = vld [vmem:[#allocation2] sm:$0xff]
    %v43 = vld [vmem:[#allocation2 + $0x8] sm:$0xff]
    %v44 = vld [vmem:[#allocation2 + $0x10] sm:$0xff]
    %v45 = vld [vmem:[#allocation2 + $0x18] sm:$0xff]
    %v46 = vld [vmem:[#allocation2 + $0x20] sm:$0xff]
    %v47 = vld [vmem:[#allocation2 + $0x28] sm:$0xff]
    %v48 = vld [vmem:[#allocation2 + $0x30] sm:$0xff]
    %v49 = vld [vmem:[#allocation2 + $0x38] sm:$0xff]
    %v50 = vld [vmem:[#allocation2 + $0x40] sm:$0xff]
    %v51 = vld [vmem:[#allocation2 + $0x48] sm:$0xff]
    %v52 = vld [vmem:[#allocation2 + $0x50] sm:$0xff]
    %v53 = vld [vmem:[#allocation2 + $0x58] sm:$0xff]
    %v54 = vld [vmem:[#allocation2 + $0x60] sm:$0xff]
    %v55 = vld [vmem:[#allocation2 + $0x68] sm:$0xff]
    %v56 = vld [vmem:[#allocation2 + $0x70] sm:$0xff]
    %v57 = vld [vmem:[#allocation2 + $0x78] sm:$0xff]
    %v58 = vld [vmem:[#allocation2 + $0x80] sm:$0xff]
    %v59 = vld [vmem:[#allocation2 + $0x88] sm:$0xff]
    %v60 = vld [vmem:[#allocation2 + $0x90] sm:$0xff]
    %v61 = vld [vmem:[#allocation2 + $0x98] sm:$0xff]
    %v62 = vld [vmem:[#allocation2 + $0xa0] sm:$0xff]
    %v63 = vld [vmem:[#allocation2 + $0xa8] sm:$0xff]
    %v64 = vld [vmem:[#allocation2 + $0xb0] sm:$0xff]
    %v65 = vld [vmem:[#allocation2 + $0xb8] sm:$0xff]
    %v66 = vld [vmem:[#allocation2 + $0xc0] sm:$0xff]
    %v67 = vld [vmem:[#allocation2 + $0xc8] sm:$0xff]
    %v68 = vld [vmem:[#allocation2 + $0xd0] sm:$0xff]
    %v69 = vld [vmem:[#allocation2 + $0xd8] sm:$0xff]
    %v70 = vld [vmem:[#allocation2 + $0xe0] sm:$0xff]
    %v71 = vld [vmem:[#allocation2 + $0xe8] sm:$0xff]
    %v72 = vld [vmem:[#allocation2 + $0xf0] sm:$0xff]
    %v73 = vld [vmem:[#allocation2 + $0xf8] sm:$0xff]
    %v74 = vld [vmem:[#allocation2 + $0x100] sm:$0xff]
    %v75 = vld [vmem:[#allocation2 + $0x108] sm:$0xff]
    %v76 = vld [vmem:[#allocation2 + $0x110] sm:$0xff]
    %v77 = vld [vmem:[#allocation2 + $0x118] sm:$0xff]
    %v78 = vld [vmem:[#allocation2 + $0x120] sm:$0xff]
    %v79 = vld [vmem:[#allocation2 + $0x128] sm:$0xff]
    %v80 = vld [vmem:[#allocation2 + $0x130] sm:$0xff]
    %v81 = vld [vmem:[#allocation2 + $0x138] sm:$0xff]
    %v82 = vld [vmem:[#allocation2 + $0x140] sm:$0xff]
    %v83 = vld [vmem:[#allocation2 + $0x148] sm:$0xff]
    %v84 = vld [vmem:[#allocation2 + $0x150] sm:$0xff]
    %v85 = vld [vmem:[#allocation2 + $0x158] sm:$0xff]
    %v86 = vld [vmem:[#allocation2 + $0x160] sm:$0xff]
    %v87 = vld [vmem:[#allocation2 + $0x168] sm:$0xff]
    %v88 = vld [vmem:[#allocation2 + $0x170] sm:$0xff]
    %v89 = vld [vmem:[#allocation2 + $0x178] sm:$0xff]
    %v90 = vld [vmem:[#allocation2 + $0x180] sm:$0xff]
    %v91 = vld [vmem:[#allocation2 + $0x188] sm:$0xff]
    %v92 = vld [vmem:[#allocation2 + $0x190] sm:$0xff]
    %v93 = vld [vmem:[#allocation2 + $0x198] sm:$0xff]
    %v94 = vld [vmem:[#allocation2 + $0x1a0] sm:$0xff]
    %v95 = vld [vmem:[#allocation2 + $0x1a8] sm:$0xff]
    %v96 = vld [vmem:[#allocation2 + $0x1b0] sm:$0xff]
    %v97 = vld [vmem:[#allocation2 + $0x1b8] sm:$0xff]
    %v98 = vld [vmem:[#allocation2 + $0x1c0] sm:$0xff]
    %v99 = vld [vmem:[#allocation2 + $0x1c8] sm:$0xff]
    %v100 = vld [vmem:[#allocation2 + $0x1d0] sm:$0xff]
    %v101 = vld [vmem:[#allocation2 + $0x1d8] sm:$0xff]
    %v102 = vld [vmem:[#allocation2 + $0x1e0] sm:$0xff]
    %v103 = vld [vmem:[#allocation2 + $0x1e8] sm:$0xff]
    %v104 = vld [vmem:[#allocation2 + $0x1f0] sm:$0xff]
    %v105 = vld [vmem:[#allocation2 + $0x1f8] sm:$0xff]
    %v106 = vld [vmem:[#allocation2 + $0x200] sm:$0xff]
    %v107 = vld [vmem:[#allocation2 + $0x208] sm:$0xff]
    %v108 = vld [vmem:[#allocation2 + $0x210] sm:$0xff]
    %v109 = vld [vmem:[#allocation2 + $0x218] sm:$0xff]
    %v110 = vld [vmem:[#allocation2 + $0x220] sm:$0xff]
    %v111 = vld [vmem:[#allocation2 + $0x228] sm:$0xff]
    %v112 = vld [vmem:[#allocation2 + $0x230] sm:$0xff]
    %v113 = vld [vmem:[#allocation2 + $0x238] sm:$0xff]
    %v114 = vld [vmem:[#allocation2 + $0x240] sm:$0xff]
    %v115 = vld [vmem:[#allocation2 + $0x248] sm:$0xff]
    %v116 = vld [vmem:[#allocation2 + $0x250] sm:$0xff]
    %v117 = vld [vmem:[#allocation2 + $0x258] sm:$0xff]
    %v118 = vld [vmem:[#allocation2 + $0x260] sm:$0xff]
    %v119 = vld [vmem:[#allocation2 + $0x268] sm:$0xff]
    %v120 = vld [vmem:[#allocation2 + $0x270] sm:$0xff]
    %v121 = vld [vmem:[#allocation2 + $0x278] sm:$0xff]
    %v122 = vld [vmem:[#allocation2 + $0x280] sm:$0xff]
    %v123 = vld [vmem:[#allocation2 + $0x288] sm:$0xff]
    %v124 = vld [vmem:[#allocation2 + $0x290] sm:$0xff]
    %v125 = vld [vmem:[#allocation2 + $0x298] sm:$0xff]
    %v126 = vld [vmem:[#allocation2 + $0x2a0] sm:$0xff]
    %v127 = vld [vmem:[#allocation2 + $0x2a8] sm:$0xff]
    %v128 = vld [vmem:[#allocation2 + $0x2b0] sm:$0xff]
    %v129 = vld [vmem:[#allocation2 + $0x2b8] sm:$0xff]
    %v130 = vld [vmem:[#allocation2 + $0x2c0] sm:$0xff]
    %v131 = vld [vmem:[#allocation2 + $0x2c8] sm:$0xff]
    %v132 = vld [vmem:[#allocation2 + $0x2d0] sm:$0xff]
    %v133 = vld [vmem:[#allocation2 + $0x2d8] sm:$0xff]
    %v134 = vld [vmem:[#allocation2 + $0x2e0] sm:$0xff]
    %v135 = vld [vmem:[#allocation2 + $0x2e8] sm:$0xff]
    %v136 = vld [vmem:[#allocation2 + $0x2f0] sm:$0xff]
    %v137 = vld [vmem:[#allocation2 + $0x2f8] sm:$0xff]
    %v138 = vld [vmem:[#allocation2 + $0x300] sm:$0xff]
    %v139 = vld [vmem:[#allocation2 + $0x308] sm:$0xff]
    %v140 = vld [vmem:[#allocation2 + $0x310] sm:$0xff]
    %v141 = vld [vmem:[#allocation2 + $0x318] sm:$0xff]
    %v142 = vld [vmem:[#allocation2 + $0x320] sm:$0xff]
    %v143 = vld [vmem:[#allocation2 + $0x328] sm:$0xff]
    %v144 = vld [vmem:[#allocation2 + $0x330] sm:$0xff]
    %v145 = vld [vmem:[#allocation2 + $0x338] sm:$0xff]
    %v146 = vld [vmem:[#allocation2 + $0x340] sm:$0xff]
    %v147 = vld [vmem:[#allocation2 + $0x348] sm:$0xff]
    %v148 = vld [vmem:[#allocation2 + $0x350] sm:$0xff]
    %v149 = vld [vmem:[#allocation2 + $0x358] sm:$0xff]
    %v150 = vld [vmem:[#allocation2 + $0x360] sm:$0xff]
    %v151 = vld [vmem:[#allocation2 + $0x368] sm:$0xff]
    %v152 = vld [vmem:[#allocation2 + $0x370] sm:$0xff]
    %v153 = vld [vmem:[#allocation2 + $0x378] sm:$0xff]
    %v154 = vld [vmem:[#allocation2 + $0x380] sm:$0xff]
    %v155 = vld [vmem:[#allocation2 + $0x388] sm:$0xff]
    %v156 = vld [vmem:[#allocation2 + $0x390] sm:$0xff]
    %v157 = vld [vmem:[#allocation2 + $0x398] sm:$0xff]
    %v158 = vld [vmem:[#allocation2 + $0x3a0] sm:$0xff]
    %v159 = vld [vmem:[#allocation2 + $0x3a8] sm:$0xff]
    %v160 = vld [vmem:[#allocation2 + $0x3b0] sm:$0xff]
    %v161 = vld [vmem:[#allocation2 + $0x3b8] sm:$0xff]
    %v162 = vld [vmem:[#allocation2 + $0x3c0] sm:$0xff]
    %v163 = vld [vmem:[#allocation2 + $0x3c8] sm:$0xff]
    %v164 = vld [vmem:[#allocation2 + $0x3d0] sm:$0xff]
    %v165 = vld [vmem:[#allocation2 + $0x3d8] sm:$0xff]
    %v166 = vld [vmem:[#allocation2 + $0x3e0] sm:$0xff]
    %v167 = vld [vmem:[#allocation2 + $0x3e8] sm:$0xff]
    %v168 = vld [vmem:[#allocation2 + $0x3f0] sm:$0xff]
    %v169 = vld [vmem:[#allocation2 + $0x3f8] sm:$0xff]
    %v170 = vld [vmem:[#allocation4] sm:$0xf]
    %v172 = vlaneseq
    %v173 = vshrl.u32 %v172, 7
    %v174 = vsub.s32 0, %v173
    %v175 = vrot.slane %v170, %v174
    %v176 = vlaneseq
    %v177 = vshrl.u32 %v176, 7
    %v178 = vsub.s32 1, %v177
    %v179 = vrot.slane %v170, %v178
    %v180 = vlaneseq
    %v181 = vshrl.u32 %v180, 7
    %v182 = vsub.s32 2, %v181
    %v183 = vrot.slane %v170, %v182
    %v184 = vlaneseq
    %v185 = vshrl.u32 %v184, 7
    %v186 = vsub.s32 3, %v185
    %v187 = vrot.slane %v170, %v186
    %192 = vmatprep.subr.mxu0 %v103
    %193 = vmatpush1.msra.mxu0 %v102
    %194 = vmatprep.subr.mxu0 %v99
    %195 = vmatpush1.msra.mxu0 %v98
    %196 = vmatprep.subr.mxu0 %v95
    %197 = vmatpush1.msra.mxu0 %v94
    %198 = vmatprep.subr.mxu0 %v91
    %199 = vmatpush1.msra.mxu0 %v90
    %200 = vmatprep.subr.mxu0 %v87
    %201 = vmatpush1.msra.mxu0 %v86
    %202 = vmatprep.subr.mxu0 %v83
    %203 = vmatpush1.msra.mxu0 %v82
    %204 = vmatprep.subr.mxu0 %v79
    %205 = vmatpush1.msra.mxu0 %v78
    %206 = vmatprep.subr.mxu0 %v75
    %207 = vmatpush1.msra.mxu0 %v74
    %208 = vmatprep.subr.mxu0 %v71
    %209 = vmatpush1.msra.mxu0 %v70
    %210 = vmatprep.subr.mxu0 %v67
    %211 = vmatpush1.msra.mxu0 %v66
    %212 = vmatprep.subr.mxu0 %v63
    %213 = vmatpush1.msra.mxu0 %v62
    %214 = vmatprep.subr.mxu0 %v59
    %215 = vmatpush1.msra.mxu0 %v58
    %216 = vmatprep.subr.mxu0 %v55
    %217 = vmatpush1.msra.mxu0 %v54
    %218 = vmatprep.subr.mxu0 %v51
    %219 = vmatpush1.msra.mxu0 %v50
    %220 = vmatprep.subr.mxu0 %v47
    %221 = vmatpush1.msra.mxu0 %v46
    %222 = vmatprep.subr.mxu0 %v43
    %223 = vmatpush1.msra.mxu0 %v42
    %224 = vmatprep.subr.mxu0 %v167
    %225 = vmatpush2.msra.mxu0 %v166
    %226 = vmatprep.subr.mxu0 %v163
    %227 = vmatpush2.msra.mxu0 %v162
    %228 = vmatprep.subr.mxu0 %v159
    %229 = vmatpush2.msra.mxu0 %v158
    %230 = vmatprep.subr.mxu0 %v155
    %231 = vmatpush2.msra.mxu0 %v154
    %232 = vmatprep.subr.mxu0 %v151
    %233 = vmatpush2.msra.mxu0 %v150
    %234 = vmatprep.subr.mxu0 %v147
    %235 = vmatpush2.msra.mxu0 %v146
    %236 = vmatprep.subr.mxu0 %v143
    %237 = vmatpush2.msra.mxu0 %v142
    %238 = vmatprep.subr.mxu0 %v139
    %239 = vmatpush2.msra.mxu0 %v138
    %240 = vmatprep.subr.mxu0 %v135
    %241 = vmatpush2.msra.mxu0 %v134
    %242 = vmatprep.subr.mxu0 %v131
    %243 = vmatpush2.msra.mxu0 %v130
    %244 = vmatprep.subr.mxu0 %v127
    %245 = vmatpush2.msra.mxu0 %v126
    %246 = vmatprep.subr.mxu0 %v123
    %247 = vmatpush2.msra.mxu0 %v122
    %248 = vmatprep.subr.mxu0 %v119
    %249 = vmatpush2.msra.mxu0 %v118
    %250 = vmatprep.subr.mxu0 %v115
    %251 = vmatpush2.msra.mxu0 %v114
    %252 = vmatprep.subr.mxu0 %v111
    %253 = vmatpush2.msra.mxu0 %v110
    %254 = vmatprep.subr.mxu0 %v107
    %255 = vmatpush2.msra.mxu0 %v106
    %256 = vmatprep.mubr.f32.mxu0 %v41
    %257 = vmatmul.mubr.f32.gmra.mxu0 %v40
    %v258 = vpop.f32.mrf.mxu0
    %v259 = vadd.f32 %v175, %v258
    %v260 = vpop.f32.mrf.mxu0
    %v261 = vadd.f32 %v179, %v260
    %262 = vdwg.mxu0
    %263 = vmatprep.subr.mxu0 %v105
    %264 = vmatpush1.msra.mxu0 %v104
    %265 = vmatprep.subr.mxu0 %v101
    %266 = vmatpush1.msra.mxu0 %v100
    %267 = vmatprep.subr.mxu0 %v97
    %268 = vmatpush1.msra.mxu0 %v96
    %269 = vmatprep.subr.mxu0 %v93
    %270 = vmatpush1.msra.mxu0 %v92
    %271 = vmatprep.subr.mxu0 %v89
    %272 = vmatpush1.msra.mxu0 %v88
    %273 = vmatprep.subr.mxu0 %v85
    %274 = vmatpush1.msra.mxu0 %v84
    %275 = vmatprep.subr.mxu0 %v81
    %276 = vmatpush1.msra.mxu0 %v80
    %277 = vmatprep.subr.mxu0 %v77
    %278 = vmatpush1.msra.mxu0 %v76
    %279 = vmatprep.subr.mxu0 %v73
    %280 = vmatpush1.msra.mxu0 %v72
    %281 = vmatprep.subr.mxu0 %v69
    %282 = vmatpush1.msra.mxu0 %v68
    %283 = vmatprep.subr.mxu0 %v65
    %284 = vmatpush1.msra.mxu0 %v64
    %285 = vmatprep.subr.mxu0 %v61
    %286 = vmatpush1.msra.mxu0 %v60
    %287 = vmatprep.subr.mxu0 %v57
    %288 = vmatpush1.msra.mxu0 %v56
    %289 = vmatprep.subr.mxu0 %v53
    %290 = vmatpush1.msra.mxu0 %v52
    %291 = vmatprep.subr.mxu0 %v49
    %292 = vmatpush1.msra.mxu0 %v48
    %293 = vmatprep.subr.mxu0 %v45
    %294 = vmatpush1.msra.mxu0 %v44
    %295 = vmatprep.subr.mxu0 %v169
    %296 = vmatpush2.msra.mxu0 %v168
    %297 = vmatprep.subr.mxu0 %v165
    %298 = vmatpush2.msra.mxu0 %v164
    %299 = vmatprep.subr.mxu0 %v161
    %300 = vmatpush2.msra.mxu0 %v160
    %301 = vmatprep.subr.mxu0 %v157
    %302 = vmatpush2.msra.mxu0 %v156
    %303 = vmatprep.subr.mxu0 %v153
    %304 = vmatpush2.msra.mxu0 %v152
    %305 = vmatprep.subr.mxu0 %v149
    %306 = vmatpush2.msra.mxu0 %v148
    %307 = vmatprep.subr.mxu0 %v145
    %308 = vmatpush2.msra.mxu0 %v144
    %309 = vmatprep.subr.mxu0 %v141
    %310 = vmatpush2.msra.mxu0 %v140
    %311 = vmatprep.subr.mxu0 %v137
    %312 = vmatpush2.msra.mxu0 %v136
    %313 = vmatprep.subr.mxu0 %v133
    %314 = vmatpush2.msra.mxu0 %v132
    %315 = vmatprep.subr.mxu0 %v129
    %316 = vmatpush2.msra.mxu0 %v128
    %317 = vmatprep.subr.mxu0 %v125
    %318 = vmatpush2.msra.mxu0 %v124
    %319 = vmatprep.subr.mxu0 %v121
    %320 = vmatpush2.msra.mxu0 %v120
    %321 = vmatprep.subr.mxu0 %v117
    %322 = vmatpush2.msra.mxu0 %v116
    %323 = vmatprep.subr.mxu0 %v113
    %324 = vmatpush2.msra.mxu0 %v112
    %325 = vmatprep.subr.mxu0 %v109
    %326 = vmatpush2.msra.mxu0 %v108
    %327 = vmatprep.mubr.f32.mxu0 %v41
    %328 = vmatmul.mubr.f32.gmra.mxu0 %v40
    %v329 = vpop.f32.mrf.mxu0
    %v330 = vadd.f32 %v183, %v329
    %v331 = vpop.f32.mrf.mxu0
    %v332 = vadd.f32 %v187, %v331
    %333 = vdwg.mxu0
    %v334 = vmax.f32 %v259, 0.0
    %v335 = vmax.f32 %v261, 0.0
    %v336 = vmax.f32 %v330, 0.0
    %v337 = vmax.f32 %v332, 0.0
    %338 = vst [vmem:[%s3] sm:$0xff] %v334
    %339 = vst [vmem:[%s3 + $0x8] sm:$0xff] %v335
    %340 = vst [vmem:[%s3 + $0x10] sm:$0xff] %v336
    %341 = vst [vmem:[%s3 + $0x18] sm:$0xff] %v337
    // Predicated region
    $region22: #{fcn_forward.6} parent=1 // pred_check
      _
    $region23: #{fcn_forward.6} parent=1 // pred_check_branch
      %343 = sbr.rel (0) target = $region25
    $region24: #{fcn_forward.6} parent=1 // pred_region
      _
    $region25: #{fcn_forward.6} parent=1 // pred_fallthru
      _
    // Predicated region
    $region26: #{fcn_forward.6} parent=1 // pred_check
      _
    $region27: #{fcn_forward.6} parent=1 // pred_check_branch
      %345 = sbr.rel (0) target = $region29
    $region28: #{fcn_forward.6} parent=1 // pred_region
      _
    $region29: #{fcn_forward.6} parent=1 // pred_fallthru
      _
    %346 = vsyncpa [#allocation3], 1
    %347 = vsyncpa [#allocation5], 1

// kernel: fcn_forward.7
$region0: #{fcn_forward.7}
  #allocation0 [shape = 'u32[]', space=smem, size = 0x4, offset = 0x4, fixed_abs, tag = 'smem constant byte address 0x4 - core index']
  #allocation1 [shape = 'u32[144,128]{1,0:T(1,128)}', space=vmem, size = 0x12000, scoped, tag = 'internal scratch']
  %s0 = inlined_call_operand.vmem [shape: f32[2,4,512], index: 0, kind: input, shape index: {}]
  %s1 = inlined_call_operand.vmem [shape: f32[2,16,256], index: 1, kind: input, shape index: {}]
  %s2 = inlined_call_operand.vmem [shape: f32[512,128], index: 2, kind: input, shape index: {}]
  %s3 = inlined_call_operand.vmem [shape: f32[1,128], index: 3, kind: input, shape index: {}]
  %s4 = inlined_call_operand.vmem [shape: f32[256,128], index: 4, kind: input, shape index: {}]
  %s5 = inlined_call_operand.vmem [shape: f32[1,128], index: 5, kind: input, shape index: {}]
  %s6 = inlined_call_operand.hbm [shape: f32[4096,4], index: 6, kind: input, shape index: {}]
  %s7 = inlined_call_operand.vmem [shape: f32[4096,16], index: 7, kind: input, shape index: {}]
  %s8 = inlined_call_operand.vmem [shape: f32[2,4096,128], index: 8, kind: output, shape index: {}]
  %s9 = sld [smem:[#allocation0]]
  $region69: #{fcn_forward.7} parent=0
    _
  %s11 = ssub.s32 1, %s9
  %s12 = scalar_select 0, %s11, %s9
  $region1: #{fcn_forward.7} parent=0
    #allocation2 [shape = 'u8[2097152]{0}', space=vmem, size = 0x200000, scoped, tag = 'input window, operand 6, single buffered']
    #allocation3 [shape = 's32[2]{0}', space=sflag, size = 0x8, scoped, tag = 'scoped memory for fcn_forward.7']
    %13 = vsyncpa [#allocation3], 0
    loop: start=0, step=1, limit=4
    $region2: #{fcn_forward.7} parent=1 // loop_pre_header
      _
    $region3: #{fcn_forward.7} parent=1 // loop_header
      %s15 = sphi 0, %s19
      %p16 = scmp.ge.s32.totalorder %s15, 4
      %s25 = sphi 0, %s27
      %s28 = sphi 0, %s25
      %s29 = sphi 0, %s28
      %s45 = sphi 0, %s29
      %s51 = sphi 0, %s53
      %s54 = sphi 0, %s51
      %s55 = sphi 0, %s54
      %s71 = sphi 0, %s55
      %s75 = sphi 0, %s75
      %s77 = sphi 0, %s75
      %s78 = sphi 0, %s77
      %s92 = sphi 0, %s78
      %s96 = sphi 0, %s96
      %s98 = sphi 0, %s96
      %s99 = sphi 0, %s98
      %s113 = sphi 0, %s99
      %s117 = sphi 0, %s117
      %s119 = sphi 0, %s117
      %s120 = sphi 0, %s119
      %s134 = sphi 0, %s120
      %s138 = sphi 0, %s138
      %s140 = sphi 0, %s138
      %s141 = sphi 0, %s140
      %s155 = sphi 0, %s141
      %s159 = sphi 0, %s159
      %s161 = sphi 0, %s159
      %s162 = sphi 0, %s161
      %s176 = sphi 0, %s162
      %s180 = sphi 0, %s180
      %s182 = sphi 0, %s180
      %s183 = sphi 0, %s182
      %s197 = sphi 0, %s183
      %s203 = sphi 0, %s205
      %s206 = sphi 0, %s203
      %s207 = sphi 0, %s206
      %s223 = sphi 0, %s207
    $region4: #{fcn_forward.7} parent=1 // loop_header_branch
      %18 = sbr.rel (%p16) target = $region8
    $region5: #{fcn_forward.7} parent=1 // loop_body
      %s20 = ssub.s32 %s15, 1
      %s21 = ssub.s32 %s15, 2
      %s22 = sadd.s32 %s15, 1
      %s23 = ssub.s32 %s15, %s22
      %p24 = scmp.eq.s32.totalorder %s23, 0
      %s26 = sadd.s32 %s25, 1
      %s27 = scalar_select %p24, %s25, %s26
      %p30 = pneg %p24
      %p31 = scmp.eq.s32.totalorder %s15, 1
      %p32 = por %p30, %p31
      %p33 = scmp.ne.s32.totalorder %s25, %s28
      %p34 = scmp.eq.s32.totalorder %s15, 0
      %p35 = por %p33, %p34
      %p36 = scmp.ne.s32.totalorder %s25, %s28
      %p37 = scmp.eq.s32.totalorder %s20, 1
      %p38 = por %p36, %p37
      %p39 = scmp.ne.s32.totalorder %s28, %s29
      %p40 = scmp.eq.s32.totalorder %s20, 0
      %p41 = por %p39, %p40
      %p42 = scmp.ne.s32.totalorder %s28, %s29
      %p43 = scmp.eq.s32.totalorder %s21, 1
      %p44 = por %p42, %p43
      %p46 = scmp.ne.s32.totalorder %s29, %s45
      %p47 = scmp.eq.s32.totalorder %s21, 0
      %p48 = por %p46, %p47
      %s49 = ssub.s32 %s15, %s22
      %p50 = scmp.eq.s32.totalorder %s49, 0
      %s52 = sadd.s32 %s51, 1
      %s53 = scalar_select %p50, %s51, %s52
      %p56 = pneg %p50
      %p57 = scmp.eq.s32.totalorder %s15, 1
      %p58 = por %p56, %p57
      %p59 = scmp.ne.s32.totalorder %s51, %s54
      %p60 = scmp.eq.s32.totalorder %s15, 0
      %p61 = por %p59, %p60
      %p62 = scmp.ne.s32.totalorder %s51, %s54
      %p63 = scmp.eq.s32.totalorder %s20, 1
      %p64 = por %p62, %p63
      %p65 = scmp.ne.s32.totalorder %s54, %s55
      %p66 = scmp.eq.s32.totalorder %s20, 0
      %p67 = por %p65, %p66
      %p68 = scmp.ne.s32.totalorder %s54, %s55
      %p69 = scmp.eq.s32.totalorder %s21, 1
      %p70 = por %p68, %p69
      %p72 = scmp.ne.s32.totalorder %s55, %s71
      %p73 = scmp.eq.s32.totalorder %s21, 0
      %p74 = por %p72, %p73
      %s76 = sadd.s32 %s75, 1
      %p79 = scmp.eq.s32.totalorder %s15, 1
      %p80 = scmp.ne.s32.totalorder %s75, %s77
      %p81 = scmp.eq.s32.totalorder %s15, 0
      %p82 = por %p80, %p81
      %p83 = scmp.ne.s32.totalorder %s75, %s77
      %p84 = scmp.eq.s32.totalorder %s20, 1
      %p85 = por %p83, %p84
      %p86 = scmp.ne.s32.totalorder %s77, %s78
      %p87 = scmp.eq.s32.totalorder %s20, 0
      %p88 = por %p86, %p87
      %p89 = scmp.ne.s32.totalorder %s77, %s78
      %p90 = scmp.eq.s32.totalorder %s21, 1
      %p91 = por %p89, %p90
      %p93 = scmp.ne.s32.totalorder %s78, %s92
      %p94 = scmp.eq.s32.totalorder %s21, 0
      %p95 = por %p93, %p94
      %s97 = sadd.s32 %s96, 1
      %p100 = scmp.eq.s32.totalorder %s15, 1
      %p101 = scmp.ne.s32.totalorder %s96, %s98
      %p102 = scmp.eq.s32.totalorder %s15, 0
      %p103 = por %p101, %p102
      %p104 = scmp.ne.s32.totalorder %s96, %s98
      %p105 = scmp.eq.s32.totalorder %s20, 1
      %p106 = por %p104, %p105
      %p107 = scmp.ne.s32.totalorder %s98, %s99
      %p108 = scmp.eq.s32.totalorder %s20, 0
      %p109 = por %p107, %p108
      %p110 = scmp.ne.s32.totalorder %s98, %s99
      %p111 = scmp.eq.s32.totalorder %s21, 1
      %p112 = por %p110, %p111
      %p114 = scmp.ne.s32.totalorder %s99, %s113
      %p115 = scmp.eq.s32.totalorder %s21, 0
      %p116 = por %p114, %p115
      %s118 = sadd.s32 %s117, 1
      %p121 = scmp.eq.s32.totalorder %s15, 1
      %p122 = scmp.ne.s32.totalorder %s117, %s119
      %p123 = scmp.eq.s32.totalorder %s15, 0
      %p124 = por %p122, %p123
      %p125 = scmp.ne.s32.totalorder %s117, %s119
      %p126 = scmp.eq.s32.totalorder %s20, 1
      %p127 = por %p125, %p126
      %p128 = scmp.ne.s32.totalorder %s119, %s120
      %p129 = scmp.eq.s32.totalorder %s20, 0
      %p130 = por %p128, %p129
      %p131 = scmp.ne.s32.totalorder %s119, %s120
      %p132 = scmp.eq.s32.totalorder %s21, 1
      %p133 = por %p131, %p132
      %p135 = scmp.ne.s32.totalorder %s120, %s134
      %p136 = scmp.eq.s32.totalorder %s21, 0
      %p137 = por %p135, %p136
      %s139 = sadd.s32 %s138, 1
      %p142 = scmp.eq.s32.totalorder %s15, 1
      %p143 = scmp.ne.s32.totalorder %s138, %s140
      %p144 = scmp.eq.s32.totalorder %s15, 0
      %p145 = por %p143, %p144
      %p146 = scmp.ne.s32.totalorder %s138, %s140
      %p147 = scmp.eq.s32.totalorder %s20, 1
      %p148 = por %p146, %p147
      %p149 = scmp.ne.s32.totalorder %s140, %s141
      %p150 = scmp.eq.s32.totalorder %s20, 0
      %p151 = por %p149, %p150
      %p152 = scmp.ne.s32.totalorder %s140, %s141
      %p153 = scmp.eq.s32.totalorder %s21, 1
      %p154 = por %p152, %p153
      %p156 = scmp.ne.s32.totalorder %s141, %s155
      %p157 = scmp.eq.s32.totalorder %s21, 0
      %p158 = por %p156, %p157
      %s160 = sadd.s32 %s159, 1
      %p163 = scmp.eq.s32.totalorder %s15, 1
      %p164 = scmp.ne.s32.totalorder %s159, %s161
      %p165 = scmp.eq.s32.totalorder %s15, 0
      %p166 = por %p164, %p165
      %p167 = scmp.ne.s32.totalorder %s159, %s161
      %p168 = scmp.eq.s32.totalorder %s20, 1
      %p169 = por %p167, %p168
      %p170 = scmp.ne.s32.totalorder %s161, %s162
      %p171 = scmp.eq.s32.totalorder %s20, 0
      %p172 = por %p170, %p171
      %p173 = scmp.ne.s32.totalorder %s161, %s162
      %p174 = scmp.eq.s32.totalorder %s21, 1
      %p175 = por %p173, %p174
      %p177 = scmp.ne.s32.totalorder %s162, %s176
      %p178 = scmp.eq.s32.totalorder %s21, 0
      %p179 = por %p177, %p178
      %s181 = sadd.s32 %s180, 1
      %p184 = scmp.eq.s32.totalorder %s15, 1
      %p185 = scmp.ne.s32.totalorder %s180, %s182
      %p186 = scmp.eq.s32.totalorder %s15, 0
      %p187 = por %p185, %p186
      %p188 = scmp.ne.s32.totalorder %s180, %s182
      %p189 = scmp.eq.s32.totalorder %s20, 1
      %p190 = por %p188, %p189
      %p191 = scmp.ne.s32.totalorder %s182, %s183
      %p192 = scmp.eq.s32.totalorder %s20, 0
      %p193 = por %p191, %p192
      %p194 = scmp.ne.s32.totalorder %s182, %s183
      %p195 = scmp.eq.s32.totalorder %s21, 1
      %p196 = por %p194, %p195
      %p198 = scmp.ne.s32.totalorder %s183, %s197
      %p199 = scmp.eq.s32.totalorder %s21, 0
      %p200 = por %p198, %p199
      %s201 = ssub.s32 %s15, %s22
      %p202 = scmp.eq.s32.totalorder %s201, 0
      %s204 = sadd.s32 %s203, 1
      %s205 = scalar_select %p202, %s203, %s204
      %p208 = pneg %p202
      %p209 = scmp.eq.s32.totalorder %s15, 1
      %p210 = por %p208, %p209
      %p211 = scmp.ne.s32.totalorder %s203, %s206
      %p212 = scmp.eq.s32.totalorder %s15, 0
      %p213 = por %p211, %p212
      %p214 = scmp.ne.s32.totalorder %s203, %s206
      %p215 = scmp.eq.s32.totalorder %s20, 1
      %p216 = por %p214, %p215
      %p217 = scmp.ne.s32.totalorder %s206, %s207
      %p218 = scmp.eq.s32.totalorder %s20, 0
      %p219 = por %p217, %p218
      %p220 = scmp.ne.s32.totalorder %s206, %s207
      %p221 = scmp.eq.s32.totalorder %s21, 1
      %p222 = por %p220, %p221
      %p224 = scmp.ne.s32.totalorder %s207, %s223
      %p225 = scmp.eq.s32.totalorder %s21, 0
      %p226 = por %p224, %p225
      %p227 = scmp.le.s32.totalorder 1, %s15
      %p228 = scmp.lt.s32.totalorder %s15, 3
      %p229 = pnand %p227, %p228
      %p230 = pneg %p229
      // Predicated region
      $region9: #{fcn_forward.7} parent=5 // pred_check
        _
      $region10: #{fcn_forward.7} parent=5 // pred_check_branch
        %232 = sbr.rel (%p229) target = $region12
      $region11: #{fcn_forward.7} parent=5 // pred_region
        %s233 = ssub.s32 %s15, 1
        // Predicated region
        $region13: #{fcn_forward.7} parent=11 // pred_check
          %p234 = pneg %p88
        $region14: #{fcn_forward.7} parent=11 // pred_check_branch
          %236 = sbr.rel (%p234) target = $region16
        $region15: #{fcn_forward.7} parent=11 // pred_region
          _
        $region16: #{fcn_forward.7} parent=11 // pred_fallthru
          _
        // Predicated region
        $region17: #{fcn_forward.7} parent=11 // pred_check
          %p237 = pneg %p109
        $region18: #{fcn_forward.7} parent=11 // pred_check_branch
          %239 = sbr.rel (%p237) target = $region20
        $region19: #{fcn_forward.7} parent=11 // pred_region
          _
        $region20: #{fcn_forward.7} parent=11 // pred_fallthru
          _
        // Predicated region
        $region21: #{fcn_forward.7} parent=11 // pred_check
          %p240 = pneg %p130
        $region22: #{fcn_forward.7} parent=11 // pred_check_branch
          %242 = sbr.rel (%p240) target = $region24
        $region23: #{fcn_forward.7} parent=11 // pred_region
          _
        $region24: #{fcn_forward.7} parent=11 // pred_fallthru
          _
        // Predicated region
        $region25: #{fcn_forward.7} parent=11 // pred_check
          %p243 = pneg %p151
        $region26: #{fcn_forward.7} parent=11 // pred_check_branch
          %245 = sbr.rel (%p243) target = $region28
        $region27: #{fcn_forward.7} parent=11 // pred_region
          _
        $region28: #{fcn_forward.7} parent=11 // pred_fallthru
          _
        // Predicated region
        $region29: #{fcn_forward.7} parent=11 // pred_check
          %p246 = pneg %p172
        $region30: #{fcn_forward.7} parent=11 // pred_check_branch
          %248 = sbr.rel (%p246) target = $region32
        $region31: #{fcn_forward.7} parent=11 // pred_region
          %s250 = ssub.s32 65536, 65536
          %251 = vsyncadd [#allocation3], %s250
          %s252 = sshll.u32 [#allocation2], 4
          %s253 = int_to_ptr.vmem [resolvable:$true] %s252
          %258 = dma.hbm_to_vmem [thread:$0]  %s6, 65536, %s253, [#allocation3], 128, 128, 8
        $region32: #{fcn_forward.7} parent=11 // pred_fallthru
          _
        // Predicated region
        $region33: #{fcn_forward.7} parent=11 // pred_check
          %p259 = pneg %p193
        $region34: #{fcn_forward.7} parent=11 // pred_check_branch
          %261 = sbr.rel (%p259) target = $region36
        $region35: #{fcn_forward.7} parent=11 // pred_region
          _
        $region36: #{fcn_forward.7} parent=11 // pred_fallthru
          _
      $region12: #{fcn_forward.7} parent=5 // pred_fallthru
        _
      %p262 = scmp.lt.s32.totalorder %s15, 2
      // Predicated region
      $region37: #{fcn_forward.7} parent=5 // pred_check
        %p263 = pneg %p262
      $region38: #{fcn_forward.7} parent=5 // pred_check_branch
        %265 = sbr.rel (%p263) target = $region40
      $region39: #{fcn_forward.7} parent=5 // pred_region
        // Predicated region
        $region41: #{fcn_forward.7} parent=39 // pred_check
          %p266 = pneg %p35
        $region42: #{fcn_forward.7} parent=39 // pred_check_branch
          %268 = sbr.rel (%p266) target = $region44
        $region43: #{fcn_forward.7} parent=39 // pred_region
          %p269 = scmp.lt.s32.totalorder %s15, 1
          %s270 = scalar_select %p269, %s15, 1
          %s271 = smul.addr %s270, 4
          %s272 = smul.addr %s271, 4
          %s273 = scalar_lea.vmem %s0, %s272
        $region44: #{fcn_forward.7} parent=39 // pred_fallthru
          _
        // Predicated region
        $region45: #{fcn_forward.7} parent=39 // pred_check
          %p274 = pneg %p61
        $region46: #{fcn_forward.7} parent=39 // pred_check_branch
          %276 = sbr.rel (%p274) target = $region48
        $region47: #{fcn_forward.7} parent=39 // pred_region
          %p277 = scmp.lt.s32.totalorder %s15, 1
          %s278 = scalar_select %p277, %s15, 1
          %s279 = smul.addr %s278, 4
          %s280 = smul.addr %s279, 8
          %s281 = scalar_lea.vmem %s1, %s280
        $region48: #{fcn_forward.7} parent=39 // pred_fallthru
          _
      $region40: #{fcn_forward.7} parent=5 // pred_fallthru
        _
      %p282 = scmp.le.s32.totalorder 1, %s15
      %p283 = scmp.lt.s32.totalorder %s15, 3
      %p284 = pnand %p282, %p283
      %p285 = pneg %p284
      // Predicated region
      $region49: #{fcn_forward.7} parent=5 // pred_check
        _
      $region50: #{fcn_forward.7} parent=5 // pred_check_branch
        %287 = sbr.rel (%p284) target = $region52
      $region51: #{fcn_forward.7} parent=5 // pred_region
        %s288 = ssub.s32 %s15, 1
        // Predicated region
        $region53: #{fcn_forward.7} parent=51 // pred_check
          %p289 = pneg %p172
        $region54: #{fcn_forward.7} parent=51 // pred_check_branch
          %291 = sbr.rel (%p289) target = $region56
        $region55: #{fcn_forward.7} parent=51 // pred_region
          %292 = dma.done [#allocation3], 65536
        $region56: #{fcn_forward.7} parent=51 // pred_fallthru
          _
        %p293 = scmp.lt.s32.totalorder %s20, 1
        %s294 = scalar_select %p293, %s20, 1
        %s295 = smul.addr %s294, 4
        %s296 = smul.addr %s295, 4
        %s297 = scalar_lea.vmem %s0, %s296
        %p298 = pneg %p41
        %p299 = pneg %p38
        %p300 = scmp.lt.s32.totalorder %s20, 1
        %s301 = scalar_select %p300, %s20, 1
        %s302 = smul.addr %s301, 4
        %s303 = smul.addr %s302, 8
        %s304 = scalar_lea.vmem %s1, %s303
        %p305 = pneg %p67
        %p306 = pneg %p64
        %p307 = pneg %p88
        %p308 = pneg %p85
        %p309 = pneg %p109
        %p310 = pneg %p106
        %p311 = pneg %p130
        %p312 = pneg %p127
        %p313 = pneg %p151
        %p314 = pneg %p148
        %p315 = pneg %p172
        %p316 = pneg %p169
        %p317 = pneg %p193
        %p318 = pneg %p190
        %p319 = pneg %p219
        %p320 = pneg %p216
        %p321 = scmp.lt.s32.totalorder %s20, 1
        %s322 = scalar_select %p321, %s20, 1
        %s323 = smul.addr %s322, 512
        %s324 = smul.addr %s323, 8
        %s325 = scalar_lea.vmem %s8, %s324
        %p326 = scmp.lt.s32.totalorder %s20, 1
        %s327 = scalar_select %p326, %s20, 1
        %s328 = smul.addr %s327, 4
        %s329 = smul.addr %s328, 4
        %s330 = scalar_lea.vmem %s0, %s329
        %p331 = scmp.lt.s32.totalorder %s20, 1
        %s332 = scalar_select %p331, %s20, 1
        %s333 = smul.addr %s332, 4
        %s334 = smul.addr %s333, 8
        %s335 = scalar_lea.vmem %s1, %s334
        %p336 = scmp.lt.s32.totalorder %s20, 1
        %s337 = scalar_select %p336, %s20, 1
        %s338 = smul.addr %s337, 512
        %s339 = smul.addr %s338, 8
        %s340 = scalar_lea.vmem %s8, %s339
        %v341 = vld [vmem:[%s330] sm:$0xff]
        %v342 = vld [vmem:[%s330 + $0x8] sm:$0xff]
        %v343 = vld [vmem:[%s2] sm:$0xff]
        %v344 = vld [vmem:[%s2 + $0x8] sm:$0xff]
        %v345 = vld [vmem:[%s2 + $0x10] sm:$0xff]
        %v346 = vld [vmem:[%s2 + $0x18] sm:$0xff]
        %v347 = vld [vmem:[%s2 + $0x20] sm:$0xff]
        %v348 = vld [vmem:[%s2 + $0x28] sm:$0xff]
        %v349 = vld [vmem:[%s2 + $0x30] sm:$0xff]
        %v350 = vld [vmem:[%s2 + $0x38] sm:$0xff]
        %v351 = vld [vmem:[%s2 + $0x40] sm:$0xff]
        %v352 = vld [vmem:[%s2 + $0x48] sm:$0xff]
        %v353 = vld [vmem:[%s2 + $0x50] sm:$0xff]
        %v354 = vld [vmem:[%s2 + $0x58] sm:$0xff]
        %v355 = vld [vmem:[%s2 + $0x60] sm:$0xff]
        %v356 = vld [vmem:[%s2 + $0x68] sm:$0xff]
        %v357 = vld [vmem:[%s2 + $0x70] sm:$0xff]
        %v358 = vld [vmem:[%s2 + $0x78] sm:$0xff]
        %v359 = vld [vmem:[%s2 + $0x80] sm:$0xff]
        %v360 = vld [vmem:[%s2 + $0x88] sm:$0xff]
        %v361 = vld [vmem:[%s2 + $0x90] sm:$0xff]
        %v362 = vld [vmem:[%s2 + $0x98] sm:$0xff]
        %v363 = vld [vmem:[%s2 + $0xa0] sm:$0xff]
        %v364 = vld [vmem:[%s2 + $0xa8] sm:$0xff]
        %v365 = vld [vmem:[%s2 + $0xb0] sm:$0xff]
        %v366 = vld [vmem:[%s2 + $0xb8] sm:$0xff]
        %v367 = vld [vmem:[%s2 + $0xc0] sm:$0xff]
        %v368 = vld [vmem:[%s2 + $0xc8] sm:$0xff]
        %v369 = vld [vmem:[%s2 + $0xd0] sm:$0xff]
        %v370 = vld [vmem:[%s2 + $0xd8] sm:$0xff]
        %v371 = vld [vmem:[%s2 + $0xe0] sm:$0xff]
        %v372 = vld [vmem:[%s2 + $0xe8] sm:$0xff]
        %v373 = vld [vmem:[%s2 + $0xf0] sm:$0xff]
        %v374 = vld [vmem:[%s2 + $0xf8] sm:$0xff]
        %v375 = vld [vmem:[%s2 + $0x100] sm:$0xff]
        %v376 = vld [vmem:[%s2 + $0x108] sm:$0xff]
        %v377 = vld [vmem:[%s2 + $0x110] sm:$0xff]
        %v378 = vld [vmem:[%s2 + $0x118] sm:$0xff]
        %v379 = vld [vmem:[%s2 + $0x120] sm:$0xff]
        %v380 = vld [vmem:[%s2 + $0x128] sm:$0xff]
        %v381 = vld [vmem:[%s2 + $0x130] sm:$0xff]
        %v382 = vld [vmem:[%s2 + $0x138] sm:$0xff]
        %v383 = vld [vmem:[%s2 + $0x140] sm:$0xff]
        %v384 = vld [vmem:[%s2 + $0x148] sm:$0xff]
        %v385 = vld [vmem:[%s2 + $0x150] sm:$0xff]
        %v386 = vld [vmem:[%s2 + $0x158] sm:$0xff]
        %v387 = vld [vmem:[%s2 + $0x160] sm:$0xff]
        %v388 = vld [vmem:[%s2 + $0x168] sm:$0xff]
        %v389 = vld [vmem:[%s2 + $0x170] sm:$0xff]
        %v390 = vld [vmem:[%s2 + $0x178] sm:$0xff]
        %v391 = vld [vmem:[%s2 + $0x180] sm:$0xff]
        %v392 = vld [vmem:[%s2 + $0x188] sm:$0xff]
        %v393 = vld [vmem:[%s2 + $0x190] sm:$0xff]
        %v394 = vld [vmem:[%s2 + $0x198] sm:$0xff]
        %v395 = vld [vmem:[%s2 + $0x1a0] sm:$0xff]
        %v396 = vld [vmem:[%s2 + $0x1a8] sm:$0xff]
        %v397 = vld [vmem:[%s2 + $0x1b0] sm:$0xff]
        %v398 = vld [vmem:[%s2 + $0x1b8] sm:$0xff]
        %v399 = vld [vmem:[%s2 + $0x1c0] sm:$0xff]
        %v400 = vld [vmem:[%s2 + $0x1c8] sm:$0xff]
        %v401 = vld [vmem:[%s2 + $0x1d0] sm:$0xff]
        %v402 = vld [vmem:[%s2 + $0x1d8] sm:$0xff]
        %v403 = vld [vmem:[%s2 + $0x1e0] sm:$0xff]
        %v404 = vld [vmem:[%s2 + $0x1e8] sm:$0xff]
        %v405 = vld [vmem:[%s2 + $0x1f0] sm:$0xff]
        %v406 = vld [vmem:[%s2 + $0x1f8] sm:$0xff]
        %v407 = vld [vmem:[%s3] sm:$0x1]
        %v409 = vlaneseq
        %v410 = vshrl.u32 %v409, 7
        %v411 = vsub.s32 0, %v410
        %v412 = vrot.slane %v407, %v411
        %v416 = vcombine.high %v341, %v341
        %v417 = vcombine.high %v342, %v342
        %420 = vmatprep.subr.mxu0 0.0
        %421 = vmatpush1.msra.mxu0 %v358
        %422 = vmatprep.subr.mxu0 0.0
        %423 = vmatpush1.msra.mxu0 %v357
        %424 = vmatprep.subr.mxu0 0.0
        %425 = vmatpush1.msra.mxu0 %v356
        %426 = vmatprep.subr.mxu0 0.0
        %427 = vmatpush1.msra.mxu0 %v355
        %428 = vmatprep.subr.mxu0 0.0
        %429 = vmatpush1.msra.mxu0 %v354
        %430 = vmatprep.subr.mxu0 0.0
        %431 = vmatpush1.msra.mxu0 %v353
        %432 = vmatprep.subr.mxu0 0.0
        %433 = vmatpush1.msra.mxu0 %v352
        %434 = vmatprep.subr.mxu0 0.0
        %435 = vmatpush1.msra.mxu0 %v351
        %436 = vmatprep.subr.mxu0 0.0
        %437 = vmatpush1.msra.mxu0 %v350
        %438 = vmatprep.subr.mxu0 0.0
        %439 = vmatpush1.msra.mxu0 %v349
        %440 = vmatprep.subr.mxu0 0.0
        %441 = vmatpush1.msra.mxu0 %v348
        %442 = vmatprep.subr.mxu0 0.0
        %443 = vmatpush1.msra.mxu0 %v347
        %444 = vmatprep.subr.mxu0 0.0
        %445 = vmatpush1.msra.mxu0 %v346
        %446 = vmatprep.subr.mxu0 0.0
        %447 = vmatpush1.msra.mxu0 %v345
        %448 = vmatprep.subr.mxu0 0.0
        %449 = vmatpush1.msra.mxu0 %v344
        %450 = vmatprep.subr.mxu0 0.0
        %451 = vmatpush1.msra.mxu0 %v343
        %452 = vmatprep.subr.mxu0 0.0
        %453 = vmatpush2.msra.mxu0 %v374
        %454 = vmatprep.subr.mxu0 0.0
        %455 = vmatpush2.msra.mxu0 %v373
        %456 = vmatprep.subr.mxu0 0.0
        %457 = vmatpush2.msra.mxu0 %v372
        %458 = vmatprep.subr.mxu0 0.0
        %459 = vmatpush2.msra.mxu0 %v371
        %460 = vmatprep.subr.mxu0 0.0
        %461 = vmatpush2.msra.mxu0 %v370
        %462 = vmatprep.subr.mxu0 0.0
        %463 = vmatpush2.msra.mxu0 %v369
        %464 = vmatprep.subr.mxu0 0.0
        %465 = vmatpush2.msra.mxu0 %v368
        %466 = vmatprep.subr.mxu0 0.0
        %467 = vmatpush2.msra.mxu0 %v367
        %468 = vmatprep.subr.mxu0 0.0
        %469 = vmatpush2.msra.mxu0 %v366
        %470 = vmatprep.subr.mxu0 0.0
        %471 = vmatpush2.msra.mxu0 %v365
        %472 = vmatprep.subr.mxu0 0.0
        %473 = vmatpush2.msra.mxu0 %v364
        %474 = vmatprep.subr.mxu0 0.0
        %475 = vmatpush2.msra.mxu0 %v363
        %476 = vmatprep.subr.mxu0 0.0
        %477 = vmatpush2.msra.mxu0 %v362
        %478 = vmatprep.subr.mxu0 0.0
        %479 = vmatpush2.msra.mxu0 %v361
        %480 = vmatprep.subr.mxu0 0.0
        %481 = vmatpush2.msra.mxu0 %v360
        %482 = vmatprep.subr.mxu0 0.0
        %483 = vmatpush2.msra.mxu0 %v359
        %484 = vmatprep.mubr.f32.mxu0 %v416
        %485 = vmatmul.mubr.f32.gmra.mxu0 %v341
        %v486 = vpop.f32.mrf.mxu0
        %v487 = vadd.f32 %v412, %v486
        %v488 = vpop.f32.mrf.mxu0
        %489 = vdwg.mxu0
        %490 = vmatprep.subr.mxu0 0.0
        %491 = vmatpush1.msra.mxu0 %v390
        %492 = vmatprep.subr.mxu0 0.0
        %493 = vmatpush1.msra.mxu0 %v389
        %494 = vmatprep.subr.mxu0 0.0
        %495 = vmatpush1.msra.mxu0 %v388
        %496 = vmatprep.subr.mxu0 0.0
        %497 = vmatpush1.msra.mxu0 %v387
        %498 = vmatprep.subr.mxu0 0.0
        %499 = vmatpush1.msra.mxu0 %v386
        %500 = vmatprep.subr.mxu0 0.0
        %501 = vmatpush1.msra.mxu0 %v385
        %502 = vmatprep.subr.mxu0 0.0
        %503 = vmatpush1.msra.mxu0 %v384
        %504 = vmatprep.subr.mxu0 0.0
        %505 = vmatpush1.msra.mxu0 %v383
        %506 = vmatprep.subr.mxu0 0.0
        %507 = vmatpush1.msra.mxu0 %v382
        %508 = vmatprep.subr.mxu0 0.0
        %509 = vmatpush1.msra.mxu0 %v381
        %510 = vmatprep.subr.mxu0 0.0
        %511 = vmatpush1.msra.mxu0 %v380
        %512 = vmatprep.subr.mxu0 0.0
        %513 = vmatpush1.msra.mxu0 %v379
        %514 = vmatprep.subr.mxu0 0.0
        %515 = vmatpush1.msra.mxu0 %v378
        %516 = vmatprep.subr.mxu0 0.0
        %517 = vmatpush1.msra.mxu0 %v377
        %518 = vmatprep.subr.mxu0 0.0
        %519 = vmatpush1.msra.mxu0 %v376
        %520 = vmatprep.subr.mxu0 0.0
        %521 = vmatpush1.msra.mxu0 %v375
        %522 = vmatprep.subr.mxu0 0.0
        %523 = vmatpush2.msra.mxu0 %v406
        %524 = vmatprep.subr.mxu0 0.0
        %525 = vmatpush2.msra.mxu0 %v405
        %526 = vmatprep.subr.mxu0 0.0
        %527 = vmatpush2.msra.mxu0 %v404
        %528 = vmatprep.subr.mxu0 0.0
        %529 = vmatpush2.msra.mxu0 %v403
        %530 = vmatprep.subr.mxu0 0.0
        %531 = vmatpush2.msra.mxu0 %v402
        %532 = vmatprep.subr.mxu0 0.0
        %533 = vmatpush2.msra.mxu0 %v401
        %534 = vmatprep.subr.mxu0 0.0
        %535 = vmatpush2.msra.mxu0 %v400
        %536 = vmatprep.subr.mxu0 0.0
        %537 = vmatpush2.msra.mxu0 %v399
        %538 = vmatprep.subr.mxu0 0.0
        %539 = vmatpush2.msra.mxu0 %v398
        %540 = vmatprep.subr.mxu0 0.0
        %541 = vmatpush2.msra.mxu0 %v397
        %542 = vmatprep.subr.mxu0 0.0
        %543 = vmatpush2.msra.mxu0 %v396
        %544 = vmatprep.subr.mxu0 0.0
        %545 = vmatpush2.msra.mxu0 %v395
        %546 = vmatprep.subr.mxu0 0.0
        %547 = vmatpush2.msra.mxu0 %v394
        %548 = vmatprep.subr.mxu0 0.0
        %549 = vmatpush2.msra.mxu0 %v393
        %550 = vmatprep.subr.mxu0 0.0
        %551 = vmatpush2.msra.mxu0 %v392
        %552 = vmatprep.subr.mxu0 0.0
        %553 = vmatpush2.msra.mxu0 %v391
        %554 = vmatprep.mubr.f32.mxu0 %v417
        %555 = vmatmul.mubr.f32.gmra.mxu0 %v342
        %v556 = vpop.f32.mrf.mxu0
        %v557 = vadd.f32 %v487, %v556
        %v558 = vpop.f32.mrf.mxu0
        %559 = vdwg.mxu0
        %v560 = vld [vmem:[%s335] sm:$0xff]
        %v561 = vld [vmem:[%s335 + $0x8] sm:$0xff]
        %v562 = vld [vmem:[%s335 + $0x10] sm:$0xff]
        %v563 = vld [vmem:[%s335 + $0x18] sm:$0xff]
        %v564 = vld [vmem:[%s4] sm:$0xff]
        %v565 = vld [vmem:[%s4 + $0x8] sm:$0xff]
        %v566 = vld [vmem:[%s4 + $0x10] sm:$0xff]
        %v567 = vld [vmem:[%s4 + $0x18] sm:$0xff]
        %v568 = vld [vmem:[%s4 + $0x20] sm:$0xff]
        %v569 = vld [vmem:[%s4 + $0x28] sm:$0xff]
        %v570 = vld [vmem:[%s4 + $0x30] sm:$0xff]
        %v571 = vld [vmem:[%s4 + $0x38] sm:$0xff]
        %v572 = vld [vmem:[%s4 + $0x40] sm:$0xff]
        %v573 = vld [vmem:[%s4 + $0x48] sm:$0xff]
        %v574 = vld [vmem:[%s4 + $0x50] sm:$0xff]
        %v575 = vld [vmem:[%s4 + $0x58] sm:$0xff]
        %v576 = vld [vmem:[%s4 + $0x60] sm:$0xff]
        %v577 = vld [vmem:[%s4 + $0x68] sm:$0xff]
        %v578 = vld [vmem:[%s4 + $0x70] sm:$0xff]
        %v579 = vld [vmem:[%s4 + $0x78] sm:$0xff]
        %v580 = vld [vmem:[%s4 + $0x80] sm:$0xff]
        %v581 = vld [vmem:[%s4 + $0x88] sm:$0xff]
        %v582 = vld [vmem:[%s4 + $0x90] sm:$0xff]
        %v583 = vld [vmem:[%s4 + $0x98] sm:$0xff]
        %v584 = vld [vmem:[%s4 + $0xa0] sm:$0xff]
        %v585 = vld [vmem:[%s4 + $0xa8] sm:$0xff]
        %v586 = vld [vmem:[%s4 + $0xb0] sm:$0xff]
        %v587 = vld [vmem:[%s4 + $0xb8] sm:$0xff]
        %v588 = vld [vmem:[%s4 + $0xc0] sm:$0xff]
        %v589 = vld [vmem:[%s4 + $0xc8] sm:$0xff]
        %v590 = vld [vmem:[%s4 + $0xd0] sm:$0xff]
        %v591 = vld [vmem:[%s4 + $0xd8] sm:$0xff]
        %v592 = vld [vmem:[%s4 + $0xe0] sm:$0xff]
        %v593 = vld [vmem:[%s4 + $0xe8] sm:$0xff]
        %v594 = vld [vmem:[%s4 + $0xf0] sm:$0xff]
        %v595 = vld [vmem:[%s4 + $0xf8] sm:$0xff]
        %v596 = vld [vmem:[%s5] sm:$0x1]
        %v598 = vlaneseq
        %v599 = vshrl.u32 %v598, 7
        %v600 = vsub.s32 0, %v599
        %v601 = vrot.slane %v596, %v600
        %603 = vmatprep.subr.mxu0 0.0
        %604 = vmatpush1.msra.mxu0 %v579
        %605 = vmatprep.subr.mxu0 0.0
        %606 = vmatpush1.msra.mxu0 %v578
        %607 = vmatprep.subr.mxu0 0.0
        %608 = vmatpush1.msra.mxu0 %v577
        %609 = vmatprep.subr.mxu0 0.0
        %610 = vmatpush1.msra.mxu0 %v576
        %611 = vmatprep.subr.mxu0 0.0
        %612 = vmatpush1.msra.mxu0 %v575
        %613 = vmatprep.subr.mxu0 0.0
        %614 = vmatpush1.msra.mxu0 %v574
        %615 = vmatprep.subr.mxu0 0.0
        %616 = vmatpush1.msra.mxu0 %v573
        %617 = vmatprep.subr.mxu0 0.0
        %618 = vmatpush1.msra.mxu0 %v572
        %619 = vmatprep.subr.mxu0 0.0
        %620 = vmatpush1.msra.mxu0 %v571
        %621 = vmatprep.subr.mxu0 0.0
        %622 = vmatpush1.msra.mxu0 %v570
        %623 = vmatprep.subr.mxu0 0.0
        %624 = vmatpush1.msra.mxu0 %v569
        %625 = vmatprep.subr.mxu0 0.0
        %626 = vmatpush1.msra.mxu0 %v568
        %627 = vmatprep.subr.mxu0 0.0
        %628 = vmatpush1.msra.mxu0 %v567
        %629 = vmatprep.subr.mxu0 0.0
        %630 = vmatpush1.msra.mxu0 %v566
        %631 = vmatprep.subr.mxu0 0.0
        %632 = vmatpush1.msra.mxu0 %v565
        %633 = vmatprep.subr.mxu0 0.0
        %634 = vmatpush1.msra.mxu0 %v564
        %635 = vmatprep.subr.mxu0 0.0
        %636 = vmatpush2.msra.mxu0 %v595
        %637 = vmatprep.subr.mxu0 0.0
        %638 = vmatpush2.msra.mxu0 %v594
        %639 = vmatprep.subr.mxu0 0.0
        %640 = vmatpush2.msra.mxu0 %v593
        %641 = vmatprep.subr.mxu0 0.0
        %642 = vmatpush2.msra.mxu0 %v592
        %643 = vmatprep.subr.mxu0 0.0
        %644 = vmatpush2.msra.mxu0 %v591
        %645 = vmatprep.subr.mxu0 0.0
        %646 = vmatpush2.msra.mxu0 %v590
        %647 = vmatprep.subr.mxu0 0.0
        %648 = vmatpush2.msra.mxu0 %v589
        %649 = vmatprep.subr.mxu0 0.0
        %650 = vmatpush2.msra.mxu0 %v588
        %651 = vmatprep.subr.mxu0 0.0
        %652 = vmatpush2.msra.mxu0 %v587
        %653 = vmatprep.subr.mxu0 0.0
        %654 = vmatpush2.msra.mxu0 %v586
        %655 = vmatprep.subr.mxu0 0.0
        %656 = vmatpush2.msra.mxu0 %v585
        %657 = vmatprep.subr.mxu0 0.0
        %658 = vmatpush2.msra.mxu0 %v584
        %659 = vmatprep.subr.mxu0 0.0
        %660 = vmatpush2.msra.mxu0 %v583
        %661 = vmatprep.subr.mxu0 0.0
        %662 = vmatpush2.msra.mxu0 %v582
        %663 = vmatprep.subr.mxu0 0.0
        %664 = vmatpush2.msra.mxu0 %v581
        %665 = vmatprep.subr.mxu0 0.0
        %666 = vmatpush2.msra.mxu0 %v580
        %667 = vmatprep.mubr.f32.mxu0 %v561
        %668 = vmatmul.mubr.f32.gmra.mxu0 %v560
        %v669 = vpop.f32.mrf.mxu0
        %v670 = vadd.f32 %v601, %v669
        %v671 = vpop.f32.mrf.mxu0
        %672 = vmatprep.mubr.f32.mxu0 %v563
        %673 = vmatmul.mubr.f32.gmra.mxu0 %v562
        %v674 = vpop.f32.mrf.mxu0
        %v675 = vadd.f32 %v601, %v674
        %v676 = vpop.f32.mrf.mxu0
        %677 = vdwg.mxu0
        %v678 = vld [vmem:[%s7] sm:$0xff]
        %v679 = vld [vmem:[%s7 + $0x8] sm:$0xff]
        %v680 = vld [vmem:[%s7 + $0x10] sm:$0xff]
        %v681 = vld [vmem:[%s7 + $0x18] sm:$0xff]
        %v682 = vld [vmem:[%s7 + $0x20] sm:$0xff]
        %v683 = vld [vmem:[%s7 + $0x28] sm:$0xff]
        %v684 = vld [vmem:[%s7 + $0x30] sm:$0xff]
        %v685 = vld [vmem:[%s7 + $0x38] sm:$0xff]
        %v686 = vld [vmem:[%s7 + $0x40] sm:$0xff]
        %v687 = vld [vmem:[%s7 + $0x48] sm:$0xff]
        %v688 = vld [vmem:[%s7 + $0x50] sm:$0xff]
        %v689 = vld [vmem:[%s7 + $0x58] sm:$0xff]
        %v690 = vld [vmem:[%s7 + $0x60] sm:$0xff]
        %v691 = vld [vmem:[%s7 + $0x68] sm:$0xff]
        %v692 = vld [vmem:[%s7 + $0x70] sm:$0xff]
        %v693 = vld [vmem:[%s7 + $0x78] sm:$0xff]
        %v694 = vld [vmem:[%s7 + $0x80] sm:$0xff]
        %v695 = vld [vmem:[%s7 + $0x88] sm:$0xff]
        %v696 = vld [vmem:[%s7 + $0x90] sm:$0xff]
        %v697 = vld [vmem:[%s7 + $0x98] sm:$0xff]
        %v698 = vld [vmem:[%s7 + $0xa0] sm:$0xff]
        %v699 = vld [vmem:[%s7 + $0xa8] sm:$0xff]
        %v700 = vld [vmem:[%s7 + $0xb0] sm:$0xff]
        %v701 = vld [vmem:[%s7 + $0xb8] sm:$0xff]
        %v702 = vld [vmem:[%s7 + $0xc0] sm:$0xff]
        %v703 = vld [vmem:[%s7 + $0xc8] sm:$0xff]
        %v704 = vld [vmem:[%s7 + $0xd0] sm:$0xff]
        %v705 = vld [vmem:[%s7 + $0xd8] sm:$0xff]
        %v706 = vld [vmem:[%s7 + $0xe0] sm:$0xff]
        %v707 = vld [vmem:[%s7 + $0xe8] sm:$0xff]
        %v708 = vld [vmem:[%s7 + $0xf0] sm:$0xff]
        %v709 = vld [vmem:[%s7 + $0xf8] sm:$0xff]
        %v710 = vld [vmem:[%s7 + $0x100] sm:$0xff]
        %v711 = vld [vmem:[%s7 + $0x108] sm:$0xff]
        %v712 = vld [vmem:[%s7 + $0x110] sm:$0xff]
        %v713 = vld [vmem:[%s7 + $0x118] sm:$0xff]
        %v714 = vld [vmem:[%s7 + $0x120] sm:$0xff]
        %v715 = vld [vmem:[%s7 + $0x128] sm:$0xff]
        %v716 = vld [vmem:[%s7 + $0x130] sm:$0xff]
        %v717 = vld [vmem:[%s7 + $0x138] sm:$0xff]
        %v718 = vld [vmem:[%s7 + $0x140] sm:$0xff]
        %v719 = vld [vmem:[%s7 + $0x148] sm:$0xff]
        %v720 = vld [vmem:[%s7 + $0x150] sm:$0xff]
        %v721 = vld [vmem:[%s7 + $0x158] sm:$0xff]
        %v722 = vld [vmem:[%s7 + $0x160] sm:$0xff]
        %v723 = vld [vmem:[%s7 + $0x168] sm:$0xff]
        %v724 = vld [vmem:[%s7 + $0x170] sm:$0xff]
        %v725 = vld [vmem:[%s7 + $0x178] sm:$0xff]
        %v726 = vld [vmem:[%s7 + $0x180] sm:$0xff]
        %v727 = vld [vmem:[%s7 + $0x188] sm:$0xff]
        %v728 = vld [vmem:[%s7 + $0x190] sm:$0xff]
        %v729 = vld [vmem:[%s7 + $0x198] sm:$0xff]
        %v730 = vld [vmem:[%s7 + $0x1a0] sm:$0xff]
        %v731 = vld [vmem:[%s7 + $0x1a8] sm:$0xff]
        %v732 = vld [vmem:[%s7 + $0x1b0] sm:$0xff]
        %v733 = vld [vmem:[%s7 + $0x1b8] sm:$0xff]
        %v734 = vld [vmem:[%s7 + $0x1c0] sm:$0xff]
        %v735 = vld [vmem:[%s7 + $0x1c8] sm:$0xff]
        %v736 = vld [vmem:[%s7 + $0x1d0] sm:$0xff]
        %v737 = vld [vmem:[%s7 + $0x1d8] sm:$0xff]
        %v738 = vld [vmem:[%s7 + $0x1e0] sm:$0xff]
        %v739 = vld [vmem:[%s7 + $0x1e8] sm:$0xff]
        %v740 = vld [vmem:[%s7 + $0x1f0] sm:$0xff]
        %v741 = vld [vmem:[%s7 + $0x1f8] sm:$0xff]
        %v742 = vld [vmem:[%s7 + $0x200] sm:$0xff]
        %v743 = vld [vmem:[%s7 + $0x208] sm:$0xff]
        %v744 = vld [vmem:[%s7 + $0x210] sm:$0xff]
        %v745 = vld [vmem:[%s7 + $0x218] sm:$0xff]
        %v746 = vld [vmem:[%s7 + $0x220] sm:$0xff]
        %v747 = vld [vmem:[%s7 + $0x228] sm:$0xff]
        %v748 = vld [vmem:[%s7 + $0x230] sm:$0xff]
        %v749 = vld [vmem:[%s7 + $0x238] sm:$0xff]
        %v750 = vld [vmem:[%s7 + $0x240] sm:$0xff]
        %v751 = vld [vmem:[%s7 + $0x248] sm:$0xff]
        %v752 = vld [vmem:[%s7 + $0x250] sm:$0xff]
        %v753 = vld [vmem:[%s7 + $0x258] sm:$0xff]
        %v754 = vld [vmem:[%s7 + $0x260] sm:$0xff]
        %v755 = vld [vmem:[%s7 + $0x268] sm:$0xff]
        %v756 = vld [vmem:[%s7 + $0x270] sm:$0xff]
        %v757 = vld [vmem:[%s7 + $0x278] sm:$0xff]
        %v758 = vld [vmem:[%s7 + $0x280] sm:$0xff]
        %v759 = vld [vmem:[%s7 + $0x288] sm:$0xff]
        %v760 = vld [vmem:[%s7 + $0x290] sm:$0xff]
        %v761 = vld [vmem:[%s7 + $0x298] sm:$0xff]
        %v762 = vld [vmem:[%s7 + $0x2a0] sm:$0xff]
        %v763 = vld [vmem:[%s7 + $0x2a8] sm:$0xff]
        %v764 = vld [vmem:[%s7 + $0x2b0] sm:$0xff]
        %v765 = vld [vmem:[%s7 + $0x2b8] sm:$0xff]
        %v766 = vld [vmem:[%s7 + $0x2c0] sm:$0xff]
        %v767 = vld [vmem:[%s7 + $0x2c8] sm:$0xff]
        %v768 = vld [vmem:[%s7 + $0x2d0] sm:$0xff]
        %v769 = vld [vmem:[%s7 + $0x2d8] sm:$0xff]
        %v770 = vld [vmem:[%s7 + $0x2e0] sm:$0xff]
        %v771 = vld [vmem:[%s7 + $0x2e8] sm:$0xff]
        %v772 = vld [vmem:[%s7 + $0x2f0] sm:$0xff]
        %v773 = vld [vmem:[%s7 + $0x2f8] sm:$0xff]
        %v774 = vld [vmem:[%s7 + $0x300] sm:$0xff]
        %v775 = vld [vmem:[%s7 + $0x308] sm:$0xff]
        %v776 = vld [vmem:[%s7 + $0x310] sm:$0xff]
        %v777 = vld [vmem:[%s7 + $0x318] sm:$0xff]
        %v778 = vld [vmem:[%s7 + $0x320] sm:$0xff]
        %v779 = vld [vmem:[%s7 + $0x328] sm:$0xff]
        %v780 = vld [vmem:[%s7 + $0x330] sm:$0xff]
        %v781 = vld [vmem:[%s7 + $0x338] sm:$0xff]
        %v782 = vld [vmem:[%s7 + $0x340] sm:$0xff]
        %v783 = vld [vmem:[%s7 + $0x348] sm:$0xff]
        %v784 = vld [vmem:[%s7 + $0x350] sm:$0xff]
        %v785 = vld [vmem:[%s7 + $0x358] sm:$0xff]
        %v786 = vld [vmem:[%s7 + $0x360] sm:$0xff]
        %v787 = vld [vmem:[%s7 + $0x368] sm:$0xff]
        %v788 = vld [vmem:[%s7 + $0x370] sm:$0xff]
        %v789 = vld [vmem:[%s7 + $0x378] sm:$0xff]
        %v790 = vld [vmem:[%s7 + $0x380] sm:$0xff]
        %v791 = vld [vmem:[%s7 + $0x388] sm:$0xff]
        %v792 = vld [vmem:[%s7 + $0x390] sm:$0xff]
        %v793 = vld [vmem:[%s7 + $0x398] sm:$0xff]
        %v794 = vld [vmem:[%s7 + $0x3a0] sm:$0xff]
        %v795 = vld [vmem:[%s7 + $0x3a8] sm:$0xff]
        %v796 = vld [vmem:[%s7 + $0x3b0] sm:$0xff]
        %v797 = vld [vmem:[%s7 + $0x3b8] sm:$0xff]
        %v798 = vld [vmem:[%s7 + $0x3c0] sm:$0xff]
        %v799 = vld [vmem:[%s7 + $0x3c8] sm:$0xff]
        %v800 = vld [vmem:[%s7 + $0x3d0] sm:$0xff]
        %v801 = vld [vmem:[%s7 + $0x3d8] sm:$0xff]
        %v802 = vld [vmem:[%s7 + $0x3e0] sm:$0xff]
        %v803 = vld [vmem:[%s7 + $0x3e8] sm:$0xff]
        %v804 = vld [vmem:[%s7 + $0x3f0] sm:$0xff]
        %v805 = vld [vmem:[%s7 + $0x3f8] sm:$0xff]
        %v806 = vld [vmem:[%s7 + $0x400] sm:$0xff]
        %v807 = vld [vmem:[%s7 + $0x408] sm:$0xff]
        %v808 = vld [vmem:[%s7 + $0x410] sm:$0xff]
        %v809 = vld [vmem:[%s7 + $0x418] sm:$0xff]
        %v810 = vld [vmem:[%s7 + $0x420] sm:$0xff]
        %v811 = vld [vmem:[%s7 + $0x428] sm:$0xff]
        %v812 = vld [vmem:[%s7 + $0x430] sm:$0xff]
        %v813 = vld [vmem:[%s7 + $0x438] sm:$0xff]
        %v814 = vld [vmem:[%s7 + $0x440] sm:$0xff]
        %v815 = vld [vmem:[%s7 + $0x448] sm:$0xff]
        %v816 = vld [vmem:[%s7 + $0x450] sm:$0xff]
        %v817 = vld [vmem:[%s7 + $0x458] sm:$0xff]
        %v818 = vld [vmem:[%s7 + $0x460] sm:$0xff]
        %v819 = vld [vmem:[%s7 + $0x468] sm:$0xff]
        %v820 = vld [vmem:[%s7 + $0x470] sm:$0xff]
        %v821 = vld [vmem:[%s7 + $0x478] sm:$0xff]
        %v822 = vld [vmem:[%s7 + $0x480] sm:$0xff]
        %v823 = vld [vmem:[%s7 + $0x488] sm:$0xff]
        %v824 = vld [vmem:[%s7 + $0x490] sm:$0xff]
        %v825 = vld [vmem:[%s7 + $0x498] sm:$0xff]
        %v826 = vld [vmem:[%s7 + $0x4a0] sm:$0xff]
        %v827 = vld [vmem:[%s7 + $0x4a8] sm:$0xff]
        %v828 = vld [vmem:[%s7 + $0x4b0] sm:$0xff]
        %v829 = vld [vmem:[%s7 + $0x4b8] sm:$0xff]
        %v830 = vld [vmem:[%s7 + $0x4c0] sm:$0xff]
        %v831 = vld [vmem:[%s7 + $0x4c8] sm:$0xff]
        %v832 = vld [vmem:[%s7 + $0x4d0] sm:$0xff]
        %v833 = vld [vmem:[%s7 + $0x4d8] sm:$0xff]
        %v834 = vld [vmem:[%s7 + $0x4e0] sm:$0xff]
        %v835 = vld [vmem:[%s7 + $0x4e8] sm:$0xff]
        %v836 = vld [vmem:[%s7 + $0x4f0] sm:$0xff]
        %v837 = vld [vmem:[%s7 + $0x4f8] sm:$0xff]
        %v838 = vld [vmem:[%s7 + $0x500] sm:$0xff]
        %v839 = vld [vmem:[%s7 + $0x508] sm:$0xff]
        %v840 = vld [vmem:[%s7 + $0x510] sm:$0xff]
        %v841 = vld [vmem:[%s7 + $0x518] sm:$0xff]
        %v842 = vld [vmem:[%s7 + $0x520] sm:$0xff]
        %v843 = vld [vmem:[%s7 + $0x528] sm:$0xff]
        %v844 = vld [vmem:[%s7 + $0x530] sm:$0xff]
        %v845 = vld [vmem:[%s7 + $0x538] sm:$0xff]
        %v846 = vld [vmem:[%s7 + $0x540] sm:$0xff]
        %v847 = vld [vmem:[%s7 + $0x548] sm:$0xff]
        %v848 = vld [vmem:[%s7 + $0x550] sm:$0xff]
        %v849 = vld [vmem:[%s7 + $0x558] sm:$0xff]
        %v850 = vld [vmem:[%s7 + $0x560] sm:$0xff]
        %v851 = vld [vmem:[%s7 + $0x568] sm:$0xff]
        %v852 = vld [vmem:[%s7 + $0x570] sm:$0xff]
        %v853 = vld [vmem:[%s7 + $0x578] sm:$0xff]
        %v854 = vld [vmem:[%s7 + $0x580] sm:$0xff]
        %v855 = vld [vmem:[%s7 + $0x588] sm:$0xff]
        %v856 = vld [vmem:[%s7 + $0x590] sm:$0xff]
        %v857 = vld [vmem:[%s7 + $0x598] sm:$0xff]
        %v858 = vld [vmem:[%s7 + $0x5a0] sm:$0xff]
        %v859 = vld [vmem:[%s7 + $0x5a8] sm:$0xff]
        %v860 = vld [vmem:[%s7 + $0x5b0] sm:$0xff]
        %v861 = vld [vmem:[%s7 + $0x5b8] sm:$0xff]
        %v862 = vld [vmem:[%s7 + $0x5c0] sm:$0xff]
        %v863 = vld [vmem:[%s7 + $0x5c8] sm:$0xff]
        %v864 = vld [vmem:[%s7 + $0x5d0] sm:$0xff]
        %v865 = vld [vmem:[%s7 + $0x5d8] sm:$0xff]
        %v866 = vld [vmem:[%s7 + $0x5e0] sm:$0xff]
        %v867 = vld [vmem:[%s7 + $0x5e8] sm:$0xff]
        %v868 = vld [vmem:[%s7 + $0x5f0] sm:$0xff]
        %v869 = vld [vmem:[%s7 + $0x5f8] sm:$0xff]
        %v870 = vld [vmem:[%s7 + $0x600] sm:$0xff]
        %v871 = vld [vmem:[%s7 + $0x608] sm:$0xff]
        %v872 = vld [vmem:[%s7 + $0x610] sm:$0xff]
        %v873 = vld [vmem:[%s7 + $0x618] sm:$0xff]
        %v874 = vld [vmem:[%s7 + $0x620] sm:$0xff]
        %v875 = vld [vmem:[%s7 + $0x628] sm:$0xff]
        %v876 = vld [vmem:[%s7 + $0x630] sm:$0xff]
        %v877 = vld [vmem:[%s7 + $0x638] sm:$0xff]
        %v878 = vld [vmem:[%s7 + $0x640] sm:$0xff]
        %v879 = vld [vmem:[%s7 + $0x648] sm:$0xff]
        %v880 = vld [vmem:[%s7 + $0x650] sm:$0xff]
        %v881 = vld [vmem:[%s7 + $0x658] sm:$0xff]
        %v882 = vld [vmem:[%s7 + $0x660] sm:$0xff]
        %v883 = vld [vmem:[%s7 + $0x668] sm:$0xff]
        %v884 = vld [vmem:[%s7 + $0x670] sm:$0xff]
        %v885 = vld [vmem:[%s7 + $0x678] sm:$0xff]
        %v886 = vld [vmem:[%s7 + $0x680] sm:$0xff]
        %v887 = vld [vmem:[%s7 + $0x688] sm:$0xff]
        %v888 = vld [vmem:[%s7 + $0x690] sm:$0xff]
        %v889 = vld [vmem:[%s7 + $0x698] sm:$0xff]
        %v890 = vld [vmem:[%s7 + $0x6a0] sm:$0xff]
        %v891 = vld [vmem:[%s7 + $0x6a8] sm:$0xff]
        %v892 = vld [vmem:[%s7 + $0x6b0] sm:$0xff]
        %v893 = vld [vmem:[%s7 + $0x6b8] sm:$0xff]
        %v894 = vld [vmem:[%s7 + $0x6c0] sm:$0xff]
        %v895 = vld [vmem:[%s7 + $0x6c8] sm:$0xff]
        %v896 = vld [vmem:[%s7 + $0x6d0] sm:$0xff]
        %v897 = vld [vmem:[%s7 + $0x6d8] sm:$0xff]
        %v898 = vld [vmem:[%s7 + $0x6e0] sm:$0xff]
        %v899 = vld [vmem:[%s7 + $0x6e8] sm:$0xff]
        %v900 = vld [vmem:[%s7 + $0x6f0] sm:$0xff]
        %v901 = vld [vmem:[%s7 + $0x6f8] sm:$0xff]
        %v902 = vld [vmem:[%s7 + $0x700] sm:$0xff]
        %v903 = vld [vmem:[%s7 + $0x708] sm:$0xff]
        %v904 = vld [vmem:[%s7 + $0x710] sm:$0xff]
        %v905 = vld [vmem:[%s7 + $0x718] sm:$0xff]
        %v906 = vld [vmem:[%s7 + $0x720] sm:$0xff]
        %v907 = vld [vmem:[%s7 + $0x728] sm:$0xff]
        %v908 = vld [vmem:[%s7 + $0x730] sm:$0xff]
        %v909 = vld [vmem:[%s7 + $0x738] sm:$0xff]
        %v910 = vld [vmem:[%s7 + $0x740] sm:$0xff]
        %v911 = vld [vmem:[%s7 + $0x748] sm:$0xff]
        %v912 = vld [vmem:[%s7 + $0x750] sm:$0xff]
        %v913 = vld [vmem:[%s7 + $0x758] sm:$0xff]
        %v914 = vld [vmem:[%s7 + $0x760] sm:$0xff]
        %v915 = vld [vmem:[%s7 + $0x768] sm:$0xff]
        %v916 = vld [vmem:[%s7 + $0x770] sm:$0xff]
        %v917 = vld [vmem:[%s7 + $0x778] sm:$0xff]
        %v918 = vld [vmem:[%s7 + $0x780] sm:$0xff]
        %v919 = vld [vmem:[%s7 + $0x788] sm:$0xff]
        %v920 = vld [vmem:[%s7 + $0x790] sm:$0xff]
        %v921 = vld [vmem:[%s7 + $0x798] sm:$0xff]
        %v922 = vld [vmem:[%s7 + $0x7a0] sm:$0xff]
        %v923 = vld [vmem:[%s7 + $0x7a8] sm:$0xff]
        %v924 = vld [vmem:[%s7 + $0x7b0] sm:$0xff]
        %v925 = vld [vmem:[%s7 + $0x7b8] sm:$0xff]
        %v926 = vld [vmem:[%s7 + $0x7c0] sm:$0xff]
        %v927 = vld [vmem:[%s7 + $0x7c8] sm:$0xff]
        %v928 = vld [vmem:[%s7 + $0x7d0] sm:$0xff]
        %v929 = vld [vmem:[%s7 + $0x7d8] sm:$0xff]
        %v930 = vld [vmem:[%s7 + $0x7e0] sm:$0xff]
        %v931 = vld [vmem:[%s7 + $0x7e8] sm:$0xff]
        %v932 = vld [vmem:[%s7 + $0x7f0] sm:$0xff]
        %v933 = vld [vmem:[%s7 + $0x7f8] sm:$0xff]
        %v934 = vld [vmem:[%s7 + $0x800] sm:$0xff]
        %v935 = vld [vmem:[%s7 + $0x808] sm:$0xff]
        %v936 = vld [vmem:[%s7 + $0x810] sm:$0xff]
        %v937 = vld [vmem:[%s7 + $0x818] sm:$0xff]
        %v938 = vld [vmem:[%s7 + $0x820] sm:$0xff]
        %v939 = vld [vmem:[%s7 + $0x828] sm:$0xff]
        %v940 = vld [vmem:[%s7 + $0x830] sm:$0xff]
        %v941 = vld [vmem:[%s7 + $0x838] sm:$0xff]
        %v942 = vld [vmem:[%s7 + $0x840] sm:$0xff]
        %v943 = vld [vmem:[%s7 + $0x848] sm:$0xff]
        %v944 = vld [vmem:[%s7 + $0x850] sm:$0xff]
        %v945 = vld [vmem:[%s7 + $0x858] sm:$0xff]
        %v946 = vld [vmem:[%s7 + $0x860] sm:$0xff]
        %v947 = vld [vmem:[%s7 + $0x868] sm:$0xff]
        %v948 = vld [vmem:[%s7 + $0x870] sm:$0xff]
        %v949 = vld [vmem:[%s7 + $0x878] sm:$0xff]
        %v950 = vld [vmem:[%s7 + $0x880] sm:$0xff]
        %v951 = vld [vmem:[%s7 + $0x888] sm:$0xff]
        %v952 = vld [vmem:[%s7 + $0x890] sm:$0xff]
        %v953 = vld [vmem:[%s7 + $0x898] sm:$0xff]
        %v954 = vld [vmem:[%s7 + $0x8a0] sm:$0xff]
        %v955 = vld [vmem:[%s7 + $0x8a8] sm:$0xff]
        %v956 = vld [vmem:[%s7 + $0x8b0] sm:$0xff]
        %v957 = vld [vmem:[%s7 + $0x8b8] sm:$0xff]
        %v958 = vld [vmem:[%s7 + $0x8c0] sm:$0xff]
        %v959 = vld [vmem:[%s7 + $0x8c8] sm:$0xff]
        %v960 = vld [vmem:[%s7 + $0x8d0] sm:$0xff]
        %v961 = vld [vmem:[%s7 + $0x8d8] sm:$0xff]
        %v962 = vld [vmem:[%s7 + $0x8e0] sm:$0xff]
        %v963 = vld [vmem:[%s7 + $0x8e8] sm:$0xff]
        %v964 = vld [vmem:[%s7 + $0x8f0] sm:$0xff]
        %v965 = vld [vmem:[%s7 + $0x8f8] sm:$0xff]
        %v966 = vld [vmem:[%s7 + $0x900] sm:$0xff]
        %v967 = vld [vmem:[%s7 + $0x908] sm:$0xff]
        %v968 = vld [vmem:[%s7 + $0x910] sm:$0xff]
        %v969 = vld [vmem:[%s7 + $0x918] sm:$0xff]
        %v970 = vld [vmem:[%s7 + $0x920] sm:$0xff]
        %v971 = vld [vmem:[%s7 + $0x928] sm:$0xff]
        %v972 = vld [vmem:[%s7 + $0x930] sm:$0xff]
        %v973 = vld [vmem:[%s7 + $0x938] sm:$0xff]
        %v974 = vld [vmem:[%s7 + $0x940] sm:$0xff]
        %v975 = vld [vmem:[%s7 + $0x948] sm:$0xff]
        %v976 = vld [vmem:[%s7 + $0x950] sm:$0xff]
        %v977 = vld [vmem:[%s7 + $0x958] sm:$0xff]
        %v978 = vld [vmem:[%s7 + $0x960] sm:$0xff]
        %v979 = vld [vmem:[%s7 + $0x968] sm:$0xff]
        %v980 = vld [vmem:[%s7 + $0x970] sm:$0xff]
        %v981 = vld [vmem:[%s7 + $0x978] sm:$0xff]
        %v982 = vld [vmem:[%s7 + $0x980] sm:$0xff]
        %v983 = vld [vmem:[%s7 + $0x988] sm:$0xff]
        %v984 = vld [vmem:[%s7 + $0x990] sm:$0xff]
        %v985 = vld [vmem:[%s7 + $0x998] sm:$0xff]
        %v986 = vld [vmem:[%s7 + $0x9a0] sm:$0xff]
        %v987 = vld [vmem:[%s7 + $0x9a8] sm:$0xff]
        %v988 = vld [vmem:[%s7 + $0x9b0] sm:$0xff]
        %v989 = vld [vmem:[%s7 + $0x9b8] sm:$0xff]
        %v990 = vld [vmem:[%s7 + $0x9c0] sm:$0xff]
        %v991 = vld [vmem:[%s7 + $0x9c8] sm:$0xff]
        %v992 = vld [vmem:[%s7 + $0x9d0] sm:$0xff]
        %v993 = vld [vmem:[%s7 + $0x9d8] sm:$0xff]
        %v994 = vld [vmem:[%s7 + $0x9e0] sm:$0xff]
        %v995 = vld [vmem:[%s7 + $0x9e8] sm:$0xff]
        %v996 = vld [vmem:[%s7 + $0x9f0] sm:$0xff]
        %v997 = vld [vmem:[%s7 + $0x9f8] sm:$0xff]
        %v998 = vld [vmem:[%s7 + $0xa00] sm:$0xff]
        %v999 = vld [vmem:[%s7 + $0xa08] sm:$0xff]
        %v1000 = vld [vmem:[%s7 + $0xa10] sm:$0xff]
        %v1001 = vld [vmem:[%s7 + $0xa18] sm:$0xff]
        %v1002 = vld [vmem:[%s7 + $0xa20] sm:$0xff]
        %v1003 = vld [vmem:[%s7 + $0xa28] sm:$0xff]
        %v1004 = vld [vmem:[%s7 + $0xa30] sm:$0xff]
        %v1005 = vld [vmem:[%s7 + $0xa38] sm:$0xff]
        %v1006 = vld [vmem:[%s7 + $0xa40] sm:$0xff]
        %v1007 = vld [vmem:[%s7 + $0xa48] sm:$0xff]
        %v1008 = vld [vmem:[%s7 + $0xa50] sm:$0xff]
        %v1009 = vld [vmem:[%s7 + $0xa58] sm:$0xff]
        %v1010 = vld [vmem:[%s7 + $0xa60] sm:$0xff]
        %v1011 = vld [vmem:[%s7 + $0xa68] sm:$0xff]
        %v1012 = vld [vmem:[%s7 + $0xa70] sm:$0xff]
        %v1013 = vld [vmem:[%s7 + $0xa78] sm:$0xff]
        %v1014 = vld [vmem:[%s7 + $0xa80] sm:$0xff]
        %v1015 = vld [vmem:[%s7 + $0xa88] sm:$0xff]
        %v1016 = vld [vmem:[%s7 + $0xa90] sm:$0xff]
        %v1017 = vld [vmem:[%s7 + $0xa98] sm:$0xff]
        %v1018 = vld [vmem:[%s7 + $0xaa0] sm:$0xff]
        %v1019 = vld [vmem:[%s7 + $0xaa8] sm:$0xff]
        %v1020 = vld [vmem:[%s7 + $0xab0] sm:$0xff]
        %v1021 = vld [vmem:[%s7 + $0xab8] sm:$0xff]
        %v1022 = vld [vmem:[%s7 + $0xac0] sm:$0xff]
        %v1023 = vld [vmem:[%s7 + $0xac8] sm:$0xff]
        %v1024 = vld [vmem:[%s7 + $0xad0] sm:$0xff]
        %v1025 = vld [vmem:[%s7 + $0xad8] sm:$0xff]
        %v1026 = vld [vmem:[%s7 + $0xae0] sm:$0xff]
        %v1027 = vld [vmem:[%s7 + $0xae8] sm:$0xff]
        %v1028 = vld [vmem:[%s7 + $0xaf0] sm:$0xff]
        %v1029 = vld [vmem:[%s7 + $0xaf8] sm:$0xff]
        %v1030 = vld [vmem:[%s7 + $0xb00] sm:$0xff]
        %v1031 = vld [vmem:[%s7 + $0xb08] sm:$0xff]
        %v1032 = vld [vmem:[%s7 + $0xb10] sm:$0xff]
        %v1033 = vld [vmem:[%s7 + $0xb18] sm:$0xff]
        %v1034 = vld [vmem:[%s7 + $0xb20] sm:$0xff]
        %v1035 = vld [vmem:[%s7 + $0xb28] sm:$0xff]
        %v1036 = vld [vmem:[%s7 + $0xb30] sm:$0xff]
        %v1037 = vld [vmem:[%s7 + $0xb38] sm:$0xff]
        %v1038 = vld [vmem:[%s7 + $0xb40] sm:$0xff]
        %v1039 = vld [vmem:[%s7 + $0xb48] sm:$0xff]
        %v1040 = vld [vmem:[%s7 + $0xb50] sm:$0xff]
        %v1041 = vld [vmem:[%s7 + $0xb58] sm:$0xff]
        %v1042 = vld [vmem:[%s7 + $0xb60] sm:$0xff]
        %v1043 = vld [vmem:[%s7 + $0xb68] sm:$0xff]
        %v1044 = vld [vmem:[%s7 + $0xb70] sm:$0xff]
        %v1045 = vld [vmem:[%s7 + $0xb78] sm:$0xff]
        %v1046 = vld [vmem:[%s7 + $0xb80] sm:$0xff]
        %v1047 = vld [vmem:[%s7 + $0xb88] sm:$0xff]
        %v1048 = vld [vmem:[%s7 + $0xb90] sm:$0xff]
        %v1049 = vld [vmem:[%s7 + $0xb98] sm:$0xff]
        %v1050 = vld [vmem:[%s7 + $0xba0] sm:$0xff]
        %v1051 = vld [vmem:[%s7 + $0xba8] sm:$0xff]
        %v1052 = vld [vmem:[%s7 + $0xbb0] sm:$0xff]
        %v1053 = vld [vmem:[%s7 + $0xbb8] sm:$0xff]
        %v1054 = vld [vmem:[%s7 + $0xbc0] sm:$0xff]
        %v1055 = vld [vmem:[%s7 + $0xbc8] sm:$0xff]
        %v1056 = vld [vmem:[%s7 + $0xbd0] sm:$0xff]
        %v1057 = vld [vmem:[%s7 + $0xbd8] sm:$0xff]
        %v1058 = vld [vmem:[%s7 + $0xbe0] sm:$0xff]
        %v1059 = vld [vmem:[%s7 + $0xbe8] sm:$0xff]
        %v1060 = vld [vmem:[%s7 + $0xbf0] sm:$0xff]
        %v1061 = vld [vmem:[%s7 + $0xbf8] sm:$0xff]
        %v1062 = vld [vmem:[%s7 + $0xc00] sm:$0xff]
        %v1063 = vld [vmem:[%s7 + $0xc08] sm:$0xff]
        %v1064 = vld [vmem:[%s7 + $0xc10] sm:$0xff]
        %v1065 = vld [vmem:[%s7 + $0xc18] sm:$0xff]
        %v1066 = vld [vmem:[%s7 + $0xc20] sm:$0xff]
        %v1067 = vld [vmem:[%s7 + $0xc28] sm:$0xff]
        %v1068 = vld [vmem:[%s7 + $0xc30] sm:$0xff]
        %v1069 = vld [vmem:[%s7 + $0xc38] sm:$0xff]
        %v1070 = vld [vmem:[%s7 + $0xc40] sm:$0xff]
        %v1071 = vld [vmem:[%s7 + $0xc48] sm:$0xff]
        %v1072 = vld [vmem:[%s7 + $0xc50] sm:$0xff]
        %v1073 = vld [vmem:[%s7 + $0xc58] sm:$0xff]
        %v1074 = vld [vmem:[%s7 + $0xc60] sm:$0xff]
        %v1075 = vld [vmem:[%s7 + $0xc68] sm:$0xff]
        %v1076 = vld [vmem:[%s7 + $0xc70] sm:$0xff]
        %v1077 = vld [vmem:[%s7 + $0xc78] sm:$0xff]
        %v1078 = vld [vmem:[%s7 + $0xc80] sm:$0xff]
        %v1079 = vld [vmem:[%s7 + $0xc88] sm:$0xff]
        %v1080 = vld [vmem:[%s7 + $0xc90] sm:$0xff]
        %v1081 = vld [vmem:[%s7 + $0xc98] sm:$0xff]
        %v1082 = vld [vmem:[%s7 + $0xca0] sm:$0xff]
        %v1083 = vld [vmem:[%s7 + $0xca8] sm:$0xff]
        %v1084 = vld [vmem:[%s7 + $0xcb0] sm:$0xff]
        %v1085 = vld [vmem:[%s7 + $0xcb8] sm:$0xff]
        %v1086 = vld [vmem:[%s7 + $0xcc0] sm:$0xff]
        %v1087 = vld [vmem:[%s7 + $0xcc8] sm:$0xff]
        %v1088 = vld [vmem:[%s7 + $0xcd0] sm:$0xff]
        %v1089 = vld [vmem:[%s7 + $0xcd8] sm:$0xff]
        %v1090 = vld [vmem:[%s7 + $0xce0] sm:$0xff]
        %v1091 = vld [vmem:[%s7 + $0xce8] sm:$0xff]
        %v1092 = vld [vmem:[%s7 + $0xcf0] sm:$0xff]
        %v1093 = vld [vmem:[%s7 + $0xcf8] sm:$0xff]
        %v1094 = vld [vmem:[%s7 + $0xd00] sm:$0xff]
        %v1095 = vld [vmem:[%s7 + $0xd08] sm:$0xff]
        %v1096 = vld [vmem:[%s7 + $0xd10] sm:$0xff]
        %v1097 = vld [vmem:[%s7 + $0xd18] sm:$0xff]
        %v1098 = vld [vmem:[%s7 + $0xd20] sm:$0xff]
        %v1099 = vld [vmem:[%s7 + $0xd28] sm:$0xff]
        %v1100 = vld [vmem:[%s7 + $0xd30] sm:$0xff]
        %v1101 = vld [vmem:[%s7 + $0xd38] sm:$0xff]
        %v1102 = vld [vmem:[%s7 + $0xd40] sm:$0xff]
        %v1103 = vld [vmem:[%s7 + $0xd48] sm:$0xff]
        %v1104 = vld [vmem:[%s7 + $0xd50] sm:$0xff]
        %v1105 = vld [vmem:[%s7 + $0xd58] sm:$0xff]
        %v1106 = vld [vmem:[%s7 + $0xd60] sm:$0xff]
        %v1107 = vld [vmem:[%s7 + $0xd68] sm:$0xff]
        %v1108 = vld [vmem:[%s7 + $0xd70] sm:$0xff]
        %v1109 = vld [vmem:[%s7 + $0xd78] sm:$0xff]
        %v1110 = vld [vmem:[%s7 + $0xd80] sm:$0xff]
        %v1111 = vld [vmem:[%s7 + $0xd88] sm:$0xff]
        %v1112 = vld [vmem:[%s7 + $0xd90] sm:$0xff]
        %v1113 = vld [vmem:[%s7 + $0xd98] sm:$0xff]
        %v1114 = vld [vmem:[%s7 + $0xda0] sm:$0xff]
        %v1115 = vld [vmem:[%s7 + $0xda8] sm:$0xff]
        %v1116 = vld [vmem:[%s7 + $0xdb0] sm:$0xff]
        %v1117 = vld [vmem:[%s7 + $0xdb8] sm:$0xff]
        %v1118 = vld [vmem:[%s7 + $0xdc0] sm:$0xff]
        %v1119 = vld [vmem:[%s7 + $0xdc8] sm:$0xff]
        %v1120 = vld [vmem:[%s7 + $0xdd0] sm:$0xff]
        %v1121 = vld [vmem:[%s7 + $0xdd8] sm:$0xff]
        %v1122 = vld [vmem:[%s7 + $0xde0] sm:$0xff]
        %v1123 = vld [vmem:[%s7 + $0xde8] sm:$0xff]
        %v1124 = vld [vmem:[%s7 + $0xdf0] sm:$0xff]
        %v1125 = vld [vmem:[%s7 + $0xdf8] sm:$0xff]
        %v1126 = vld [vmem:[%s7 + $0xe00] sm:$0xff]
        %v1127 = vld [vmem:[%s7 + $0xe08] sm:$0xff]
        %v1128 = vld [vmem:[%s7 + $0xe10] sm:$0xff]
        %v1129 = vld [vmem:[%s7 + $0xe18] sm:$0xff]
        %v1130 = vld [vmem:[%s7 + $0xe20] sm:$0xff]
        %v1131 = vld [vmem:[%s7 + $0xe28] sm:$0xff]
        %v1132 = vld [vmem:[%s7 + $0xe30] sm:$0xff]
        %v1133 = vld [vmem:[%s7 + $0xe38] sm:$0xff]
        %v1134 = vld [vmem:[%s7 + $0xe40] sm:$0xff]
        %v1135 = vld [vmem:[%s7 + $0xe48] sm:$0xff]
        %v1136 = vld [vmem:[%s7 + $0xe50] sm:$0xff]
        %v1137 = vld [vmem:[%s7 + $0xe58] sm:$0xff]
        %v1138 = vld [vmem:[%s7 + $0xe60] sm:$0xff]
        %v1139 = vld [vmem:[%s7 + $0xe68] sm:$0xff]
        %v1140 = vld [vmem:[%s7 + $0xe70] sm:$0xff]
        %v1141 = vld [vmem:[%s7 + $0xe78] sm:$0xff]
        %v1142 = vld [vmem:[%s7 + $0xe80] sm:$0xff]
        %v1143 = vld [vmem:[%s7 + $0xe88] sm:$0xff]
        %v1144 = vld [vmem:[%s7 + $0xe90] sm:$0xff]
        %v1145 = vld [vmem:[%s7 + $0xe98] sm:$0xff]
        %v1146 = vld [vmem:[%s7 + $0xea0] sm:$0xff]
        %v1147 = vld [vmem:[%s7 + $0xea8] sm:$0xff]
        %v1148 = vld [vmem:[%s7 + $0xeb0] sm:$0xff]
        %v1149 = vld [vmem:[%s7 + $0xeb8] sm:$0xff]
        %v1150 = vld [vmem:[%s7 + $0xec0] sm:$0xff]
        %v1151 = vld [vmem:[%s7 + $0xec8] sm:$0xff]
        %v1152 = vld [vmem:[%s7 + $0xed0] sm:$0xff]
        %v1153 = vld [vmem:[%s7 + $0xed8] sm:$0xff]
        %v1154 = vld [vmem:[%s7 + $0xee0] sm:$0xff]
        %v1155 = vld [vmem:[%s7 + $0xee8] sm:$0xff]
        %v1156 = vld [vmem:[%s7 + $0xef0] sm:$0xff]
        %v1157 = vld [vmem:[%s7 + $0xef8] sm:$0xff]
        %v1158 = vld [vmem:[%s7 + $0xf00] sm:$0xff]
        %v1159 = vld [vmem:[%s7 + $0xf08] sm:$0xff]
        %v1160 = vld [vmem:[%s7 + $0xf10] sm:$0xff]
        %v1161 = vld [vmem:[%s7 + $0xf18] sm:$0xff]
        %v1162 = vld [vmem:[%s7 + $0xf20] sm:$0xff]
        %v1163 = vld [vmem:[%s7 + $0xf28] sm:$0xff]
        %v1164 = vld [vmem:[%s7 + $0xf30] sm:$0xff]
        %v1165 = vld [vmem:[%s7 + $0xf38] sm:$0xff]
        %v1166 = vld [vmem:[%s7 + $0xf40] sm:$0xff]
        %v1167 = vld [vmem:[%s7 + $0xf48] sm:$0xff]
        %v1168 = vld [vmem:[%s7 + $0xf50] sm:$0xff]
        %v1169 = vld [vmem:[%s7 + $0xf58] sm:$0xff]
        %v1170 = vld [vmem:[%s7 + $0xf60] sm:$0xff]
        %v1171 = vld [vmem:[%s7 + $0xf68] sm:$0xff]
        %v1172 = vld [vmem:[%s7 + $0xf70] sm:$0xff]
        %v1173 = vld [vmem:[%s7 + $0xf78] sm:$0xff]
        %v1174 = vld [vmem:[%s7 + $0xf80] sm:$0xff]
        %v1175 = vld [vmem:[%s7 + $0xf88] sm:$0xff]
        %v1176 = vld [vmem:[%s7 + $0xf90] sm:$0xff]
        %v1177 = vld [vmem:[%s7 + $0xf98] sm:$0xff]
        %v1178 = vld [vmem:[%s7 + $0xfa0] sm:$0xff]
        %v1179 = vld [vmem:[%s7 + $0xfa8] sm:$0xff]
        %v1180 = vld [vmem:[%s7 + $0xfb0] sm:$0xff]
        %v1181 = vld [vmem:[%s7 + $0xfb8] sm:$0xff]
        %v1182 = vld [vmem:[%s7 + $0xfc0] sm:$0xff]
        %v1183 = vld [vmem:[%s7 + $0xfc8] sm:$0xff]
        %v1184 = vld [vmem:[%s7 + $0xfd0] sm:$0xff]
        %v1185 = vld [vmem:[%s7 + $0xfd8] sm:$0xff]
        %v1186 = vld [vmem:[%s7 + $0xfe0] sm:$0xff]
        %v1187 = vld [vmem:[%s7 + $0xfe8] sm:$0xff]
        %v1188 = vld [vmem:[%s7 + $0xff0] sm:$0xff]
        %v1189 = vld [vmem:[%s7 + $0xff8] sm:$0xff]
        %v1190 = vld [vmem:[#allocation2] sm:$0xff]
        %v1191 = vld [vmem:[#allocation2 + $0x8] sm:$0xff]
        %v1192 = vld [vmem:[#allocation2 + $0x10] sm:$0xff]
        %v1193 = vld [vmem:[#allocation2 + $0x18] sm:$0xff]
        %v1194 = vld [vmem:[#allocation2 + $0x20] sm:$0xff]
        %v1195 = vld [vmem:[#allocation2 + $0x28] sm:$0xff]
        %v1196 = vld [vmem:[#allocation2 + $0x30] sm:$0xff]
        %v1197 = vld [vmem:[#allocation2 + $0x38] sm:$0xff]
        %v1198 = vld [vmem:[#allocation2 + $0x40] sm:$0xff]
        %v1199 = vld [vmem:[#allocation2 + $0x48] sm:$0xff]
        %v1200 = vld [vmem:[#allocation2 + $0x50] sm:$0xff]
        %v1201 = vld [vmem:[#allocation2 + $0x58] sm:$0xff]
        %v1202 = vld [vmem:[#allocation2 + $0x60] sm:$0xff]
        %v1203 = vld [vmem:[#allocation2 + $0x68] sm:$0xff]
        %v1204 = vld [vmem:[#allocation2 + $0x70] sm:$0xff]
        %v1205 = vld [vmem:[#allocation2 + $0x78] sm:$0xff]
        %v1206 = vld [vmem:[#allocation2 + $0x80] sm:$0xff]
        %v1207 = vld [vmem:[#allocation2 + $0x88] sm:$0xff]
        %v1208 = vld [vmem:[#allocation2 + $0x90] sm:$0xff]
        %v1209 = vld [vmem:[#allocation2 + $0x98] sm:$0xff]
        %v1210 = vld [vmem:[#allocation2 + $0xa0] sm:$0xff]
        %v1211 = vld [vmem:[#allocation2 + $0xa8] sm:$0xff]
        %v1212 = vld [vmem:[#allocation2 + $0xb0] sm:$0xff]
        %v1213 = vld [vmem:[#allocation2 + $0xb8] sm:$0xff]
        %v1214 = vld [vmem:[#allocation2 + $0xc0] sm:$0xff]
        %v1215 = vld [vmem:[#allocation2 + $0xc8] sm:$0xff]
        %v1216 = vld [vmem:[#allocation2 + $0xd0] sm:$0xff]
        %v1217 = vld [vmem:[#allocation2 + $0xd8] sm:$0xff]
        %v1218 = vld [vmem:[#allocation2 + $0xe0] sm:$0xff]
        %v1219 = vld [vmem:[#allocation2 + $0xe8] sm:$0xff]
        %v1220 = vld [vmem:[#allocation2 + $0xf0] sm:$0xff]
        %v1221 = vld [vmem:[#allocation2 + $0xf8] sm:$0xff]
        %v1222 = vld [vmem:[#allocation2 + $0x100] sm:$0xff]
        %v1223 = vld [vmem:[#allocation2 + $0x108] sm:$0xff]
        %v1224 = vld [vmem:[#allocation2 + $0x110] sm:$0xff]
        %v1225 = vld [vmem:[#allocation2 + $0x118] sm:$0xff]
        %v1226 = vld [vmem:[#allocation2 + $0x120] sm:$0xff]
        %v1227 = vld [vmem:[#allocation2 + $0x128] sm:$0xff]
        %v1228 = vld [vmem:[#allocation2 + $0x130] sm:$0xff]
        %v1229 = vld [vmem:[#allocation2 + $0x138] sm:$0xff]
        %v1230 = vld [vmem:[#allocation2 + $0x140] sm:$0xff]
        %v1231 = vld [vmem:[#allocation2 + $0x148] sm:$0xff]
        %v1232 = vld [vmem:[#allocation2 + $0x150] sm:$0xff]
        %v1233 = vld [vmem:[#allocation2 + $0x158] sm:$0xff]
        %v1234 = vld [vmem:[#allocation2 + $0x160] sm:$0xff]
        %v1235 = vld [vmem:[#allocation2 + $0x168] sm:$0xff]
        %v1236 = vld [vmem:[#allocation2 + $0x170] sm:$0xff]
        %v1237 = vld [vmem:[#allocation2 + $0x178] sm:$0xff]
        %v1238 = vld [vmem:[#allocation2 + $0x180] sm:$0xff]
        %v1239 = vld [vmem:[#allocation2 + $0x188] sm:$0xff]
        %v1240 = vld [vmem:[#allocation2 + $0x190] sm:$0xff]
        %v1241 = vld [vmem:[#allocation2 + $0x198] sm:$0xff]
        %v1242 = vld [vmem:[#allocation2 + $0x1a0] sm:$0xff]
        %v1243 = vld [vmem:[#allocation2 + $0x1a8] sm:$0xff]
        %v1244 = vld [vmem:[#allocation2 + $0x1b0] sm:$0xff]
        %v1245 = vld [vmem:[#allocation2 + $0x1b8] sm:$0xff]
        %v1246 = vld [vmem:[#allocation2 + $0x1c0] sm:$0xff]
        %v1247 = vld [vmem:[#allocation2 + $0x1c8] sm:$0xff]
        %v1248 = vld [vmem:[#allocation2 + $0x1d0] sm:$0xff]
        %v1249 = vld [vmem:[#allocation2 + $0x1d8] sm:$0xff]
        %v1250 = vld [vmem:[#allocation2 + $0x1e0] sm:$0xff]
        %v1251 = vld [vmem:[#allocation2 + $0x1e8] sm:$0xff]
        %v1252 = vld [vmem:[#allocation2 + $0x1f0] sm:$0xff]
        %v1253 = vld [vmem:[#allocation2 + $0x1f8] sm:$0xff]
        %v1254 = vld [vmem:[#allocation2 + $0x200] sm:$0xff]
        %v1255 = vld [vmem:[#allocation2 + $0x208] sm:$0xff]
        %v1256 = vld [vmem:[#allocation2 + $0x210] sm:$0xff]
        %v1257 = vld [vmem:[#allocation2 + $0x218] sm:$0xff]
        %v1258 = vld [vmem:[#allocation2 + $0x220] sm:$0xff]
        %v1259 = vld [vmem:[#allocation2 + $0x228] sm:$0xff]
        %v1260 = vld [vmem:[#allocation2 + $0x230] sm:$0xff]
        %v1261 = vld [vmem:[#allocation2 + $0x238] sm:$0xff]
        %v1262 = vld [vmem:[#allocation2 + $0x240] sm:$0xff]
        %v1263 = vld [vmem:[#allocation2 + $0x248] sm:$0xff]
        %v1264 = vld [vmem:[#allocation2 + $0x250] sm:$0xff]
        %v1265 = vld [vmem:[#allocation2 + $0x258] sm:$0xff]
        %v1266 = vld [vmem:[#allocation2 + $0x260] sm:$0xff]
        %v1267 = vld [vmem:[#allocation2 + $0x268] sm:$0xff]
        %v1268 = vld [vmem:[#allocation2 + $0x270] sm:$0xff]
        %v1269 = vld [vmem:[#allocation2 + $0x278] sm:$0xff]
        %v1270 = vld [vmem:[#allocation2 + $0x280] sm:$0xff]
        %v1271 = vld [vmem:[#allocation2 + $0x288] sm:$0xff]
        %v1272 = vld [vmem:[#allocation2 + $0x290] sm:$0xff]
        %v1273 = vld [vmem:[#allocation2 + $0x298] sm:$0xff]
        %v1274 = vld [vmem:[#allocation2 + $0x2a0] sm:$0xff]
        %v1275 = vld [vmem:[#allocation2 + $0x2a8] sm:$0xff]
        %v1276 = vld [vmem:[#allocation2 + $0x2b0] sm:$0xff]
        %v1277 = vld [vmem:[#allocation2 + $0x2b8] sm:$0xff]
        %v1278 = vld [vmem:[#allocation2 + $0x2c0] sm:$0xff]
        %v1279 = vld [vmem:[#allocation2 + $0x2c8] sm:$0xff]
        %v1280 = vld [vmem:[#allocation2 + $0x2d0] sm:$0xff]
        %v1281 = vld [vmem:[#allocation2 + $0x2d8] sm:$0xff]
        %v1282 = vld [vmem:[#allocation2 + $0x2e0] sm:$0xff]
        %v1283 = vld [vmem:[#allocation2 + $0x2e8] sm:$0xff]
        %v1284 = vld [vmem:[#allocation2 + $0x2f0] sm:$0xff]
        %v1285 = vld [vmem:[#allocation2 + $0x2f8] sm:$0xff]
        %v1286 = vld [vmem:[#allocation2 + $0x300] sm:$0xff]
        %v1287 = vld [vmem:[#allocation2 + $0x308] sm:$0xff]
        %v1288 = vld [vmem:[#allocation2 + $0x310] sm:$0xff]
        %v1289 = vld [vmem:[#allocation2 + $0x318] sm:$0xff]
        %v1290 = vld [vmem:[#allocation2 + $0x320] sm:$0xff]
        %v1291 = vld [vmem:[#allocation2 + $0x328] sm:$0xff]
        %v1292 = vld [vmem:[#allocation2 + $0x330] sm:$0xff]
        %v1293 = vld [vmem:[#allocation2 + $0x338] sm:$0xff]
        %v1294 = vld [vmem:[#allocation2 + $0x340] sm:$0xff]
        %v1295 = vld [vmem:[#allocation2 + $0x348] sm:$0xff]
        %v1296 = vld [vmem:[#allocation2 + $0x350] sm:$0xff]
        %v1297 = vld [vmem:[#allocation2 + $0x358] sm:$0xff]
        %v1298 = vld [vmem:[#allocation2 + $0x360] sm:$0xff]
        %v1299 = vld [vmem:[#allocation2 + $0x368] sm:$0xff]
        %v1300 = vld [vmem:[#allocation2 + $0x370] sm:$0xff]
        %v1301 = vld [vmem:[#allocation2 + $0x378] sm:$0xff]
        %v1302 = vld [vmem:[#allocation2 + $0x380] sm:$0xff]
        %v1303 = vld [vmem:[#allocation2 + $0x388] sm:$0xff]
        %v1304 = vld [vmem:[#allocation2 + $0x390] sm:$0xff]
        %v1305 = vld [vmem:[#allocation2 + $0x398] sm:$0xff]
        %v1306 = vld [vmem:[#allocation2 + $0x3a0] sm:$0xff]
        %v1307 = vld [vmem:[#allocation2 + $0x3a8] sm:$0xff]
        %v1308 = vld [vmem:[#allocation2 + $0x3b0] sm:$0xff]
        %v1309 = vld [vmem:[#allocation2 + $0x3b8] sm:$0xff]
        %v1310 = vld [vmem:[#allocation2 + $0x3c0] sm:$0xff]
        %v1311 = vld [vmem:[#allocation2 + $0x3c8] sm:$0xff]
        %v1312 = vld [vmem:[#allocation2 + $0x3d0] sm:$0xff]
        %v1313 = vld [vmem:[#allocation2 + $0x3d8] sm:$0xff]
        %v1314 = vld [vmem:[#allocation2 + $0x3e0] sm:$0xff]
        %v1315 = vld [vmem:[#allocation2 + $0x3e8] sm:$0xff]
        %v1316 = vld [vmem:[#allocation2 + $0x3f0] sm:$0xff]
        %v1317 = vld [vmem:[#allocation2 + $0x3f8] sm:$0xff]
        %v1318 = vld [vmem:[#allocation2 + $0x400] sm:$0xff]
        %v1319 = vld [vmem:[#allocation2 + $0x408] sm:$0xff]
        %v1320 = vld [vmem:[#allocation2 + $0x410] sm:$0xff]
        %v1321 = vld [vmem:[#allocation2 + $0x418] sm:$0xff]
        %v1322 = vld [vmem:[#allocation2 + $0x420] sm:$0xff]
        %v1323 = vld [vmem:[#allocation2 + $0x428] sm:$0xff]
        %v1324 = vld [vmem:[#allocation2 + $0x430] sm:$0xff]
        %v1325 = vld [vmem:[#allocation2 + $0x438] sm:$0xff]
        %v1326 = vld [vmem:[#allocation2 + $0x440] sm:$0xff]
        %v1327 = vld [vmem:[#allocation2 + $0x448] sm:$0xff]
        %v1328 = vld [vmem:[#allocation2 + $0x450] sm:$0xff]
        %v1329 = vld [vmem:[#allocation2 + $0x458] sm:$0xff]
        %v1330 = vld [vmem:[#allocation2 + $0x460] sm:$0xff]
        %v1331 = vld [vmem:[#allocation2 + $0x468] sm:$0xff]
        %v1332 = vld [vmem:[#allocation2 + $0x470] sm:$0xff]
        %v1333 = vld [vmem:[#allocation2 + $0x478] sm:$0xff]
        %v1334 = vld [vmem:[#allocation2 + $0x480] sm:$0xff]
        %v1335 = vld [vmem:[#allocation2 + $0x488] sm:$0xff]
        %v1336 = vld [vmem:[#allocation2 + $0x490] sm:$0xff]
        %v1337 = vld [vmem:[#allocation2 + $0x498] sm:$0xff]
        %v1338 = vld [vmem:[#allocation2 + $0x4a0] sm:$0xff]
        %v1339 = vld [vmem:[#allocation2 + $0x4a8] sm:$0xff]
        %v1340 = vld [vmem:[#allocation2 + $0x4b0] sm:$0xff]
        %v1341 = vld [vmem:[#allocation2 + $0x4b8] sm:$0xff]
        %v1342 = vld [vmem:[#allocation2 + $0x4c0] sm:$0xff]
        %v1343 = vld [vmem:[#allocation2 + $0x4c8] sm:$0xff]
        %v1344 = vld [vmem:[#allocation2 + $0x4d0] sm:$0xff]
        %v1345 = vld [vmem:[#allocation2 + $0x4d8] sm:$0xff]
        %v1346 = vld [vmem:[#allocation2 + $0x4e0] sm:$0xff]
        %v1347 = vld [vmem:[#allocation2 + $0x4e8] sm:$0xff]
        %v1348 = vld [vmem:[#allocation2 + $0x4f0] sm:$0xff]
        %v1349 = vld [vmem:[#allocation2 + $0x4f8] sm:$0xff]
        %v1350 = vld [vmem:[#allocation2 + $0x500] sm:$0xff]
        %v1351 = vld [vmem:[#allocation2 + $0x508] sm:$0xff]
        %v1352 = vld [vmem:[#allocation2 + $0x510] sm:$0xff]
        %v1353 = vld [vmem:[#allocation2 + $0x518] sm:$0xff]
        %v1354 = vld [vmem:[#allocation2 + $0x520] sm:$0xff]
        %v1355 = vld [vmem:[#allocation2 + $0x528] sm:$0xff]
        %v1356 = vld [vmem:[#allocation2 + $0x530] sm:$0xff]
        %v1357 = vld [vmem:[#allocation2 + $0x538] sm:$0xff]
        %v1358 = vld [vmem:[#allocation2 + $0x540] sm:$0xff]
        %v1359 = vld [vmem:[#allocation2 + $0x548] sm:$0xff]
        %v1360 = vld [vmem:[#allocation2 + $0x550] sm:$0xff]
        %v1361 = vld [vmem:[#allocation2 + $0x558] sm:$0xff]
        %v1362 = vld [vmem:[#allocation2 + $0x560] sm:$0xff]
        %v1363 = vld [vmem:[#allocation2 + $0x568] sm:$0xff]
        %v1364 = vld [vmem:[#allocation2 + $0x570] sm:$0xff]
        %v1365 = vld [vmem:[#allocation2 + $0x578] sm:$0xff]
        %v1366 = vld [vmem:[#allocation2 + $0x580] sm:$0xff]
        %v1367 = vld [vmem:[#allocation2 + $0x588] sm:$0xff]
        %v1368 = vld [vmem:[#allocation2 + $0x590] sm:$0xff]
        %v1369 = vld [vmem:[#allocation2 + $0x598] sm:$0xff]
        %v1370 = vld [vmem:[#allocation2 + $0x5a0] sm:$0xff]
        %v1371 = vld [vmem:[#allocation2 + $0x5a8] sm:$0xff]
        %v1372 = vld [vmem:[#allocation2 + $0x5b0] sm:$0xff]
        %v1373 = vld [vmem:[#allocation2 + $0x5b8] sm:$0xff]
        %v1374 = vld [vmem:[#allocation2 + $0x5c0] sm:$0xff]
        %v1375 = vld [vmem:[#allocation2 + $0x5c8] sm:$0xff]
        %v1376 = vld [vmem:[#allocation2 + $0x5d0] sm:$0xff]
        %v1377 = vld [vmem:[#allocation2 + $0x5d8] sm:$0xff]
        %v1378 = vld [vmem:[#allocation2 + $0x5e0] sm:$0xff]
        %v1379 = vld [vmem:[#allocation2 + $0x5e8] sm:$0xff]
        %v1380 = vld [vmem:[#allocation2 + $0x5f0] sm:$0xff]
        %v1381 = vld [vmem:[#allocation2 + $0x5f8] sm:$0xff]
        %v1382 = vld [vmem:[#allocation2 + $0x600] sm:$0xff]
        %v1383 = vld [vmem:[#allocation2 + $0x608] sm:$0xff]
        %v1384 = vld [vmem:[#allocation2 + $0x610] sm:$0xff]
        %v1385 = vld [vmem:[#allocation2 + $0x618] sm:$0xff]
        %v1386 = vld [vmem:[#allocation2 + $0x620] sm:$0xff]
        %v1387 = vld [vmem:[#allocation2 + $0x628] sm:$0xff]
        %v1388 = vld [vmem:[#allocation2 + $0x630] sm:$0xff]
        %v1389 = vld [vmem:[#allocation2 + $0x638] sm:$0xff]
        %v1390 = vld [vmem:[#allocation2 + $0x640] sm:$0xff]
        %v1391 = vld [vmem:[#allocation2 + $0x648] sm:$0xff]
        %v1392 = vld [vmem:[#allocation2 + $0x650] sm:$0xff]
        %v1393 = vld [vmem:[#allocation2 + $0x658] sm:$0xff]
        %v1394 = vld [vmem:[#allocation2 + $0x660] sm:$0xff]
        %v1395 = vld [vmem:[#allocation2 + $0x668] sm:$0xff]
        %v1396 = vld [vmem:[#allocation2 + $0x670] sm:$0xff]
        %v1397 = vld [vmem:[#allocation2 + $0x678] sm:$0xff]
        %v1398 = vld [vmem:[#allocation2 + $0x680] sm:$0xff]
        %v1399 = vld [vmem:[#allocation2 + $0x688] sm:$0xff]
        %v1400 = vld [vmem:[#allocation2 + $0x690] sm:$0xff]
        %v1401 = vld [vmem:[#allocation2 + $0x698] sm:$0xff]
        %v1402 = vld [vmem:[#allocation2 + $0x6a0] sm:$0xff]
        %v1403 = vld [vmem:[#allocation2 + $0x6a8] sm:$0xff]
        %v1404 = vld [vmem:[#allocation2 + $0x6b0] sm:$0xff]
        %v1405 = vld [vmem:[#allocation2 + $0x6b8] sm:$0xff]
        %v1406 = vld [vmem:[#allocation2 + $0x6c0] sm:$0xff]
        %v1407 = vld [vmem:[#allocation2 + $0x6c8] sm:$0xff]
        %v1408 = vld [vmem:[#allocation2 + $0x6d0] sm:$0xff]
        %v1409 = vld [vmem:[#allocation2 + $0x6d8] sm:$0xff]
        %v1410 = vld [vmem:[#allocation2 + $0x6e0] sm:$0xff]
        %v1411 = vld [vmem:[#allocation2 + $0x6e8] sm:$0xff]
        %v1412 = vld [vmem:[#allocation2 + $0x6f0] sm:$0xff]
        %v1413 = vld [vmem:[#allocation2 + $0x6f8] sm:$0xff]
        %v1414 = vld [vmem:[#allocation2 + $0x700] sm:$0xff]
        %v1415 = vld [vmem:[#allocation2 + $0x708] sm:$0xff]
        %v1416 = vld [vmem:[#allocation2 + $0x710] sm:$0xff]
        %v1417 = vld [vmem:[#allocation2 + $0x718] sm:$0xff]
        %v1418 = vld [vmem:[#allocation2 + $0x720] sm:$0xff]
        %v1419 = vld [vmem:[#allocation2 + $0x728] sm:$0xff]
        %v1420 = vld [vmem:[#allocation2 + $0x730] sm:$0xff]
        %v1421 = vld [vmem:[#allocation2 + $0x738] sm:$0xff]
        %v1422 = vld [vmem:[#allocation2 + $0x740] sm:$0xff]
        %v1423 = vld [vmem:[#allocation2 + $0x748] sm:$0xff]
        %v1424 = vld [vmem:[#allocation2 + $0x750] sm:$0xff]
        %v1425 = vld [vmem:[#allocation2 + $0x758] sm:$0xff]
        %v1426 = vld [vmem:[#allocation2 + $0x760] sm:$0xff]
        %v1427 = vld [vmem:[#allocation2 + $0x768] sm:$0xff]
        %v1428 = vld [vmem:[#allocation2 + $0x770] sm:$0xff]
        %v1429 = vld [vmem:[#allocation2 + $0x778] sm:$0xff]
        %v1430 = vld [vmem:[#allocation2 + $0x780] sm:$0xff]
        %v1431 = vld [vmem:[#allocation2 + $0x788] sm:$0xff]
        %v1432 = vld [vmem:[#allocation2 + $0x790] sm:$0xff]
        %v1433 = vld [vmem:[#allocation2 + $0x798] sm:$0xff]
        %v1434 = vld [vmem:[#allocation2 + $0x7a0] sm:$0xff]
        %v1435 = vld [vmem:[#allocation2 + $0x7a8] sm:$0xff]
        %v1436 = vld [vmem:[#allocation2 + $0x7b0] sm:$0xff]
        %v1437 = vld [vmem:[#allocation2 + $0x7b8] sm:$0xff]
        %v1438 = vld [vmem:[#allocation2 + $0x7c0] sm:$0xff]
        %v1439 = vld [vmem:[#allocation2 + $0x7c8] sm:$0xff]
        %v1440 = vld [vmem:[#allocation2 + $0x7d0] sm:$0xff]
        %v1441 = vld [vmem:[#allocation2 + $0x7d8] sm:$0xff]
        %v1442 = vld [vmem:[#allocation2 + $0x7e0] sm:$0xff]
        %v1443 = vld [vmem:[#allocation2 + $0x7e8] sm:$0xff]
        %v1444 = vld [vmem:[#allocation2 + $0x7f0] sm:$0xff]
        %v1445 = vld [vmem:[#allocation2 + $0x7f8] sm:$0xff]
        %v1446 = vld [vmem:[#allocation2 + $0x800] sm:$0xff]
        %v1447 = vld [vmem:[#allocation2 + $0x808] sm:$0xff]
        %v1448 = vld [vmem:[#allocation2 + $0x810] sm:$0xff]
        %v1449 = vld [vmem:[#allocation2 + $0x818] sm:$0xff]
        %v1450 = vld [vmem:[#allocation2 + $0x820] sm:$0xff]
        %v1451 = vld [vmem:[#allocation2 + $0x828] sm:$0xff]
        %v1452 = vld [vmem:[#allocation2 + $0x830] sm:$0xff]
        %v1453 = vld [vmem:[#allocation2 + $0x838] sm:$0xff]
        %v1454 = vld [vmem:[#allocation2 + $0x840] sm:$0xff]
        %v1455 = vld [vmem:[#allocation2 + $0x848] sm:$0xff]
        %v1456 = vld [vmem:[#allocation2 + $0x850] sm:$0xff]
        %v1457 = vld [vmem:[#allocation2 + $0x858] sm:$0xff]
        %v1458 = vld [vmem:[#allocation2 + $0x860] sm:$0xff]
        %v1459 = vld [vmem:[#allocation2 + $0x868] sm:$0xff]
        %v1460 = vld [vmem:[#allocation2 + $0x870] sm:$0xff]
        %v1461 = vld [vmem:[#allocation2 + $0x878] sm:$0xff]
        %v1462 = vld [vmem:[#allocation2 + $0x880] sm:$0xff]
        %v1463 = vld [vmem:[#allocation2 + $0x888] sm:$0xff]
        %v1464 = vld [vmem:[#allocation2 + $0x890] sm:$0xff]
        %v1465 = vld [vmem:[#allocation2 + $0x898] sm:$0xff]
        %v1466 = vld [vmem:[#allocation2 + $0x8a0] sm:$0xff]
        %v1467 = vld [vmem:[#allocation2 + $0x8a8] sm:$0xff]
        %v1468 = vld [vmem:[#allocation2 + $0x8b0] sm:$0xff]
        %v1469 = vld [vmem:[#allocation2 + $0x8b8] sm:$0xff]
        %v1470 = vld [vmem:[#allocation2 + $0x8c0] sm:$0xff]
        %v1471 = vld [vmem:[#allocation2 + $0x8c8] sm:$0xff]
        %v1472 = vld [vmem:[#allocation2 + $0x8d0] sm:$0xff]
        %v1473 = vld [vmem:[#allocation2 + $0x8d8] sm:$0xff]
        %v1474 = vld [vmem:[#allocation2 + $0x8e0] sm:$0xff]
        %v1475 = vld [vmem:[#allocation2 + $0x8e8] sm:$0xff]
        %v1476 = vld [vmem:[#allocation2 + $0x8f0] sm:$0xff]
        %v1477 = vld [vmem:[#allocation2 + $0x8f8] sm:$0xff]
        %v1478 = vld [vmem:[#allocation2 + $0x900] sm:$0xff]
        %v1479 = vld [vmem:[#allocation2 + $0x908] sm:$0xff]
        %v1480 = vld [vmem:[#allocation2 + $0x910] sm:$0xff]
        %v1481 = vld [vmem:[#allocation2 + $0x918] sm:$0xff]
        %v1482 = vld [vmem:[#allocation2 + $0x920] sm:$0xff]
        %v1483 = vld [vmem:[#allocation2 + $0x928] sm:$0xff]
        %v1484 = vld [vmem:[#allocation2 + $0x930] sm:$0xff]
        %v1485 = vld [vmem:[#allocation2 + $0x938] sm:$0xff]
        %v1486 = vld [vmem:[#allocation2 + $0x940] sm:$0xff]
        %v1487 = vld [vmem:[#allocation2 + $0x948] sm:$0xff]
        %v1488 = vld [vmem:[#allocation2 + $0x950] sm:$0xff]
        %v1489 = vld [vmem:[#allocation2 + $0x958] sm:$0xff]
        %v1490 = vld [vmem:[#allocation2 + $0x960] sm:$0xff]
        %v1491 = vld [vmem:[#allocation2 + $0x968] sm:$0xff]
        %v1492 = vld [vmem:[#allocation2 + $0x970] sm:$0xff]
        %v1493 = vld [vmem:[#allocation2 + $0x978] sm:$0xff]
        %v1494 = vld [vmem:[#allocation2 + $0x980] sm:$0xff]
        %v1495 = vld [vmem:[#allocation2 + $0x988] sm:$0xff]
        %v1496 = vld [vmem:[#allocation2 + $0x990] sm:$0xff]
        %v1497 = vld [vmem:[#allocation2 + $0x998] sm:$0xff]
        %v1498 = vld [vmem:[#allocation2 + $0x9a0] sm:$0xff]
        %v1499 = vld [vmem:[#allocation2 + $0x9a8] sm:$0xff]
        %v1500 = vld [vmem:[#allocation2 + $0x9b0] sm:$0xff]
        %v1501 = vld [vmem:[#allocation2 + $0x9b8] sm:$0xff]
        %v1502 = vld [vmem:[#allocation2 + $0x9c0] sm:$0xff]
        %v1503 = vld [vmem:[#allocation2 + $0x9c8] sm:$0xff]
        %v1504 = vld [vmem:[#allocation2 + $0x9d0] sm:$0xff]
        %v1505 = vld [vmem:[#allocation2 + $0x9d8] sm:$0xff]
        %v1506 = vld [vmem:[#allocation2 + $0x9e0] sm:$0xff]
        %v1507 = vld [vmem:[#allocation2 + $0x9e8] sm:$0xff]
        %v1508 = vld [vmem:[#allocation2 + $0x9f0] sm:$0xff]
        %v1509 = vld [vmem:[#allocation2 + $0x9f8] sm:$0xff]
        %v1510 = vld [vmem:[#allocation2 + $0xa00] sm:$0xff]
        %v1511 = vld [vmem:[#allocation2 + $0xa08] sm:$0xff]
        %v1512 = vld [vmem:[#allocation2 + $0xa10] sm:$0xff]
        %v1513 = vld [vmem:[#allocation2 + $0xa18] sm:$0xff]
        %v1514 = vld [vmem:[#allocation2 + $0xa20] sm:$0xff]
        %v1515 = vld [vmem:[#allocation2 + $0xa28] sm:$0xff]
        %v1516 = vld [vmem:[#allocation2 + $0xa30] sm:$0xff]
        %v1517 = vld [vmem:[#allocation2 + $0xa38] sm:$0xff]
        %v1518 = vld [vmem:[#allocation2 + $0xa40] sm:$0xff]
        %v1519 = vld [vmem:[#allocation2 + $0xa48] sm:$0xff]
        %v1520 = vld [vmem:[#allocation2 + $0xa50] sm:$0xff]
        %v1521 = vld [vmem:[#allocation2 + $0xa58] sm:$0xff]
        %v1522 = vld [vmem:[#allocation2 + $0xa60] sm:$0xff]
        %v1523 = vld [vmem:[#allocation2 + $0xa68] sm:$0xff]
        %v1524 = vld [vmem:[#allocation2 + $0xa70] sm:$0xff]
        %v1525 = vld [vmem:[#allocation2 + $0xa78] sm:$0xff]
        %v1526 = vld [vmem:[#allocation2 + $0xa80] sm:$0xff]
        %v1527 = vld [vmem:[#allocation2 + $0xa88] sm:$0xff]
        %v1528 = vld [vmem:[#allocation2 + $0xa90] sm:$0xff]
        %v1529 = vld [vmem:[#allocation2 + $0xa98] sm:$0xff]
        %v1530 = vld [vmem:[#allocation2 + $0xaa0] sm:$0xff]
        %v1531 = vld [vmem:[#allocation2 + $0xaa8] sm:$0xff]
        %v1532 = vld [vmem:[#allocation2 + $0xab0] sm:$0xff]
        %v1533 = vld [vmem:[#allocation2 + $0xab8] sm:$0xff]
        %v1534 = vld [vmem:[#allocation2 + $0xac0] sm:$0xff]
        %v1535 = vld [vmem:[#allocation2 + $0xac8] sm:$0xff]
        %v1536 = vld [vmem:[#allocation2 + $0xad0] sm:$0xff]
        %v1537 = vld [vmem:[#allocation2 + $0xad8] sm:$0xff]
        %v1538 = vld [vmem:[#allocation2 + $0xae0] sm:$0xff]
        %v1539 = vld [vmem:[#allocation2 + $0xae8] sm:$0xff]
        %v1540 = vld [vmem:[#allocation2 + $0xaf0] sm:$0xff]
        %v1541 = vld [vmem:[#allocation2 + $0xaf8] sm:$0xff]
        %v1542 = vld [vmem:[#allocation2 + $0xb00] sm:$0xff]
        %v1543 = vld [vmem:[#allocation2 + $0xb08] sm:$0xff]
        %v1544 = vld [vmem:[#allocation2 + $0xb10] sm:$0xff]
        %v1545 = vld [vmem:[#allocation2 + $0xb18] sm:$0xff]
        %v1546 = vld [vmem:[#allocation2 + $0xb20] sm:$0xff]
        %v1547 = vld [vmem:[#allocation2 + $0xb28] sm:$0xff]
        %v1548 = vld [vmem:[#allocation2 + $0xb30] sm:$0xff]
        %v1549 = vld [vmem:[#allocation2 + $0xb38] sm:$0xff]
        %v1550 = vld [vmem:[#allocation2 + $0xb40] sm:$0xff]
        %v1551 = vld [vmem:[#allocation2 + $0xb48] sm:$0xff]
        %v1552 = vld [vmem:[#allocation2 + $0xb50] sm:$0xff]
        %v1553 = vld [vmem:[#allocation2 + $0xb58] sm:$0xff]
        %v1554 = vld [vmem:[#allocation2 + $0xb60] sm:$0xff]
        %v1555 = vld [vmem:[#allocation2 + $0xb68] sm:$0xff]
        %v1556 = vld [vmem:[#allocation2 + $0xb70] sm:$0xff]
        %v1557 = vld [vmem:[#allocation2 + $0xb78] sm:$0xff]
        %v1558 = vld [vmem:[#allocation2 + $0xb80] sm:$0xff]
        %v1559 = vld [vmem:[#allocation2 + $0xb88] sm:$0xff]
        %v1560 = vld [vmem:[#allocation2 + $0xb90] sm:$0xff]
        %v1561 = vld [vmem:[#allocation2 + $0xb98] sm:$0xff]
        %v1562 = vld [vmem:[#allocation2 + $0xba0] sm:$0xff]
        %v1563 = vld [vmem:[#allocation2 + $0xba8] sm:$0xff]
        %v1564 = vld [vmem:[#allocation2 + $0xbb0] sm:$0xff]
        %v1565 = vld [vmem:[#allocation2 + $0xbb8] sm:$0xff]
        %v1566 = vld [vmem:[#allocation2 + $0xbc0] sm:$0xff]
        %v1567 = vld [vmem:[#allocation2 + $0xbc8] sm:$0xff]
        %v1568 = vld [vmem:[#allocation2 + $0xbd0] sm:$0xff]
        %v1569 = vld [vmem:[#allocation2 + $0xbd8] sm:$0xff]
        %v1570 = vld [vmem:[#allocation2 + $0xbe0] sm:$0xff]
        %v1571 = vld [vmem:[#allocation2 + $0xbe8] sm:$0xff]
        %v1572 = vld [vmem:[#allocation2 + $0xbf0] sm:$0xff]
        %v1573 = vld [vmem:[#allocation2 + $0xbf8] sm:$0xff]
        %v1574 = vld [vmem:[#allocation2 + $0xc00] sm:$0xff]
        %v1575 = vld [vmem:[#allocation2 + $0xc08] sm:$0xff]
        %v1576 = vld [vmem:[#allocation2 + $0xc10] sm:$0xff]
        %v1577 = vld [vmem:[#allocation2 + $0xc18] sm:$0xff]
        %v1578 = vld [vmem:[#allocation2 + $0xc20] sm:$0xff]
        %v1579 = vld [vmem:[#allocation2 + $0xc28] sm:$0xff]
        %v1580 = vld [vmem:[#allocation2 + $0xc30] sm:$0xff]
        %v1581 = vld [vmem:[#allocation2 + $0xc38] sm:$0xff]
        %v1582 = vld [vmem:[#allocation2 + $0xc40] sm:$0xff]
        %v1583 = vld [vmem:[#allocation2 + $0xc48] sm:$0xff]
        %v1584 = vld [vmem:[#allocation2 + $0xc50] sm:$0xff]
        %v1585 = vld [vmem:[#allocation2 + $0xc58] sm:$0xff]
        %v1586 = vld [vmem:[#allocation2 + $0xc60] sm:$0xff]
        %v1587 = vld [vmem:[#allocation2 + $0xc68] sm:$0xff]
        %v1588 = vld [vmem:[#allocation2 + $0xc70] sm:$0xff]
        %v1589 = vld [vmem:[#allocation2 + $0xc78] sm:$0xff]
        %v1590 = vld [vmem:[#allocation2 + $0xc80] sm:$0xff]
        %v1591 = vld [vmem:[#allocation2 + $0xc88] sm:$0xff]
        %v1592 = vld [vmem:[#allocation2 + $0xc90] sm:$0xff]
        %v1593 = vld [vmem:[#allocation2 + $0xc98] sm:$0xff]
        %v1594 = vld [vmem:[#allocation2 + $0xca0] sm:$0xff]
        %v1595 = vld [vmem:[#allocation2 + $0xca8] sm:$0xff]
        %v1596 = vld [vmem:[#allocation2 + $0xcb0] sm:$0xff]
        %v1597 = vld [vmem:[#allocation2 + $0xcb8] sm:$0xff]
        %v1598 = vld [vmem:[#allocation2 + $0xcc0] sm:$0xff]
        %v1599 = vld [vmem:[#allocation2 + $0xcc8] sm:$0xff]
        %v1600 = vld [vmem:[#allocation2 + $0xcd0] sm:$0xff]
        %v1601 = vld [vmem:[#allocation2 + $0xcd8] sm:$0xff]
        %v1602 = vld [vmem:[#allocation2 + $0xce0] sm:$0xff]
        %v1603 = vld [vmem:[#allocation2 + $0xce8] sm:$0xff]
        %v1604 = vld [vmem:[#allocation2 + $0xcf0] sm:$0xff]
        %v1605 = vld [vmem:[#allocation2 + $0xcf8] sm:$0xff]
        %v1606 = vld [vmem:[#allocation2 + $0xd00] sm:$0xff]
        %v1607 = vld [vmem:[#allocation2 + $0xd08] sm:$0xff]
        %v1608 = vld [vmem:[#allocation2 + $0xd10] sm:$0xff]
        %v1609 = vld [vmem:[#allocation2 + $0xd18] sm:$0xff]
        %v1610 = vld [vmem:[#allocation2 + $0xd20] sm:$0xff]
        %v1611 = vld [vmem:[#allocation2 + $0xd28] sm:$0xff]
        %v1612 = vld [vmem:[#allocation2 + $0xd30] sm:$0xff]
        %v1613 = vld [vmem:[#allocation2 + $0xd38] sm:$0xff]
        %v1614 = vld [vmem:[#allocation2 + $0xd40] sm:$0xff]
        %v1615 = vld [vmem:[#allocation2 + $0xd48] sm:$0xff]
        %v1616 = vld [vmem:[#allocation2 + $0xd50] sm:$0xff]
        %v1617 = vld [vmem:[#allocation2 + $0xd58] sm:$0xff]
        %v1618 = vld [vmem:[#allocation2 + $0xd60] sm:$0xff]
        %v1619 = vld [vmem:[#allocation2 + $0xd68] sm:$0xff]
        %v1620 = vld [vmem:[#allocation2 + $0xd70] sm:$0xff]
        %v1621 = vld [vmem:[#allocation2 + $0xd78] sm:$0xff]
        %v1622 = vld [vmem:[#allocation2 + $0xd80] sm:$0xff]
        %v1623 = vld [vmem:[#allocation2 + $0xd88] sm:$0xff]
        %v1624 = vld [vmem:[#allocation2 + $0xd90] sm:$0xff]
        %v1625 = vld [vmem:[#allocation2 + $0xd98] sm:$0xff]
        %v1626 = vld [vmem:[#allocation2 + $0xda0] sm:$0xff]
        %v1627 = vld [vmem:[#allocation2 + $0xda8] sm:$0xff]
        %v1628 = vld [vmem:[#allocation2 + $0xdb0] sm:$0xff]
        %v1629 = vld [vmem:[#allocation2 + $0xdb8] sm:$0xff]
        %v1630 = vld [vmem:[#allocation2 + $0xdc0] sm:$0xff]
        %v1631 = vld [vmem:[#allocation2 + $0xdc8] sm:$0xff]
        %v1632 = vld [vmem:[#allocation2 + $0xdd0] sm:$0xff]
        %v1633 = vld [vmem:[#allocation2 + $0xdd8] sm:$0xff]
        %v1634 = vld [vmem:[#allocation2 + $0xde0] sm:$0xff]
        %v1635 = vld [vmem:[#allocation2 + $0xde8] sm:$0xff]
        %v1636 = vld [vmem:[#allocation2 + $0xdf0] sm:$0xff]
        %v1637 = vld [vmem:[#allocation2 + $0xdf8] sm:$0xff]
        %v1638 = vld [vmem:[#allocation2 + $0xe00] sm:$0xff]
        %v1639 = vld [vmem:[#allocation2 + $0xe08] sm:$0xff]
        %v1640 = vld [vmem:[#allocation2 + $0xe10] sm:$0xff]
        %v1641 = vld [vmem:[#allocation2 + $0xe18] sm:$0xff]
        %v1642 = vld [vmem:[#allocation2 + $0xe20] sm:$0xff]
        %v1643 = vld [vmem:[#allocation2 + $0xe28] sm:$0xff]
        %v1644 = vld [vmem:[#allocation2 + $0xe30] sm:$0xff]
        %v1645 = vld [vmem:[#allocation2 + $0xe38] sm:$0xff]
        %v1646 = vld [vmem:[#allocation2 + $0xe40] sm:$0xff]
        %v1647 = vld [vmem:[#allocation2 + $0xe48] sm:$0xff]
        %v1648 = vld [vmem:[#allocation2 + $0xe50] sm:$0xff]
        %v1649 = vld [vmem:[#allocation2 + $0xe58] sm:$0xff]
        %v1650 = vld [vmem:[#allocation2 + $0xe60] sm:$0xff]
        %v1651 = vld [vmem:[#allocation2 + $0xe68] sm:$0xff]
        %v1652 = vld [vmem:[#allocation2 + $0xe70] sm:$0xff]
        %v1653 = vld [vmem:[#allocation2 + $0xe78] sm:$0xff]
        %v1654 = vld [vmem:[#allocation2 + $0xe80] sm:$0xff]
        %v1655 = vld [vmem:[#allocation2 + $0xe88] sm:$0xff]
        %v1656 = vld [vmem:[#allocation2 + $0xe90] sm:$0xff]
        %v1657 = vld [vmem:[#allocation2 + $0xe98] sm:$0xff]
        %v1658 = vld [vmem:[#allocation2 + $0xea0] sm:$0xff]
        %v1659 = vld [vmem:[#allocation2 + $0xea8] sm:$0xff]
        %v1660 = vld [vmem:[#allocation2 + $0xeb0] sm:$0xff]
        %v1661 = vld [vmem:[#allocation2 + $0xeb8] sm:$0xff]
        %v1662 = vld [vmem:[#allocation2 + $0xec0] sm:$0xff]
        %v1663 = vld [vmem:[#allocation2 + $0xec8] sm:$0xff]
        %v1664 = vld [vmem:[#allocation2 + $0xed0] sm:$0xff]
        %v1665 = vld [vmem:[#allocation2 + $0xed8] sm:$0xff]
        %v1666 = vld [vmem:[#allocation2 + $0xee0] sm:$0xff]
        %v1667 = vld [vmem:[#allocation2 + $0xee8] sm:$0xff]
        %v1668 = vld [vmem:[#allocation2 + $0xef0] sm:$0xff]
        %v1669 = vld [vmem:[#allocation2 + $0xef8] sm:$0xff]
        %v1670 = vld [vmem:[#allocation2 + $0xf00] sm:$0xff]
        %v1671 = vld [vmem:[#allocation2 + $0xf08] sm:$0xff]
        %v1672 = vld [vmem:[#allocation2 + $0xf10] sm:$0xff]
        %v1673 = vld [vmem:[#allocation2 + $0xf18] sm:$0xff]
        %v1674 = vld [vmem:[#allocation2 + $0xf20] sm:$0xff]
        %v1675 = vld [vmem:[#allocation2 + $0xf28] sm:$0xff]
        %v1676 = vld [vmem:[#allocation2 + $0xf30] sm:$0xff]
        %v1677 = vld [vmem:[#allocation2 + $0xf38] sm:$0xff]
        %v1678 = vld [vmem:[#allocation2 + $0xf40] sm:$0xff]
        %v1679 = vld [vmem:[#allocation2 + $0xf48] sm:$0xff]
        %v1680 = vld [vmem:[#allocation2 + $0xf50] sm:$0xff]
        %v1681 = vld [vmem:[#allocation2 + $0xf58] sm:$0xff]
        %v1682 = vld [vmem:[#allocation2 + $0xf60] sm:$0xff]
        %v1683 = vld [vmem:[#allocation2 + $0xf68] sm:$0xff]
        %v1684 = vld [vmem:[#allocation2 + $0xf70] sm:$0xff]
        %v1685 = vld [vmem:[#allocation2 + $0xf78] sm:$0xff]
        %v1686 = vld [vmem:[#allocation2 + $0xf80] sm:$0xff]
        %v1687 = vld [vmem:[#allocation2 + $0xf88] sm:$0xff]
        %v1688 = vld [vmem:[#allocation2 + $0xf90] sm:$0xff]
        %v1689 = vld [vmem:[#allocation2 + $0xf98] sm:$0xff]
        %v1690 = vld [vmem:[#allocation2 + $0xfa0] sm:$0xff]
        %v1691 = vld [vmem:[#allocation2 + $0xfa8] sm:$0xff]
        %v1692 = vld [vmem:[#allocation2 + $0xfb0] sm:$0xff]
        %v1693 = vld [vmem:[#allocation2 + $0xfb8] sm:$0xff]
        %v1694 = vld [vmem:[#allocation2 + $0xfc0] sm:$0xff]
        %v1695 = vld [vmem:[#allocation2 + $0xfc8] sm:$0xff]
        %v1696 = vld [vmem:[#allocation2 + $0xfd0] sm:$0xff]
        %v1697 = vld [vmem:[#allocation2 + $0xfd8] sm:$0xff]
        %v1698 = vld [vmem:[#allocation2 + $0xfe0] sm:$0xff]
        %v1699 = vld [vmem:[#allocation2 + $0xfe8] sm:$0xff]
        %v1700 = vld [vmem:[#allocation2 + $0xff0] sm:$0xff]
        %v1701 = vld [vmem:[#allocation2 + $0xff8] sm:$0xff]
        %vm1702 = vcmask 31744
        %v1704 = vsel %vm1702, %v1190, 0
        %v1707 = vsel %vm1702, %v1191, 0
        %v1710 = vsel %vm1702, %v1192, 0
        %v1713 = vsel %vm1702, %v1193, 0
        %v1716 = vsel %vm1702, %v1194, 0
        %v1719 = vsel %vm1702, %v1195, 0
        %v1722 = vsel %vm1702, %v1196, 0
        %v1725 = vsel %vm1702, %v1197, 0
        %v1728 = vsel %vm1702, %v1198, 0
        %v1731 = vsel %vm1702, %v1199, 0
        %v1734 = vsel %vm1702, %v1200, 0
        %v1737 = vsel %vm1702, %v1201, 0
        %v1740 = vsel %vm1702, %v1202, 0
        %v1743 = vsel %vm1702, %v1203, 0
        %v1746 = vsel %vm1702, %v1204, 0
        %v1749 = vsel %vm1702, %v1205, 0
        %v1752 = vsel %vm1702, %v1206, 0
        %v1755 = vsel %vm1702, %v1207, 0
        %v1758 = vsel %vm1702, %v1208, 0
        %v1761 = vsel %vm1702, %v1209, 0
        %v1764 = vsel %vm1702, %v1210, 0
        %v1767 = vsel %vm1702, %v1211, 0
        %v1770 = vsel %vm1702, %v1212, 0
        %v1773 = vsel %vm1702, %v1213, 0
        %v1776 = vsel %vm1702, %v1214, 0
        %v1779 = vsel %vm1702, %v1215, 0
        %v1782 = vsel %vm1702, %v1216, 0
        %v1785 = vsel %vm1702, %v1217, 0
        %v1788 = vsel %vm1702, %v1218, 0
        %v1791 = vsel %vm1702, %v1219, 0
        %v1794 = vsel %vm1702, %v1220, 0
        %v1797 = vsel %vm1702, %v1221, 0
        %v1800 = vsel %vm1702, %v1222, 0
        %v1803 = vsel %vm1702, %v1223, 0
        %v1806 = vsel %vm1702, %v1224, 0
        %v1809 = vsel %vm1702, %v1225, 0
        %v1812 = vsel %vm1702, %v1226, 0
        %v1815 = vsel %vm1702, %v1227, 0
        %v1818 = vsel %vm1702, %v1228, 0
        %v1821 = vsel %vm1702, %v1229, 0
        %v1824 = vsel %vm1702, %v1230, 0
        %v1827 = vsel %vm1702, %v1231, 0
        %v1830 = vsel %vm1702, %v1232, 0
        %v1833 = vsel %vm1702, %v1233, 0
        %v1836 = vsel %vm1702, %v1234, 0
        %v1839 = vsel %vm1702, %v1235, 0
        %v1842 = vsel %vm1702, %v1236, 0
        %v1845 = vsel %vm1702, %v1237, 0
        %v1848 = vsel %vm1702, %v1238, 0
        %v1851 = vsel %vm1702, %v1239, 0
        %v1854 = vsel %vm1702, %v1240, 0
        %v1857 = vsel %vm1702, %v1241, 0
        %v1860 = vsel %vm1702, %v1242, 0
        %v1863 = vsel %vm1702, %v1243, 0
        %v1866 = vsel %vm1702, %v1244, 0
        %v1869 = vsel %vm1702, %v1245, 0
        %v1872 = vsel %vm1702, %v1246, 0
        %v1875 = vsel %vm1702, %v1247, 0
        %v1878 = vsel %vm1702, %v1248, 0
        %v1881 = vsel %vm1702, %v1249, 0
        %v1884 = vsel %vm1702, %v1250, 0
        %v1887 = vsel %vm1702, %v1251, 0
        %v1890 = vsel %vm1702, %v1252, 0
        %v1893 = vsel %vm1702, %v1253, 0
        %v1896 = vsel %vm1702, %v1254, 0
        %v1899 = vsel %vm1702, %v1255, 0
        %v1902 = vsel %vm1702, %v1256, 0
        %v1905 = vsel %vm1702, %v1257, 0
        %v1908 = vsel %vm1702, %v1258, 0
        %v1911 = vsel %vm1702, %v1259, 0
        %v1914 = vsel %vm1702, %v1260, 0
        %v1917 = vsel %vm1702, %v1261, 0
        %v1920 = vsel %vm1702, %v1262, 0
        %v1923 = vsel %vm1702, %v1263, 0
        %v1926 = vsel %vm1702, %v1264, 0
        %v1929 = vsel %vm1702, %v1265, 0
        %v1932 = vsel %vm1702, %v1266, 0
        %v1935 = vsel %vm1702, %v1267, 0
        %v1938 = vsel %vm1702, %v1268, 0
        %v1941 = vsel %vm1702, %v1269, 0
        %v1944 = vsel %vm1702, %v1270, 0
        %v1947 = vsel %vm1702, %v1271, 0
        %v1950 = vsel %vm1702, %v1272, 0
        %v1953 = vsel %vm1702, %v1273, 0
        %v1956 = vsel %vm1702, %v1274, 0
        %v1959 = vsel %vm1702, %v1275, 0
        %v1962 = vsel %vm1702, %v1276, 0
        %v1965 = vsel %vm1702, %v1277, 0
        %v1968 = vsel %vm1702, %v1278, 0
        %v1971 = vsel %vm1702, %v1279, 0
        %v1974 = vsel %vm1702, %v1280, 0
        %v1977 = vsel %vm1702, %v1281, 0
        %v1980 = vsel %vm1702, %v1282, 0
        %v1983 = vsel %vm1702, %v1283, 0
        %v1986 = vsel %vm1702, %v1284, 0
        %v1989 = vsel %vm1702, %v1285, 0
        %v1992 = vsel %vm1702, %v1286, 0
        %v1995 = vsel %vm1702, %v1287, 0
        %v1998 = vsel %vm1702, %v1288, 0
        %v2001 = vsel %vm1702, %v1289, 0
        %v2004 = vsel %vm1702, %v1290, 0
        %v2007 = vsel %vm1702, %v1291, 0
        %v2010 = vsel %vm1702, %v1292, 0
        %v2013 = vsel %vm1702, %v1293, 0
        %v2016 = vsel %vm1702, %v1294, 0
        %v2019 = vsel %vm1702, %v1295, 0
        %v2022 = vsel %vm1702, %v1296, 0
        %v2025 = vsel %vm1702, %v1297, 0
        %v2028 = vsel %vm1702, %v1298, 0
        %v2031 = vsel %vm1702, %v1299, 0
        %v2034 = vsel %vm1702, %v1300, 0
        %v2037 = vsel %vm1702, %v1301, 0
        %v2040 = vsel %vm1702, %v1302, 0
        %v2043 = vsel %vm1702, %v1303, 0
        %v2046 = vsel %vm1702, %v1304, 0
        %v2049 = vsel %vm1702, %v1305, 0
        %v2052 = vsel %vm1702, %v1306, 0
        %v2055 = vsel %vm1702, %v1307, 0
        %v2058 = vsel %vm1702, %v1308, 0
        %v2061 = vsel %vm1702, %v1309, 0
        %v2064 = vsel %vm1702, %v1310, 0
        %v2067 = vsel %vm1702, %v1311, 0
        %v2070 = vsel %vm1702, %v1312, 0
        %v2073 = vsel %vm1702, %v1313, 0
        %v2076 = vsel %vm1702, %v1314, 0
        %v2079 = vsel %vm1702, %v1315, 0
        %v2082 = vsel %vm1702, %v1316, 0
        %v2085 = vsel %vm1702, %v1317, 0
        %v2088 = vsel %vm1702, %v1318, 0
        %v2091 = vsel %vm1702, %v1319, 0
        %v2094 = vsel %vm1702, %v1320, 0
        %v2097 = vsel %vm1702, %v1321, 0
        %v2100 = vsel %vm1702, %v1322, 0
        %v2103 = vsel %vm1702, %v1323, 0
        %v2106 = vsel %vm1702, %v1324, 0
        %v2109 = vsel %vm1702, %v1325, 0
        %v2112 = vsel %vm1702, %v1326, 0
        %v2115 = vsel %vm1702, %v1327, 0
        %v2118 = vsel %vm1702, %v1328, 0
        %v2121 = vsel %vm1702, %v1329, 0
        %v2124 = vsel %vm1702, %v1330, 0
        %v2127 = vsel %vm1702, %v1331, 0
        %v2130 = vsel %vm1702, %v1332, 0
        %v2133 = vsel %vm1702, %v1333, 0
        %v2136 = vsel %vm1702, %v1334, 0
        %v2139 = vsel %vm1702, %v1335, 0
        %v2142 = vsel %vm1702, %v1336, 0
        %v2145 = vsel %vm1702, %v1337, 0
        %v2148 = vsel %vm1702, %v1338, 0
        %v2151 = vsel %vm1702, %v1339, 0
        %v2154 = vsel %vm1702, %v1340, 0
        %v2157 = vsel %vm1702, %v1341, 0
        %v2160 = vsel %vm1702, %v1342, 0
        %v2163 = vsel %vm1702, %v1343, 0
        %v2166 = vsel %vm1702, %v1344, 0
        %v2169 = vsel %vm1702, %v1345, 0
        %v2172 = vsel %vm1702, %v1346, 0
        %v2175 = vsel %vm1702, %v1347, 0
        %v2178 = vsel %vm1702, %v1348, 0
        %v2181 = vsel %vm1702, %v1349, 0
        %v2184 = vsel %vm1702, %v1350, 0
        %v2187 = vsel %vm1702, %v1351, 0
        %v2190 = vsel %vm1702, %v1352, 0
        %v2193 = vsel %vm1702, %v1353, 0
        %v2196 = vsel %vm1702, %v1354, 0
        %v2199 = vsel %vm1702, %v1355, 0
        %v2202 = vsel %vm1702, %v1356, 0
        %v2205 = vsel %vm1702, %v1357, 0
        %v2208 = vsel %vm1702, %v1358, 0
        %v2211 = vsel %vm1702, %v1359, 0
        %v2214 = vsel %vm1702, %v1360, 0
        %v2217 = vsel %vm1702, %v1361, 0
        %v2220 = vsel %vm1702, %v1362, 0
        %v2223 = vsel %vm1702, %v1363, 0
        %v2226 = vsel %vm1702, %v1364, 0
        %v2229 = vsel %vm1702, %v1365, 0
        %v2232 = vsel %vm1702, %v1366, 0
        %v2235 = vsel %vm1702, %v1367, 0
        %v2238 = vsel %vm1702, %v1368, 0
        %v2241 = vsel %vm1702, %v1369, 0
        %v2244 = vsel %vm1702, %v1370, 0
        %v2247 = vsel %vm1702, %v1371, 0
        %v2250 = vsel %vm1702, %v1372, 0
        %v2253 = vsel %vm1702, %v1373, 0
        %v2256 = vsel %vm1702, %v1374, 0
        %v2259 = vsel %vm1702, %v1375, 0
        %v2262 = vsel %vm1702, %v1376, 0
        %v2265 = vsel %vm1702, %v1377, 0
        %v2268 = vsel %vm1702, %v1378, 0
        %v2271 = vsel %vm1702, %v1379, 0
        %v2274 = vsel %vm1702, %v1380, 0
        %v2277 = vsel %vm1702, %v1381, 0
        %v2280 = vsel %vm1702, %v1382, 0
        %v2283 = vsel %vm1702, %v1383, 0
        %v2286 = vsel %vm1702, %v1384, 0
        %v2289 = vsel %vm1702, %v1385, 0
        %v2292 = vsel %vm1702, %v1386, 0
        %v2295 = vsel %vm1702, %v1387, 0
        %v2298 = vsel %vm1702, %v1388, 0
        %v2301 = vsel %vm1702, %v1389, 0
        %v2304 = vsel %vm1702, %v1390, 0
        %v2307 = vsel %vm1702, %v1391, 0
        %v2310 = vsel %vm1702, %v1392, 0
        %v2313 = vsel %vm1702, %v1393, 0
        %v2316 = vsel %vm1702, %v1394, 0
        %v2319 = vsel %vm1702, %v1395, 0
        %v2322 = vsel %vm1702, %v1396, 0
        %v2325 = vsel %vm1702, %v1397, 0
        %v2328 = vsel %vm1702, %v1398, 0
        %v2331 = vsel %vm1702, %v1399, 0
        %v2334 = vsel %vm1702, %v1400, 0
        %v2337 = vsel %vm1702, %v1401, 0
        %v2340 = vsel %vm1702, %v1402, 0
        %v2343 = vsel %vm1702, %v1403, 0
        %v2346 = vsel %vm1702, %v1404, 0
        %v2349 = vsel %vm1702, %v1405, 0
        %v2352 = vsel %vm1702, %v1406, 0
        %v2355 = vsel %vm1702, %v1407, 0
        %v2358 = vsel %vm1702, %v1408, 0
        %v2361 = vsel %vm1702, %v1409, 0
        %v2364 = vsel %vm1702, %v1410, 0
        %v2367 = vsel %vm1702, %v1411, 0
        %v2370 = vsel %vm1702, %v1412, 0
        %v2373 = vsel %vm1702, %v1413, 0
        %v2376 = vsel %vm1702, %v1414, 0
        %v2379 = vsel %vm1702, %v1415, 0
        %v2382 = vsel %vm1702, %v1416, 0
        %v2385 = vsel %vm1702, %v1417, 0
        %v2388 = vsel %vm1702, %v1418, 0
        %v2391 = vsel %vm1702, %v1419, 0
        %v2394 = vsel %vm1702, %v1420, 0
        %v2397 = vsel %vm1702, %v1421, 0
        %v2400 = vsel %vm1702, %v1422, 0
        %v2403 = vsel %vm1702, %v1423, 0
        %v2406 = vsel %vm1702, %v1424, 0
        %v2409 = vsel %vm1702, %v1425, 0
        %v2412 = vsel %vm1702, %v1426, 0
        %v2415 = vsel %vm1702, %v1427, 0
        %v2418 = vsel %vm1702, %v1428, 0
        %v2421 = vsel %vm1702, %v1429, 0
        %v2424 = vsel %vm1702, %v1430, 0
        %v2427 = vsel %vm1702, %v1431, 0
        %v2430 = vsel %vm1702, %v1432, 0
        %v2433 = vsel %vm1702, %v1433, 0
        %v2436 = vsel %vm1702, %v1434, 0
        %v2439 = vsel %vm1702, %v1435, 0
        %v2442 = vsel %vm1702, %v1436, 0
        %v2445 = vsel %vm1702, %v1437, 0
        %v2448 = vsel %vm1702, %v1438, 0
        %v2451 = vsel %vm1702, %v1439, 0
        %v2454 = vsel %vm1702, %v1440, 0
        %v2457 = vsel %vm1702, %v1441, 0
        %v2460 = vsel %vm1702, %v1442, 0
        %v2463 = vsel %vm1702, %v1443, 0
        %v2466 = vsel %vm1702, %v1444, 0
        %v2469 = vsel %vm1702, %v1445, 0
        %v2472 = vsel %vm1702, %v1446, 0
        %v2475 = vsel %vm1702, %v1447, 0
        %v2478 = vsel %vm1702, %v1448, 0
        %v2481 = vsel %vm1702, %v1449, 0
        %v2484 = vsel %vm1702, %v1450, 0
        %v2487 = vsel %vm1702, %v1451, 0
        %v2490 = vsel %vm1702, %v1452, 0
        %v2493 = vsel %vm1702, %v1453, 0
        %v2496 = vsel %vm1702, %v1454, 0
        %v2499 = vsel %vm1702, %v1455, 0
        %v2502 = vsel %vm1702, %v1456, 0
        %v2505 = vsel %vm1702, %v1457, 0
        %v2508 = vsel %vm1702, %v1458, 0
        %v2511 = vsel %vm1702, %v1459, 0
        %v2514 = vsel %vm1702, %v1460, 0
        %v2517 = vsel %vm1702, %v1461, 0
        %v2520 = vsel %vm1702, %v1462, 0
        %v2523 = vsel %vm1702, %v1463, 0
        %v2526 = vsel %vm1702, %v1464, 0
        %v2529 = vsel %vm1702, %v1465, 0
        %v2532 = vsel %vm1702, %v1466, 0
        %v2535 = vsel %vm1702, %v1467, 0
        %v2538 = vsel %vm1702, %v1468, 0
        %v2541 = vsel %vm1702, %v1469, 0
        %v2544 = vsel %vm1702, %v1470, 0
        %v2547 = vsel %vm1702, %v1471, 0
        %v2550 = vsel %vm1702, %v1472, 0
        %v2553 = vsel %vm1702, %v1473, 0
        %v2556 = vsel %vm1702, %v1474, 0
        %v2559 = vsel %vm1702, %v1475, 0
        %v2562 = vsel %vm1702, %v1476, 0
        %v2565 = vsel %vm1702, %v1477, 0
        %v2568 = vsel %vm1702, %v1478, 0
        %v2571 = vsel %vm1702, %v1479, 0
        %v2574 = vsel %vm1702, %v1480, 0
        %v2577 = vsel %vm1702, %v1481, 0
        %v2580 = vsel %vm1702, %v1482, 0
        %v2583 = vsel %vm1702, %v1483, 0
        %v2586 = vsel %vm1702, %v1484, 0
        %v2589 = vsel %vm1702, %v1485, 0
        %v2592 = vsel %vm1702, %v1486, 0
        %v2595 = vsel %vm1702, %v1487, 0
        %v2598 = vsel %vm1702, %v1488, 0
        %v2601 = vsel %vm1702, %v1489, 0
        %v2604 = vsel %vm1702, %v1490, 0
        %v2607 = vsel %vm1702, %v1491, 0
        %v2610 = vsel %vm1702, %v1492, 0
        %v2613 = vsel %vm1702, %v1493, 0
        %v2616 = vsel %vm1702, %v1494, 0
        %v2619 = vsel %vm1702, %v1495, 0
        %v2622 = vsel %vm1702, %v1496, 0
        %v2625 = vsel %vm1702, %v1497, 0
        %v2628 = vsel %vm1702, %v1498, 0
        %v2631 = vsel %vm1702, %v1499, 0
        %v2634 = vsel %vm1702, %v1500, 0
        %v2637 = vsel %vm1702, %v1501, 0
        %v2640 = vsel %vm1702, %v1502, 0
        %v2643 = vsel %vm1702, %v1503, 0
        %v2646 = vsel %vm1702, %v1504, 0
        %v2649 = vsel %vm1702, %v1505, 0
        %v2652 = vsel %vm1702, %v1506, 0
        %v2655 = vsel %vm1702, %v1507, 0
        %v2658 = vsel %vm1702, %v1508, 0
        %v2661 = vsel %vm1702, %v1509, 0
        %v2664 = vsel %vm1702, %v1510, 0
        %v2667 = vsel %vm1702, %v1511, 0
        %v2670 = vsel %vm1702, %v1512, 0
        %v2673 = vsel %vm1702, %v1513, 0
        %v2676 = vsel %vm1702, %v1514, 0
        %v2679 = vsel %vm1702, %v1515, 0
        %v2682 = vsel %vm1702, %v1516, 0
        %v2685 = vsel %vm1702, %v1517, 0
        %v2688 = vsel %vm1702, %v1518, 0
        %v2691 = vsel %vm1702, %v1519, 0
        %v2694 = vsel %vm1702, %v1520, 0
        %v2697 = vsel %vm1702, %v1521, 0
        %v2700 = vsel %vm1702, %v1522, 0
        %v2703 = vsel %vm1702, %v1523, 0
        %v2706 = vsel %vm1702, %v1524, 0
        %v2709 = vsel %vm1702, %v1525, 0
        %v2712 = vsel %vm1702, %v1526, 0
        %v2715 = vsel %vm1702, %v1527, 0
        %v2718 = vsel %vm1702, %v1528, 0
        %v2721 = vsel %vm1702, %v1529, 0
        %v2724 = vsel %vm1702, %v1530, 0
        %v2727 = vsel %vm1702, %v1531, 0
        %v2730 = vsel %vm1702, %v1532, 0
        %v2733 = vsel %vm1702, %v1533, 0
        %v2736 = vsel %vm1702, %v1534, 0
        %v2739 = vsel %vm1702, %v1535, 0
        %v2742 = vsel %vm1702, %v1536, 0
        %v2745 = vsel %vm1702, %v1537, 0
        %v2748 = vsel %vm1702, %v1538, 0
        %v2751 = vsel %vm1702, %v1539, 0
        %v2754 = vsel %vm1702, %v1540, 0
        %v2757 = vsel %vm1702, %v1541, 0
        %v2760 = vsel %vm1702, %v1542, 0
        %v2763 = vsel %vm1702, %v1543, 0
        %v2766 = vsel %vm1702, %v1544, 0
        %v2769 = vsel %vm1702, %v1545, 0
        %v2772 = vsel %vm1702, %v1546, 0
        %v2775 = vsel %vm1702, %v1547, 0
        %v2778 = vsel %vm1702, %v1548, 0
        %v2781 = vsel %vm1702, %v1549, 0
        %v2784 = vsel %vm1702, %v1550, 0
        %v2787 = vsel %vm1702, %v1551, 0
        %v2790 = vsel %vm1702, %v1552, 0
        %v2793 = vsel %vm1702, %v1553, 0
        %v2796 = vsel %vm1702, %v1554, 0
        %v2799 = vsel %vm1702, %v1555, 0
        %v2802 = vsel %vm1702, %v1556, 0
        %v2805 = vsel %vm1702, %v1557, 0
        %v2808 = vsel %vm1702, %v1558, 0
        %v2811 = vsel %vm1702, %v1559, 0
        %v2814 = vsel %vm1702, %v1560, 0
        %v2817 = vsel %vm1702, %v1561, 0
        %v2820 = vsel %vm1702, %v1562, 0
        %v2823 = vsel %vm1702, %v1563, 0
        %v2826 = vsel %vm1702, %v1564, 0
        %v2829 = vsel %vm1702, %v1565, 0
        %v2832 = vsel %vm1702, %v1566, 0
        %v2835 = vsel %vm1702, %v1567, 0
        %v2838 = vsel %vm1702, %v1568, 0
        %v2841 = vsel %vm1702, %v1569, 0
        %v2844 = vsel %vm1702, %v1570, 0
        %v2847 = vsel %vm1702, %v1571, 0
        %v2850 = vsel %vm1702, %v1572, 0
        %v2853 = vsel %vm1702, %v1573, 0
        %v2856 = vsel %vm1702, %v1574, 0
        %v2859 = vsel %vm1702, %v1575, 0
        %v2862 = vsel %vm1702, %v1576, 0
        %v2865 = vsel %vm1702, %v1577, 0
        %v2868 = vsel %vm1702, %v1578, 0
        %v2871 = vsel %vm1702, %v1579, 0
        %v2874 = vsel %vm1702, %v1580, 0
        %v2877 = vsel %vm1702, %v1581, 0
        %v2880 = vsel %vm1702, %v1582, 0
        %v2883 = vsel %vm1702, %v1583, 0
        %v2886 = vsel %vm1702, %v1584, 0
        %v2889 = vsel %vm1702, %v1585, 0
        %v2892 = vsel %vm1702, %v1586, 0
        %v2895 = vsel %vm1702, %v1587, 0
        %v2898 = vsel %vm1702, %v1588, 0
        %v2901 = vsel %vm1702, %v1589, 0
        %v2904 = vsel %vm1702, %v1590, 0
        %v2907 = vsel %vm1702, %v1591, 0
        %v2910 = vsel %vm1702, %v1592, 0
        %v2913 = vsel %vm1702, %v1593, 0
        %v2916 = vsel %vm1702, %v1594, 0
        %v2919 = vsel %vm1702, %v1595, 0
        %v2922 = vsel %vm1702, %v1596, 0
        %v2925 = vsel %vm1702, %v1597, 0
        %v2928 = vsel %vm1702, %v1598, 0
        %v2931 = vsel %vm1702, %v1599, 0
        %v2934 = vsel %vm1702, %v1600, 0
        %v2937 = vsel %vm1702, %v1601, 0
        %v2940 = vsel %vm1702, %v1602, 0
        %v2943 = vsel %vm1702, %v1603, 0
        %v2946 = vsel %vm1702, %v1604, 0
        %v2949 = vsel %vm1702, %v1605, 0
        %v2952 = vsel %vm1702, %v1606, 0
        %v2955 = vsel %vm1702, %v1607, 0
        %v2958 = vsel %vm1702, %v1608, 0
        %v2961 = vsel %vm1702, %v1609, 0
        %v2964 = vsel %vm1702, %v1610, 0
        %v2967 = vsel %vm1702, %v1611, 0
        %v2970 = vsel %vm1702, %v1612, 0
        %v2973 = vsel %vm1702, %v1613, 0
        %v2976 = vsel %vm1702, %v1614, 0
        %v2979 = vsel %vm1702, %v1615, 0
        %v2982 = vsel %vm1702, %v1616, 0
        %v2985 = vsel %vm1702, %v1617, 0
        %v2988 = vsel %vm1702, %v1618, 0
        %v2991 = vsel %vm1702, %v1619, 0
        %v2994 = vsel %vm1702, %v1620, 0
        %v2997 = vsel %vm1702, %v1621, 0
        %v3000 = vsel %vm1702, %v1622, 0
        %v3003 = vsel %vm1702, %v1623, 0
        %v3006 = vsel %vm1702, %v1624, 0
        %v3009 = vsel %vm1702, %v1625, 0
        %v3012 = vsel %vm1702, %v1626, 0
        %v3015 = vsel %vm1702, %v1627, 0
        %v3018 = vsel %vm1702, %v1628, 0
        %v3021 = vsel %vm1702, %v1629, 0
        %v3024 = vsel %vm1702, %v1630, 0
        %v3027 = vsel %vm1702, %v1631, 0
        %v3030 = vsel %vm1702, %v1632, 0
        %v3033 = vsel %vm1702, %v1633, 0
        %v3036 = vsel %vm1702, %v1634, 0
        %v3039 = vsel %vm1702, %v1635, 0
        %v3042 = vsel %vm1702, %v1636, 0
        %v3045 = vsel %vm1702, %v1637, 0
        %v3048 = vsel %vm1702, %v1638, 0
        %v3051 = vsel %vm1702, %v1639, 0
        %v3054 = vsel %vm1702, %v1640, 0
        %v3057 = vsel %vm1702, %v1641, 0
        %v3060 = vsel %vm1702, %v1642, 0
        %v3063 = vsel %vm1702, %v1643, 0
        %v3066 = vsel %vm1702, %v1644, 0
        %v3069 = vsel %vm1702, %v1645, 0
        %v3072 = vsel %vm1702, %v1646, 0
        %v3075 = vsel %vm1702, %v1647, 0
        %v3078 = vsel %vm1702, %v1648, 0
        %v3081 = vsel %vm1702, %v1649, 0
        %v3084 = vsel %vm1702, %v1650, 0
        %v3087 = vsel %vm1702, %v1651, 0
        %v3090 = vsel %vm1702, %v1652, 0
        %v3093 = vsel %vm1702, %v1653, 0
        %v3096 = vsel %vm1702, %v1654, 0
        %v3099 = vsel %vm1702, %v1655, 0
        %v3102 = vsel %vm1702, %v1656, 0
        %v3105 = vsel %vm1702, %v1657, 0
        %v3108 = vsel %vm1702, %v1658, 0
        %v3111 = vsel %vm1702, %v1659, 0
        %v3114 = vsel %vm1702, %v1660, 0
        %v3117 = vsel %vm1702, %v1661, 0
        %v3120 = vsel %vm1702, %v1662, 0
        %v3123 = vsel %vm1702, %v1663, 0
        %v3126 = vsel %vm1702, %v1664, 0
        %v3129 = vsel %vm1702, %v1665, 0
        %v3132 = vsel %vm1702, %v1666, 0
        %v3135 = vsel %vm1702, %v1667, 0
        %v3138 = vsel %vm1702, %v1668, 0
        %v3141 = vsel %vm1702, %v1669, 0
        %v3144 = vsel %vm1702, %v1670, 0
        %v3147 = vsel %vm1702, %v1671, 0
        %v3150 = vsel %vm1702, %v1672, 0
        %v3153 = vsel %vm1702, %v1673, 0
        %v3156 = vsel %vm1702, %v1674, 0
        %v3159 = vsel %vm1702, %v1675, 0
        %v3162 = vsel %vm1702, %v1676, 0
        %v3165 = vsel %vm1702, %v1677, 0
        %v3168 = vsel %vm1702, %v1678, 0
        %v3171 = vsel %vm1702, %v1679, 0
        %v3174 = vsel %vm1702, %v1680, 0
        %v3177 = vsel %vm1702, %v1681, 0
        %v3180 = vsel %vm1702, %v1682, 0
        %v3183 = vsel %vm1702, %v1683, 0
        %v3186 = vsel %vm1702, %v1684, 0
        %v3189 = vsel %vm1702, %v1685, 0
        %v3192 = vsel %vm1702, %v1686, 0
        %v3195 = vsel %vm1702, %v1687, 0
        %v3198 = vsel %vm1702, %v1688, 0
        %v3201 = vsel %vm1702, %v1689, 0
        %v3204 = vsel %vm1702, %v1690, 0
        %v3207 = vsel %vm1702, %v1691, 0
        %v3210 = vsel %vm1702, %v1692, 0
        %v3213 = vsel %vm1702, %v1693, 0
        %v3216 = vsel %vm1702, %v1694, 0
        %v3219 = vsel %vm1702, %v1695, 0
        %v3222 = vsel %vm1702, %v1696, 0
        %v3225 = vsel %vm1702, %v1697, 0
        %v3228 = vsel %vm1702, %v1698, 0
        %v3231 = vsel %vm1702, %v1699, 0
        %v3234 = vsel %vm1702, %v1700, 0
        %v3237 = vsel %vm1702, %v1701, 0
        %vm3239 = vcmask 1043456
        %v3241 = vsel %vm3239, %v557, 0
        %3243 = vmatprep.subr.mxu0 0.0
        %3244 = vmatpush1.msra.mxu0 0.0
        %3245 = vmatprep.subr.mxu0 0.0
        %3246 = vmatpush1.msra.mxu0 0.0
        %3247 = vmatprep.subr.mxu0 0.0
        %3248 = vmatpush1.msra.mxu0 0.0
        %3249 = vmatprep.subr.mxu0 0.0
        %3250 = vmatpush1.msra.mxu0 0.0
        %3251 = vmatprep.subr.mxu0 0.0
        %3252 = vmatpush1.msra.mxu0 0.0
        %3253 = vmatprep.subr.mxu0 0.0
        %3254 = vmatpush1.msra.mxu0 0.0
        %3255 = vmatprep.subr.mxu0 0.0
        %3256 = vmatpush1.msra.mxu0 0.0
        %3257 = vmatprep.subr.mxu0 0.0
        %3258 = vmatpush1.msra.mxu0 0.0
        %3259 = vmatprep.subr.mxu0 0.0
        %3260 = vmatpush1.msra.mxu0 0.0
        %3261 = vmatprep.subr.mxu0 0.0
        %3262 = vmatpush1.msra.mxu0 0.0
        %3263 = vmatprep.subr.mxu0 0.0
        %3264 = vmatpush1.msra.mxu0 0.0
        %3265 = vmatprep.subr.mxu0 0.0
        %3266 = vmatpush1.msra.mxu0 0.0
        %3267 = vmatprep.subr.mxu0 0.0
        %3268 = vmatpush1.msra.mxu0 0.0
        %3269 = vmatprep.subr.mxu0 0.0
        %3270 = vmatpush1.msra.mxu0 0.0
        %3271 = vmatprep.subr.mxu0 0.0
        %3272 = vmatpush1.msra.mxu0 0.0
        %3273 = vmatprep.subr.mxu0 0.0
        %3274 = vmatpush1.msra.mxu0 %v3241
        %3275 = vmatprep.subr.mxu0 0.0
        %3276 = vmatpush2.msra.mxu0 0.0
        %3277 = vmatprep.subr.mxu0 0.0
        %3278 = vmatpush2.msra.mxu0 0.0
        %3279 = vmatprep.subr.mxu0 0.0
        %3280 = vmatpush2.msra.mxu0 0.0
        %3281 = vmatprep.subr.mxu0 0.0
        %3282 = vmatpush2.msra.mxu0 0.0
        %3283 = vmatprep.subr.mxu0 0.0
        %3284 = vmatpush2.msra.mxu0 0.0
        %3285 = vmatprep.subr.mxu0 0.0
        %3286 = vmatpush2.msra.mxu0 0.0
        %3287 = vmatprep.subr.mxu0 0.0
        %3288 = vmatpush2.msra.mxu0 0.0
        %3289 = vmatprep.subr.mxu0 0.0
        %3290 = vmatpush2.msra.mxu0 0.0
        %3291 = vmatprep.subr.mxu0 0.0
        %3292 = vmatpush2.msra.mxu0 0.0
        %3293 = vmatprep.subr.mxu0 0.0
        %3294 = vmatpush2.msra.mxu0 0.0
        %3295 = vmatprep.subr.mxu0 0.0
        %3296 = vmatpush2.msra.mxu0 0.0
        %3297 = vmatprep.subr.mxu0 0.0
        %3298 = vmatpush2.msra.mxu0 0.0
        %3299 = vmatprep.subr.mxu0 0.0
        %3300 = vmatpush2.msra.mxu0 0.0
        %3301 = vmatprep.subr.mxu0 0.0
        %3302 = vmatpush2.msra.mxu0 0.0
        %3303 = vmatprep.subr.mxu0 0.0
        %3304 = vmatpush2.msra.mxu0 0.0
        %3305 = vmatprep.subr.mxu0 0.0
        %3306 = vmatpush2.msra.mxu0 0.0
        %3307 = vmatprep.mubr.f32.mxu0 0.0
        %3308 = vmatmul.mubr.f32.gmra.mxu0 %v1704
        %v3309 = vpop.f32.mrf.mxu0
        %v3310 = vadd.f32 0.0, %v3309
        %v3311 = vpop.f32.mrf.mxu0
        %3312 = vmatprep.mubr.f32.mxu0 0.0
        %3313 = vmatmul.mubr.f32.gmra.mxu0 %v1707
        %v3314 = vpop.f32.mrf.mxu0
        %v3315 = vadd.f32 0.0, %v3314
        %v3316 = vpop.f32.mrf.mxu0
        %3317 = vmatprep.mubr.f32.mxu0 0.0
        %3318 = vmatmul.mubr.f32.gmra.mxu0 %v1710
        %v3319 = vpop.f32.mrf.mxu0
        %v3320 = vadd.f32 0.0, %v3319
        %v3321 = vpop.f32.mrf.mxu0
        %3322 = vmatprep.mubr.f32.mxu0 0.0
        %3323 = vmatmul.mubr.f32.gmra.mxu0 %v1713
        %v3324 = vpop.f32.mrf.mxu0
        %v3325 = vadd.f32 0.0, %v3324
        %v3326 = vpop.f32.mrf.mxu0
        %3327 = vmatprep.mubr.f32.mxu0 0.0
        %3328 = vmatmul.mubr.f32.gmra.mxu0 %v1716
        %v3329 = vpop.f32.mrf.mxu0
        %v3330 = vadd.f32 0.0, %v3329
        %v3331 = vpop.f32.mrf.mxu0
        %3332 = vmatprep.mubr.f32.mxu0 0.0
        %3333 = vmatmul.mubr.f32.gmra.mxu0 %v1719
        %v3334 = vpop.f32.mrf.mxu0
        %v3335 = vadd.f32 0.0, %v3334
        %v3336 = vpop.f32.mrf.mxu0
        %3337 = vmatprep.mubr.f32.mxu0 0.0
        %3338 = vmatmul.mubr.f32.gmra.mxu0 %v1722
        %v3339 = vpop.f32.mrf.mxu0
        %v3340 = vadd.f32 0.0, %v3339
        %v3341 = vpop.f32.mrf.mxu0
        %3342 = vmatprep.mubr.f32.mxu0 0.0
        %3343 = vmatmul.mubr.f32.gmra.mxu0 %v1725
        %v3344 = vpop.f32.mrf.mxu0
        %v3345 = vadd.f32 0.0, %v3344
        %v3346 = vpop.f32.mrf.mxu0
        %3347 = vmatprep.mubr.f32.mxu0 0.0
        %3348 = vmatmul.mubr.f32.gmra.mxu0 %v1728
        %v3349 = vpop.f32.mrf.mxu0
        %v3350 = vadd.f32 0.0, %v3349
        %v3351 = vpop.f32.mrf.mxu0
        %3352 = vmatprep.mubr.f32.mxu0 0.0
        %3353 = vmatmul.mubr.f32.gmra.mxu0 %v1731
        %v3354 = vpop.f32.mrf.mxu0
        %v3355 = vadd.f32 0.0, %v3354
        %v3356 = vpop.f32.mrf.mxu0
        %3357 = vmatprep.mubr.f32.mxu0 0.0
        %3358 = vmatmul.mubr.f32.gmra.mxu0 %v1734
        %v3359 = vpop.f32.mrf.mxu0
        %v3360 = vadd.f32 0.0, %v3359
        %v3361 = vpop.f32.mrf.mxu0
        %3362 = vmatprep.mubr.f32.mxu0 0.0
        %3363 = vmatmul.mubr.f32.gmra.mxu0 %v1737
        %v3364 = vpop.f32.mrf.mxu0
        %v3365 = vadd.f32 0.0, %v3364
        %v3366 = vpop.f32.mrf.mxu0
        %3367 = vmatprep.mubr.f32.mxu0 0.0
        %3368 = vmatmul.mubr.f32.gmra.mxu0 %v1740
        %v3369 = vpop.f32.mrf.mxu0
        %v3370 = vadd.f32 0.0, %v3369
        %v3371 = vpop.f32.mrf.mxu0
        %3372 = vmatprep.mubr.f32.mxu0 0.0
        %3373 = vmatmul.mubr.f32.gmra.mxu0 %v1743
        %v3374 = vpop.f32.mrf.mxu0
        %v3375 = vadd.f32 0.0, %v3374
        %v3376 = vpop.f32.mrf.mxu0
        %3377 = vmatprep.mubr.f32.mxu0 0.0
        %3378 = vmatmul.mubr.f32.gmra.mxu0 %v1746
        %v3379 = vpop.f32.mrf.mxu0
        %v3380 = vadd.f32 0.0, %v3379
        %v3381 = vpop.f32.mrf.mxu0
        %3382 = vmatprep.mubr.f32.mxu0 0.0
        %3383 = vmatmul.mubr.f32.gmra.mxu0 %v1749
        %v3384 = vpop.f32.mrf.mxu0
        %v3385 = vadd.f32 0.0, %v3384
        %v3386 = vpop.f32.mrf.mxu0
        %3387 = vmatprep.mubr.f32.mxu0 0.0
        %3388 = vmatmul.mubr.f32.gmra.mxu0 %v1752
        %v3389 = vpop.f32.mrf.mxu0
        %v3390 = vadd.f32 0.0, %v3389
        %v3391 = vpop.f32.mrf.mxu0
        %3392 = vmatprep.mubr.f32.mxu0 0.0
        %3393 = vmatmul.mubr.f32.gmra.mxu0 %v1755
        %v3394 = vpop.f32.mrf.mxu0
        %v3395 = vadd.f32 0.0, %v3394
        %v3396 = vpop.f32.mrf.mxu0
        %3397 = vmatprep.mubr.f32.mxu0 0.0
        %3398 = vmatmul.mubr.f32.gmra.mxu0 %v1758
        %v3399 = vpop.f32.mrf.mxu0
        %v3400 = vadd.f32 0.0, %v3399
        %v3401 = vpop.f32.mrf.mxu0
        %3402 = vmatprep.mubr.f32.mxu0 0.0
        %3403 = vmatmul.mubr.f32.gmra.mxu0 %v1761
        %v3404 = vpop.f32.mrf.mxu0
        %v3405 = vadd.f32 0.0, %v3404
        %v3406 = vpop.f32.mrf.mxu0
        %3407 = vmatprep.mubr.f32.mxu0 0.0
        %3408 = vmatmul.mubr.f32.gmra.mxu0 %v1764
        %v3409 = vpop.f32.mrf.mxu0
        %v3410 = vadd.f32 0.0, %v3409
        %v3411 = vpop.f32.mrf.mxu0
        %3412 = vmatprep.mubr.f32.mxu0 0.0
        %3413 = vmatmul.mubr.f32.gmra.mxu0 %v1767
        %v3414 = vpop.f32.mrf.mxu0
        %v3415 = vadd.f32 0.0, %v3414
        %v3416 = vpop.f32.mrf.mxu0
        %3417 = vmatprep.mubr.f32.mxu0 0.0
        %3418 = vmatmul.mubr.f32.gmra.mxu0 %v1770
        %v3419 = vpop.f32.mrf.mxu0
        %v3420 = vadd.f32 0.0, %v3419
        %v3421 = vpop.f32.mrf.mxu0
        %3422 = vmatprep.mubr.f32.mxu0 0.0
        %3423 = vmatmul.mubr.f32.gmra.mxu0 %v1773
        %v3424 = vpop.f32.mrf.mxu0
        %v3425 = vadd.f32 0.0, %v3424
        %v3426 = vpop.f32.mrf.mxu0
        %3427 = vmatprep.mubr.f32.mxu0 0.0
        %3428 = vmatmul.mubr.f32.gmra.mxu0 %v1776
        %v3429 = vpop.f32.mrf.mxu0
        %v3430 = vadd.f32 0.0, %v3429
        %v3431 = vpop.f32.mrf.mxu0
        %3432 = vmatprep.mubr.f32.mxu0 0.0
        %3433 = vmatmul.mubr.f32.gmra.mxu0 %v1779
        %v3434 = vpop.f32.mrf.mxu0
        %v3435 = vadd.f32 0.0, %v3434
        %v3436 = vpop.f32.mrf.mxu0
        %3437 = vmatprep.mubr.f32.mxu0 0.0
        %3438 = vmatmul.mubr.f32.gmra.mxu0 %v1782
        %v3439 = vpop.f32.mrf.mxu0
        %v3440 = vadd.f32 0.0, %v3439
        %v3441 = vpop.f32.mrf.mxu0
        %3442 = vmatprep.mubr.f32.mxu0 0.0
        %3443 = vmatmul.mubr.f32.gmra.mxu0 %v1785
        %v3444 = vpop.f32.mrf.mxu0
        %v3445 = vadd.f32 0.0, %v3444
        %v3446 = vpop.f32.mrf.mxu0
        %3447 = vmatprep.mubr.f32.mxu0 0.0
        %3448 = vmatmul.mubr.f32.gmra.mxu0 %v1788
        %v3449 = vpop.f32.mrf.mxu0
        %v3450 = vadd.f32 0.0, %v3449
        %v3451 = vpop.f32.mrf.mxu0
        %3452 = vmatprep.mubr.f32.mxu0 0.0
        %3453 = vmatmul.mubr.f32.gmra.mxu0 %v1791
        %v3454 = vpop.f32.mrf.mxu0
        %v3455 = vadd.f32 0.0, %v3454
        %v3456 = vpop.f32.mrf.mxu0
        %3457 = vmatprep.mubr.f32.mxu0 0.0
        %3458 = vmatmul.mubr.f32.gmra.mxu0 %v1794
        %v3459 = vpop.f32.mrf.mxu0
        %v3460 = vadd.f32 0.0, %v3459
        %v3461 = vpop.f32.mrf.mxu0
        %3462 = vmatprep.mubr.f32.mxu0 0.0
        %3463 = vmatmul.mubr.f32.gmra.mxu0 %v1797
        %v3464 = vpop.f32.mrf.mxu0
        %v3465 = vadd.f32 0.0, %v3464
        %v3466 = vpop.f32.mrf.mxu0
        %3467 = vmatprep.mubr.f32.mxu0 0.0
        %3468 = vmatmul.mubr.f32.gmra.mxu0 %v1800
        %v3469 = vpop.f32.mrf.mxu0
        %v3470 = vadd.f32 0.0, %v3469
        %v3471 = vpop.f32.mrf.mxu0
        %3472 = vmatprep.mubr.f32.mxu0 0.0
        %3473 = vmatmul.mubr.f32.gmra.mxu0 %v1803
        %v3474 = vpop.f32.mrf.mxu0
        %v3475 = vadd.f32 0.0, %v3474
        %v3476 = vpop.f32.mrf.mxu0
        %3477 = vmatprep.mubr.f32.mxu0 0.0
        %3478 = vmatmul.mubr.f32.gmra.mxu0 %v1806
        %v3479 = vpop.f32.mrf.mxu0
        %v3480 = vadd.f32 0.0, %v3479
        %v3481 = vpop.f32.mrf.mxu0
        %3482 = vmatprep.mubr.f32.mxu0 0.0
        %3483 = vmatmul.mubr.f32.gmra.mxu0 %v1809
        %v3484 = vpop.f32.mrf.mxu0
        %v3485 = vadd.f32 0.0, %v3484
        %v3486 = vpop.f32.mrf.mxu0
        %3487 = vmatprep.mubr.f32.mxu0 0.0
        %3488 = vmatmul.mubr.f32.gmra.mxu0 %v1812
        %v3489 = vpop.f32.mrf.mxu0
        %v3490 = vadd.f32 0.0, %v3489
        %v3491 = vpop.f32.mrf.mxu0
        %3492 = vmatprep.mubr.f32.mxu0 0.0
        %3493 = vmatmul.mubr.f32.gmra.mxu0 %v1815
        %v3494 = vpop.f32.mrf.mxu0
        %v3495 = vadd.f32 0.0, %v3494
        %v3496 = vpop.f32.mrf.mxu0
        %3497 = vmatprep.mubr.f32.mxu0 0.0
        %3498 = vmatmul.mubr.f32.gmra.mxu0 %v1818
        %v3499 = vpop.f32.mrf.mxu0
        %v3500 = vadd.f32 0.0, %v3499
        %v3501 = vpop.f32.mrf.mxu0
        %3502 = vmatprep.mubr.f32.mxu0 0.0
        %3503 = vmatmul.mubr.f32.gmra.mxu0 %v1821
        %v3504 = vpop.f32.mrf.mxu0
        %v3505 = vadd.f32 0.0, %v3504
        %v3506 = vpop.f32.mrf.mxu0
        %3507 = vmatprep.mubr.f32.mxu0 0.0
        %3508 = vmatmul.mubr.f32.gmra.mxu0 %v1824
        %v3509 = vpop.f32.mrf.mxu0
        %v3510 = vadd.f32 0.0, %v3509
        %v3511 = vpop.f32.mrf.mxu0
        %3512 = vmatprep.mubr.f32.mxu0 0.0
        %3513 = vmatmul.mubr.f32.gmra.mxu0 %v1827
        %v3514 = vpop.f32.mrf.mxu0
        %v3515 = vadd.f32 0.0, %v3514
        %v3516 = vpop.f32.mrf.mxu0
        %3517 = vmatprep.mubr.f32.mxu0 0.0
        %3518 = vmatmul.mubr.f32.gmra.mxu0 %v1830
        %v3519 = vpop.f32.mrf.mxu0
        %v3520 = vadd.f32 0.0, %v3519
        %v3521 = vpop.f32.mrf.mxu0
        %3522 = vmatprep.mubr.f32.mxu0 0.0
        %3523 = vmatmul.mubr.f32.gmra.mxu0 %v1833
        %v3524 = vpop.f32.mrf.mxu0
        %v3525 = vadd.f32 0.0, %v3524
        %v3526 = vpop.f32.mrf.mxu0
        %3527 = vmatprep.mubr.f32.mxu0 0.0
        %3528 = vmatmul.mubr.f32.gmra.mxu0 %v1836
        %v3529 = vpop.f32.mrf.mxu0
        %v3530 = vadd.f32 0.0, %v3529
        %v3531 = vpop.f32.mrf.mxu0
        %3532 = vmatprep.mubr.f32.mxu0 0.0
        %3533 = vmatmul.mubr.f32.gmra.mxu0 %v1839
        %v3534 = vpop.f32.mrf.mxu0
        %v3535 = vadd.f32 0.0, %v3534
        %v3536 = vpop.f32.mrf.mxu0
        %3537 = vmatprep.mubr.f32.mxu0 0.0
        %3538 = vmatmul.mubr.f32.gmra.mxu0 %v1842
        %v3539 = vpop.f32.mrf.mxu0
        %v3540 = vadd.f32 0.0, %v3539
        %v3541 = vpop.f32.mrf.mxu0
        %3542 = vmatprep.mubr.f32.mxu0 0.0
        %3543 = vmatmul.mubr.f32.gmra.mxu0 %v1845
        %v3544 = vpop.f32.mrf.mxu0
        %v3545 = vadd.f32 0.0, %v3544
        %v3546 = vpop.f32.mrf.mxu0
        %3547 = vmatprep.mubr.f32.mxu0 0.0
        %3548 = vmatmul.mubr.f32.gmra.mxu0 %v1848
        %v3549 = vpop.f32.mrf.mxu0
        %v3550 = vadd.f32 0.0, %v3549
        %v3551 = vpop.f32.mrf.mxu0
        %3552 = vmatprep.mubr.f32.mxu0 0.0
        %3553 = vmatmul.mubr.f32.gmra.mxu0 %v1851
        %v3554 = vpop.f32.mrf.mxu0
        %v3555 = vadd.f32 0.0, %v3554
        %v3556 = vpop.f32.mrf.mxu0
        %3557 = vmatprep.mubr.f32.mxu0 0.0
        %3558 = vmatmul.mubr.f32.gmra.mxu0 %v1854
        %v3559 = vpop.f32.mrf.mxu0
        %v3560 = vadd.f32 0.0, %v3559
        %v3561 = vpop.f32.mrf.mxu0
        %3562 = vmatprep.mubr.f32.mxu0 0.0
        %3563 = vmatmul.mubr.f32.gmra.mxu0 %v1857
        %v3564 = vpop.f32.mrf.mxu0
        %v3565 = vadd.f32 0.0, %v3564
        %v3566 = vpop.f32.mrf.mxu0
        %3567 = vmatprep.mubr.f32.mxu0 0.0
        %3568 = vmatmul.mubr.f32.gmra.mxu0 %v1860
        %v3569 = vpop.f32.mrf.mxu0
        %v3570 = vadd.f32 0.0, %v3569
        %v3571 = vpop.f32.mrf.mxu0
        %3572 = vmatprep.mubr.f32.mxu0 0.0
        %3573 = vmatmul.mubr.f32.gmra.mxu0 %v1863
        %v3574 = vpop.f32.mrf.mxu0
        %v3575 = vadd.f32 0.0, %v3574
        %v3576 = vpop.f32.mrf.mxu0
        %3577 = vmatprep.mubr.f32.mxu0 0.0
        %3578 = vmatmul.mubr.f32.gmra.mxu0 %v1866
        %v3579 = vpop.f32.mrf.mxu0
        %v3580 = vadd.f32 0.0, %v3579
        %v3581 = vpop.f32.mrf.mxu0
        %3582 = vmatprep.mubr.f32.mxu0 0.0
        %3583 = vmatmul.mubr.f32.gmra.mxu0 %v1869
        %v3584 = vpop.f32.mrf.mxu0
        %v3585 = vadd.f32 0.0, %v3584
        %v3586 = vpop.f32.mrf.mxu0
        %3587 = vmatprep.mubr.f32.mxu0 0.0
        %3588 = vmatmul.mubr.f32.gmra.mxu0 %v1872
        %v3589 = vpop.f32.mrf.mxu0
        %v3590 = vadd.f32 0.0, %v3589
        %v3591 = vpop.f32.mrf.mxu0
        %3592 = vmatprep.mubr.f32.mxu0 0.0
        %3593 = vmatmul.mubr.f32.gmra.mxu0 %v1875
        %v3594 = vpop.f32.mrf.mxu0
        %v3595 = vadd.f32 0.0, %v3594
        %v3596 = vpop.f32.mrf.mxu0
        %3597 = vmatprep.mubr.f32.mxu0 0.0
        %3598 = vmatmul.mubr.f32.gmra.mxu0 %v1878
        %v3599 = vpop.f32.mrf.mxu0
        %v3600 = vadd.f32 0.0, %v3599
        %v3601 = vpop.f32.mrf.mxu0
        %3602 = vmatprep.mubr.f32.mxu0 0.0
        %3603 = vmatmul.mubr.f32.gmra.mxu0 %v1881
        %v3604 = vpop.f32.mrf.mxu0
        %v3605 = vadd.f32 0.0, %v3604
        %v3606 = vpop.f32.mrf.mxu0
        %3607 = vmatprep.mubr.f32.mxu0 0.0
        %3608 = vmatmul.mubr.f32.gmra.mxu0 %v1884
        %v3609 = vpop.f32.mrf.mxu0
        %v3610 = vadd.f32 0.0, %v3609
        %v3611 = vpop.f32.mrf.mxu0
        %3612 = vmatprep.mubr.f32.mxu0 0.0
        %3613 = vmatmul.mubr.f32.gmra.mxu0 %v1887
        %v3614 = vpop.f32.mrf.mxu0
        %v3615 = vadd.f32 0.0, %v3614
        %v3616 = vpop.f32.mrf.mxu0
        %3617 = vmatprep.mubr.f32.mxu0 0.0
        %3618 = vmatmul.mubr.f32.gmra.mxu0 %v1890
        %v3619 = vpop.f32.mrf.mxu0
        %v3620 = vadd.f32 0.0, %v3619
        %v3621 = vpop.f32.mrf.mxu0
        %3622 = vmatprep.mubr.f32.mxu0 0.0
        %3623 = vmatmul.mubr.f32.gmra.mxu0 %v1893
        %v3624 = vpop.f32.mrf.mxu0
        %v3625 = vadd.f32 0.0, %v3624
        %v3626 = vpop.f32.mrf.mxu0
        %3627 = vmatprep.mubr.f32.mxu0 0.0
        %3628 = vmatmul.mubr.f32.gmra.mxu0 %v1896
        %v3629 = vpop.f32.mrf.mxu0
        %v3630 = vadd.f32 0.0, %v3629
        %v3631 = vpop.f32.mrf.mxu0
        %3632 = vmatprep.mubr.f32.mxu0 0.0
        %3633 = vmatmul.mubr.f32.gmra.mxu0 %v1899
        %v3634 = vpop.f32.mrf.mxu0
        %v3635 = vadd.f32 0.0, %v3634
        %v3636 = vpop.f32.mrf.mxu0
        %3637 = vmatprep.mubr.f32.mxu0 0.0
        %3638 = vmatmul.mubr.f32.gmra.mxu0 %v1902
        %v3639 = vpop.f32.mrf.mxu0
        %v3640 = vadd.f32 0.0, %v3639
        %v3641 = vpop.f32.mrf.mxu0
        %3642 = vmatprep.mubr.f32.mxu0 0.0
        %3643 = vmatmul.mubr.f32.gmra.mxu0 %v1905
        %v3644 = vpop.f32.mrf.mxu0
        %v3645 = vadd.f32 0.0, %v3644
        %v3646 = vpop.f32.mrf.mxu0
        %3647 = vmatprep.mubr.f32.mxu0 0.0
        %3648 = vmatmul.mubr.f32.gmra.mxu0 %v1908
        %v3649 = vpop.f32.mrf.mxu0
        %v3650 = vadd.f32 0.0, %v3649
        %v3651 = vpop.f32.mrf.mxu0
        %3652 = vmatprep.mubr.f32.mxu0 0.0
        %3653 = vmatmul.mubr.f32.gmra.mxu0 %v1911
        %v3654 = vpop.f32.mrf.mxu0
        %v3655 = vadd.f32 0.0, %v3654
        %v3656 = vpop.f32.mrf.mxu0
        %3657 = vmatprep.mubr.f32.mxu0 0.0
        %3658 = vmatmul.mubr.f32.gmra.mxu0 %v1914
        %v3659 = vpop.f32.mrf.mxu0
        %v3660 = vadd.f32 0.0, %v3659
        %v3661 = vpop.f32.mrf.mxu0
        %3662 = vmatprep.mubr.f32.mxu0 0.0
        %3663 = vmatmul.mubr.f32.gmra.mxu0 %v1917
        %v3664 = vpop.f32.mrf.mxu0
        %v3665 = vadd.f32 0.0, %v3664
        %v3666 = vpop.f32.mrf.mxu0
        %3667 = vmatprep.mubr.f32.mxu0 0.0
        %3668 = vmatmul.mubr.f32.gmra.mxu0 %v1920
        %v3669 = vpop.f32.mrf.mxu0
        %v3670 = vadd.f32 0.0, %v3669
        %v3671 = vpop.f32.mrf.mxu0
        %3672 = vmatprep.mubr.f32.mxu0 0.0
        %3673 = vmatmul.mubr.f32.gmra.mxu0 %v1923
        %v3674 = vpop.f32.mrf.mxu0
        %v3675 = vadd.f32 0.0, %v3674
        %v3676 = vpop.f32.mrf.mxu0
        %3677 = vmatprep.mubr.f32.mxu0 0.0
        %3678 = vmatmul.mubr.f32.gmra.mxu0 %v1926
        %v3679 = vpop.f32.mrf.mxu0
        %v3680 = vadd.f32 0.0, %v3679
        %v3681 = vpop.f32.mrf.mxu0
        %3682 = vmatprep.mubr.f32.mxu0 0.0
        %3683 = vmatmul.mubr.f32.gmra.mxu0 %v1929
        %v3684 = vpop.f32.mrf.mxu0
        %v3685 = vadd.f32 0.0, %v3684
        %v3686 = vpop.f32.mrf.mxu0
        %3687 = vmatprep.mubr.f32.mxu0 0.0
        %3688 = vmatmul.mubr.f32.gmra.mxu0 %v1932
        %v3689 = vpop.f32.mrf.mxu0
        %v3690 = vadd.f32 0.0, %v3689
        %v3691 = vpop.f32.mrf.mxu0
        %3692 = vmatprep.mubr.f32.mxu0 0.0
        %3693 = vmatmul.mubr.f32.gmra.mxu0 %v1935
        %v3694 = vpop.f32.mrf.mxu0
        %v3695 = vadd.f32 0.0, %v3694
        %v3696 = vpop.f32.mrf.mxu0
        %3697 = vmatprep.mubr.f32.mxu0 0.0
        %3698 = vmatmul.mubr.f32.gmra.mxu0 %v1938
        %v3699 = vpop.f32.mrf.mxu0
        %v3700 = vadd.f32 0.0, %v3699
        %v3701 = vpop.f32.mrf.mxu0
        %3702 = vmatprep.mubr.f32.mxu0 0.0
        %3703 = vmatmul.mubr.f32.gmra.mxu0 %v1941
        %v3704 = vpop.f32.mrf.mxu0
        %v3705 = vadd.f32 0.0, %v3704
        %v3706 = vpop.f32.mrf.mxu0
        %3707 = vmatprep.mubr.f32.mxu0 0.0
        %3708 = vmatmul.mubr.f32.gmra.mxu0 %v1944
        %v3709 = vpop.f32.mrf.mxu0
        %v3710 = vadd.f32 0.0, %v3709
        %v3711 = vpop.f32.mrf.mxu0
        %3712 = vmatprep.mubr.f32.mxu0 0.0
        %3713 = vmatmul.mubr.f32.gmra.mxu0 %v1947
        %v3714 = vpop.f32.mrf.mxu0
        %v3715 = vadd.f32 0.0, %v3714
        %v3716 = vpop.f32.mrf.mxu0
        %3717 = vmatprep.mubr.f32.mxu0 0.0
        %3718 = vmatmul.mubr.f32.gmra.mxu0 %v1950
        %v3719 = vpop.f32.mrf.mxu0
        %v3720 = vadd.f32 0.0, %v3719
        %v3721 = vpop.f32.mrf.mxu0
        %3722 = vmatprep.mubr.f32.mxu0 0.0
        %3723 = vmatmul.mubr.f32.gmra.mxu0 %v1953
        %v3724 = vpop.f32.mrf.mxu0
        %v3725 = vadd.f32 0.0, %v3724
        %v3726 = vpop.f32.mrf.mxu0
        %3727 = vmatprep.mubr.f32.mxu0 0.0
        %3728 = vmatmul.mubr.f32.gmra.mxu0 %v1956
        %v3729 = vpop.f32.mrf.mxu0
        %v3730 = vadd.f32 0.0, %v3729
        %v3731 = vpop.f32.mrf.mxu0
        %3732 = vmatprep.mubr.f32.mxu0 0.0
        %3733 = vmatmul.mubr.f32.gmra.mxu0 %v1959
        %v3734 = vpop.f32.mrf.mxu0
        %v3735 = vadd.f32 0.0, %v3734
        %v3736 = vpop.f32.mrf.mxu0
        %3737 = vmatprep.mubr.f32.mxu0 0.0
        %3738 = vmatmul.mubr.f32.gmra.mxu0 %v1962
        %v3739 = vpop.f32.mrf.mxu0
        %v3740 = vadd.f32 0.0, %v3739
        %v3741 = vpop.f32.mrf.mxu0
        %3742 = vmatprep.mubr.f32.mxu0 0.0
        %3743 = vmatmul.mubr.f32.gmra.mxu0 %v1965
        %v3744 = vpop.f32.mrf.mxu0
        %v3745 = vadd.f32 0.0, %v3744
        %v3746 = vpop.f32.mrf.mxu0
        %3747 = vmatprep.mubr.f32.mxu0 0.0
        %3748 = vmatmul.mubr.f32.gmra.mxu0 %v1968
        %v3749 = vpop.f32.mrf.mxu0
        %v3750 = vadd.f32 0.0, %v3749
        %v3751 = vpop.f32.mrf.mxu0
        %3752 = vmatprep.mubr.f32.mxu0 0.0
        %3753 = vmatmul.mubr.f32.gmra.mxu0 %v1971
        %v3754 = vpop.f32.mrf.mxu0
        %v3755 = vadd.f32 0.0, %v3754
        %v3756 = vpop.f32.mrf.mxu0
        %3757 = vmatprep.mubr.f32.mxu0 0.0
        %3758 = vmatmul.mubr.f32.gmra.mxu0 %v1974
        %v3759 = vpop.f32.mrf.mxu0
        %v3760 = vadd.f32 0.0, %v3759
        %v3761 = vpop.f32.mrf.mxu0
        %3762 = vmatprep.mubr.f32.mxu0 0.0
        %3763 = vmatmul.mubr.f32.gmra.mxu0 %v1977
        %v3764 = vpop.f32.mrf.mxu0
        %v3765 = vadd.f32 0.0, %v3764
        %v3766 = vpop.f32.mrf.mxu0
        %3767 = vmatprep.mubr.f32.mxu0 0.0
        %3768 = vmatmul.mubr.f32.gmra.mxu0 %v1980
        %v3769 = vpop.f32.mrf.mxu0
        %v3770 = vadd.f32 0.0, %v3769
        %v3771 = vpop.f32.mrf.mxu0
        %3772 = vmatprep.mubr.f32.mxu0 0.0
        %3773 = vmatmul.mubr.f32.gmra.mxu0 %v1983
        %v3774 = vpop.f32.mrf.mxu0
        %v3775 = vadd.f32 0.0, %v3774
        %v3776 = vpop.f32.mrf.mxu0
        %3777 = vmatprep.mubr.f32.mxu0 0.0
        %3778 = vmatmul.mubr.f32.gmra.mxu0 %v1986
        %v3779 = vpop.f32.mrf.mxu0
        %v3780 = vadd.f32 0.0, %v3779
        %v3781 = vpop.f32.mrf.mxu0
        %3782 = vmatprep.mubr.f32.mxu0 0.0
        %3783 = vmatmul.mubr.f32.gmra.mxu0 %v1989
        %v3784 = vpop.f32.mrf.mxu0
        %v3785 = vadd.f32 0.0, %v3784
        %v3786 = vpop.f32.mrf.mxu0
        %3787 = vmatprep.mubr.f32.mxu0 0.0
        %3788 = vmatmul.mubr.f32.gmra.mxu0 %v1992
        %v3789 = vpop.f32.mrf.mxu0
        %v3790 = vadd.f32 0.0, %v3789
        %v3791 = vpop.f32.mrf.mxu0
        %3792 = vmatprep.mubr.f32.mxu0 0.0
        %3793 = vmatmul.mubr.f32.gmra.mxu0 %v1995
        %v3794 = vpop.f32.mrf.mxu0
        %v3795 = vadd.f32 0.0, %v3794
        %v3796 = vpop.f32.mrf.mxu0
        %3797 = vmatprep.mubr.f32.mxu0 0.0
        %3798 = vmatmul.mubr.f32.gmra.mxu0 %v1998
        %v3799 = vpop.f32.mrf.mxu0
        %v3800 = vadd.f32 0.0, %v3799
        %v3801 = vpop.f32.mrf.mxu0
        %3802 = vmatprep.mubr.f32.mxu0 0.0
        %3803 = vmatmul.mubr.f32.gmra.mxu0 %v2001
        %v3804 = vpop.f32.mrf.mxu0
        %v3805 = vadd.f32 0.0, %v3804
        %v3806 = vpop.f32.mrf.mxu0
        %3807 = vmatprep.mubr.f32.mxu0 0.0
        %3808 = vmatmul.mubr.f32.gmra.mxu0 %v2004
        %v3809 = vpop.f32.mrf.mxu0
        %v3810 = vadd.f32 0.0, %v3809
        %v3811 = vpop.f32.mrf.mxu0
        %3812 = vmatprep.mubr.f32.mxu0 0.0
        %3813 = vmatmul.mubr.f32.gmra.mxu0 %v2007
        %v3814 = vpop.f32.mrf.mxu0
        %v3815 = vadd.f32 0.0, %v3814
        %v3816 = vpop.f32.mrf.mxu0
        %3817 = vmatprep.mubr.f32.mxu0 0.0
        %3818 = vmatmul.mubr.f32.gmra.mxu0 %v2010
        %v3819 = vpop.f32.mrf.mxu0
        %v3820 = vadd.f32 0.0, %v3819
        %v3821 = vpop.f32.mrf.mxu0
        %3822 = vmatprep.mubr.f32.mxu0 0.0
        %3823 = vmatmul.mubr.f32.gmra.mxu0 %v2013
        %v3824 = vpop.f32.mrf.mxu0
        %v3825 = vadd.f32 0.0, %v3824
        %v3826 = vpop.f32.mrf.mxu0
        %3827 = vmatprep.mubr.f32.mxu0 0.0
        %3828 = vmatmul.mubr.f32.gmra.mxu0 %v2016
        %v3829 = vpop.f32.mrf.mxu0
        %v3830 = vadd.f32 0.0, %v3829
        %v3831 = vpop.f32.mrf.mxu0
        %3832 = vmatprep.mubr.f32.mxu0 0.0
        %3833 = vmatmul.mubr.f32.gmra.mxu0 %v2019
        %v3834 = vpop.f32.mrf.mxu0
        %v3835 = vadd.f32 0.0, %v3834
        %v3836 = vpop.f32.mrf.mxu0
        %3837 = vmatprep.mubr.f32.mxu0 0.0
        %3838 = vmatmul.mubr.f32.gmra.mxu0 %v2022
        %v3839 = vpop.f32.mrf.mxu0
        %v3840 = vadd.f32 0.0, %v3839
        %v3841 = vpop.f32.mrf.mxu0
        %3842 = vmatprep.mubr.f32.mxu0 0.0
        %3843 = vmatmul.mubr.f32.gmra.mxu0 %v2025
        %v3844 = vpop.f32.mrf.mxu0
        %v3845 = vadd.f32 0.0, %v3844
        %v3846 = vpop.f32.mrf.mxu0
        %3847 = vmatprep.mubr.f32.mxu0 0.0
        %3848 = vmatmul.mubr.f32.gmra.mxu0 %v2028
        %v3849 = vpop.f32.mrf.mxu0
        %v3850 = vadd.f32 0.0, %v3849
        %v3851 = vpop.f32.mrf.mxu0
        %3852 = vmatprep.mubr.f32.mxu0 0.0
        %3853 = vmatmul.mubr.f32.gmra.mxu0 %v2031
        %v3854 = vpop.f32.mrf.mxu0
        %v3855 = vadd.f32 0.0, %v3854
        %v3856 = vpop.f32.mrf.mxu0
        %3857 = vmatprep.mubr.f32.mxu0 0.0
        %3858 = vmatmul.mubr.f32.gmra.mxu0 %v2034
        %v3859 = vpop.f32.mrf.mxu0
        %v3860 = vadd.f32 0.0, %v3859
        %v3861 = vpop.f32.mrf.mxu0
        %3862 = vmatprep.mubr.f32.mxu0 0.0
        %3863 = vmatmul.mubr.f32.gmra.mxu0 %v2037
        %v3864 = vpop.f32.mrf.mxu0
        %v3865 = vadd.f32 0.0, %v3864
        %v3866 = vpop.f32.mrf.mxu0
        %3867 = vmatprep.mubr.f32.mxu0 0.0
        %3868 = vmatmul.mubr.f32.gmra.mxu0 %v2040
        %v3869 = vpop.f32.mrf.mxu0
        %v3870 = vadd.f32 0.0, %v3869
        %v3871 = vpop.f32.mrf.mxu0
        %3872 = vmatprep.mubr.f32.mxu0 0.0
        %3873 = vmatmul.mubr.f32.gmra.mxu0 %v2043
        %v3874 = vpop.f32.mrf.mxu0
        %v3875 = vadd.f32 0.0, %v3874
        %v3876 = vpop.f32.mrf.mxu0
        %3877 = vmatprep.mubr.f32.mxu0 0.0
        %3878 = vmatmul.mubr.f32.gmra.mxu0 %v2046
        %v3879 = vpop.f32.mrf.mxu0
        %v3880 = vadd.f32 0.0, %v3879
        %v3881 = vpop.f32.mrf.mxu0
        %3882 = vmatprep.mubr.f32.mxu0 0.0
        %3883 = vmatmul.mubr.f32.gmra.mxu0 %v2049
        %v3884 = vpop.f32.mrf.mxu0
        %v3885 = vadd.f32 0.0, %v3884
        %v3886 = vpop.f32.mrf.mxu0
        %3887 = vmatprep.mubr.f32.mxu0 0.0
        %3888 = vmatmul.mubr.f32.gmra.mxu0 %v2052
        %v3889 = vpop.f32.mrf.mxu0
        %v3890 = vadd.f32 0.0, %v3889
        %v3891 = vpop.f32.mrf.mxu0
        %3892 = vmatprep.mubr.f32.mxu0 0.0
        %3893 = vmatmul.mubr.f32.gmra.mxu0 %v2055
        %v3894 = vpop.f32.mrf.mxu0
        %v3895 = vadd.f32 0.0, %v3894
        %v3896 = vpop.f32.mrf.mxu0
        %3897 = vmatprep.mubr.f32.mxu0 0.0
        %3898 = vmatmul.mubr.f32.gmra.mxu0 %v2058
        %v3899 = vpop.f32.mrf.mxu0
        %v3900 = vadd.f32 0.0, %v3899
        %v3901 = vpop.f32.mrf.mxu0
        %3902 = vmatprep.mubr.f32.mxu0 0.0
        %3903 = vmatmul.mubr.f32.gmra.mxu0 %v2061
        %v3904 = vpop.f32.mrf.mxu0
        %v3905 = vadd.f32 0.0, %v3904
        %v3906 = vpop.f32.mrf.mxu0
        %3907 = vmatprep.mubr.f32.mxu0 0.0
        %3908 = vmatmul.mubr.f32.gmra.mxu0 %v2064
        %v3909 = vpop.f32.mrf.mxu0
        %v3910 = vadd.f32 0.0, %v3909
        %v3911 = vpop.f32.mrf.mxu0
        %3912 = vmatprep.mubr.f32.mxu0 0.0
        %3913 = vmatmul.mubr.f32.gmra.mxu0 %v2067
        %v3914 = vpop.f32.mrf.mxu0
        %v3915 = vadd.f32 0.0, %v3914
        %v3916 = vpop.f32.mrf.mxu0
        %3917 = vmatprep.mubr.f32.mxu0 0.0
        %3918 = vmatmul.mubr.f32.gmra.mxu0 %v2070
        %v3919 = vpop.f32.mrf.mxu0
        %v3920 = vadd.f32 0.0, %v3919
        %v3921 = vpop.f32.mrf.mxu0
        %3922 = vmatprep.mubr.f32.mxu0 0.0
        %3923 = vmatmul.mubr.f32.gmra.mxu0 %v2073
        %v3924 = vpop.f32.mrf.mxu0
        %v3925 = vadd.f32 0.0, %v3924
        %v3926 = vpop.f32.mrf.mxu0
        %3927 = vmatprep.mubr.f32.mxu0 0.0
        %3928 = vmatmul.mubr.f32.gmra.mxu0 %v2076
        %v3929 = vpop.f32.mrf.mxu0
        %v3930 = vadd.f32 0.0, %v3929
        %v3931 = vpop.f32.mrf.mxu0
        %3932 = vmatprep.mubr.f32.mxu0 0.0
        %3933 = vmatmul.mubr.f32.gmra.mxu0 %v2079
        %v3934 = vpop.f32.mrf.mxu0
        %v3935 = vadd.f32 0.0, %v3934
        %v3936 = vpop.f32.mrf.mxu0
        %3937 = vmatprep.mubr.f32.mxu0 0.0
        %3938 = vmatmul.mubr.f32.gmra.mxu0 %v2082
        %v3939 = vpop.f32.mrf.mxu0
        %v3940 = vadd.f32 0.0, %v3939
        %v3941 = vpop.f32.mrf.mxu0
        %3942 = vmatprep.mubr.f32.mxu0 0.0
        %3943 = vmatmul.mubr.f32.gmra.mxu0 %v2085
        %v3944 = vpop.f32.mrf.mxu0
        %v3945 = vadd.f32 0.0, %v3944
        %v3946 = vpop.f32.mrf.mxu0
        %3947 = vmatprep.mubr.f32.mxu0 0.0
        %3948 = vmatmul.mubr.f32.gmra.mxu0 %v2088
        %v3949 = vpop.f32.mrf.mxu0
        %v3950 = vadd.f32 0.0, %v3949
        %v3951 = vpop.f32.mrf.mxu0
        %3952 = vmatprep.mubr.f32.mxu0 0.0
        %3953 = vmatmul.mubr.f32.gmra.mxu0 %v2091
        %v3954 = vpop.f32.mrf.mxu0
        %v3955 = vadd.f32 0.0, %v3954
        %v3956 = vpop.f32.mrf.mxu0
        %3957 = vmatprep.mubr.f32.mxu0 0.0
        %3958 = vmatmul.mubr.f32.gmra.mxu0 %v2094
        %v3959 = vpop.f32.mrf.mxu0
        %v3960 = vadd.f32 0.0, %v3959
        %v3961 = vpop.f32.mrf.mxu0
        %3962 = vmatprep.mubr.f32.mxu0 0.0
        %3963 = vmatmul.mubr.f32.gmra.mxu0 %v2097
        %v3964 = vpop.f32.mrf.mxu0
        %v3965 = vadd.f32 0.0, %v3964
        %v3966 = vpop.f32.mrf.mxu0
        %3967 = vmatprep.mubr.f32.mxu0 0.0
        %3968 = vmatmul.mubr.f32.gmra.mxu0 %v2100
        %v3969 = vpop.f32.mrf.mxu0
        %v3970 = vadd.f32 0.0, %v3969
        %v3971 = vpop.f32.mrf.mxu0
        %3972 = vmatprep.mubr.f32.mxu0 0.0
        %3973 = vmatmul.mubr.f32.gmra.mxu0 %v2103
        %v3974 = vpop.f32.mrf.mxu0
        %v3975 = vadd.f32 0.0, %v3974
        %v3976 = vpop.f32.mrf.mxu0
        %3977 = vmatprep.mubr.f32.mxu0 0.0
        %3978 = vmatmul.mubr.f32.gmra.mxu0 %v2106
        %v3979 = vpop.f32.mrf.mxu0
        %v3980 = vadd.f32 0.0, %v3979
        %v3981 = vpop.f32.mrf.mxu0
        %3982 = vmatprep.mubr.f32.mxu0 0.0
        %3983 = vmatmul.mubr.f32.gmra.mxu0 %v2109
        %v3984 = vpop.f32.mrf.mxu0
        %v3985 = vadd.f32 0.0, %v3984
        %v3986 = vpop.f32.mrf.mxu0
        %3987 = vmatprep.mubr.f32.mxu0 0.0
        %3988 = vmatmul.mubr.f32.gmra.mxu0 %v2112
        %v3989 = vpop.f32.mrf.mxu0
        %v3990 = vadd.f32 0.0, %v3989
        %v3991 = vpop.f32.mrf.mxu0
        %3992 = vmatprep.mubr.f32.mxu0 0.0
        %3993 = vmatmul.mubr.f32.gmra.mxu0 %v2115
        %v3994 = vpop.f32.mrf.mxu0
        %v3995 = vadd.f32 0.0, %v3994
        %v3996 = vpop.f32.mrf.mxu0
        %3997 = vmatprep.mubr.f32.mxu0 0.0
        %3998 = vmatmul.mubr.f32.gmra.mxu0 %v2118
        %v3999 = vpop.f32.mrf.mxu0
        %v4000 = vadd.f32 0.0, %v3999
        %v4001 = vpop.f32.mrf.mxu0
        %4002 = vmatprep.mubr.f32.mxu0 0.0
        %4003 = vmatmul.mubr.f32.gmra.mxu0 %v2121
        %v4004 = vpop.f32.mrf.mxu0
        %v4005 = vadd.f32 0.0, %v4004
        %v4006 = vpop.f32.mrf.mxu0
        %4007 = vmatprep.mubr.f32.mxu0 0.0
        %4008 = vmatmul.mubr.f32.gmra.mxu0 %v2124
        %v4009 = vpop.f32.mrf.mxu0
        %v4010 = vadd.f32 0.0, %v4009
        %v4011 = vpop.f32.mrf.mxu0
        %4012 = vmatprep.mubr.f32.mxu0 0.0
        %4013 = vmatmul.mubr.f32.gmra.mxu0 %v2127
        %v4014 = vpop.f32.mrf.mxu0
        %v4015 = vadd.f32 0.0, %v4014
        %v4016 = vpop.f32.mrf.mxu0
        %4017 = vmatprep.mubr.f32.mxu0 0.0
        %4018 = vmatmul.mubr.f32.gmra.mxu0 %v2130
        %v4019 = vpop.f32.mrf.mxu0
        %v4020 = vadd.f32 0.0, %v4019
        %v4021 = vpop.f32.mrf.mxu0
        %4022 = vmatprep.mubr.f32.mxu0 0.0
        %4023 = vmatmul.mubr.f32.gmra.mxu0 %v2133
        %v4024 = vpop.f32.mrf.mxu0
        %v4025 = vadd.f32 0.0, %v4024
        %v4026 = vpop.f32.mrf.mxu0
        %4027 = vmatprep.mubr.f32.mxu0 0.0
        %4028 = vmatmul.mubr.f32.gmra.mxu0 %v2136
        %v4029 = vpop.f32.mrf.mxu0
        %v4030 = vadd.f32 0.0, %v4029
        %v4031 = vpop.f32.mrf.mxu0
        %4032 = vmatprep.mubr.f32.mxu0 0.0
        %4033 = vmatmul.mubr.f32.gmra.mxu0 %v2139
        %v4034 = vpop.f32.mrf.mxu0
        %v4035 = vadd.f32 0.0, %v4034
        %v4036 = vpop.f32.mrf.mxu0
        %4037 = vmatprep.mubr.f32.mxu0 0.0
        %4038 = vmatmul.mubr.f32.gmra.mxu0 %v2142
        %v4039 = vpop.f32.mrf.mxu0
        %v4040 = vadd.f32 0.0, %v4039
        %v4041 = vpop.f32.mrf.mxu0
        %4042 = vmatprep.mubr.f32.mxu0 0.0
        %4043 = vmatmul.mubr.f32.gmra.mxu0 %v2145
        %v4044 = vpop.f32.mrf.mxu0
        %v4045 = vadd.f32 0.0, %v4044
        %v4046 = vpop.f32.mrf.mxu0
        %4047 = vmatprep.mubr.f32.mxu0 0.0
        %4048 = vmatmul.mubr.f32.gmra.mxu0 %v2148
        %v4049 = vpop.f32.mrf.mxu0
        %v4050 = vadd.f32 0.0, %v4049
        %v4051 = vpop.f32.mrf.mxu0
        %4052 = vmatprep.mubr.f32.mxu0 0.0
        %4053 = vmatmul.mubr.f32.gmra.mxu0 %v2151
        %v4054 = vpop.f32.mrf.mxu0
        %v4055 = vadd.f32 0.0, %v4054
        %v4056 = vpop.f32.mrf.mxu0
        %4057 = vmatprep.mubr.f32.mxu0 0.0
        %4058 = vmatmul.mubr.f32.gmra.mxu0 %v2154
        %v4059 = vpop.f32.mrf.mxu0
        %v4060 = vadd.f32 0.0, %v4059
        %v4061 = vpop.f32.mrf.mxu0
        %4062 = vmatprep.mubr.f32.mxu0 0.0
        %4063 = vmatmul.mubr.f32.gmra.mxu0 %v2157
        %v4064 = vpop.f32.mrf.mxu0
        %v4065 = vadd.f32 0.0, %v4064
        %v4066 = vpop.f32.mrf.mxu0
        %4067 = vmatprep.mubr.f32.mxu0 0.0
        %4068 = vmatmul.mubr.f32.gmra.mxu0 %v2160
        %v4069 = vpop.f32.mrf.mxu0
        %v4070 = vadd.f32 0.0, %v4069
        %v4071 = vpop.f32.mrf.mxu0
        %4072 = vmatprep.mubr.f32.mxu0 0.0
        %4073 = vmatmul.mubr.f32.gmra.mxu0 %v2163
        %v4074 = vpop.f32.mrf.mxu0
        %v4075 = vadd.f32 0.0, %v4074
        %v4076 = vpop.f32.mrf.mxu0
        %4077 = vmatprep.mubr.f32.mxu0 0.0
        %4078 = vmatmul.mubr.f32.gmra.mxu0 %v2166
        %v4079 = vpop.f32.mrf.mxu0
        %v4080 = vadd.f32 0.0, %v4079
        %v4081 = vpop.f32.mrf.mxu0
        %4082 = vmatprep.mubr.f32.mxu0 0.0
        %4083 = vmatmul.mubr.f32.gmra.mxu0 %v2169
        %v4084 = vpop.f32.mrf.mxu0
        %v4085 = vadd.f32 0.0, %v4084
        %v4086 = vpop.f32.mrf.mxu0
        %4087 = vmatprep.mubr.f32.mxu0 0.0
        %4088 = vmatmul.mubr.f32.gmra.mxu0 %v2172
        %v4089 = vpop.f32.mrf.mxu0
        %v4090 = vadd.f32 0.0, %v4089
        %v4091 = vpop.f32.mrf.mxu0
        %4092 = vmatprep.mubr.f32.mxu0 0.0
        %4093 = vmatmul.mubr.f32.gmra.mxu0 %v2175
        %v4094 = vpop.f32.mrf.mxu0
        %v4095 = vadd.f32 0.0, %v4094
        %v4096 = vpop.f32.mrf.mxu0
        %4097 = vmatprep.mubr.f32.mxu0 0.0
        %4098 = vmatmul.mubr.f32.gmra.mxu0 %v2178
        %v4099 = vpop.f32.mrf.mxu0
        %v4100 = vadd.f32 0.0, %v4099
        %v4101 = vpop.f32.mrf.mxu0
        %4102 = vmatprep.mubr.f32.mxu0 0.0
        %4103 = vmatmul.mubr.f32.gmra.mxu0 %v2181
        %v4104 = vpop.f32.mrf.mxu0
        %v4105 = vadd.f32 0.0, %v4104
        %v4106 = vpop.f32.mrf.mxu0
        %4107 = vmatprep.mubr.f32.mxu0 0.0
        %4108 = vmatmul.mubr.f32.gmra.mxu0 %v2184
        %v4109 = vpop.f32.mrf.mxu0
        %v4110 = vadd.f32 0.0, %v4109
        %v4111 = vpop.f32.mrf.mxu0
        %4112 = vmatprep.mubr.f32.mxu0 0.0
        %4113 = vmatmul.mubr.f32.gmra.mxu0 %v2187
        %v4114 = vpop.f32.mrf.mxu0
        %v4115 = vadd.f32 0.0, %v4114
        %v4116 = vpop.f32.mrf.mxu0
        %4117 = vmatprep.mubr.f32.mxu0 0.0
        %4118 = vmatmul.mubr.f32.gmra.mxu0 %v2190
        %v4119 = vpop.f32.mrf.mxu0
        %v4120 = vadd.f32 0.0, %v4119
        %v4121 = vpop.f32.mrf.mxu0
        %4122 = vmatprep.mubr.f32.mxu0 0.0
        %4123 = vmatmul.mubr.f32.gmra.mxu0 %v2193
        %v4124 = vpop.f32.mrf.mxu0
        %v4125 = vadd.f32 0.0, %v4124
        %v4126 = vpop.f32.mrf.mxu0
        %4127 = vmatprep.mubr.f32.mxu0 0.0
        %4128 = vmatmul.mubr.f32.gmra.mxu0 %v2196
        %v4129 = vpop.f32.mrf.mxu0
        %v4130 = vadd.f32 0.0, %v4129
        %v4131 = vpop.f32.mrf.mxu0
        %4132 = vmatprep.mubr.f32.mxu0 0.0
        %4133 = vmatmul.mubr.f32.gmra.mxu0 %v2199
        %v4134 = vpop.f32.mrf.mxu0
        %v4135 = vadd.f32 0.0, %v4134
        %v4136 = vpop.f32.mrf.mxu0
        %4137 = vmatprep.mubr.f32.mxu0 0.0
        %4138 = vmatmul.mubr.f32.gmra.mxu0 %v2202
        %v4139 = vpop.f32.mrf.mxu0
        %v4140 = vadd.f32 0.0, %v4139
        %v4141 = vpop.f32.mrf.mxu0
        %4142 = vmatprep.mubr.f32.mxu0 0.0
        %4143 = vmatmul.mubr.f32.gmra.mxu0 %v2205
        %v4144 = vpop.f32.mrf.mxu0
        %v4145 = vadd.f32 0.0, %v4144
        %v4146 = vpop.f32.mrf.mxu0
        %4147 = vmatprep.mubr.f32.mxu0 0.0
        %4148 = vmatmul.mubr.f32.gmra.mxu0 %v2208
        %v4149 = vpop.f32.mrf.mxu0
        %v4150 = vadd.f32 0.0, %v4149
        %v4151 = vpop.f32.mrf.mxu0
        %4152 = vmatprep.mubr.f32.mxu0 0.0
        %4153 = vmatmul.mubr.f32.gmra.mxu0 %v2211
        %v4154 = vpop.f32.mrf.mxu0
        %v4155 = vadd.f32 0.0, %v4154
        %v4156 = vpop.f32.mrf.mxu0
        %4157 = vmatprep.mubr.f32.mxu0 0.0
        %4158 = vmatmul.mubr.f32.gmra.mxu0 %v2214
        %v4159 = vpop.f32.mrf.mxu0
        %v4160 = vadd.f32 0.0, %v4159
        %v4161 = vpop.f32.mrf.mxu0
        %4162 = vmatprep.mubr.f32.mxu0 0.0
        %4163 = vmatmul.mubr.f32.gmra.mxu0 %v2217
        %v4164 = vpop.f32.mrf.mxu0
        %v4165 = vadd.f32 0.0, %v4164
        %v4166 = vpop.f32.mrf.mxu0
        %4167 = vmatprep.mubr.f32.mxu0 0.0
        %4168 = vmatmul.mubr.f32.gmra.mxu0 %v2220
        %v4169 = vpop.f32.mrf.mxu0
        %v4170 = vadd.f32 0.0, %v4169
        %v4171 = vpop.f32.mrf.mxu0
        %4172 = vmatprep.mubr.f32.mxu0 0.0
        %4173 = vmatmul.mubr.f32.gmra.mxu0 %v2223
        %v4174 = vpop.f32.mrf.mxu0
        %v4175 = vadd.f32 0.0, %v4174
        %v4176 = vpop.f32.mrf.mxu0
        %4177 = vmatprep.mubr.f32.mxu0 0.0
        %4178 = vmatmul.mubr.f32.gmra.mxu0 %v2226
        %v4179 = vpop.f32.mrf.mxu0
        %v4180 = vadd.f32 0.0, %v4179
        %v4181 = vpop.f32.mrf.mxu0
        %4182 = vmatprep.mubr.f32.mxu0 0.0
        %4183 = vmatmul.mubr.f32.gmra.mxu0 %v2229
        %v4184 = vpop.f32.mrf.mxu0
        %v4185 = vadd.f32 0.0, %v4184
        %v4186 = vpop.f32.mrf.mxu0
        %4187 = vmatprep.mubr.f32.mxu0 0.0
        %4188 = vmatmul.mubr.f32.gmra.mxu0 %v2232
        %v4189 = vpop.f32.mrf.mxu0
        %v4190 = vadd.f32 0.0, %v4189
        %v4191 = vpop.f32.mrf.mxu0
        %4192 = vmatprep.mubr.f32.mxu0 0.0
        %4193 = vmatmul.mubr.f32.gmra.mxu0 %v2235
        %v4194 = vpop.f32.mrf.mxu0
        %v4195 = vadd.f32 0.0, %v4194
        %v4196 = vpop.f32.mrf.mxu0
        %4197 = vmatprep.mubr.f32.mxu0 0.0
        %4198 = vmatmul.mubr.f32.gmra.mxu0 %v2238
        %v4199 = vpop.f32.mrf.mxu0
        %v4200 = vadd.f32 0.0, %v4199
        %v4201 = vpop.f32.mrf.mxu0
        %4202 = vmatprep.mubr.f32.mxu0 0.0
        %4203 = vmatmul.mubr.f32.gmra.mxu0 %v2241
        %v4204 = vpop.f32.mrf.mxu0
        %v4205 = vadd.f32 0.0, %v4204
        %v4206 = vpop.f32.mrf.mxu0
        %4207 = vmatprep.mubr.f32.mxu0 0.0
        %4208 = vmatmul.mubr.f32.gmra.mxu0 %v2244
        %v4209 = vpop.f32.mrf.mxu0
        %v4210 = vadd.f32 0.0, %v4209
        %v4211 = vpop.f32.mrf.mxu0
        %4212 = vmatprep.mubr.f32.mxu0 0.0
        %4213 = vmatmul.mubr.f32.gmra.mxu0 %v2247
        %v4214 = vpop.f32.mrf.mxu0
        %v4215 = vadd.f32 0.0, %v4214
        %v4216 = vpop.f32.mrf.mxu0
        %4217 = vmatprep.mubr.f32.mxu0 0.0
        %4218 = vmatmul.mubr.f32.gmra.mxu0 %v2250
        %v4219 = vpop.f32.mrf.mxu0
        %v4220 = vadd.f32 0.0, %v4219
        %v4221 = vpop.f32.mrf.mxu0
        %4222 = vmatprep.mubr.f32.mxu0 0.0
        %4223 = vmatmul.mubr.f32.gmra.mxu0 %v2253
        %v4224 = vpop.f32.mrf.mxu0
        %v4225 = vadd.f32 0.0, %v4224
        %v4226 = vpop.f32.mrf.mxu0
        %4227 = vmatprep.mubr.f32.mxu0 0.0
        %4228 = vmatmul.mubr.f32.gmra.mxu0 %v2256
        %v4229 = vpop.f32.mrf.mxu0
        %v4230 = vadd.f32 0.0, %v4229
        %v4231 = vpop.f32.mrf.mxu0
        %4232 = vmatprep.mubr.f32.mxu0 0.0
        %4233 = vmatmul.mubr.f32.gmra.mxu0 %v2259
        %v4234 = vpop.f32.mrf.mxu0
        %v4235 = vadd.f32 0.0, %v4234
        %v4236 = vpop.f32.mrf.mxu0
        %4237 = vmatprep.mubr.f32.mxu0 0.0
        %4238 = vmatmul.mubr.f32.gmra.mxu0 %v2262
        %v4239 = vpop.f32.mrf.mxu0
        %v4240 = vadd.f32 0.0, %v4239
        %v4241 = vpop.f32.mrf.mxu0
        %4242 = vmatprep.mubr.f32.mxu0 0.0
        %4243 = vmatmul.mubr.f32.gmra.mxu0 %v2265
        %v4244 = vpop.f32.mrf.mxu0
        %v4245 = vadd.f32 0.0, %v4244
        %v4246 = vpop.f32.mrf.mxu0
        %4247 = vmatprep.mubr.f32.mxu0 0.0
        %4248 = vmatmul.mubr.f32.gmra.mxu0 %v2268
        %v4249 = vpop.f32.mrf.mxu0
        %v4250 = vadd.f32 0.0, %v4249
        %v4251 = vpop.f32.mrf.mxu0
        %4252 = vmatprep.mubr.f32.mxu0 0.0
        %4253 = vmatmul.mubr.f32.gmra.mxu0 %v2271
        %v4254 = vpop.f32.mrf.mxu0
        %v4255 = vadd.f32 0.0, %v4254
        %v4256 = vpop.f32.mrf.mxu0
        %4257 = vmatprep.mubr.f32.mxu0 0.0
        %4258 = vmatmul.mubr.f32.gmra.mxu0 %v2274
        %v4259 = vpop.f32.mrf.mxu0
        %v4260 = vadd.f32 0.0, %v4259
        %v4261 = vpop.f32.mrf.mxu0
        %4262 = vmatprep.mubr.f32.mxu0 0.0
        %4263 = vmatmul.mubr.f32.gmra.mxu0 %v2277
        %v4264 = vpop.f32.mrf.mxu0
        %v4265 = vadd.f32 0.0, %v4264
        %v4266 = vpop.f32.mrf.mxu0
        %4267 = vmatprep.mubr.f32.mxu0 0.0
        %4268 = vmatmul.mubr.f32.gmra.mxu0 %v2280
        %v4269 = vpop.f32.mrf.mxu0
        %v4270 = vadd.f32 0.0, %v4269
        %v4271 = vpop.f32.mrf.mxu0
        %4272 = vmatprep.mubr.f32.mxu0 0.0
        %4273 = vmatmul.mubr.f32.gmra.mxu0 %v2283
        %v4274 = vpop.f32.mrf.mxu0
        %v4275 = vadd.f32 0.0, %v4274
        %v4276 = vpop.f32.mrf.mxu0
        %4277 = vmatprep.mubr.f32.mxu0 0.0
        %4278 = vmatmul.mubr.f32.gmra.mxu0 %v2286
        %v4279 = vpop.f32.mrf.mxu0
        %v4280 = vadd.f32 0.0, %v4279
        %v4281 = vpop.f32.mrf.mxu0
        %4282 = vmatprep.mubr.f32.mxu0 0.0
        %4283 = vmatmul.mubr.f32.gmra.mxu0 %v2289
        %v4284 = vpop.f32.mrf.mxu0
        %v4285 = vadd.f32 0.0, %v4284
        %v4286 = vpop.f32.mrf.mxu0
        %4287 = vmatprep.mubr.f32.mxu0 0.0
        %4288 = vmatmul.mubr.f32.gmra.mxu0 %v2292
        %v4289 = vpop.f32.mrf.mxu0
        %v4290 = vadd.f32 0.0, %v4289
        %v4291 = vpop.f32.mrf.mxu0
        %4292 = vmatprep.mubr.f32.mxu0 0.0
        %4293 = vmatmul.mubr.f32.gmra.mxu0 %v2295
        %v4294 = vpop.f32.mrf.mxu0
        %v4295 = vadd.f32 0.0, %v4294
        %v4296 = vpop.f32.mrf.mxu0
        %4297 = vmatprep.mubr.f32.mxu0 0.0
        %4298 = vmatmul.mubr.f32.gmra.mxu0 %v2298
        %v4299 = vpop.f32.mrf.mxu0
        %v4300 = vadd.f32 0.0, %v4299
        %v4301 = vpop.f32.mrf.mxu0
        %4302 = vmatprep.mubr.f32.mxu0 0.0
        %4303 = vmatmul.mubr.f32.gmra.mxu0 %v2301
        %v4304 = vpop.f32.mrf.mxu0
        %v4305 = vadd.f32 0.0, %v4304
        %v4306 = vpop.f32.mrf.mxu0
        %4307 = vmatprep.mubr.f32.mxu0 0.0
        %4308 = vmatmul.mubr.f32.gmra.mxu0 %v2304
        %v4309 = vpop.f32.mrf.mxu0
        %v4310 = vadd.f32 0.0, %v4309
        %v4311 = vpop.f32.mrf.mxu0
        %4312 = vmatprep.mubr.f32.mxu0 0.0
        %4313 = vmatmul.mubr.f32.gmra.mxu0 %v2307
        %v4314 = vpop.f32.mrf.mxu0
        %v4315 = vadd.f32 0.0, %v4314
        %v4316 = vpop.f32.mrf.mxu0
        %4317 = vmatprep.mubr.f32.mxu0 0.0
        %4318 = vmatmul.mubr.f32.gmra.mxu0 %v2310
        %v4319 = vpop.f32.mrf.mxu0
        %v4320 = vadd.f32 0.0, %v4319
        %v4321 = vpop.f32.mrf.mxu0
        %4322 = vmatprep.mubr.f32.mxu0 0.0
        %4323 = vmatmul.mubr.f32.gmra.mxu0 %v2313
        %v4324 = vpop.f32.mrf.mxu0
        %v4325 = vadd.f32 0.0, %v4324
        %v4326 = vpop.f32.mrf.mxu0
        %4327 = vmatprep.mubr.f32.mxu0 0.0
        %4328 = vmatmul.mubr.f32.gmra.mxu0 %v2316
        %v4329 = vpop.f32.mrf.mxu0
        %v4330 = vadd.f32 0.0, %v4329
        %v4331 = vpop.f32.mrf.mxu0
        %4332 = vmatprep.mubr.f32.mxu0 0.0
        %4333 = vmatmul.mubr.f32.gmra.mxu0 %v2319
        %v4334 = vpop.f32.mrf.mxu0
        %v4335 = vadd.f32 0.0, %v4334
        %v4336 = vpop.f32.mrf.mxu0
        %4337 = vmatprep.mubr.f32.mxu0 0.0
        %4338 = vmatmul.mubr.f32.gmra.mxu0 %v2322
        %v4339 = vpop.f32.mrf.mxu0
        %v4340 = vadd.f32 0.0, %v4339
        %v4341 = vpop.f32.mrf.mxu0
        %4342 = vmatprep.mubr.f32.mxu0 0.0
        %4343 = vmatmul.mubr.f32.gmra.mxu0 %v2325
        %v4344 = vpop.f32.mrf.mxu0
        %v4345 = vadd.f32 0.0, %v4344
        %v4346 = vpop.f32.mrf.mxu0
        %4347 = vmatprep.mubr.f32.mxu0 0.0
        %4348 = vmatmul.mubr.f32.gmra.mxu0 %v2328
        %v4349 = vpop.f32.mrf.mxu0
        %v4350 = vadd.f32 0.0, %v4349
        %v4351 = vpop.f32.mrf.mxu0
        %4352 = vmatprep.mubr.f32.mxu0 0.0
        %4353 = vmatmul.mubr.f32.gmra.mxu0 %v2331
        %v4354 = vpop.f32.mrf.mxu0
        %v4355 = vadd.f32 0.0, %v4354
        %v4356 = vpop.f32.mrf.mxu0
        %4357 = vmatprep.mubr.f32.mxu0 0.0
        %4358 = vmatmul.mubr.f32.gmra.mxu0 %v2334
        %v4359 = vpop.f32.mrf.mxu0
        %v4360 = vadd.f32 0.0, %v4359
        %v4361 = vpop.f32.mrf.mxu0
        %4362 = vmatprep.mubr.f32.mxu0 0.0
        %4363 = vmatmul.mubr.f32.gmra.mxu0 %v2337
        %v4364 = vpop.f32.mrf.mxu0
        %v4365 = vadd.f32 0.0, %v4364
        %v4366 = vpop.f32.mrf.mxu0
        %4367 = vmatprep.mubr.f32.mxu0 0.0
        %4368 = vmatmul.mubr.f32.gmra.mxu0 %v2340
        %v4369 = vpop.f32.mrf.mxu0
        %v4370 = vadd.f32 0.0, %v4369
        %v4371 = vpop.f32.mrf.mxu0
        %4372 = vmatprep.mubr.f32.mxu0 0.0
        %4373 = vmatmul.mubr.f32.gmra.mxu0 %v2343
        %v4374 = vpop.f32.mrf.mxu0
        %v4375 = vadd.f32 0.0, %v4374
        %v4376 = vpop.f32.mrf.mxu0
        %4377 = vmatprep.mubr.f32.mxu0 0.0
        %4378 = vmatmul.mubr.f32.gmra.mxu0 %v2346
        %v4379 = vpop.f32.mrf.mxu0
        %v4380 = vadd.f32 0.0, %v4379
        %v4381 = vpop.f32.mrf.mxu0
        %4382 = vmatprep.mubr.f32.mxu0 0.0
        %4383 = vmatmul.mubr.f32.gmra.mxu0 %v2349
        %v4384 = vpop.f32.mrf.mxu0
        %v4385 = vadd.f32 0.0, %v4384
        %v4386 = vpop.f32.mrf.mxu0
        %4387 = vmatprep.mubr.f32.mxu0 0.0
        %4388 = vmatmul.mubr.f32.gmra.mxu0 %v2352
        %v4389 = vpop.f32.mrf.mxu0
        %v4390 = vadd.f32 0.0, %v4389
        %v4391 = vpop.f32.mrf.mxu0
        %4392 = vmatprep.mubr.f32.mxu0 0.0
        %4393 = vmatmul.mubr.f32.gmra.mxu0 %v2355
        %v4394 = vpop.f32.mrf.mxu0
        %v4395 = vadd.f32 0.0, %v4394
        %v4396 = vpop.f32.mrf.mxu0
        %4397 = vmatprep.mubr.f32.mxu0 0.0
        %4398 = vmatmul.mubr.f32.gmra.mxu0 %v2358
        %v4399 = vpop.f32.mrf.mxu0
        %v4400 = vadd.f32 0.0, %v4399
        %v4401 = vpop.f32.mrf.mxu0
        %4402 = vmatprep.mubr.f32.mxu0 0.0
        %4403 = vmatmul.mubr.f32.gmra.mxu0 %v2361
        %v4404 = vpop.f32.mrf.mxu0
        %v4405 = vadd.f32 0.0, %v4404
        %v4406 = vpop.f32.mrf.mxu0
        %4407 = vmatprep.mubr.f32.mxu0 0.0
        %4408 = vmatmul.mubr.f32.gmra.mxu0 %v2364
        %v4409 = vpop.f32.mrf.mxu0
        %v4410 = vadd.f32 0.0, %v4409
        %v4411 = vpop.f32.mrf.mxu0
        %4412 = vmatprep.mubr.f32.mxu0 0.0
        %4413 = vmatmul.mubr.f32.gmra.mxu0 %v2367
        %v4414 = vpop.f32.mrf.mxu0
        %v4415 = vadd.f32 0.0, %v4414
        %v4416 = vpop.f32.mrf.mxu0
        %4417 = vmatprep.mubr.f32.mxu0 0.0
        %4418 = vmatmul.mubr.f32.gmra.mxu0 %v2370
        %v4419 = vpop.f32.mrf.mxu0
        %v4420 = vadd.f32 0.0, %v4419
        %v4421 = vpop.f32.mrf.mxu0
        %4422 = vmatprep.mubr.f32.mxu0 0.0
        %4423 = vmatmul.mubr.f32.gmra.mxu0 %v2373
        %v4424 = vpop.f32.mrf.mxu0
        %v4425 = vadd.f32 0.0, %v4424
        %v4426 = vpop.f32.mrf.mxu0
        %4427 = vmatprep.mubr.f32.mxu0 0.0
        %4428 = vmatmul.mubr.f32.gmra.mxu0 %v2376
        %v4429 = vpop.f32.mrf.mxu0
        %v4430 = vadd.f32 0.0, %v4429
        %v4431 = vpop.f32.mrf.mxu0
        %4432 = vmatprep.mubr.f32.mxu0 0.0
        %4433 = vmatmul.mubr.f32.gmra.mxu0 %v2379
        %v4434 = vpop.f32.mrf.mxu0
        %v4435 = vadd.f32 0.0, %v4434
        %v4436 = vpop.f32.mrf.mxu0
        %4437 = vmatprep.mubr.f32.mxu0 0.0
        %4438 = vmatmul.mubr.f32.gmra.mxu0 %v2382
        %v4439 = vpop.f32.mrf.mxu0
        %v4440 = vadd.f32 0.0, %v4439
        %v4441 = vpop.f32.mrf.mxu0
        %4442 = vmatprep.mubr.f32.mxu0 0.0
        %4443 = vmatmul.mubr.f32.gmra.mxu0 %v2385
        %v4444 = vpop.f32.mrf.mxu0
        %v4445 = vadd.f32 0.0, %v4444
        %v4446 = vpop.f32.mrf.mxu0
        %4447 = vmatprep.mubr.f32.mxu0 0.0
        %4448 = vmatmul.mubr.f32.gmra.mxu0 %v2388
        %v4449 = vpop.f32.mrf.mxu0
        %v4450 = vadd.f32 0.0, %v4449
        %v4451 = vpop.f32.mrf.mxu0
        %4452 = vmatprep.mubr.f32.mxu0 0.0
        %4453 = vmatmul.mubr.f32.gmra.mxu0 %v2391
        %v4454 = vpop.f32.mrf.mxu0
        %v4455 = vadd.f32 0.0, %v4454
        %v4456 = vpop.f32.mrf.mxu0
        %4457 = vmatprep.mubr.f32.mxu0 0.0
        %4458 = vmatmul.mubr.f32.gmra.mxu0 %v2394
        %v4459 = vpop.f32.mrf.mxu0
        %v4460 = vadd.f32 0.0, %v4459
        %v4461 = vpop.f32.mrf.mxu0
        %4462 = vmatprep.mubr.f32.mxu0 0.0
        %4463 = vmatmul.mubr.f32.gmra.mxu0 %v2397
        %v4464 = vpop.f32.mrf.mxu0
        %v4465 = vadd.f32 0.0, %v4464
        %v4466 = vpop.f32.mrf.mxu0
        %4467 = vmatprep.mubr.f32.mxu0 0.0
        %4468 = vmatmul.mubr.f32.gmra.mxu0 %v2400
        %v4469 = vpop.f32.mrf.mxu0
        %v4470 = vadd.f32 0.0, %v4469
        %v4471 = vpop.f32.mrf.mxu0
        %4472 = vmatprep.mubr.f32.mxu0 0.0
        %4473 = vmatmul.mubr.f32.gmra.mxu0 %v2403
        %v4474 = vpop.f32.mrf.mxu0
        %v4475 = vadd.f32 0.0, %v4474
        %v4476 = vpop.f32.mrf.mxu0
        %4477 = vmatprep.mubr.f32.mxu0 0.0
        %4478 = vmatmul.mubr.f32.gmra.mxu0 %v2406
        %v4479 = vpop.f32.mrf.mxu0
        %v4480 = vadd.f32 0.0, %v4479
        %v4481 = vpop.f32.mrf.mxu0
        %4482 = vmatprep.mubr.f32.mxu0 0.0
        %4483 = vmatmul.mubr.f32.gmra.mxu0 %v2409
        %v4484 = vpop.f32.mrf.mxu0
        %v4485 = vadd.f32 0.0, %v4484
        %v4486 = vpop.f32.mrf.mxu0
        %4487 = vmatprep.mubr.f32.mxu0 0.0
        %4488 = vmatmul.mubr.f32.gmra.mxu0 %v2412
        %v4489 = vpop.f32.mrf.mxu0
        %v4490 = vadd.f32 0.0, %v4489
        %v4491 = vpop.f32.mrf.mxu0
        %4492 = vmatprep.mubr.f32.mxu0 0.0
        %4493 = vmatmul.mubr.f32.gmra.mxu0 %v2415
        %v4494 = vpop.f32.mrf.mxu0
        %v4495 = vadd.f32 0.0, %v4494
        %v4496 = vpop.f32.mrf.mxu0
        %4497 = vmatprep.mubr.f32.mxu0 0.0
        %4498 = vmatmul.mubr.f32.gmra.mxu0 %v2418
        %v4499 = vpop.f32.mrf.mxu0
        %v4500 = vadd.f32 0.0, %v4499
        %v4501 = vpop.f32.mrf.mxu0
        %4502 = vmatprep.mubr.f32.mxu0 0.0
        %4503 = vmatmul.mubr.f32.gmra.mxu0 %v2421
        %v4504 = vpop.f32.mrf.mxu0
        %v4505 = vadd.f32 0.0, %v4504
        %v4506 = vpop.f32.mrf.mxu0
        %4507 = vmatprep.mubr.f32.mxu0 0.0
        %4508 = vmatmul.mubr.f32.gmra.mxu0 %v2424
        %v4509 = vpop.f32.mrf.mxu0
        %v4510 = vadd.f32 0.0, %v4509
        %v4511 = vpop.f32.mrf.mxu0
        %4512 = vmatprep.mubr.f32.mxu0 0.0
        %4513 = vmatmul.mubr.f32.gmra.mxu0 %v2427
        %v4514 = vpop.f32.mrf.mxu0
        %v4515 = vadd.f32 0.0, %v4514
        %v4516 = vpop.f32.mrf.mxu0
        %4517 = vmatprep.mubr.f32.mxu0 0.0
        %4518 = vmatmul.mubr.f32.gmra.mxu0 %v2430
        %v4519 = vpop.f32.mrf.mxu0
        %v4520 = vadd.f32 0.0, %v4519
        %v4521 = vpop.f32.mrf.mxu0
        %4522 = vmatprep.mubr.f32.mxu0 0.0
        %4523 = vmatmul.mubr.f32.gmra.mxu0 %v2433
        %v4524 = vpop.f32.mrf.mxu0
        %v4525 = vadd.f32 0.0, %v4524
        %v4526 = vpop.f32.mrf.mxu0
        %4527 = vmatprep.mubr.f32.mxu0 0.0
        %4528 = vmatmul.mubr.f32.gmra.mxu0 %v2436
        %v4529 = vpop.f32.mrf.mxu0
        %v4530 = vadd.f32 0.0, %v4529
        %v4531 = vpop.f32.mrf.mxu0
        %4532 = vmatprep.mubr.f32.mxu0 0.0
        %4533 = vmatmul.mubr.f32.gmra.mxu0 %v2439
        %v4534 = vpop.f32.mrf.mxu0
        %v4535 = vadd.f32 0.0, %v4534
        %v4536 = vpop.f32.mrf.mxu0
        %4537 = vmatprep.mubr.f32.mxu0 0.0
        %4538 = vmatmul.mubr.f32.gmra.mxu0 %v2442
        %v4539 = vpop.f32.mrf.mxu0
        %v4540 = vadd.f32 0.0, %v4539
        %v4541 = vpop.f32.mrf.mxu0
        %4542 = vmatprep.mubr.f32.mxu0 0.0
        %4543 = vmatmul.mubr.f32.gmra.mxu0 %v2445
        %v4544 = vpop.f32.mrf.mxu0
        %v4545 = vadd.f32 0.0, %v4544
        %v4546 = vpop.f32.mrf.mxu0
        %4547 = vmatprep.mubr.f32.mxu0 0.0
        %4548 = vmatmul.mubr.f32.gmra.mxu0 %v2448
        %v4549 = vpop.f32.mrf.mxu0
        %v4550 = vadd.f32 0.0, %v4549
        %v4551 = vpop.f32.mrf.mxu0
        %4552 = vmatprep.mubr.f32.mxu0 0.0
        %4553 = vmatmul.mubr.f32.gmra.mxu0 %v2451
        %v4554 = vpop.f32.mrf.mxu0
        %v4555 = vadd.f32 0.0, %v4554
        %v4556 = vpop.f32.mrf.mxu0
        %4557 = vmatprep.mubr.f32.mxu0 0.0
        %4558 = vmatmul.mubr.f32.gmra.mxu0 %v2454
        %v4559 = vpop.f32.mrf.mxu0
        %v4560 = vadd.f32 0.0, %v4559
        %v4561 = vpop.f32.mrf.mxu0
        %4562 = vmatprep.mubr.f32.mxu0 0.0
        %4563 = vmatmul.mubr.f32.gmra.mxu0 %v2457
        %v4564 = vpop.f32.mrf.mxu0
        %v4565 = vadd.f32 0.0, %v4564
        %v4566 = vpop.f32.mrf.mxu0
        %4567 = vmatprep.mubr.f32.mxu0 0.0
        %4568 = vmatmul.mubr.f32.gmra.mxu0 %v2460
        %v4569 = vpop.f32.mrf.mxu0
        %v4570 = vadd.f32 0.0, %v4569
        %v4571 = vpop.f32.mrf.mxu0
        %4572 = vmatprep.mubr.f32.mxu0 0.0
        %4573 = vmatmul.mubr.f32.gmra.mxu0 %v2463
        %v4574 = vpop.f32.mrf.mxu0
        %v4575 = vadd.f32 0.0, %v4574
        %v4576 = vpop.f32.mrf.mxu0
        %4577 = vmatprep.mubr.f32.mxu0 0.0
        %4578 = vmatmul.mubr.f32.gmra.mxu0 %v2466
        %v4579 = vpop.f32.mrf.mxu0
        %v4580 = vadd.f32 0.0, %v4579
        %v4581 = vpop.f32.mrf.mxu0
        %4582 = vmatprep.mubr.f32.mxu0 0.0
        %4583 = vmatmul.mubr.f32.gmra.mxu0 %v2469
        %v4584 = vpop.f32.mrf.mxu0
        %v4585 = vadd.f32 0.0, %v4584
        %v4586 = vpop.f32.mrf.mxu0
        %4587 = vmatprep.mubr.f32.mxu0 0.0
        %4588 = vmatmul.mubr.f32.gmra.mxu0 %v2472
        %v4589 = vpop.f32.mrf.mxu0
        %v4590 = vadd.f32 0.0, %v4589
        %v4591 = vpop.f32.mrf.mxu0
        %4592 = vmatprep.mubr.f32.mxu0 0.0
        %4593 = vmatmul.mubr.f32.gmra.mxu0 %v2475
        %v4594 = vpop.f32.mrf.mxu0
        %v4595 = vadd.f32 0.0, %v4594
        %v4596 = vpop.f32.mrf.mxu0
        %4597 = vmatprep.mubr.f32.mxu0 0.0
        %4598 = vmatmul.mubr.f32.gmra.mxu0 %v2478
        %v4599 = vpop.f32.mrf.mxu0
        %v4600 = vadd.f32 0.0, %v4599
        %v4601 = vpop.f32.mrf.mxu0
        %4602 = vmatprep.mubr.f32.mxu0 0.0
        %4603 = vmatmul.mubr.f32.gmra.mxu0 %v2481
        %v4604 = vpop.f32.mrf.mxu0
        %v4605 = vadd.f32 0.0, %v4604
        %v4606 = vpop.f32.mrf.mxu0
        %4607 = vmatprep.mubr.f32.mxu0 0.0
        %4608 = vmatmul.mubr.f32.gmra.mxu0 %v2484
        %v4609 = vpop.f32.mrf.mxu0
        %v4610 = vadd.f32 0.0, %v4609
        %v4611 = vpop.f32.mrf.mxu0
        %4612 = vmatprep.mubr.f32.mxu0 0.0
        %4613 = vmatmul.mubr.f32.gmra.mxu0 %v2487
        %v4614 = vpop.f32.mrf.mxu0
        %v4615 = vadd.f32 0.0, %v4614
        %v4616 = vpop.f32.mrf.mxu0
        %4617 = vmatprep.mubr.f32.mxu0 0.0
        %4618 = vmatmul.mubr.f32.gmra.mxu0 %v2490
        %v4619 = vpop.f32.mrf.mxu0
        %v4620 = vadd.f32 0.0, %v4619
        %v4621 = vpop.f32.mrf.mxu0
        %4622 = vmatprep.mubr.f32.mxu0 0.0
        %4623 = vmatmul.mubr.f32.gmra.mxu0 %v2493
        %v4624 = vpop.f32.mrf.mxu0
        %v4625 = vadd.f32 0.0, %v4624
        %v4626 = vpop.f32.mrf.mxu0
        %4627 = vmatprep.mubr.f32.mxu0 0.0
        %4628 = vmatmul.mubr.f32.gmra.mxu0 %v2496
        %v4629 = vpop.f32.mrf.mxu0
        %v4630 = vadd.f32 0.0, %v4629
        %v4631 = vpop.f32.mrf.mxu0
        %4632 = vmatprep.mubr.f32.mxu0 0.0
        %4633 = vmatmul.mubr.f32.gmra.mxu0 %v2499
        %v4634 = vpop.f32.mrf.mxu0
        %v4635 = vadd.f32 0.0, %v4634
        %v4636 = vpop.f32.mrf.mxu0
        %4637 = vmatprep.mubr.f32.mxu0 0.0
        %4638 = vmatmul.mubr.f32.gmra.mxu0 %v2502
        %v4639 = vpop.f32.mrf.mxu0
        %v4640 = vadd.f32 0.0, %v4639
        %v4641 = vpop.f32.mrf.mxu0
        %4642 = vmatprep.mubr.f32.mxu0 0.0
        %4643 = vmatmul.mubr.f32.gmra.mxu0 %v2505
        %v4644 = vpop.f32.mrf.mxu0
        %v4645 = vadd.f32 0.0, %v4644
        %v4646 = vpop.f32.mrf.mxu0
        %4647 = vmatprep.mubr.f32.mxu0 0.0
        %4648 = vmatmul.mubr.f32.gmra.mxu0 %v2508
        %v4649 = vpop.f32.mrf.mxu0
        %v4650 = vadd.f32 0.0, %v4649
        %v4651 = vpop.f32.mrf.mxu0
        %4652 = vmatprep.mubr.f32.mxu0 0.0
        %4653 = vmatmul.mubr.f32.gmra.mxu0 %v2511
        %v4654 = vpop.f32.mrf.mxu0
        %v4655 = vadd.f32 0.0, %v4654
        %v4656 = vpop.f32.mrf.mxu0
        %4657 = vmatprep.mubr.f32.mxu0 0.0
        %4658 = vmatmul.mubr.f32.gmra.mxu0 %v2514
        %v4659 = vpop.f32.mrf.mxu0
        %v4660 = vadd.f32 0.0, %v4659
        %v4661 = vpop.f32.mrf.mxu0
        %4662 = vmatprep.mubr.f32.mxu0 0.0
        %4663 = vmatmul.mubr.f32.gmra.mxu0 %v2517
        %v4664 = vpop.f32.mrf.mxu0
        %v4665 = vadd.f32 0.0, %v4664
        %v4666 = vpop.f32.mrf.mxu0
        %4667 = vmatprep.mubr.f32.mxu0 0.0
        %4668 = vmatmul.mubr.f32.gmra.mxu0 %v2520
        %v4669 = vpop.f32.mrf.mxu0
        %v4670 = vadd.f32 0.0, %v4669
        %v4671 = vpop.f32.mrf.mxu0
        %4672 = vmatprep.mubr.f32.mxu0 0.0
        %4673 = vmatmul.mubr.f32.gmra.mxu0 %v2523
        %v4674 = vpop.f32.mrf.mxu0
        %v4675 = vadd.f32 0.0, %v4674
        %v4676 = vpop.f32.mrf.mxu0
        %4677 = vmatprep.mubr.f32.mxu0 0.0
        %4678 = vmatmul.mubr.f32.gmra.mxu0 %v2526
        %v4679 = vpop.f32.mrf.mxu0
        %v4680 = vadd.f32 0.0, %v4679
        %v4681 = vpop.f32.mrf.mxu0
        %4682 = vmatprep.mubr.f32.mxu0 0.0
        %4683 = vmatmul.mubr.f32.gmra.mxu0 %v2529
        %v4684 = vpop.f32.mrf.mxu0
        %v4685 = vadd.f32 0.0, %v4684
        %v4686 = vpop.f32.mrf.mxu0
        %4687 = vmatprep.mubr.f32.mxu0 0.0
        %4688 = vmatmul.mubr.f32.gmra.mxu0 %v2532
        %v4689 = vpop.f32.mrf.mxu0
        %v4690 = vadd.f32 0.0, %v4689
        %v4691 = vpop.f32.mrf.mxu0
        %4692 = vmatprep.mubr.f32.mxu0 0.0
        %4693 = vmatmul.mubr.f32.gmra.mxu0 %v2535
        %v4694 = vpop.f32.mrf.mxu0
        %v4695 = vadd.f32 0.0, %v4694
        %v4696 = vpop.f32.mrf.mxu0
        %4697 = vmatprep.mubr.f32.mxu0 0.0
        %4698 = vmatmul.mubr.f32.gmra.mxu0 %v2538
        %v4699 = vpop.f32.mrf.mxu0
        %v4700 = vadd.f32 0.0, %v4699
        %v4701 = vpop.f32.mrf.mxu0
        %4702 = vmatprep.mubr.f32.mxu0 0.0
        %4703 = vmatmul.mubr.f32.gmra.mxu0 %v2541
        %v4704 = vpop.f32.mrf.mxu0
        %v4705 = vadd.f32 0.0, %v4704
        %v4706 = vpop.f32.mrf.mxu0
        %4707 = vmatprep.mubr.f32.mxu0 0.0
        %4708 = vmatmul.mubr.f32.gmra.mxu0 %v2544
        %v4709 = vpop.f32.mrf.mxu0
        %v4710 = vadd.f32 0.0, %v4709
        %v4711 = vpop.f32.mrf.mxu0
        %4712 = vmatprep.mubr.f32.mxu0 0.0
        %4713 = vmatmul.mubr.f32.gmra.mxu0 %v2547
        %v4714 = vpop.f32.mrf.mxu0
        %v4715 = vadd.f32 0.0, %v4714
        %v4716 = vpop.f32.mrf.mxu0
        %4717 = vmatprep.mubr.f32.mxu0 0.0
        %4718 = vmatmul.mubr.f32.gmra.mxu0 %v2550
        %v4719 = vpop.f32.mrf.mxu0
        %v4720 = vadd.f32 0.0, %v4719
        %v4721 = vpop.f32.mrf.mxu0
        %4722 = vmatprep.mubr.f32.mxu0 0.0
        %4723 = vmatmul.mubr.f32.gmra.mxu0 %v2553
        %v4724 = vpop.f32.mrf.mxu0
        %v4725 = vadd.f32 0.0, %v4724
        %v4726 = vpop.f32.mrf.mxu0
        %4727 = vmatprep.mubr.f32.mxu0 0.0
        %4728 = vmatmul.mubr.f32.gmra.mxu0 %v2556
        %v4729 = vpop.f32.mrf.mxu0
        %v4730 = vadd.f32 0.0, %v4729
        %v4731 = vpop.f32.mrf.mxu0
        %4732 = vmatprep.mubr.f32.mxu0 0.0
        %4733 = vmatmul.mubr.f32.gmra.mxu0 %v2559
        %v4734 = vpop.f32.mrf.mxu0
        %v4735 = vadd.f32 0.0, %v4734
        %v4736 = vpop.f32.mrf.mxu0
        %4737 = vmatprep.mubr.f32.mxu0 0.0
        %4738 = vmatmul.mubr.f32.gmra.mxu0 %v2562
        %v4739 = vpop.f32.mrf.mxu0
        %v4740 = vadd.f32 0.0, %v4739
        %v4741 = vpop.f32.mrf.mxu0
        %4742 = vmatprep.mubr.f32.mxu0 0.0
        %4743 = vmatmul.mubr.f32.gmra.mxu0 %v2565
        %v4744 = vpop.f32.mrf.mxu0
        %v4745 = vadd.f32 0.0, %v4744
        %v4746 = vpop.f32.mrf.mxu0
        %4747 = vmatprep.mubr.f32.mxu0 0.0
        %4748 = vmatmul.mubr.f32.gmra.mxu0 %v2568
        %v4749 = vpop.f32.mrf.mxu0
        %v4750 = vadd.f32 0.0, %v4749
        %v4751 = vpop.f32.mrf.mxu0
        %4752 = vmatprep.mubr.f32.mxu0 0.0
        %4753 = vmatmul.mubr.f32.gmra.mxu0 %v2571
        %v4754 = vpop.f32.mrf.mxu0
        %v4755 = vadd.f32 0.0, %v4754
        %v4756 = vpop.f32.mrf.mxu0
        %4757 = vmatprep.mubr.f32.mxu0 0.0
        %4758 = vmatmul.mubr.f32.gmra.mxu0 %v2574
        %v4759 = vpop.f32.mrf.mxu0
        %v4760 = vadd.f32 0.0, %v4759
        %v4761 = vpop.f32.mrf.mxu0
        %4762 = vmatprep.mubr.f32.mxu0 0.0
        %4763 = vmatmul.mubr.f32.gmra.mxu0 %v2577
        %v4764 = vpop.f32.mrf.mxu0
        %v4765 = vadd.f32 0.0, %v4764
        %v4766 = vpop.f32.mrf.mxu0
        %4767 = vmatprep.mubr.f32.mxu0 0.0
        %4768 = vmatmul.mubr.f32.gmra.mxu0 %v2580
        %v4769 = vpop.f32.mrf.mxu0
        %v4770 = vadd.f32 0.0, %v4769
        %v4771 = vpop.f32.mrf.mxu0
        %4772 = vmatprep.mubr.f32.mxu0 0.0
        %4773 = vmatmul.mubr.f32.gmra.mxu0 %v2583
        %v4774 = vpop.f32.mrf.mxu0
        %v4775 = vadd.f32 0.0, %v4774
        %v4776 = vpop.f32.mrf.mxu0
        %4777 = vmatprep.mubr.f32.mxu0 0.0
        %4778 = vmatmul.mubr.f32.gmra.mxu0 %v2586
        %v4779 = vpop.f32.mrf.mxu0
        %v4780 = vadd.f32 0.0, %v4779
        %v4781 = vpop.f32.mrf.mxu0
        %4782 = vmatprep.mubr.f32.mxu0 0.0
        %4783 = vmatmul.mubr.f32.gmra.mxu0 %v2589
        %v4784 = vpop.f32.mrf.mxu0
        %v4785 = vadd.f32 0.0, %v4784
        %v4786 = vpop.f32.mrf.mxu0
        %4787 = vmatprep.mubr.f32.mxu0 0.0
        %4788 = vmatmul.mubr.f32.gmra.mxu0 %v2592
        %v4789 = vpop.f32.mrf.mxu0
        %v4790 = vadd.f32 0.0, %v4789
        %v4791 = vpop.f32.mrf.mxu0
        %4792 = vmatprep.mubr.f32.mxu0 0.0
        %4793 = vmatmul.mubr.f32.gmra.mxu0 %v2595
        %v4794 = vpop.f32.mrf.mxu0
        %v4795 = vadd.f32 0.0, %v4794
        %v4796 = vpop.f32.mrf.mxu0
        %4797 = vmatprep.mubr.f32.mxu0 0.0
        %4798 = vmatmul.mubr.f32.gmra.mxu0 %v2598
        %v4799 = vpop.f32.mrf.mxu0
        %v4800 = vadd.f32 0.0, %v4799
        %v4801 = vpop.f32.mrf.mxu0
        %4802 = vmatprep.mubr.f32.mxu0 0.0
        %4803 = vmatmul.mubr.f32.gmra.mxu0 %v2601
        %v4804 = vpop.f32.mrf.mxu0
        %v4805 = vadd.f32 0.0, %v4804
        %v4806 = vpop.f32.mrf.mxu0
        %4807 = vmatprep.mubr.f32.mxu0 0.0
        %4808 = vmatmul.mubr.f32.gmra.mxu0 %v2604
        %v4809 = vpop.f32.mrf.mxu0
        %v4810 = vadd.f32 0.0, %v4809
        %v4811 = vpop.f32.mrf.mxu0
        %4812 = vmatprep.mubr.f32.mxu0 0.0
        %4813 = vmatmul.mubr.f32.gmra.mxu0 %v2607
        %v4814 = vpop.f32.mrf.mxu0
        %v4815 = vadd.f32 0.0, %v4814
        %v4816 = vpop.f32.mrf.mxu0
        %4817 = vmatprep.mubr.f32.mxu0 0.0
        %4818 = vmatmul.mubr.f32.gmra.mxu0 %v2610
        %v4819 = vpop.f32.mrf.mxu0
        %v4820 = vadd.f32 0.0, %v4819
        %v4821 = vpop.f32.mrf.mxu0
        %4822 = vmatprep.mubr.f32.mxu0 0.0
        %4823 = vmatmul.mubr.f32.gmra.mxu0 %v2613
        %v4824 = vpop.f32.mrf.mxu0
        %v4825 = vadd.f32 0.0, %v4824
        %v4826 = vpop.f32.mrf.mxu0
        %4827 = vmatprep.mubr.f32.mxu0 0.0
        %4828 = vmatmul.mubr.f32.gmra.mxu0 %v2616
        %v4829 = vpop.f32.mrf.mxu0
        %v4830 = vadd.f32 0.0, %v4829
        %v4831 = vpop.f32.mrf.mxu0
        %4832 = vmatprep.mubr.f32.mxu0 0.0
        %4833 = vmatmul.mubr.f32.gmra.mxu0 %v2619
        %v4834 = vpop.f32.mrf.mxu0
        %v4835 = vadd.f32 0.0, %v4834
        %v4836 = vpop.f32.mrf.mxu0
        %4837 = vmatprep.mubr.f32.mxu0 0.0
        %4838 = vmatmul.mubr.f32.gmra.mxu0 %v2622
        %v4839 = vpop.f32.mrf.mxu0
        %v4840 = vadd.f32 0.0, %v4839
        %v4841 = vpop.f32.mrf.mxu0
        %4842 = vmatprep.mubr.f32.mxu0 0.0
        %4843 = vmatmul.mubr.f32.gmra.mxu0 %v2625
        %v4844 = vpop.f32.mrf.mxu0
        %v4845 = vadd.f32 0.0, %v4844
        %v4846 = vpop.f32.mrf.mxu0
        %4847 = vmatprep.mubr.f32.mxu0 0.0
        %4848 = vmatmul.mubr.f32.gmra.mxu0 %v2628
        %v4849 = vpop.f32.mrf.mxu0
        %v4850 = vadd.f32 0.0, %v4849
        %v4851 = vpop.f32.mrf.mxu0
        %4852 = vmatprep.mubr.f32.mxu0 0.0
        %4853 = vmatmul.mubr.f32.gmra.mxu0 %v2631
        %v4854 = vpop.f32.mrf.mxu0
        %v4855 = vadd.f32 0.0, %v4854
        %v4856 = vpop.f32.mrf.mxu0
        %4857 = vmatprep.mubr.f32.mxu0 0.0
        %4858 = vmatmul.mubr.f32.gmra.mxu0 %v2634
        %v4859 = vpop.f32.mrf.mxu0
        %v4860 = vadd.f32 0.0, %v4859
        %v4861 = vpop.f32.mrf.mxu0
        %4862 = vmatprep.mubr.f32.mxu0 0.0
        %4863 = vmatmul.mubr.f32.gmra.mxu0 %v2637
        %v4864 = vpop.f32.mrf.mxu0
        %v4865 = vadd.f32 0.0, %v4864
        %v4866 = vpop.f32.mrf.mxu0
        %4867 = vmatprep.mubr.f32.mxu0 0.0
        %4868 = vmatmul.mubr.f32.gmra.mxu0 %v2640
        %v4869 = vpop.f32.mrf.mxu0
        %v4870 = vadd.f32 0.0, %v4869
        %v4871 = vpop.f32.mrf.mxu0
        %4872 = vmatprep.mubr.f32.mxu0 0.0
        %4873 = vmatmul.mubr.f32.gmra.mxu0 %v2643
        %v4874 = vpop.f32.mrf.mxu0
        %v4875 = vadd.f32 0.0, %v4874
        %v4876 = vpop.f32.mrf.mxu0
        %4877 = vmatprep.mubr.f32.mxu0 0.0
        %4878 = vmatmul.mubr.f32.gmra.mxu0 %v2646
        %v4879 = vpop.f32.mrf.mxu0
        %v4880 = vadd.f32 0.0, %v4879
        %v4881 = vpop.f32.mrf.mxu0
        %4882 = vmatprep.mubr.f32.mxu0 0.0
        %4883 = vmatmul.mubr.f32.gmra.mxu0 %v2649
        %v4884 = vpop.f32.mrf.mxu0
        %v4885 = vadd.f32 0.0, %v4884
        %v4886 = vpop.f32.mrf.mxu0
        %4887 = vmatprep.mubr.f32.mxu0 0.0
        %4888 = vmatmul.mubr.f32.gmra.mxu0 %v2652
        %v4889 = vpop.f32.mrf.mxu0
        %v4890 = vadd.f32 0.0, %v4889
        %v4891 = vpop.f32.mrf.mxu0
        %4892 = vmatprep.mubr.f32.mxu0 0.0
        %4893 = vmatmul.mubr.f32.gmra.mxu0 %v2655
        %v4894 = vpop.f32.mrf.mxu0
        %v4895 = vadd.f32 0.0, %v4894
        %v4896 = vpop.f32.mrf.mxu0
        %4897 = vmatprep.mubr.f32.mxu0 0.0
        %4898 = vmatmul.mubr.f32.gmra.mxu0 %v2658
        %v4899 = vpop.f32.mrf.mxu0
        %v4900 = vadd.f32 0.0, %v4899
        %v4901 = vpop.f32.mrf.mxu0
        %4902 = vmatprep.mubr.f32.mxu0 0.0
        %4903 = vmatmul.mubr.f32.gmra.mxu0 %v2661
        %v4904 = vpop.f32.mrf.mxu0
        %v4905 = vadd.f32 0.0, %v4904
        %v4906 = vpop.f32.mrf.mxu0
        %4907 = vmatprep.mubr.f32.mxu0 0.0
        %4908 = vmatmul.mubr.f32.gmra.mxu0 %v2664
        %v4909 = vpop.f32.mrf.mxu0
        %v4910 = vadd.f32 0.0, %v4909
        %v4911 = vpop.f32.mrf.mxu0
        %4912 = vmatprep.mubr.f32.mxu0 0.0
        %4913 = vmatmul.mubr.f32.gmra.mxu0 %v2667
        %v4914 = vpop.f32.mrf.mxu0
        %v4915 = vadd.f32 0.0, %v4914
        %v4916 = vpop.f32.mrf.mxu0
        %4917 = vmatprep.mubr.f32.mxu0 0.0
        %4918 = vmatmul.mubr.f32.gmra.mxu0 %v2670
        %v4919 = vpop.f32.mrf.mxu0
        %v4920 = vadd.f32 0.0, %v4919
        %v4921 = vpop.f32.mrf.mxu0
        %4922 = vmatprep.mubr.f32.mxu0 0.0
        %4923 = vmatmul.mubr.f32.gmra.mxu0 %v2673
        %v4924 = vpop.f32.mrf.mxu0
        %v4925 = vadd.f32 0.0, %v4924
        %v4926 = vpop.f32.mrf.mxu0
        %4927 = vmatprep.mubr.f32.mxu0 0.0
        %4928 = vmatmul.mubr.f32.gmra.mxu0 %v2676
        %v4929 = vpop.f32.mrf.mxu0
        %v4930 = vadd.f32 0.0, %v4929
        %v4931 = vpop.f32.mrf.mxu0
        %4932 = vmatprep.mubr.f32.mxu0 0.0
        %4933 = vmatmul.mubr.f32.gmra.mxu0 %v2679
        %v4934 = vpop.f32.mrf.mxu0
        %v4935 = vadd.f32 0.0, %v4934
        %v4936 = vpop.f32.mrf.mxu0
        %4937 = vmatprep.mubr.f32.mxu0 0.0
        %4938 = vmatmul.mubr.f32.gmra.mxu0 %v2682
        %v4939 = vpop.f32.mrf.mxu0
        %v4940 = vadd.f32 0.0, %v4939
        %v4941 = vpop.f32.mrf.mxu0
        %4942 = vmatprep.mubr.f32.mxu0 0.0
        %4943 = vmatmul.mubr.f32.gmra.mxu0 %v2685
        %v4944 = vpop.f32.mrf.mxu0
        %v4945 = vadd.f32 0.0, %v4944
        %v4946 = vpop.f32.mrf.mxu0
        %4947 = vmatprep.mubr.f32.mxu0 0.0
        %4948 = vmatmul.mubr.f32.gmra.mxu0 %v2688
        %v4949 = vpop.f32.mrf.mxu0
        %v4950 = vadd.f32 0.0, %v4949
        %v4951 = vpop.f32.mrf.mxu0
        %4952 = vmatprep.mubr.f32.mxu0 0.0
        %4953 = vmatmul.mubr.f32.gmra.mxu0 %v2691
        %v4954 = vpop.f32.mrf.mxu0
        %v4955 = vadd.f32 0.0, %v4954
        %v4956 = vpop.f32.mrf.mxu0
        %4957 = vmatprep.mubr.f32.mxu0 0.0
        %4958 = vmatmul.mubr.f32.gmra.mxu0 %v2694
        %v4959 = vpop.f32.mrf.mxu0
        %v4960 = vadd.f32 0.0, %v4959
        %v4961 = vpop.f32.mrf.mxu0
        %4962 = vmatprep.mubr.f32.mxu0 0.0
        %4963 = vmatmul.mubr.f32.gmra.mxu0 %v2697
        %v4964 = vpop.f32.mrf.mxu0
        %v4965 = vadd.f32 0.0, %v4964
        %v4966 = vpop.f32.mrf.mxu0
        %4967 = vmatprep.mubr.f32.mxu0 0.0
        %4968 = vmatmul.mubr.f32.gmra.mxu0 %v2700
        %v4969 = vpop.f32.mrf.mxu0
        %v4970 = vadd.f32 0.0, %v4969
        %v4971 = vpop.f32.mrf.mxu0
        %4972 = vmatprep.mubr.f32.mxu0 0.0
        %4973 = vmatmul.mubr.f32.gmra.mxu0 %v2703
        %v4974 = vpop.f32.mrf.mxu0
        %v4975 = vadd.f32 0.0, %v4974
        %v4976 = vpop.f32.mrf.mxu0
        %4977 = vmatprep.mubr.f32.mxu0 0.0
        %4978 = vmatmul.mubr.f32.gmra.mxu0 %v2706
        %v4979 = vpop.f32.mrf.mxu0
        %v4980 = vadd.f32 0.0, %v4979
        %v4981 = vpop.f32.mrf.mxu0
        %4982 = vmatprep.mubr.f32.mxu0 0.0
        %4983 = vmatmul.mubr.f32.gmra.mxu0 %v2709
        %v4984 = vpop.f32.mrf.mxu0
        %v4985 = vadd.f32 0.0, %v4984
        %v4986 = vpop.f32.mrf.mxu0
        %4987 = vmatprep.mubr.f32.mxu0 0.0
        %4988 = vmatmul.mubr.f32.gmra.mxu0 %v2712
        %v4989 = vpop.f32.mrf.mxu0
        %v4990 = vadd.f32 0.0, %v4989
        %v4991 = vpop.f32.mrf.mxu0
        %4992 = vmatprep.mubr.f32.mxu0 0.0
        %4993 = vmatmul.mubr.f32.gmra.mxu0 %v2715
        %v4994 = vpop.f32.mrf.mxu0
        %v4995 = vadd.f32 0.0, %v4994
        %v4996 = vpop.f32.mrf.mxu0
        %4997 = vmatprep.mubr.f32.mxu0 0.0
        %4998 = vmatmul.mubr.f32.gmra.mxu0 %v2718
        %v4999 = vpop.f32.mrf.mxu0
        %v5000 = vadd.f32 0.0, %v4999
        %v5001 = vpop.f32.mrf.mxu0
        %5002 = vmatprep.mubr.f32.mxu0 0.0
        %5003 = vmatmul.mubr.f32.gmra.mxu0 %v2721
        %v5004 = vpop.f32.mrf.mxu0
        %v5005 = vadd.f32 0.0, %v5004
        %v5006 = vpop.f32.mrf.mxu0
        %5007 = vmatprep.mubr.f32.mxu0 0.0
        %5008 = vmatmul.mubr.f32.gmra.mxu0 %v2724
        %v5009 = vpop.f32.mrf.mxu0
        %v5010 = vadd.f32 0.0, %v5009
        %v5011 = vpop.f32.mrf.mxu0
        %5012 = vmatprep.mubr.f32.mxu0 0.0
        %5013 = vmatmul.mubr.f32.gmra.mxu0 %v2727
        %v5014 = vpop.f32.mrf.mxu0
        %v5015 = vadd.f32 0.0, %v5014
        %v5016 = vpop.f32.mrf.mxu0
        %5017 = vmatprep.mubr.f32.mxu0 0.0
        %5018 = vmatmul.mubr.f32.gmra.mxu0 %v2730
        %v5019 = vpop.f32.mrf.mxu0
        %v5020 = vadd.f32 0.0, %v5019
        %v5021 = vpop.f32.mrf.mxu0
        %5022 = vmatprep.mubr.f32.mxu0 0.0
        %5023 = vmatmul.mubr.f32.gmra.mxu0 %v2733
        %v5024 = vpop.f32.mrf.mxu0
        %v5025 = vadd.f32 0.0, %v5024
        %v5026 = vpop.f32.mrf.mxu0
        %5027 = vmatprep.mubr.f32.mxu0 0.0
        %5028 = vmatmul.mubr.f32.gmra.mxu0 %v2736
        %v5029 = vpop.f32.mrf.mxu0
        %v5030 = vadd.f32 0.0, %v5029
        %v5031 = vpop.f32.mrf.mxu0
        %5032 = vmatprep.mubr.f32.mxu0 0.0
        %5033 = vmatmul.mubr.f32.gmra.mxu0 %v2739
        %v5034 = vpop.f32.mrf.mxu0
        %v5035 = vadd.f32 0.0, %v5034
        %v5036 = vpop.f32.mrf.mxu0
        %5037 = vmatprep.mubr.f32.mxu0 0.0
        %5038 = vmatmul.mubr.f32.gmra.mxu0 %v2742
        %v5039 = vpop.f32.mrf.mxu0
        %v5040 = vadd.f32 0.0, %v5039
        %v5041 = vpop.f32.mrf.mxu0
        %5042 = vmatprep.mubr.f32.mxu0 0.0
        %5043 = vmatmul.mubr.f32.gmra.mxu0 %v2745
        %v5044 = vpop.f32.mrf.mxu0
        %v5045 = vadd.f32 0.0, %v5044
        %v5046 = vpop.f32.mrf.mxu0
        %5047 = vmatprep.mubr.f32.mxu0 0.0
        %5048 = vmatmul.mubr.f32.gmra.mxu0 %v2748
        %v5049 = vpop.f32.mrf.mxu0
        %v5050 = vadd.f32 0.0, %v5049
        %v5051 = vpop.f32.mrf.mxu0
        %5052 = vmatprep.mubr.f32.mxu0 0.0
        %5053 = vmatmul.mubr.f32.gmra.mxu0 %v2751
        %v5054 = vpop.f32.mrf.mxu0
        %v5055 = vadd.f32 0.0, %v5054
        %v5056 = vpop.f32.mrf.mxu0
        %5057 = vmatprep.mubr.f32.mxu0 0.0
        %5058 = vmatmul.mubr.f32.gmra.mxu0 %v2754
        %v5059 = vpop.f32.mrf.mxu0
        %v5060 = vadd.f32 0.0, %v5059
        %v5061 = vpop.f32.mrf.mxu0
        %5062 = vmatprep.mubr.f32.mxu0 0.0
        %5063 = vmatmul.mubr.f32.gmra.mxu0 %v2757
        %v5064 = vpop.f32.mrf.mxu0
        %v5065 = vadd.f32 0.0, %v5064
        %v5066 = vpop.f32.mrf.mxu0
        %5067 = vmatprep.mubr.f32.mxu0 0.0
        %5068 = vmatmul.mubr.f32.gmra.mxu0 %v2760
        %v5069 = vpop.f32.mrf.mxu0
        %v5070 = vadd.f32 0.0, %v5069
        %v5071 = vpop.f32.mrf.mxu0
        %5072 = vmatprep.mubr.f32.mxu0 0.0
        %5073 = vmatmul.mubr.f32.gmra.mxu0 %v2763
        %v5074 = vpop.f32.mrf.mxu0
        %v5075 = vadd.f32 0.0, %v5074
        %v5076 = vpop.f32.mrf.mxu0
        %5077 = vmatprep.mubr.f32.mxu0 0.0
        %5078 = vmatmul.mubr.f32.gmra.mxu0 %v2766
        %v5079 = vpop.f32.mrf.mxu0
        %v5080 = vadd.f32 0.0, %v5079
        %v5081 = vpop.f32.mrf.mxu0
        %5082 = vmatprep.mubr.f32.mxu0 0.0
        %5083 = vmatmul.mubr.f32.gmra.mxu0 %v2769
        %v5084 = vpop.f32.mrf.mxu0
        %v5085 = vadd.f32 0.0, %v5084
        %v5086 = vpop.f32.mrf.mxu0
        %5087 = vmatprep.mubr.f32.mxu0 0.0
        %5088 = vmatmul.mubr.f32.gmra.mxu0 %v2772
        %v5089 = vpop.f32.mrf.mxu0
        %v5090 = vadd.f32 0.0, %v5089
        %v5091 = vpop.f32.mrf.mxu0
        %5092 = vmatprep.mubr.f32.mxu0 0.0
        %5093 = vmatmul.mubr.f32.gmra.mxu0 %v2775
        %v5094 = vpop.f32.mrf.mxu0
        %v5095 = vadd.f32 0.0, %v5094
        %v5096 = vpop.f32.mrf.mxu0
        %5097 = vmatprep.mubr.f32.mxu0 0.0
        %5098 = vmatmul.mubr.f32.gmra.mxu0 %v2778
        %v5099 = vpop.f32.mrf.mxu0
        %v5100 = vadd.f32 0.0, %v5099
        %v5101 = vpop.f32.mrf.mxu0
        %5102 = vmatprep.mubr.f32.mxu0 0.0
        %5103 = vmatmul.mubr.f32.gmra.mxu0 %v2781
        %v5104 = vpop.f32.mrf.mxu0
        %v5105 = vadd.f32 0.0, %v5104
        %v5106 = vpop.f32.mrf.mxu0
        %5107 = vmatprep.mubr.f32.mxu0 0.0
        %5108 = vmatmul.mubr.f32.gmra.mxu0 %v2784
        %v5109 = vpop.f32.mrf.mxu0
        %v5110 = vadd.f32 0.0, %v5109
        %v5111 = vpop.f32.mrf.mxu0
        %5112 = vmatprep.mubr.f32.mxu0 0.0
        %5113 = vmatmul.mubr.f32.gmra.mxu0 %v2787
        %v5114 = vpop.f32.mrf.mxu0
        %v5115 = vadd.f32 0.0, %v5114
        %v5116 = vpop.f32.mrf.mxu0
        %5117 = vmatprep.mubr.f32.mxu0 0.0
        %5118 = vmatmul.mubr.f32.gmra.mxu0 %v2790
        %v5119 = vpop.f32.mrf.mxu0
        %v5120 = vadd.f32 0.0, %v5119
        %v5121 = vpop.f32.mrf.mxu0
        %5122 = vmatprep.mubr.f32.mxu0 0.0
        %5123 = vmatmul.mubr.f32.gmra.mxu0 %v2793
        %v5124 = vpop.f32.mrf.mxu0
        %v5125 = vadd.f32 0.0, %v5124
        %v5126 = vpop.f32.mrf.mxu0
        %5127 = vmatprep.mubr.f32.mxu0 0.0
        %5128 = vmatmul.mubr.f32.gmra.mxu0 %v2796
        %v5129 = vpop.f32.mrf.mxu0
        %v5130 = vadd.f32 0.0, %v5129
        %v5131 = vpop.f32.mrf.mxu0
        %5132 = vmatprep.mubr.f32.mxu0 0.0
        %5133 = vmatmul.mubr.f32.gmra.mxu0 %v2799
        %v5134 = vpop.f32.mrf.mxu0
        %v5135 = vadd.f32 0.0, %v5134
        %v5136 = vpop.f32.mrf.mxu0
        %5137 = vmatprep.mubr.f32.mxu0 0.0
        %5138 = vmatmul.mubr.f32.gmra.mxu0 %v2802
        %v5139 = vpop.f32.mrf.mxu0
        %v5140 = vadd.f32 0.0, %v5139
        %v5141 = vpop.f32.mrf.mxu0
        %5142 = vmatprep.mubr.f32.mxu0 0.0
        %5143 = vmatmul.mubr.f32.gmra.mxu0 %v2805
        %v5144 = vpop.f32.mrf.mxu0
        %v5145 = vadd.f32 0.0, %v5144
        %v5146 = vpop.f32.mrf.mxu0
        %5147 = vmatprep.mubr.f32.mxu0 0.0
        %5148 = vmatmul.mubr.f32.gmra.mxu0 %v2808
        %v5149 = vpop.f32.mrf.mxu0
        %v5150 = vadd.f32 0.0, %v5149
        %v5151 = vpop.f32.mrf.mxu0
        %5152 = vmatprep.mubr.f32.mxu0 0.0
        %5153 = vmatmul.mubr.f32.gmra.mxu0 %v2811
        %v5154 = vpop.f32.mrf.mxu0
        %v5155 = vadd.f32 0.0, %v5154
        %v5156 = vpop.f32.mrf.mxu0
        %5157 = vmatprep.mubr.f32.mxu0 0.0
        %5158 = vmatmul.mubr.f32.gmra.mxu0 %v2814
        %v5159 = vpop.f32.mrf.mxu0
        %v5160 = vadd.f32 0.0, %v5159
        %v5161 = vpop.f32.mrf.mxu0
        %5162 = vmatprep.mubr.f32.mxu0 0.0
        %5163 = vmatmul.mubr.f32.gmra.mxu0 %v2817
        %v5164 = vpop.f32.mrf.mxu0
        %v5165 = vadd.f32 0.0, %v5164
        %v5166 = vpop.f32.mrf.mxu0
        %5167 = vmatprep.mubr.f32.mxu0 0.0
        %5168 = vmatmul.mubr.f32.gmra.mxu0 %v2820
        %v5169 = vpop.f32.mrf.mxu0
        %v5170 = vadd.f32 0.0, %v5169
        %v5171 = vpop.f32.mrf.mxu0
        %5172 = vmatprep.mubr.f32.mxu0 0.0
        %5173 = vmatmul.mubr.f32.gmra.mxu0 %v2823
        %v5174 = vpop.f32.mrf.mxu0
        %v5175 = vadd.f32 0.0, %v5174
        %v5176 = vpop.f32.mrf.mxu0
        %5177 = vmatprep.mubr.f32.mxu0 0.0
        %5178 = vmatmul.mubr.f32.gmra.mxu0 %v2826
        %v5179 = vpop.f32.mrf.mxu0
        %v5180 = vadd.f32 0.0, %v5179
        %v5181 = vpop.f32.mrf.mxu0
        %5182 = vmatprep.mubr.f32.mxu0 0.0
        %5183 = vmatmul.mubr.f32.gmra.mxu0 %v2829
        %v5184 = vpop.f32.mrf.mxu0
        %v5185 = vadd.f32 0.0, %v5184
        %v5186 = vpop.f32.mrf.mxu0
        %5187 = vmatprep.mubr.f32.mxu0 0.0
        %5188 = vmatmul.mubr.f32.gmra.mxu0 %v2832
        %v5189 = vpop.f32.mrf.mxu0
        %v5190 = vadd.f32 0.0, %v5189
        %v5191 = vpop.f32.mrf.mxu0
        %5192 = vmatprep.mubr.f32.mxu0 0.0
        %5193 = vmatmul.mubr.f32.gmra.mxu0 %v2835
        %v5194 = vpop.f32.mrf.mxu0
        %v5195 = vadd.f32 0.0, %v5194
        %v5196 = vpop.f32.mrf.mxu0
        %5197 = vmatprep.mubr.f32.mxu0 0.0
        %5198 = vmatmul.mubr.f32.gmra.mxu0 %v2838
        %v5199 = vpop.f32.mrf.mxu0
        %v5200 = vadd.f32 0.0, %v5199
        %v5201 = vpop.f32.mrf.mxu0
        %5202 = vmatprep.mubr.f32.mxu0 0.0
        %5203 = vmatmul.mubr.f32.gmra.mxu0 %v2841
        %v5204 = vpop.f32.mrf.mxu0
        %v5205 = vadd.f32 0.0, %v5204
        %v5206 = vpop.f32.mrf.mxu0
        %5207 = vmatprep.mubr.f32.mxu0 0.0
        %5208 = vmatmul.mubr.f32.gmra.mxu0 %v2844
        %v5209 = vpop.f32.mrf.mxu0
        %v5210 = vadd.f32 0.0, %v5209
        %v5211 = vpop.f32.mrf.mxu0
        %5212 = vmatprep.mubr.f32.mxu0 0.0
        %5213 = vmatmul.mubr.f32.gmra.mxu0 %v2847
        %v5214 = vpop.f32.mrf.mxu0
        %v5215 = vadd.f32 0.0, %v5214
        %v5216 = vpop.f32.mrf.mxu0
        %5217 = vmatprep.mubr.f32.mxu0 0.0
        %5218 = vmatmul.mubr.f32.gmra.mxu0 %v2850
        %v5219 = vpop.f32.mrf.mxu0
        %v5220 = vadd.f32 0.0, %v5219
        %v5221 = vpop.f32.mrf.mxu0
        %5222 = vmatprep.mubr.f32.mxu0 0.0
        %5223 = vmatmul.mubr.f32.gmra.mxu0 %v2853
        %v5224 = vpop.f32.mrf.mxu0
        %v5225 = vadd.f32 0.0, %v5224
        %v5226 = vpop.f32.mrf.mxu0
        %5227 = vmatprep.mubr.f32.mxu0 0.0
        %5228 = vmatmul.mubr.f32.gmra.mxu0 %v2856
        %v5229 = vpop.f32.mrf.mxu0
        %v5230 = vadd.f32 0.0, %v5229
        %v5231 = vpop.f32.mrf.mxu0
        %5232 = vmatprep.mubr.f32.mxu0 0.0
        %5233 = vmatmul.mubr.f32.gmra.mxu0 %v2859
        %v5234 = vpop.f32.mrf.mxu0
        %v5235 = vadd.f32 0.0, %v5234
        %v5236 = vpop.f32.mrf.mxu0
        %5237 = vmatprep.mubr.f32.mxu0 0.0
        %5238 = vmatmul.mubr.f32.gmra.mxu0 %v2862
        %v5239 = vpop.f32.mrf.mxu0
        %v5240 = vadd.f32 0.0, %v5239
        %v5241 = vpop.f32.mrf.mxu0
        %5242 = vmatprep.mubr.f32.mxu0 0.0
        %5243 = vmatmul.mubr.f32.gmra.mxu0 %v2865
        %v5244 = vpop.f32.mrf.mxu0
        %v5245 = vadd.f32 0.0, %v5244
        %v5246 = vpop.f32.mrf.mxu0
        %5247 = vmatprep.mubr.f32.mxu0 0.0
        %5248 = vmatmul.mubr.f32.gmra.mxu0 %v2868
        %v5249 = vpop.f32.mrf.mxu0
        %v5250 = vadd.f32 0.0, %v5249
        %v5251 = vpop.f32.mrf.mxu0
        %5252 = vmatprep.mubr.f32.mxu0 0.0
        %5253 = vmatmul.mubr.f32.gmra.mxu0 %v2871
        %v5254 = vpop.f32.mrf.mxu0
        %v5255 = vadd.f32 0.0, %v5254
        %v5256 = vpop.f32.mrf.mxu0
        %5257 = vmatprep.mubr.f32.mxu0 0.0
        %5258 = vmatmul.mubr.f32.gmra.mxu0 %v2874
        %v5259 = vpop.f32.mrf.mxu0
        %v5260 = vadd.f32 0.0, %v5259
        %v5261 = vpop.f32.mrf.mxu0
        %5262 = vmatprep.mubr.f32.mxu0 0.0
        %5263 = vmatmul.mubr.f32.gmra.mxu0 %v2877
        %v5264 = vpop.f32.mrf.mxu0
        %v5265 = vadd.f32 0.0, %v5264
        %v5266 = vpop.f32.mrf.mxu0
        %5267 = vmatprep.mubr.f32.mxu0 0.0
        %5268 = vmatmul.mubr.f32.gmra.mxu0 %v2880
        %v5269 = vpop.f32.mrf.mxu0
        %v5270 = vadd.f32 0.0, %v5269
        %v5271 = vpop.f32.mrf.mxu0
        %5272 = vmatprep.mubr.f32.mxu0 0.0
        %5273 = vmatmul.mubr.f32.gmra.mxu0 %v2883
        %v5274 = vpop.f32.mrf.mxu0
        %v5275 = vadd.f32 0.0, %v5274
        %v5276 = vpop.f32.mrf.mxu0
        %5277 = vmatprep.mubr.f32.mxu0 0.0
        %5278 = vmatmul.mubr.f32.gmra.mxu0 %v2886
        %v5279 = vpop.f32.mrf.mxu0
        %v5280 = vadd.f32 0.0, %v5279
        %v5281 = vpop.f32.mrf.mxu0
        %5282 = vmatprep.mubr.f32.mxu0 0.0
        %5283 = vmatmul.mubr.f32.gmra.mxu0 %v2889
        %v5284 = vpop.f32.mrf.mxu0
        %v5285 = vadd.f32 0.0, %v5284
        %v5286 = vpop.f32.mrf.mxu0
        %5287 = vmatprep.mubr.f32.mxu0 0.0
        %5288 = vmatmul.mubr.f32.gmra.mxu0 %v2892
        %v5289 = vpop.f32.mrf.mxu0
        %v5290 = vadd.f32 0.0, %v5289
        %v5291 = vpop.f32.mrf.mxu0
        %5292 = vmatprep.mubr.f32.mxu0 0.0
        %5293 = vmatmul.mubr.f32.gmra.mxu0 %v2895
        %v5294 = vpop.f32.mrf.mxu0
        %v5295 = vadd.f32 0.0, %v5294
        %v5296 = vpop.f32.mrf.mxu0
        %5297 = vmatprep.mubr.f32.mxu0 0.0
        %5298 = vmatmul.mubr.f32.gmra.mxu0 %v2898
        %v5299 = vpop.f32.mrf.mxu0
        %v5300 = vadd.f32 0.0, %v5299
        %v5301 = vpop.f32.mrf.mxu0
        %5302 = vmatprep.mubr.f32.mxu0 0.0
        %5303 = vmatmul.mubr.f32.gmra.mxu0 %v2901
        %v5304 = vpop.f32.mrf.mxu0
        %v5305 = vadd.f32 0.0, %v5304
        %v5306 = vpop.f32.mrf.mxu0
        %5307 = vmatprep.mubr.f32.mxu0 0.0
        %5308 = vmatmul.mubr.f32.gmra.mxu0 %v2904
        %v5309 = vpop.f32.mrf.mxu0
        %v5310 = vadd.f32 0.0, %v5309
        %v5311 = vpop.f32.mrf.mxu0
        %5312 = vmatprep.mubr.f32.mxu0 0.0
        %5313 = vmatmul.mubr.f32.gmra.mxu0 %v2907
        %v5314 = vpop.f32.mrf.mxu0
        %v5315 = vadd.f32 0.0, %v5314
        %v5316 = vpop.f32.mrf.mxu0
        %5317 = vmatprep.mubr.f32.mxu0 0.0
        %5318 = vmatmul.mubr.f32.gmra.mxu0 %v2910
        %v5319 = vpop.f32.mrf.mxu0
        %v5320 = vadd.f32 0.0, %v5319
        %v5321 = vpop.f32.mrf.mxu0
        %5322 = vmatprep.mubr.f32.mxu0 0.0
        %5323 = vmatmul.mubr.f32.gmra.mxu0 %v2913
        %v5324 = vpop.f32.mrf.mxu0
        %v5325 = vadd.f32 0.0, %v5324
        %v5326 = vpop.f32.mrf.mxu0
        %5327 = vmatprep.mubr.f32.mxu0 0.0
        %5328 = vmatmul.mubr.f32.gmra.mxu0 %v2916
        %v5329 = vpop.f32.mrf.mxu0
        %v5330 = vadd.f32 0.0, %v5329
        %v5331 = vpop.f32.mrf.mxu0
        %5332 = vmatprep.mubr.f32.mxu0 0.0
        %5333 = vmatmul.mubr.f32.gmra.mxu0 %v2919
        %v5334 = vpop.f32.mrf.mxu0
        %v5335 = vadd.f32 0.0, %v5334
        %v5336 = vpop.f32.mrf.mxu0
        %5337 = vmatprep.mubr.f32.mxu0 0.0
        %5338 = vmatmul.mubr.f32.gmra.mxu0 %v2922
        %v5339 = vpop.f32.mrf.mxu0
        %v5340 = vadd.f32 0.0, %v5339
        %v5341 = vpop.f32.mrf.mxu0
        %5342 = vmatprep.mubr.f32.mxu0 0.0
        %5343 = vmatmul.mubr.f32.gmra.mxu0 %v2925
        %v5344 = vpop.f32.mrf.mxu0
        %v5345 = vadd.f32 0.0, %v5344
        %v5346 = vpop.f32.mrf.mxu0
        %5347 = vmatprep.mubr.f32.mxu0 0.0
        %5348 = vmatmul.mubr.f32.gmra.mxu0 %v2928
        %v5349 = vpop.f32.mrf.mxu0
        %v5350 = vadd.f32 0.0, %v5349
        %v5351 = vpop.f32.mrf.mxu0
        %5352 = vmatprep.mubr.f32.mxu0 0.0
        %5353 = vmatmul.mubr.f32.gmra.mxu0 %v2931
        %v5354 = vpop.f32.mrf.mxu0
        %v5355 = vadd.f32 0.0, %v5354
        %v5356 = vpop.f32.mrf.mxu0
        %5357 = vmatprep.mubr.f32.mxu0 0.0
        %5358 = vmatmul.mubr.f32.gmra.mxu0 %v2934
        %v5359 = vpop.f32.mrf.mxu0
        %v5360 = vadd.f32 0.0, %v5359
        %v5361 = vpop.f32.mrf.mxu0
        %5362 = vmatprep.mubr.f32.mxu0 0.0
        %5363 = vmatmul.mubr.f32.gmra.mxu0 %v2937
        %v5364 = vpop.f32.mrf.mxu0
        %v5365 = vadd.f32 0.0, %v5364
        %v5366 = vpop.f32.mrf.mxu0
        %5367 = vmatprep.mubr.f32.mxu0 0.0
        %5368 = vmatmul.mubr.f32.gmra.mxu0 %v2940
        %v5369 = vpop.f32.mrf.mxu0
        %v5370 = vadd.f32 0.0, %v5369
        %v5371 = vpop.f32.mrf.mxu0
        %5372 = vmatprep.mubr.f32.mxu0 0.0
        %5373 = vmatmul.mubr.f32.gmra.mxu0 %v2943
        %v5374 = vpop.f32.mrf.mxu0
        %v5375 = vadd.f32 0.0, %v5374
        %v5376 = vpop.f32.mrf.mxu0
        %5377 = vmatprep.mubr.f32.mxu0 0.0
        %5378 = vmatmul.mubr.f32.gmra.mxu0 %v2946
        %v5379 = vpop.f32.mrf.mxu0
        %v5380 = vadd.f32 0.0, %v5379
        %v5381 = vpop.f32.mrf.mxu0
        %5382 = vmatprep.mubr.f32.mxu0 0.0
        %5383 = vmatmul.mubr.f32.gmra.mxu0 %v2949
        %v5384 = vpop.f32.mrf.mxu0
        %v5385 = vadd.f32 0.0, %v5384
        %v5386 = vpop.f32.mrf.mxu0
        %5387 = vmatprep.mubr.f32.mxu0 0.0
        %5388 = vmatmul.mubr.f32.gmra.mxu0 %v2952
        %v5389 = vpop.f32.mrf.mxu0
        %v5390 = vadd.f32 0.0, %v5389
        %v5391 = vpop.f32.mrf.mxu0
        %5392 = vmatprep.mubr.f32.mxu0 0.0
        %5393 = vmatmul.mubr.f32.gmra.mxu0 %v2955
        %v5394 = vpop.f32.mrf.mxu0
        %v5395 = vadd.f32 0.0, %v5394
        %v5396 = vpop.f32.mrf.mxu0
        %5397 = vmatprep.mubr.f32.mxu0 0.0
        %5398 = vmatmul.mubr.f32.gmra.mxu0 %v2958
        %v5399 = vpop.f32.mrf.mxu0
        %v5400 = vadd.f32 0.0, %v5399
        %v5401 = vpop.f32.mrf.mxu0
        %5402 = vmatprep.mubr.f32.mxu0 0.0
        %5403 = vmatmul.mubr.f32.gmra.mxu0 %v2961
        %v5404 = vpop.f32.mrf.mxu0
        %v5405 = vadd.f32 0.0, %v5404
        %v5406 = vpop.f32.mrf.mxu0
        %5407 = vmatprep.mubr.f32.mxu0 0.0
        %5408 = vmatmul.mubr.f32.gmra.mxu0 %v2964
        %v5409 = vpop.f32.mrf.mxu0
        %v5410 = vadd.f32 0.0, %v5409
        %v5411 = vpop.f32.mrf.mxu0
        %5412 = vmatprep.mubr.f32.mxu0 0.0
        %5413 = vmatmul.mubr.f32.gmra.mxu0 %v2967
        %v5414 = vpop.f32.mrf.mxu0
        %v5415 = vadd.f32 0.0, %v5414
        %v5416 = vpop.f32.mrf.mxu0
        %5417 = vmatprep.mubr.f32.mxu0 0.0
        %5418 = vmatmul.mubr.f32.gmra.mxu0 %v2970
        %v5419 = vpop.f32.mrf.mxu0
        %v5420 = vadd.f32 0.0, %v5419
        %v5421 = vpop.f32.mrf.mxu0
        %5422 = vmatprep.mubr.f32.mxu0 0.0
        %5423 = vmatmul.mubr.f32.gmra.mxu0 %v2973
        %v5424 = vpop.f32.mrf.mxu0
        %v5425 = vadd.f32 0.0, %v5424
        %v5426 = vpop.f32.mrf.mxu0
        %5427 = vmatprep.mubr.f32.mxu0 0.0
        %5428 = vmatmul.mubr.f32.gmra.mxu0 %v2976
        %v5429 = vpop.f32.mrf.mxu0
        %v5430 = vadd.f32 0.0, %v5429
        %v5431 = vpop.f32.mrf.mxu0
        %5432 = vmatprep.mubr.f32.mxu0 0.0
        %5433 = vmatmul.mubr.f32.gmra.mxu0 %v2979
        %v5434 = vpop.f32.mrf.mxu0
        %v5435 = vadd.f32 0.0, %v5434
        %v5436 = vpop.f32.mrf.mxu0
        %5437 = vmatprep.mubr.f32.mxu0 0.0
        %5438 = vmatmul.mubr.f32.gmra.mxu0 %v2982
        %v5439 = vpop.f32.mrf.mxu0
        %v5440 = vadd.f32 0.0, %v5439
        %v5441 = vpop.f32.mrf.mxu0
        %5442 = vmatprep.mubr.f32.mxu0 0.0
        %5443 = vmatmul.mubr.f32.gmra.mxu0 %v2985
        %v5444 = vpop.f32.mrf.mxu0
        %v5445 = vadd.f32 0.0, %v5444
        %v5446 = vpop.f32.mrf.mxu0
        %5447 = vmatprep.mubr.f32.mxu0 0.0
        %5448 = vmatmul.mubr.f32.gmra.mxu0 %v2988
        %v5449 = vpop.f32.mrf.mxu0
        %v5450 = vadd.f32 0.0, %v5449
        %v5451 = vpop.f32.mrf.mxu0
        %5452 = vmatprep.mubr.f32.mxu0 0.0
        %5453 = vmatmul.mubr.f32.gmra.mxu0 %v2991
        %v5454 = vpop.f32.mrf.mxu0
        %v5455 = vadd.f32 0.0, %v5454
        %v5456 = vpop.f32.mrf.mxu0
        %5457 = vmatprep.mubr.f32.mxu0 0.0
        %5458 = vmatmul.mubr.f32.gmra.mxu0 %v2994
        %v5459 = vpop.f32.mrf.mxu0
        %v5460 = vadd.f32 0.0, %v5459
        %v5461 = vpop.f32.mrf.mxu0
        %5462 = vmatprep.mubr.f32.mxu0 0.0
        %5463 = vmatmul.mubr.f32.gmra.mxu0 %v2997
        %v5464 = vpop.f32.mrf.mxu0
        %v5465 = vadd.f32 0.0, %v5464
        %v5466 = vpop.f32.mrf.mxu0
        %5467 = vmatprep.mubr.f32.mxu0 0.0
        %5468 = vmatmul.mubr.f32.gmra.mxu0 %v3000
        %v5469 = vpop.f32.mrf.mxu0
        %v5470 = vadd.f32 0.0, %v5469
        %v5471 = vpop.f32.mrf.mxu0
        %5472 = vmatprep.mubr.f32.mxu0 0.0
        %5473 = vmatmul.mubr.f32.gmra.mxu0 %v3003
        %v5474 = vpop.f32.mrf.mxu0
        %v5475 = vadd.f32 0.0, %v5474
        %v5476 = vpop.f32.mrf.mxu0
        %5477 = vmatprep.mubr.f32.mxu0 0.0
        %5478 = vmatmul.mubr.f32.gmra.mxu0 %v3006
        %v5479 = vpop.f32.mrf.mxu0
        %v5480 = vadd.f32 0.0, %v5479
        %v5481 = vpop.f32.mrf.mxu0
        %5482 = vmatprep.mubr.f32.mxu0 0.0
        %5483 = vmatmul.mubr.f32.gmra.mxu0 %v3009
        %v5484 = vpop.f32.mrf.mxu0
        %v5485 = vadd.f32 0.0, %v5484
        %v5486 = vpop.f32.mrf.mxu0
        %5487 = vmatprep.mubr.f32.mxu0 0.0
        %5488 = vmatmul.mubr.f32.gmra.mxu0 %v3012
        %v5489 = vpop.f32.mrf.mxu0
        %v5490 = vadd.f32 0.0, %v5489
        %v5491 = vpop.f32.mrf.mxu0
        %5492 = vmatprep.mubr.f32.mxu0 0.0
        %5493 = vmatmul.mubr.f32.gmra.mxu0 %v3015
        %v5494 = vpop.f32.mrf.mxu0
        %v5495 = vadd.f32 0.0, %v5494
        %v5496 = vpop.f32.mrf.mxu0
        %5497 = vmatprep.mubr.f32.mxu0 0.0
        %5498 = vmatmul.mubr.f32.gmra.mxu0 %v3018
        %v5499 = vpop.f32.mrf.mxu0
        %v5500 = vadd.f32 0.0, %v5499
        %v5501 = vpop.f32.mrf.mxu0
        %5502 = vmatprep.mubr.f32.mxu0 0.0
        %5503 = vmatmul.mubr.f32.gmra.mxu0 %v3021
        %v5504 = vpop.f32.mrf.mxu0
        %v5505 = vadd.f32 0.0, %v5504
        %v5506 = vpop.f32.mrf.mxu0
        %5507 = vmatprep.mubr.f32.mxu0 0.0
        %5508 = vmatmul.mubr.f32.gmra.mxu0 %v3024
        %v5509 = vpop.f32.mrf.mxu0
        %v5510 = vadd.f32 0.0, %v5509
        %v5511 = vpop.f32.mrf.mxu0
        %5512 = vmatprep.mubr.f32.mxu0 0.0
        %5513 = vmatmul.mubr.f32.gmra.mxu0 %v3027
        %v5514 = vpop.f32.mrf.mxu0
        %v5515 = vadd.f32 0.0, %v5514
        %v5516 = vpop.f32.mrf.mxu0
        %5517 = vmatprep.mubr.f32.mxu0 0.0
        %5518 = vmatmul.mubr.f32.gmra.mxu0 %v3030
        %v5519 = vpop.f32.mrf.mxu0
        %v5520 = vadd.f32 0.0, %v5519
        %v5521 = vpop.f32.mrf.mxu0
        %5522 = vmatprep.mubr.f32.mxu0 0.0
        %5523 = vmatmul.mubr.f32.gmra.mxu0 %v3033
        %v5524 = vpop.f32.mrf.mxu0
        %v5525 = vadd.f32 0.0, %v5524
        %v5526 = vpop.f32.mrf.mxu0
        %5527 = vmatprep.mubr.f32.mxu0 0.0
        %5528 = vmatmul.mubr.f32.gmra.mxu0 %v3036
        %v5529 = vpop.f32.mrf.mxu0
        %v5530 = vadd.f32 0.0, %v5529
        %v5531 = vpop.f32.mrf.mxu0
        %5532 = vmatprep.mubr.f32.mxu0 0.0
        %5533 = vmatmul.mubr.f32.gmra.mxu0 %v3039
        %v5534 = vpop.f32.mrf.mxu0
        %v5535 = vadd.f32 0.0, %v5534
        %v5536 = vpop.f32.mrf.mxu0
        %5537 = vmatprep.mubr.f32.mxu0 0.0
        %5538 = vmatmul.mubr.f32.gmra.mxu0 %v3042
        %v5539 = vpop.f32.mrf.mxu0
        %v5540 = vadd.f32 0.0, %v5539
        %v5541 = vpop.f32.mrf.mxu0
        %5542 = vmatprep.mubr.f32.mxu0 0.0
        %5543 = vmatmul.mubr.f32.gmra.mxu0 %v3045
        %v5544 = vpop.f32.mrf.mxu0
        %v5545 = vadd.f32 0.0, %v5544
        %v5546 = vpop.f32.mrf.mxu0
        %5547 = vmatprep.mubr.f32.mxu0 0.0
        %5548 = vmatmul.mubr.f32.gmra.mxu0 %v3048
        %v5549 = vpop.f32.mrf.mxu0
        %v5550 = vadd.f32 0.0, %v5549
        %v5551 = vpop.f32.mrf.mxu0
        %5552 = vmatprep.mubr.f32.mxu0 0.0
        %5553 = vmatmul.mubr.f32.gmra.mxu0 %v3051
        %v5554 = vpop.f32.mrf.mxu0
        %v5555 = vadd.f32 0.0, %v5554
        %v5556 = vpop.f32.mrf.mxu0
        %5557 = vmatprep.mubr.f32.mxu0 0.0
        %5558 = vmatmul.mubr.f32.gmra.mxu0 %v3054
        %v5559 = vpop.f32.mrf.mxu0
        %v5560 = vadd.f32 0.0, %v5559
        %v5561 = vpop.f32.mrf.mxu0
        %5562 = vmatprep.mubr.f32.mxu0 0.0
        %5563 = vmatmul.mubr.f32.gmra.mxu0 %v3057
        %v5564 = vpop.f32.mrf.mxu0
        %v5565 = vadd.f32 0.0, %v5564
        %v5566 = vpop.f32.mrf.mxu0
        %5567 = vmatprep.mubr.f32.mxu0 0.0
        %5568 = vmatmul.mubr.f32.gmra.mxu0 %v3060
        %v5569 = vpop.f32.mrf.mxu0
        %v5570 = vadd.f32 0.0, %v5569
        %v5571 = vpop.f32.mrf.mxu0
        %5572 = vmatprep.mubr.f32.mxu0 0.0
        %5573 = vmatmul.mubr.f32.gmra.mxu0 %v3063
        %v5574 = vpop.f32.mrf.mxu0
        %v5575 = vadd.f32 0.0, %v5574
        %v5576 = vpop.f32.mrf.mxu0
        %5577 = vmatprep.mubr.f32.mxu0 0.0
        %5578 = vmatmul.mubr.f32.gmra.mxu0 %v3066
        %v5579 = vpop.f32.mrf.mxu0
        %v5580 = vadd.f32 0.0, %v5579
        %v5581 = vpop.f32.mrf.mxu0
        %5582 = vmatprep.mubr.f32.mxu0 0.0
        %5583 = vmatmul.mubr.f32.gmra.mxu0 %v3069
        %v5584 = vpop.f32.mrf.mxu0
        %v5585 = vadd.f32 0.0, %v5584
        %v5586 = vpop.f32.mrf.mxu0
        %5587 = vmatprep.mubr.f32.mxu0 0.0
        %5588 = vmatmul.mubr.f32.gmra.mxu0 %v3072
        %v5589 = vpop.f32.mrf.mxu0
        %v5590 = vadd.f32 0.0, %v5589
        %v5591 = vpop.f32.mrf.mxu0
        %5592 = vmatprep.mubr.f32.mxu0 0.0
        %5593 = vmatmul.mubr.f32.gmra.mxu0 %v3075
        %v5594 = vpop.f32.mrf.mxu0
        %v5595 = vadd.f32 0.0, %v5594
        %v5596 = vpop.f32.mrf.mxu0
        %5597 = vmatprep.mubr.f32.mxu0 0.0
        %5598 = vmatmul.mubr.f32.gmra.mxu0 %v3078
        %v5599 = vpop.f32.mrf.mxu0
        %v5600 = vadd.f32 0.0, %v5599
        %v5601 = vpop.f32.mrf.mxu0
        %5602 = vmatprep.mubr.f32.mxu0 0.0
        %5603 = vmatmul.mubr.f32.gmra.mxu0 %v3081
        %v5604 = vpop.f32.mrf.mxu0
        %v5605 = vadd.f32 0.0, %v5604
        %v5606 = vpop.f32.mrf.mxu0
        %5607 = vmatprep.mubr.f32.mxu0 0.0
        %5608 = vmatmul.mubr.f32.gmra.mxu0 %v3084
        %v5609 = vpop.f32.mrf.mxu0
        %v5610 = vadd.f32 0.0, %v5609
        %v5611 = vpop.f32.mrf.mxu0
        %5612 = vmatprep.mubr.f32.mxu0 0.0
        %5613 = vmatmul.mubr.f32.gmra.mxu0 %v3087
        %v5614 = vpop.f32.mrf.mxu0
        %v5615 = vadd.f32 0.0, %v5614
        %v5616 = vpop.f32.mrf.mxu0
        %5617 = vmatprep.mubr.f32.mxu0 0.0
        %5618 = vmatmul.mubr.f32.gmra.mxu0 %v3090
        %v5619 = vpop.f32.mrf.mxu0
        %v5620 = vadd.f32 0.0, %v5619
        %v5621 = vpop.f32.mrf.mxu0
        %5622 = vmatprep.mubr.f32.mxu0 0.0
        %5623 = vmatmul.mubr.f32.gmra.mxu0 %v3093
        %v5624 = vpop.f32.mrf.mxu0
        %v5625 = vadd.f32 0.0, %v5624
        %v5626 = vpop.f32.mrf.mxu0
        %5627 = vmatprep.mubr.f32.mxu0 0.0
        %5628 = vmatmul.mubr.f32.gmra.mxu0 %v3096
        %v5629 = vpop.f32.mrf.mxu0
        %v5630 = vadd.f32 0.0, %v5629
        %v5631 = vpop.f32.mrf.mxu0
        %5632 = vmatprep.mubr.f32.mxu0 0.0
        %5633 = vmatmul.mubr.f32.gmra.mxu0 %v3099
        %v5634 = vpop.f32.mrf.mxu0
        %v5635 = vadd.f32 0.0, %v5634
        %v5636 = vpop.f32.mrf.mxu0
        %5637 = vmatprep.mubr.f32.mxu0 0.0
        %5638 = vmatmul.mubr.f32.gmra.mxu0 %v3102
        %v5639 = vpop.f32.mrf.mxu0
        %v5640 = vadd.f32 0.0, %v5639
        %v5641 = vpop.f32.mrf.mxu0
        %5642 = vmatprep.mubr.f32.mxu0 0.0
        %5643 = vmatmul.mubr.f32.gmra.mxu0 %v3105
        %v5644 = vpop.f32.mrf.mxu0
        %v5645 = vadd.f32 0.0, %v5644
        %v5646 = vpop.f32.mrf.mxu0
        %5647 = vmatprep.mubr.f32.mxu0 0.0
        %5648 = vmatmul.mubr.f32.gmra.mxu0 %v3108
        %v5649 = vpop.f32.mrf.mxu0
        %v5650 = vadd.f32 0.0, %v5649
        %v5651 = vpop.f32.mrf.mxu0
        %5652 = vmatprep.mubr.f32.mxu0 0.0
        %5653 = vmatmul.mubr.f32.gmra.mxu0 %v3111
        %v5654 = vpop.f32.mrf.mxu0
        %v5655 = vadd.f32 0.0, %v5654
        %v5656 = vpop.f32.mrf.mxu0
        %5657 = vmatprep.mubr.f32.mxu0 0.0
        %5658 = vmatmul.mubr.f32.gmra.mxu0 %v3114
        %v5659 = vpop.f32.mrf.mxu0
        %v5660 = vadd.f32 0.0, %v5659
        %v5661 = vpop.f32.mrf.mxu0
        %5662 = vmatprep.mubr.f32.mxu0 0.0
        %5663 = vmatmul.mubr.f32.gmra.mxu0 %v3117
        %v5664 = vpop.f32.mrf.mxu0
        %v5665 = vadd.f32 0.0, %v5664
        %v5666 = vpop.f32.mrf.mxu0
        %5667 = vmatprep.mubr.f32.mxu0 0.0
        %5668 = vmatmul.mubr.f32.gmra.mxu0 %v3120
        %v5669 = vpop.f32.mrf.mxu0
        %v5670 = vadd.f32 0.0, %v5669
        %v5671 = vpop.f32.mrf.mxu0
        %5672 = vmatprep.mubr.f32.mxu0 0.0
        %5673 = vmatmul.mubr.f32.gmra.mxu0 %v3123
        %v5674 = vpop.f32.mrf.mxu0
        %v5675 = vadd.f32 0.0, %v5674
        %v5676 = vpop.f32.mrf.mxu0
        %5677 = vmatprep.mubr.f32.mxu0 0.0
        %5678 = vmatmul.mubr.f32.gmra.mxu0 %v3126
        %v5679 = vpop.f32.mrf.mxu0
        %v5680 = vadd.f32 0.0, %v5679
        %v5681 = vpop.f32.mrf.mxu0
        %5682 = vmatprep.mubr.f32.mxu0 0.0
        %5683 = vmatmul.mubr.f32.gmra.mxu0 %v3129
        %v5684 = vpop.f32.mrf.mxu0
        %v5685 = vadd.f32 0.0, %v5684
        %v5686 = vpop.f32.mrf.mxu0
        %5687 = vmatprep.mubr.f32.mxu0 0.0
        %5688 = vmatmul.mubr.f32.gmra.mxu0 %v3132
        %v5689 = vpop.f32.mrf.mxu0
        %v5690 = vadd.f32 0.0, %v5689
        %v5691 = vpop.f32.mrf.mxu0
        %5692 = vmatprep.mubr.f32.mxu0 0.0
        %5693 = vmatmul.mubr.f32.gmra.mxu0 %v3135
        %v5694 = vpop.f32.mrf.mxu0
        %v5695 = vadd.f32 0.0, %v5694
        %v5696 = vpop.f32.mrf.mxu0
        %5697 = vmatprep.mubr.f32.mxu0 0.0
        %5698 = vmatmul.mubr.f32.gmra.mxu0 %v3138
        %v5699 = vpop.f32.mrf.mxu0
        %v5700 = vadd.f32 0.0, %v5699
        %v5701 = vpop.f32.mrf.mxu0
        %5702 = vmatprep.mubr.f32.mxu0 0.0
        %5703 = vmatmul.mubr.f32.gmra.mxu0 %v3141
        %v5704 = vpop.f32.mrf.mxu0
        %v5705 = vadd.f32 0.0, %v5704
        %v5706 = vpop.f32.mrf.mxu0
        %5707 = vmatprep.mubr.f32.mxu0 0.0
        %5708 = vmatmul.mubr.f32.gmra.mxu0 %v3144
        %v5709 = vpop.f32.mrf.mxu0
        %v5710 = vadd.f32 0.0, %v5709
        %v5711 = vpop.f32.mrf.mxu0
        %5712 = vmatprep.mubr.f32.mxu0 0.0
        %5713 = vmatmul.mubr.f32.gmra.mxu0 %v3147
        %v5714 = vpop.f32.mrf.mxu0
        %v5715 = vadd.f32 0.0, %v5714
        %v5716 = vpop.f32.mrf.mxu0
        %5717 = vmatprep.mubr.f32.mxu0 0.0
        %5718 = vmatmul.mubr.f32.gmra.mxu0 %v3150
        %v5719 = vpop.f32.mrf.mxu0
        %v5720 = vadd.f32 0.0, %v5719
        %v5721 = vpop.f32.mrf.mxu0
        %5722 = vmatprep.mubr.f32.mxu0 0.0
        %5723 = vmatmul.mubr.f32.gmra.mxu0 %v3153
        %v5724 = vpop.f32.mrf.mxu0
        %v5725 = vadd.f32 0.0, %v5724
        %v5726 = vpop.f32.mrf.mxu0
        %5727 = vmatprep.mubr.f32.mxu0 0.0
        %5728 = vmatmul.mubr.f32.gmra.mxu0 %v3156
        %v5729 = vpop.f32.mrf.mxu0
        %v5730 = vadd.f32 0.0, %v5729
        %v5731 = vpop.f32.mrf.mxu0
        %5732 = vmatprep.mubr.f32.mxu0 0.0
        %5733 = vmatmul.mubr.f32.gmra.mxu0 %v3159
        %v5734 = vpop.f32.mrf.mxu0
        %v5735 = vadd.f32 0.0, %v5734
        %v5736 = vpop.f32.mrf.mxu0
        %5737 = vmatprep.mubr.f32.mxu0 0.0
        %5738 = vmatmul.mubr.f32.gmra.mxu0 %v3162
        %v5739 = vpop.f32.mrf.mxu0
        %v5740 = vadd.f32 0.0, %v5739
        %v5741 = vpop.f32.mrf.mxu0
        %5742 = vmatprep.mubr.f32.mxu0 0.0
        %5743 = vmatmul.mubr.f32.gmra.mxu0 %v3165
        %v5744 = vpop.f32.mrf.mxu0
        %v5745 = vadd.f32 0.0, %v5744
        %v5746 = vpop.f32.mrf.mxu0
        %5747 = vmatprep.mubr.f32.mxu0 0.0
        %5748 = vmatmul.mubr.f32.gmra.mxu0 %v3168
        %v5749 = vpop.f32.mrf.mxu0
        %v5750 = vadd.f32 0.0, %v5749
        %v5751 = vpop.f32.mrf.mxu0
        %5752 = vmatprep.mubr.f32.mxu0 0.0
        %5753 = vmatmul.mubr.f32.gmra.mxu0 %v3171
        %v5754 = vpop.f32.mrf.mxu0
        %v5755 = vadd.f32 0.0, %v5754
        %v5756 = vpop.f32.mrf.mxu0
        %5757 = vmatprep.mubr.f32.mxu0 0.0
        %5758 = vmatmul.mubr.f32.gmra.mxu0 %v3174
        %v5759 = vpop.f32.mrf.mxu0
        %v5760 = vadd.f32 0.0, %v5759
        %v5761 = vpop.f32.mrf.mxu0
        %5762 = vmatprep.mubr.f32.mxu0 0.0
        %5763 = vmatmul.mubr.f32.gmra.mxu0 %v3177
        %v5764 = vpop.f32.mrf.mxu0
        %v5765 = vadd.f32 0.0, %v5764
        %v5766 = vpop.f32.mrf.mxu0
        %5767 = vmatprep.mubr.f32.mxu0 0.0
        %5768 = vmatmul.mubr.f32.gmra.mxu0 %v3180
        %v5769 = vpop.f32.mrf.mxu0
        %v5770 = vadd.f32 0.0, %v5769
        %v5771 = vpop.f32.mrf.mxu0
        %5772 = vmatprep.mubr.f32.mxu0 0.0
        %5773 = vmatmul.mubr.f32.gmra.mxu0 %v3183
        %v5774 = vpop.f32.mrf.mxu0
        %v5775 = vadd.f32 0.0, %v5774
        %v5776 = vpop.f32.mrf.mxu0
        %5777 = vmatprep.mubr.f32.mxu0 0.0
        %5778 = vmatmul.mubr.f32.gmra.mxu0 %v3186
        %v5779 = vpop.f32.mrf.mxu0
        %v5780 = vadd.f32 0.0, %v5779
        %v5781 = vpop.f32.mrf.mxu0
        %5782 = vmatprep.mubr.f32.mxu0 0.0
        %5783 = vmatmul.mubr.f32.gmra.mxu0 %v3189
        %v5784 = vpop.f32.mrf.mxu0
        %v5785 = vadd.f32 0.0, %v5784
        %v5786 = vpop.f32.mrf.mxu0
        %5787 = vmatprep.mubr.f32.mxu0 0.0
        %5788 = vmatmul.mubr.f32.gmra.mxu0 %v3192
        %v5789 = vpop.f32.mrf.mxu0
        %v5790 = vadd.f32 0.0, %v5789
        %v5791 = vpop.f32.mrf.mxu0
        %5792 = vmatprep.mubr.f32.mxu0 0.0
        %5793 = vmatmul.mubr.f32.gmra.mxu0 %v3195
        %v5794 = vpop.f32.mrf.mxu0
        %v5795 = vadd.f32 0.0, %v5794
        %v5796 = vpop.f32.mrf.mxu0
        %5797 = vmatprep.mubr.f32.mxu0 0.0
        %5798 = vmatmul.mubr.f32.gmra.mxu0 %v3198
        %v5799 = vpop.f32.mrf.mxu0
        %v5800 = vadd.f32 0.0, %v5799
        %v5801 = vpop.f32.mrf.mxu0
        %5802 = vmatprep.mubr.f32.mxu0 0.0
        %5803 = vmatmul.mubr.f32.gmra.mxu0 %v3201
        %v5804 = vpop.f32.mrf.mxu0
        %v5805 = vadd.f32 0.0, %v5804
        %v5806 = vpop.f32.mrf.mxu0
        %5807 = vmatprep.mubr.f32.mxu0 0.0
        %5808 = vmatmul.mubr.f32.gmra.mxu0 %v3204
        %v5809 = vpop.f32.mrf.mxu0
        %v5810 = vadd.f32 0.0, %v5809
        %v5811 = vpop.f32.mrf.mxu0
        %5812 = vmatprep.mubr.f32.mxu0 0.0
        %5813 = vmatmul.mubr.f32.gmra.mxu0 %v3207
        %v5814 = vpop.f32.mrf.mxu0
        %v5815 = vadd.f32 0.0, %v5814
        %v5816 = vpop.f32.mrf.mxu0
        %5817 = vmatprep.mubr.f32.mxu0 0.0
        %5818 = vmatmul.mubr.f32.gmra.mxu0 %v3210
        %v5819 = vpop.f32.mrf.mxu0
        %v5820 = vadd.f32 0.0, %v5819
        %v5821 = vpop.f32.mrf.mxu0
        %5822 = vmatprep.mubr.f32.mxu0 0.0
        %5823 = vmatmul.mubr.f32.gmra.mxu0 %v3213
        %v5824 = vpop.f32.mrf.mxu0
        %v5825 = vadd.f32 0.0, %v5824
        %v5826 = vpop.f32.mrf.mxu0
        %5827 = vmatprep.mubr.f32.mxu0 0.0
        %5828 = vmatmul.mubr.f32.gmra.mxu0 %v3216
        %v5829 = vpop.f32.mrf.mxu0
        %v5830 = vadd.f32 0.0, %v5829
        %v5831 = vpop.f32.mrf.mxu0
        %5832 = vmatprep.mubr.f32.mxu0 0.0
        %5833 = vmatmul.mubr.f32.gmra.mxu0 %v3219
        %v5834 = vpop.f32.mrf.mxu0
        %v5835 = vadd.f32 0.0, %v5834
        %v5836 = vpop.f32.mrf.mxu0
        %5837 = vmatprep.mubr.f32.mxu0 0.0
        %5838 = vmatmul.mubr.f32.gmra.mxu0 %v3222
        %v5839 = vpop.f32.mrf.mxu0
        %v5840 = vadd.f32 0.0, %v5839
        %v5841 = vpop.f32.mrf.mxu0
        %5842 = vmatprep.mubr.f32.mxu0 0.0
        %5843 = vmatmul.mubr.f32.gmra.mxu0 %v3225
        %v5844 = vpop.f32.mrf.mxu0
        %v5845 = vadd.f32 0.0, %v5844
        %v5846 = vpop.f32.mrf.mxu0
        %5847 = vmatprep.mubr.f32.mxu0 0.0
        %5848 = vmatmul.mubr.f32.gmra.mxu0 %v3228
        %v5849 = vpop.f32.mrf.mxu0
        %v5850 = vadd.f32 0.0, %v5849
        %v5851 = vpop.f32.mrf.mxu0
        %5852 = vmatprep.mubr.f32.mxu0 0.0
        %5853 = vmatmul.mubr.f32.gmra.mxu0 %v3231
        %v5854 = vpop.f32.mrf.mxu0
        %v5855 = vadd.f32 0.0, %v5854
        %v5856 = vpop.f32.mrf.mxu0
        %5857 = vmatprep.mubr.f32.mxu0 0.0
        %5858 = vmatmul.mubr.f32.gmra.mxu0 %v3234
        %v5859 = vpop.f32.mrf.mxu0
        %v5860 = vadd.f32 0.0, %v5859
        %v5861 = vpop.f32.mrf.mxu0
        %5862 = vmatprep.mubr.f32.mxu0 0.0
        %5863 = vmatmul.mubr.f32.gmra.mxu0 %v3237
        %v5864 = vpop.f32.mrf.mxu0
        %v5865 = vadd.f32 0.0, %v5864
        %v5866 = vpop.f32.mrf.mxu0
        %5867 = vdwg.mxu0
        %vm5868 = vcmask 130048
        %v5870 = vsel %vm5868, %v678, 0
        %v5873 = vsel %vm5868, %v679, 0
        %v5876 = vsel %vm5868, %v680, 0
        %v5879 = vsel %vm5868, %v681, 0
        %v5882 = vsel %vm5868, %v682, 0
        %v5885 = vsel %vm5868, %v683, 0
        %v5888 = vsel %vm5868, %v684, 0
        %v5891 = vsel %vm5868, %v685, 0
        %v5894 = vsel %vm5868, %v686, 0
        %v5897 = vsel %vm5868, %v687, 0
        %v5900 = vsel %vm5868, %v688, 0
        %v5903 = vsel %vm5868, %v689, 0
        %v5906 = vsel %vm5868, %v690, 0
        %v5909 = vsel %vm5868, %v691, 0
        %v5912 = vsel %vm5868, %v692, 0
        %v5915 = vsel %vm5868, %v693, 0
        %v5918 = vsel %vm5868, %v694, 0
        %v5921 = vsel %vm5868, %v695, 0
        %v5924 = vsel %vm5868, %v696, 0
        %v5927 = vsel %vm5868, %v697, 0
        %v5930 = vsel %vm5868, %v698, 0
        %v5933 = vsel %vm5868, %v699, 0
        %v5936 = vsel %vm5868, %v700, 0
        %v5939 = vsel %vm5868, %v701, 0
        %v5942 = vsel %vm5868, %v702, 0
        %v5945 = vsel %vm5868, %v703, 0
        %v5948 = vsel %vm5868, %v704, 0
        %v5951 = vsel %vm5868, %v705, 0
        %v5954 = vsel %vm5868, %v706, 0
        %v5957 = vsel %vm5868, %v707, 0
        %v5960 = vsel %vm5868, %v708, 0
        %v5963 = vsel %vm5868, %v709, 0
        %v5966 = vsel %vm5868, %v710, 0
        %v5969 = vsel %vm5868, %v711, 0
        %v5972 = vsel %vm5868, %v712, 0
        %v5975 = vsel %vm5868, %v713, 0
        %v5978 = vsel %vm5868, %v714, 0
        %v5981 = vsel %vm5868, %v715, 0
        %v5984 = vsel %vm5868, %v716, 0
        %v5987 = vsel %vm5868, %v717, 0
        %v5990 = vsel %vm5868, %v718, 0
        %v5993 = vsel %vm5868, %v719, 0
        %v5996 = vsel %vm5868, %v720, 0
        %v5999 = vsel %vm5868, %v721, 0
        %v6002 = vsel %vm5868, %v722, 0
        %v6005 = vsel %vm5868, %v723, 0
        %v6008 = vsel %vm5868, %v724, 0
        %v6011 = vsel %vm5868, %v725, 0
        %v6014 = vsel %vm5868, %v726, 0
        %v6017 = vsel %vm5868, %v727, 0
        %v6020 = vsel %vm5868, %v728, 0
        %v6023 = vsel %vm5868, %v729, 0
        %v6026 = vsel %vm5868, %v730, 0
        %v6029 = vsel %vm5868, %v731, 0
        %v6032 = vsel %vm5868, %v732, 0
        %v6035 = vsel %vm5868, %v733, 0
        %v6038 = vsel %vm5868, %v734, 0
        %v6041 = vsel %vm5868, %v735, 0
        %v6044 = vsel %vm5868, %v736, 0
        %v6047 = vsel %vm5868, %v737, 0
        %v6050 = vsel %vm5868, %v738, 0
        %v6053 = vsel %vm5868, %v739, 0
        %v6056 = vsel %vm5868, %v740, 0
        %v6059 = vsel %vm5868, %v741, 0
        %v6062 = vsel %vm5868, %v742, 0
        %v6065 = vsel %vm5868, %v743, 0
        %v6068 = vsel %vm5868, %v744, 0
        %v6071 = vsel %vm5868, %v745, 0
        %v6074 = vsel %vm5868, %v746, 0
        %v6077 = vsel %vm5868, %v747, 0
        %v6080 = vsel %vm5868, %v748, 0
        %v6083 = vsel %vm5868, %v749, 0
        %v6086 = vsel %vm5868, %v750, 0
        %v6089 = vsel %vm5868, %v751, 0
        %v6092 = vsel %vm5868, %v752, 0
        %v6095 = vsel %vm5868, %v753, 0
        %v6098 = vsel %vm5868, %v754, 0
        %v6101 = vsel %vm5868, %v755, 0
        %v6104 = vsel %vm5868, %v756, 0
        %v6107 = vsel %vm5868, %v757, 0
        %v6110 = vsel %vm5868, %v758, 0
        %v6113 = vsel %vm5868, %v759, 0
        %v6116 = vsel %vm5868, %v760, 0
        %v6119 = vsel %vm5868, %v761, 0
        %v6122 = vsel %vm5868, %v762, 0
        %v6125 = vsel %vm5868, %v763, 0
        %v6128 = vsel %vm5868, %v764, 0
        %v6131 = vsel %vm5868, %v765, 0
        %v6134 = vsel %vm5868, %v766, 0
        %v6137 = vsel %vm5868, %v767, 0
        %v6140 = vsel %vm5868, %v768, 0
        %v6143 = vsel %vm5868, %v769, 0
        %v6146 = vsel %vm5868, %v770, 0
        %v6149 = vsel %vm5868, %v771, 0
        %v6152 = vsel %vm5868, %v772, 0
        %v6155 = vsel %vm5868, %v773, 0
        %v6158 = vsel %vm5868, %v774, 0
        %v6161 = vsel %vm5868, %v775, 0
        %v6164 = vsel %vm5868, %v776, 0
        %v6167 = vsel %vm5868, %v777, 0
        %v6170 = vsel %vm5868, %v778, 0
        %v6173 = vsel %vm5868, %v779, 0
        %v6176 = vsel %vm5868, %v780, 0
        %v6179 = vsel %vm5868, %v781, 0
        %v6182 = vsel %vm5868, %v782, 0
        %v6185 = vsel %vm5868, %v783, 0
        %v6188 = vsel %vm5868, %v784, 0
        %v6191 = vsel %vm5868, %v785, 0
        %v6194 = vsel %vm5868, %v786, 0
        %v6197 = vsel %vm5868, %v787, 0
        %v6200 = vsel %vm5868, %v788, 0
        %v6203 = vsel %vm5868, %v789, 0
        %v6206 = vsel %vm5868, %v790, 0
        %v6209 = vsel %vm5868, %v791, 0
        %v6212 = vsel %vm5868, %v792, 0
        %v6215 = vsel %vm5868, %v793, 0
        %v6218 = vsel %vm5868, %v794, 0
        %v6221 = vsel %vm5868, %v795, 0
        %v6224 = vsel %vm5868, %v796, 0
        %v6227 = vsel %vm5868, %v797, 0
        %v6230 = vsel %vm5868, %v798, 0
        %v6233 = vsel %vm5868, %v799, 0
        %v6236 = vsel %vm5868, %v800, 0
        %v6239 = vsel %vm5868, %v801, 0
        %v6242 = vsel %vm5868, %v802, 0
        %v6245 = vsel %vm5868, %v803, 0
        %v6248 = vsel %vm5868, %v804, 0
        %v6251 = vsel %vm5868, %v805, 0
        %v6254 = vsel %vm5868, %v806, 0
        %v6257 = vsel %vm5868, %v807, 0
        %v6260 = vsel %vm5868, %v808, 0
        %v6263 = vsel %vm5868, %v809, 0
        %v6266 = vsel %vm5868, %v810, 0
        %v6269 = vsel %vm5868, %v811, 0
        %v6272 = vsel %vm5868, %v812, 0
        %v6275 = vsel %vm5868, %v813, 0
        %v6278 = vsel %vm5868, %v814, 0
        %v6281 = vsel %vm5868, %v815, 0
        %v6284 = vsel %vm5868, %v816, 0
        %v6287 = vsel %vm5868, %v817, 0
        %v6290 = vsel %vm5868, %v818, 0
        %v6293 = vsel %vm5868, %v819, 0
        %v6296 = vsel %vm5868, %v820, 0
        %v6299 = vsel %vm5868, %v821, 0
        %v6302 = vsel %vm5868, %v822, 0
        %v6305 = vsel %vm5868, %v823, 0
        %v6308 = vsel %vm5868, %v824, 0
        %v6311 = vsel %vm5868, %v825, 0
        %v6314 = vsel %vm5868, %v826, 0
        %v6317 = vsel %vm5868, %v827, 0
        %v6320 = vsel %vm5868, %v828, 0
        %v6323 = vsel %vm5868, %v829, 0
        %v6326 = vsel %vm5868, %v830, 0
        %v6329 = vsel %vm5868, %v831, 0
        %v6332 = vsel %vm5868, %v832, 0
        %v6335 = vsel %vm5868, %v833, 0
        %v6338 = vsel %vm5868, %v834, 0
        %v6341 = vsel %vm5868, %v835, 0
        %v6344 = vsel %vm5868, %v836, 0
        %v6347 = vsel %vm5868, %v837, 0
        %v6350 = vsel %vm5868, %v838, 0
        %v6353 = vsel %vm5868, %v839, 0
        %v6356 = vsel %vm5868, %v840, 0
        %v6359 = vsel %vm5868, %v841, 0
        %v6362 = vsel %vm5868, %v842, 0
        %v6365 = vsel %vm5868, %v843, 0
        %v6368 = vsel %vm5868, %v844, 0
        %v6371 = vsel %vm5868, %v845, 0
        %v6374 = vsel %vm5868, %v846, 0
        %v6377 = vsel %vm5868, %v847, 0
        %v6380 = vsel %vm5868, %v848, 0
        %v6383 = vsel %vm5868, %v849, 0
        %v6386 = vsel %vm5868, %v850, 0
        %v6389 = vsel %vm5868, %v851, 0
        %v6392 = vsel %vm5868, %v852, 0
        %v6395 = vsel %vm5868, %v853, 0
        %v6398 = vsel %vm5868, %v854, 0
        %v6401 = vsel %vm5868, %v855, 0
        %v6404 = vsel %vm5868, %v856, 0
        %v6407 = vsel %vm5868, %v857, 0
        %v6410 = vsel %vm5868, %v858, 0
        %v6413 = vsel %vm5868, %v859, 0
        %v6416 = vsel %vm5868, %v860, 0
        %v6419 = vsel %vm5868, %v861, 0
        %v6422 = vsel %vm5868, %v862, 0
        %v6425 = vsel %vm5868, %v863, 0
        %v6428 = vsel %vm5868, %v864, 0
        %v6431 = vsel %vm5868, %v865, 0
        %v6434 = vsel %vm5868, %v866, 0
        %v6437 = vsel %vm5868, %v867, 0
        %v6440 = vsel %vm5868, %v868, 0
        %v6443 = vsel %vm5868, %v869, 0
        %v6446 = vsel %vm5868, %v870, 0
        %v6449 = vsel %vm5868, %v871, 0
        %v6452 = vsel %vm5868, %v872, 0
        %v6455 = vsel %vm5868, %v873, 0
        %v6458 = vsel %vm5868, %v874, 0
        %v6461 = vsel %vm5868, %v875, 0
        %v6464 = vsel %vm5868, %v876, 0
        %v6467 = vsel %vm5868, %v877, 0
        %v6470 = vsel %vm5868, %v878, 0
        %v6473 = vsel %vm5868, %v879, 0
        %v6476 = vsel %vm5868, %v880, 0
        %v6479 = vsel %vm5868, %v881, 0
        %v6482 = vsel %vm5868, %v882, 0
        %v6485 = vsel %vm5868, %v883, 0
        %v6488 = vsel %vm5868, %v884, 0
        %v6491 = vsel %vm5868, %v885, 0
        %v6494 = vsel %vm5868, %v886, 0
        %v6497 = vsel %vm5868, %v887, 0
        %v6500 = vsel %vm5868, %v888, 0
        %v6503 = vsel %vm5868, %v889, 0
        %v6506 = vsel %vm5868, %v890, 0
        %v6509 = vsel %vm5868, %v891, 0
        %v6512 = vsel %vm5868, %v892, 0
        %v6515 = vsel %vm5868, %v893, 0
        %v6518 = vsel %vm5868, %v894, 0
        %v6521 = vsel %vm5868, %v895, 0
        %v6524 = vsel %vm5868, %v896, 0
        %v6527 = vsel %vm5868, %v897, 0
        %v6530 = vsel %vm5868, %v898, 0
        %v6533 = vsel %vm5868, %v899, 0
        %v6536 = vsel %vm5868, %v900, 0
        %v6539 = vsel %vm5868, %v901, 0
        %v6542 = vsel %vm5868, %v902, 0
        %v6545 = vsel %vm5868, %v903, 0
        %v6548 = vsel %vm5868, %v904, 0
        %v6551 = vsel %vm5868, %v905, 0
        %v6554 = vsel %vm5868, %v906, 0
        %v6557 = vsel %vm5868, %v907, 0
        %v6560 = vsel %vm5868, %v908, 0
        %v6563 = vsel %vm5868, %v909, 0
        %v6566 = vsel %vm5868, %v910, 0
        %v6569 = vsel %vm5868, %v911, 0
        %v6572 = vsel %vm5868, %v912, 0
        %v6575 = vsel %vm5868, %v913, 0
        %v6578 = vsel %vm5868, %v914, 0
        %v6581 = vsel %vm5868, %v915, 0
        %v6584 = vsel %vm5868, %v916, 0
        %v6587 = vsel %vm5868, %v917, 0
        %v6590 = vsel %vm5868, %v918, 0
        %v6593 = vsel %vm5868, %v919, 0
        %v6596 = vsel %vm5868, %v920, 0
        %v6599 = vsel %vm5868, %v921, 0
        %v6602 = vsel %vm5868, %v922, 0
        %v6605 = vsel %vm5868, %v923, 0
        %v6608 = vsel %vm5868, %v924, 0
        %v6611 = vsel %vm5868, %v925, 0
        %v6614 = vsel %vm5868, %v926, 0
        %v6617 = vsel %vm5868, %v927, 0
        %v6620 = vsel %vm5868, %v928, 0
        %v6623 = vsel %vm5868, %v929, 0
        %v6626 = vsel %vm5868, %v930, 0
        %v6629 = vsel %vm5868, %v931, 0
        %v6632 = vsel %vm5868, %v932, 0
        %v6635 = vsel %vm5868, %v933, 0
        %v6638 = vsel %vm5868, %v934, 0
        %v6641 = vsel %vm5868, %v935, 0
        %v6644 = vsel %vm5868, %v936, 0
        %v6647 = vsel %vm5868, %v937, 0
        %v6650 = vsel %vm5868, %v938, 0
        %v6653 = vsel %vm5868, %v939, 0
        %v6656 = vsel %vm5868, %v940, 0
        %v6659 = vsel %vm5868, %v941, 0
        %v6662 = vsel %vm5868, %v942, 0
        %v6665 = vsel %vm5868, %v943, 0
        %v6668 = vsel %vm5868, %v944, 0
        %v6671 = vsel %vm5868, %v945, 0
        %v6674 = vsel %vm5868, %v946, 0
        %v6677 = vsel %vm5868, %v947, 0
        %v6680 = vsel %vm5868, %v948, 0
        %v6683 = vsel %vm5868, %v949, 0
        %v6686 = vsel %vm5868, %v950, 0
        %v6689 = vsel %vm5868, %v951, 0
        %v6692 = vsel %vm5868, %v952, 0
        %v6695 = vsel %vm5868, %v953, 0
        %v6698 = vsel %vm5868, %v954, 0
        %v6701 = vsel %vm5868, %v955, 0
        %v6704 = vsel %vm5868, %v956, 0
        %v6707 = vsel %vm5868, %v957, 0
        %v6710 = vsel %vm5868, %v958, 0
        %v6713 = vsel %vm5868, %v959, 0
        %v6716 = vsel %vm5868, %v960, 0
        %v6719 = vsel %vm5868, %v961, 0
        %v6722 = vsel %vm5868, %v962, 0
        %v6725 = vsel %vm5868, %v963, 0
        %v6728 = vsel %vm5868, %v964, 0
        %v6731 = vsel %vm5868, %v965, 0
        %v6734 = vsel %vm5868, %v966, 0
        %v6737 = vsel %vm5868, %v967, 0
        %v6740 = vsel %vm5868, %v968, 0
        %v6743 = vsel %vm5868, %v969, 0
        %v6746 = vsel %vm5868, %v970, 0
        %v6749 = vsel %vm5868, %v971, 0
        %v6752 = vsel %vm5868, %v972, 0
        %v6755 = vsel %vm5868, %v973, 0
        %v6758 = vsel %vm5868, %v974, 0
        %v6761 = vsel %vm5868, %v975, 0
        %v6764 = vsel %vm5868, %v976, 0
        %v6767 = vsel %vm5868, %v977, 0
        %v6770 = vsel %vm5868, %v978, 0
        %v6773 = vsel %vm5868, %v979, 0
        %v6776 = vsel %vm5868, %v980, 0
        %v6779 = vsel %vm5868, %v981, 0
        %v6782 = vsel %vm5868, %v982, 0
        %v6785 = vsel %vm5868, %v983, 0
        %v6788 = vsel %vm5868, %v984, 0
        %v6791 = vsel %vm5868, %v985, 0
        %v6794 = vsel %vm5868, %v986, 0
        %v6797 = vsel %vm5868, %v987, 0
        %v6800 = vsel %vm5868, %v988, 0
        %v6803 = vsel %vm5868, %v989, 0
        %v6806 = vsel %vm5868, %v990, 0
        %v6809 = vsel %vm5868, %v991, 0
        %v6812 = vsel %vm5868, %v992, 0
        %v6815 = vsel %vm5868, %v993, 0
        %v6818 = vsel %vm5868, %v994, 0
        %v6821 = vsel %vm5868, %v995, 0
        %v6824 = vsel %vm5868, %v996, 0
        %v6827 = vsel %vm5868, %v997, 0
        %v6830 = vsel %vm5868, %v998, 0
        %v6833 = vsel %vm5868, %v999, 0
        %v6836 = vsel %vm5868, %v1000, 0
        %v6839 = vsel %vm5868, %v1001, 0
        %v6842 = vsel %vm5868, %v1002, 0
        %v6845 = vsel %vm5868, %v1003, 0
        %v6848 = vsel %vm5868, %v1004, 0
        %v6851 = vsel %vm5868, %v1005, 0
        %v6854 = vsel %vm5868, %v1006, 0
        %v6857 = vsel %vm5868, %v1007, 0
        %v6860 = vsel %vm5868, %v1008, 0
        %v6863 = vsel %vm5868, %v1009, 0
        %v6866 = vsel %vm5868, %v1010, 0
        %v6869 = vsel %vm5868, %v1011, 0
        %v6872 = vsel %vm5868, %v1012, 0
        %v6875 = vsel %vm5868, %v1013, 0
        %v6878 = vsel %vm5868, %v1014, 0
        %v6881 = vsel %vm5868, %v1015, 0
        %v6884 = vsel %vm5868, %v1016, 0
        %v6887 = vsel %vm5868, %v1017, 0
        %v6890 = vsel %vm5868, %v1018, 0
        %v6893 = vsel %vm5868, %v1019, 0
        %v6896 = vsel %vm5868, %v1020, 0
        %v6899 = vsel %vm5868, %v1021, 0
        %v6902 = vsel %vm5868, %v1022, 0
        %v6905 = vsel %vm5868, %v1023, 0
        %v6908 = vsel %vm5868, %v1024, 0
        %v6911 = vsel %vm5868, %v1025, 0
        %v6914 = vsel %vm5868, %v1026, 0
        %v6917 = vsel %vm5868, %v1027, 0
        %v6920 = vsel %vm5868, %v1028, 0
        %v6923 = vsel %vm5868, %v1029, 0
        %v6926 = vsel %vm5868, %v1030, 0
        %v6929 = vsel %vm5868, %v1031, 0
        %v6932 = vsel %vm5868, %v1032, 0
        %v6935 = vsel %vm5868, %v1033, 0
        %v6938 = vsel %vm5868, %v1034, 0
        %v6941 = vsel %vm5868, %v1035, 0
        %v6944 = vsel %vm5868, %v1036, 0
        %v6947 = vsel %vm5868, %v1037, 0
        %v6950 = vsel %vm5868, %v1038, 0
        %v6953 = vsel %vm5868, %v1039, 0
        %v6956 = vsel %vm5868, %v1040, 0
        %v6959 = vsel %vm5868, %v1041, 0
        %v6962 = vsel %vm5868, %v1042, 0
        %v6965 = vsel %vm5868, %v1043, 0
        %v6968 = vsel %vm5868, %v1044, 0
        %v6971 = vsel %vm5868, %v1045, 0
        %v6974 = vsel %vm5868, %v1046, 0
        %v6977 = vsel %vm5868, %v1047, 0
        %v6980 = vsel %vm5868, %v1048, 0
        %v6983 = vsel %vm5868, %v1049, 0
        %v6986 = vsel %vm5868, %v1050, 0
        %v6989 = vsel %vm5868, %v1051, 0
        %v6992 = vsel %vm5868, %v1052, 0
        %v6995 = vsel %vm5868, %v1053, 0
        %v6998 = vsel %vm5868, %v1054, 0
        %v7001 = vsel %vm5868, %v1055, 0
        %v7004 = vsel %vm5868, %v1056, 0
        %v7007 = vsel %vm5868, %v1057, 0
        %v7010 = vsel %vm5868, %v1058, 0
        %v7013 = vsel %vm5868, %v1059, 0
        %v7016 = vsel %vm5868, %v1060, 0
        %v7019 = vsel %vm5868, %v1061, 0
        %v7022 = vsel %vm5868, %v1062, 0
        %v7025 = vsel %vm5868, %v1063, 0
        %v7028 = vsel %vm5868, %v1064, 0
        %v7031 = vsel %vm5868, %v1065, 0
        %v7034 = vsel %vm5868, %v1066, 0
        %v7037 = vsel %vm5868, %v1067, 0
        %v7040 = vsel %vm5868, %v1068, 0
        %v7043 = vsel %vm5868, %v1069, 0
        %v7046 = vsel %vm5868, %v1070, 0
        %v7049 = vsel %vm5868, %v1071, 0
        %v7052 = vsel %vm5868, %v1072, 0
        %v7055 = vsel %vm5868, %v1073, 0
        %v7058 = vsel %vm5868, %v1074, 0
        %v7061 = vsel %vm5868, %v1075, 0
        %v7064 = vsel %vm5868, %v1076, 0
        %v7067 = vsel %vm5868, %v1077, 0
        %v7070 = vsel %vm5868, %v1078, 0
        %v7073 = vsel %vm5868, %v1079, 0
        %v7076 = vsel %vm5868, %v1080, 0
        %v7079 = vsel %vm5868, %v1081, 0
        %v7082 = vsel %vm5868, %v1082, 0
        %v7085 = vsel %vm5868, %v1083, 0
        %v7088 = vsel %vm5868, %v1084, 0
        %v7091 = vsel %vm5868, %v1085, 0
        %v7094 = vsel %vm5868, %v1086, 0
        %v7097 = vsel %vm5868, %v1087, 0
        %v7100 = vsel %vm5868, %v1088, 0
        %v7103 = vsel %vm5868, %v1089, 0
        %v7106 = vsel %vm5868, %v1090, 0
        %v7109 = vsel %vm5868, %v1091, 0
        %v7112 = vsel %vm5868, %v1092, 0
        %v7115 = vsel %vm5868, %v1093, 0
        %v7118 = vsel %vm5868, %v1094, 0
        %v7121 = vsel %vm5868, %v1095, 0
        %v7124 = vsel %vm5868, %v1096, 0
        %v7127 = vsel %vm5868, %v1097, 0
        %v7130 = vsel %vm5868, %v1098, 0
        %v7133 = vsel %vm5868, %v1099, 0
        %v7136 = vsel %vm5868, %v1100, 0
        %v7139 = vsel %vm5868, %v1101, 0
        %v7142 = vsel %vm5868, %v1102, 0
        %v7145 = vsel %vm5868, %v1103, 0
        %v7148 = vsel %vm5868, %v1104, 0
        %v7151 = vsel %vm5868, %v1105, 0
        %v7154 = vsel %vm5868, %v1106, 0
        %v7157 = vsel %vm5868, %v1107, 0
        %v7160 = vsel %vm5868, %v1108, 0
        %v7163 = vsel %vm5868, %v1109, 0
        %v7166 = vsel %vm5868, %v1110, 0
        %v7169 = vsel %vm5868, %v1111, 0
        %v7172 = vsel %vm5868, %v1112, 0
        %v7175 = vsel %vm5868, %v1113, 0
        %v7178 = vsel %vm5868, %v1114, 0
        %v7181 = vsel %vm5868, %v1115, 0
        %v7184 = vsel %vm5868, %v1116, 0
        %v7187 = vsel %vm5868, %v1117, 0
        %v7190 = vsel %vm5868, %v1118, 0
        %v7193 = vsel %vm5868, %v1119, 0
        %v7196 = vsel %vm5868, %v1120, 0
        %v7199 = vsel %vm5868, %v1121, 0
        %v7202 = vsel %vm5868, %v1122, 0
        %v7205 = vsel %vm5868, %v1123, 0
        %v7208 = vsel %vm5868, %v1124, 0
        %v7211 = vsel %vm5868, %v1125, 0
        %v7214 = vsel %vm5868, %v1126, 0
        %v7217 = vsel %vm5868, %v1127, 0
        %v7220 = vsel %vm5868, %v1128, 0
        %v7223 = vsel %vm5868, %v1129, 0
        %v7226 = vsel %vm5868, %v1130, 0
        %v7229 = vsel %vm5868, %v1131, 0
        %v7232 = vsel %vm5868, %v1132, 0
        %v7235 = vsel %vm5868, %v1133, 0
        %v7238 = vsel %vm5868, %v1134, 0
        %v7241 = vsel %vm5868, %v1135, 0
        %v7244 = vsel %vm5868, %v1136, 0
        %v7247 = vsel %vm5868, %v1137, 0
        %v7250 = vsel %vm5868, %v1138, 0
        %v7253 = vsel %vm5868, %v1139, 0
        %v7256 = vsel %vm5868, %v1140, 0
        %v7259 = vsel %vm5868, %v1141, 0
        %v7262 = vsel %vm5868, %v1142, 0
        %v7265 = vsel %vm5868, %v1143, 0
        %v7268 = vsel %vm5868, %v1144, 0
        %v7271 = vsel %vm5868, %v1145, 0
        %v7274 = vsel %vm5868, %v1146, 0
        %v7277 = vsel %vm5868, %v1147, 0
        %v7280 = vsel %vm5868, %v1148, 0
        %v7283 = vsel %vm5868, %v1149, 0
        %v7286 = vsel %vm5868, %v1150, 0
        %v7289 = vsel %vm5868, %v1151, 0
        %v7292 = vsel %vm5868, %v1152, 0
        %v7295 = vsel %vm5868, %v1153, 0
        %v7298 = vsel %vm5868, %v1154, 0
        %v7301 = vsel %vm5868, %v1155, 0
        %v7304 = vsel %vm5868, %v1156, 0
        %v7307 = vsel %vm5868, %v1157, 0
        %v7310 = vsel %vm5868, %v1158, 0
        %v7313 = vsel %vm5868, %v1159, 0
        %v7316 = vsel %vm5868, %v1160, 0
        %v7319 = vsel %vm5868, %v1161, 0
        %v7322 = vsel %vm5868, %v1162, 0
        %v7325 = vsel %vm5868, %v1163, 0
        %v7328 = vsel %vm5868, %v1164, 0
        %v7331 = vsel %vm5868, %v1165, 0
        %v7334 = vsel %vm5868, %v1166, 0
        %v7337 = vsel %vm5868, %v1167, 0
        %v7340 = vsel %vm5868, %v1168, 0
        %v7343 = vsel %vm5868, %v1169, 0
        %v7346 = vsel %vm5868, %v1170, 0
        %v7349 = vsel %vm5868, %v1171, 0
        %v7352 = vsel %vm5868, %v1172, 0
        %v7355 = vsel %vm5868, %v1173, 0
        %v7358 = vsel %vm5868, %v1174, 0
        %v7361 = vsel %vm5868, %v1175, 0
        %v7364 = vsel %vm5868, %v1176, 0
        %v7367 = vsel %vm5868, %v1177, 0
        %v7370 = vsel %vm5868, %v1178, 0
        %v7373 = vsel %vm5868, %v1179, 0
        %v7376 = vsel %vm5868, %v1180, 0
        %v7379 = vsel %vm5868, %v1181, 0
        %v7382 = vsel %vm5868, %v1182, 0
        %v7385 = vsel %vm5868, %v1183, 0
        %v7388 = vsel %vm5868, %v1184, 0
        %v7391 = vsel %vm5868, %v1185, 0
        %v7394 = vsel %vm5868, %v1186, 0
        %v7397 = vsel %vm5868, %v1187, 0
        %v7400 = vsel %vm5868, %v1188, 0
        %v7403 = vsel %vm5868, %v1189, 0
        %7405 = vmatprep.subr.mxu0 0.0
        %7406 = vmatpush1.msra.mxu0 0.0
        %7407 = vmatprep.subr.mxu0 0.0
        %7408 = vmatpush1.msra.mxu0 0.0
        %7409 = vmatprep.subr.mxu0 0.0
        %7410 = vmatpush1.msra.mxu0 0.0
        %7411 = vmatprep.subr.mxu0 0.0
        %7412 = vmatpush1.msra.mxu0 0.0
        %7413 = vmatprep.subr.mxu0 0.0
        %7414 = vmatpush1.msra.mxu0 0.0
        %7415 = vmatprep.subr.mxu0 0.0
        %7416 = vmatpush1.msra.mxu0 0.0
        %7417 = vmatprep.subr.mxu0 0.0
        %7418 = vmatpush1.msra.mxu0 0.0
        %7419 = vmatprep.subr.mxu0 0.0
        %7420 = vmatpush1.msra.mxu0 0.0
        %7421 = vmatprep.subr.mxu0 0.0
        %7422 = vmatpush1.msra.mxu0 0.0
        %7423 = vmatprep.subr.mxu0 0.0
        %7424 = vmatpush1.msra.mxu0 0.0
        %7425 = vmatprep.subr.mxu0 0.0
        %7426 = vmatpush1.msra.mxu0 0.0
        %7427 = vmatprep.subr.mxu0 0.0
        %7428 = vmatpush1.msra.mxu0 0.0
        %7429 = vmatprep.subr.mxu0 0.0
        %7430 = vmatpush1.msra.mxu0 0.0
        %7431 = vmatprep.subr.mxu0 0.0
        %7432 = vmatpush1.msra.mxu0 0.0
        %7433 = vmatprep.subr.mxu0 0.0
        %7434 = vmatpush1.msra.mxu0 %v675
        %7435 = vmatprep.subr.mxu0 0.0
        %7436 = vmatpush1.msra.mxu0 %v670
        %7437 = vmatprep.subr.mxu0 0.0
        %7438 = vmatpush2.msra.mxu0 0.0
        %7439 = vmatprep.subr.mxu0 0.0
        %7440 = vmatpush2.msra.mxu0 0.0
        %7441 = vmatprep.subr.mxu0 0.0
        %7442 = vmatpush2.msra.mxu0 0.0
        %7443 = vmatprep.subr.mxu0 0.0
        %7444 = vmatpush2.msra.mxu0 0.0
        %7445 = vmatprep.subr.mxu0 0.0
        %7446 = vmatpush2.msra.mxu0 0.0
        %7447 = vmatprep.subr.mxu0 0.0
        %7448 = vmatpush2.msra.mxu0 0.0
        %7449 = vmatprep.subr.mxu0 0.0
        %7450 = vmatpush2.msra.mxu0 0.0
        %7451 = vmatprep.subr.mxu0 0.0
        %7452 = vmatpush2.msra.mxu0 0.0
        %7453 = vmatprep.subr.mxu0 0.0
        %7454 = vmatpush2.msra.mxu0 0.0
        %7455 = vmatprep.subr.mxu0 0.0
        %7456 = vmatpush2.msra.mxu0 0.0
        %7457 = vmatprep.subr.mxu0 0.0
        %7458 = vmatpush2.msra.mxu0 0.0
        %7459 = vmatprep.subr.mxu0 0.0
        %7460 = vmatpush2.msra.mxu0 0.0
        %7461 = vmatprep.subr.mxu0 0.0
        %7462 = vmatpush2.msra.mxu0 0.0
        %7463 = vmatprep.subr.mxu0 0.0
        %7464 = vmatpush2.msra.mxu0 0.0
        %7465 = vmatprep.subr.mxu0 0.0
        %7466 = vmatpush2.msra.mxu0 0.0
        %7467 = vmatprep.subr.mxu0 0.0
        %7468 = vmatpush2.msra.mxu0 0.0
        %7469 = vmatprep.mubr.f32.mxu0 0.0
        %7470 = vmatmul.mubr.f32.gmra.mxu0 %v5870
        %v7471 = vpop.f32.mrf.mxu0
        %v7472 = vadd.f32 %v3310, %v7471
        %v7473 = vpop.f32.mrf.mxu0
        %7474 = vmatprep.mubr.f32.mxu0 0.0
        %7475 = vmatmul.mubr.f32.gmra.mxu0 %v5873
        %v7476 = vpop.f32.mrf.mxu0
        %v7477 = vadd.f32 %v3315, %v7476
        %v7478 = vpop.f32.mrf.mxu0
        %7479 = vmatprep.mubr.f32.mxu0 0.0
        %7480 = vmatmul.mubr.f32.gmra.mxu0 %v5876
        %v7481 = vpop.f32.mrf.mxu0
        %v7482 = vadd.f32 %v3320, %v7481
        %v7483 = vpop.f32.mrf.mxu0
        %7484 = vmatprep.mubr.f32.mxu0 0.0
        %7485 = vmatmul.mubr.f32.gmra.mxu0 %v5879
        %v7486 = vpop.f32.mrf.mxu0
        %v7487 = vadd.f32 %v3325, %v7486
        %v7488 = vpop.f32.mrf.mxu0
        %7489 = vmatprep.mubr.f32.mxu0 0.0
        %7490 = vmatmul.mubr.f32.gmra.mxu0 %v5882
        %v7491 = vpop.f32.mrf.mxu0
        %v7492 = vadd.f32 %v3330, %v7491
        %v7493 = vpop.f32.mrf.mxu0
        %7494 = vmatprep.mubr.f32.mxu0 0.0
        %7495 = vmatmul.mubr.f32.gmra.mxu0 %v5885
        %v7496 = vpop.f32.mrf.mxu0
        %v7497 = vadd.f32 %v3335, %v7496
        %v7498 = vpop.f32.mrf.mxu0
        %7499 = vmatprep.mubr.f32.mxu0 0.0
        %7500 = vmatmul.mubr.f32.gmra.mxu0 %v5888
        %v7501 = vpop.f32.mrf.mxu0
        %v7502 = vadd.f32 %v3340, %v7501
        %v7503 = vpop.f32.mrf.mxu0
        %7504 = vmatprep.mubr.f32.mxu0 0.0
        %7505 = vmatmul.mubr.f32.gmra.mxu0 %v5891
        %v7506 = vpop.f32.mrf.mxu0
        %v7507 = vadd.f32 %v3345, %v7506
        %v7508 = vpop.f32.mrf.mxu0
        %7509 = vmatprep.mubr.f32.mxu0 0.0
        %7510 = vmatmul.mubr.f32.gmra.mxu0 %v5894
        %v7511 = vpop.f32.mrf.mxu0
        %v7512 = vadd.f32 %v3350, %v7511
        %v7513 = vpop.f32.mrf.mxu0
        %7514 = vmatprep.mubr.f32.mxu0 0.0
        %7515 = vmatmul.mubr.f32.gmra.mxu0 %v5897
        %v7516 = vpop.f32.mrf.mxu0
        %v7517 = vadd.f32 %v3355, %v7516
        %v7518 = vpop.f32.mrf.mxu0
        %7519 = vmatprep.mubr.f32.mxu0 0.0
        %7520 = vmatmul.mubr.f32.gmra.mxu0 %v5900
        %v7521 = vpop.f32.mrf.mxu0
        %v7522 = vadd.f32 %v3360, %v7521
        %v7523 = vpop.f32.mrf.mxu0
        %7524 = vmatprep.mubr.f32.mxu0 0.0
        %7525 = vmatmul.mubr.f32.gmra.mxu0 %v5903
        %v7526 = vpop.f32.mrf.mxu0
        %v7527 = vadd.f32 %v3365, %v7526
        %v7528 = vpop.f32.mrf.mxu0
        %7529 = vmatprep.mubr.f32.mxu0 0.0
        %7530 = vmatmul.mubr.f32.gmra.mxu0 %v5906
        %v7531 = vpop.f32.mrf.mxu0
        %v7532 = vadd.f32 %v3370, %v7531
        %v7533 = vpop.f32.mrf.mxu0
        %7534 = vmatprep.mubr.f32.mxu0 0.0
        %7535 = vmatmul.mubr.f32.gmra.mxu0 %v5909
        %v7536 = vpop.f32.mrf.mxu0
        %v7537 = vadd.f32 %v3375, %v7536
        %v7538 = vpop.f32.mrf.mxu0
        %7539 = vmatprep.mubr.f32.mxu0 0.0
        %7540 = vmatmul.mubr.f32.gmra.mxu0 %v5912
        %v7541 = vpop.f32.mrf.mxu0
        %v7542 = vadd.f32 %v3380, %v7541
        %v7543 = vpop.f32.mrf.mxu0
        %7544 = vmatprep.mubr.f32.mxu0 0.0
        %7545 = vmatmul.mubr.f32.gmra.mxu0 %v5915
        %v7546 = vpop.f32.mrf.mxu0
        %v7547 = vadd.f32 %v3385, %v7546
        %v7548 = vpop.f32.mrf.mxu0
        %7549 = vmatprep.mubr.f32.mxu0 0.0
        %7550 = vmatmul.mubr.f32.gmra.mxu0 %v5918
        %v7551 = vpop.f32.mrf.mxu0
        %v7552 = vadd.f32 %v3390, %v7551
        %v7553 = vpop.f32.mrf.mxu0
        %7554 = vmatprep.mubr.f32.mxu0 0.0
        %7555 = vmatmul.mubr.f32.gmra.mxu0 %v5921
        %v7556 = vpop.f32.mrf.mxu0
        %v7557 = vadd.f32 %v3395, %v7556
        %v7558 = vpop.f32.mrf.mxu0
        %7559 = vmatprep.mubr.f32.mxu0 0.0
        %7560 = vmatmul.mubr.f32.gmra.mxu0 %v5924
        %v7561 = vpop.f32.mrf.mxu0
        %v7562 = vadd.f32 %v3400, %v7561
        %v7563 = vpop.f32.mrf.mxu0
        %7564 = vmatprep.mubr.f32.mxu0 0.0
        %7565 = vmatmul.mubr.f32.gmra.mxu0 %v5927
        %v7566 = vpop.f32.mrf.mxu0
        %v7567 = vadd.f32 %v3405, %v7566
        %v7568 = vpop.f32.mrf.mxu0
        %7569 = vmatprep.mubr.f32.mxu0 0.0
        %7570 = vmatmul.mubr.f32.gmra.mxu0 %v5930
        %v7571 = vpop.f32.mrf.mxu0
        %v7572 = vadd.f32 %v3410, %v7571
        %v7573 = vpop.f32.mrf.mxu0
        %7574 = vmatprep.mubr.f32.mxu0 0.0
        %7575 = vmatmul.mubr.f32.gmra.mxu0 %v5933
        %v7576 = vpop.f32.mrf.mxu0
        %v7577 = vadd.f32 %v3415, %v7576
        %v7578 = vpop.f32.mrf.mxu0
        %7579 = vmatprep.mubr.f32.mxu0 0.0
        %7580 = vmatmul.mubr.f32.gmra.mxu0 %v5936
        %v7581 = vpop.f32.mrf.mxu0
        %v7582 = vadd.f32 %v3420, %v7581
        %v7583 = vpop.f32.mrf.mxu0
        %7584 = vmatprep.mubr.f32.mxu0 0.0
        %7585 = vmatmul.mubr.f32.gmra.mxu0 %v5939
        %v7586 = vpop.f32.mrf.mxu0
        %v7587 = vadd.f32 %v3425, %v7586
        %v7588 = vpop.f32.mrf.mxu0
        %7589 = vmatprep.mubr.f32.mxu0 0.0
        %7590 = vmatmul.mubr.f32.gmra.mxu0 %v5942
        %v7591 = vpop.f32.mrf.mxu0
        %v7592 = vadd.f32 %v3430, %v7591
        %v7593 = vpop.f32.mrf.mxu0
        %7594 = vmatprep.mubr.f32.mxu0 0.0
        %7595 = vmatmul.mubr.f32.gmra.mxu0 %v5945
        %v7596 = vpop.f32.mrf.mxu0
        %v7597 = vadd.f32 %v3435, %v7596
        %v7598 = vpop.f32.mrf.mxu0
        %7599 = vmatprep.mubr.f32.mxu0 0.0
        %7600 = vmatmul.mubr.f32.gmra.mxu0 %v5948
        %v7601 = vpop.f32.mrf.mxu0
        %v7602 = vadd.f32 %v3440, %v7601
        %v7603 = vpop.f32.mrf.mxu0
        %7604 = vmatprep.mubr.f32.mxu0 0.0
        %7605 = vmatmul.mubr.f32.gmra.mxu0 %v5951
        %v7606 = vpop.f32.mrf.mxu0
        %v7607 = vadd.f32 %v3445, %v7606
        %v7608 = vpop.f32.mrf.mxu0
        %7609 = vmatprep.mubr.f32.mxu0 0.0
        %7610 = vmatmul.mubr.f32.gmra.mxu0 %v5954
        %v7611 = vpop.f32.mrf.mxu0
        %v7612 = vadd.f32 %v3450, %v7611
        %v7613 = vpop.f32.mrf.mxu0
        %7614 = vmatprep.mubr.f32.mxu0 0.0
        %7615 = vmatmul.mubr.f32.gmra.mxu0 %v5957
        %v7616 = vpop.f32.mrf.mxu0
        %v7617 = vadd.f32 %v3455, %v7616
        %v7618 = vpop.f32.mrf.mxu0
        %7619 = vmatprep.mubr.f32.mxu0 0.0
        %7620 = vmatmul.mubr.f32.gmra.mxu0 %v5960
        %v7621 = vpop.f32.mrf.mxu0
        %v7622 = vadd.f32 %v3460, %v7621
        %v7623 = vpop.f32.mrf.mxu0
        %7624 = vmatprep.mubr.f32.mxu0 0.0
        %7625 = vmatmul.mubr.f32.gmra.mxu0 %v5963
        %v7626 = vpop.f32.mrf.mxu0
        %v7627 = vadd.f32 %v3465, %v7626
        %v7628 = vpop.f32.mrf.mxu0
        %7629 = vmatprep.mubr.f32.mxu0 0.0
        %7630 = vmatmul.mubr.f32.gmra.mxu0 %v5966
        %v7631 = vpop.f32.mrf.mxu0
        %v7632 = vadd.f32 %v3470, %v7631
        %v7633 = vpop.f32.mrf.mxu0
        %7634 = vmatprep.mubr.f32.mxu0 0.0
        %7635 = vmatmul.mubr.f32.gmra.mxu0 %v5969
        %v7636 = vpop.f32.mrf.mxu0
        %v7637 = vadd.f32 %v3475, %v7636
        %v7638 = vpop.f32.mrf.mxu0
        %7639 = vmatprep.mubr.f32.mxu0 0.0
        %7640 = vmatmul.mubr.f32.gmra.mxu0 %v5972
        %v7641 = vpop.f32.mrf.mxu0
        %v7642 = vadd.f32 %v3480, %v7641
        %v7643 = vpop.f32.mrf.mxu0
        %7644 = vmatprep.mubr.f32.mxu0 0.0
        %7645 = vmatmul.mubr.f32.gmra.mxu0 %v5975
        %v7646 = vpop.f32.mrf.mxu0
        %v7647 = vadd.f32 %v3485, %v7646
        %v7648 = vpop.f32.mrf.mxu0
        %7649 = vmatprep.mubr.f32.mxu0 0.0
        %7650 = vmatmul.mubr.f32.gmra.mxu0 %v5978
        %v7651 = vpop.f32.mrf.mxu0
        %v7652 = vadd.f32 %v3490, %v7651
        %v7653 = vpop.f32.mrf.mxu0
        %7654 = vmatprep.mubr.f32.mxu0 0.0
        %7655 = vmatmul.mubr.f32.gmra.mxu0 %v5981
        %v7656 = vpop.f32.mrf.mxu0
        %v7657 = vadd.f32 %v3495, %v7656
        %v7658 = vpop.f32.mrf.mxu0
        %7659 = vmatprep.mubr.f32.mxu0 0.0
        %7660 = vmatmul.mubr.f32.gmra.mxu0 %v5984
        %v7661 = vpop.f32.mrf.mxu0
        %v7662 = vadd.f32 %v3500, %v7661
        %v7663 = vpop.f32.mrf.mxu0
        %7664 = vmatprep.mubr.f32.mxu0 0.0
        %7665 = vmatmul.mubr.f32.gmra.mxu0 %v5987
        %v7666 = vpop.f32.mrf.mxu0
        %v7667 = vadd.f32 %v3505, %v7666
        %v7668 = vpop.f32.mrf.mxu0
        %7669 = vmatprep.mubr.f32.mxu0 0.0
        %7670 = vmatmul.mubr.f32.gmra.mxu0 %v5990
        %v7671 = vpop.f32.mrf.mxu0
        %v7672 = vadd.f32 %v3510, %v7671
        %v7673 = vpop.f32.mrf.mxu0
        %7674 = vmatprep.mubr.f32.mxu0 0.0
        %7675 = vmatmul.mubr.f32.gmra.mxu0 %v5993
        %v7676 = vpop.f32.mrf.mxu0
        %v7677 = vadd.f32 %v3515, %v7676
        %v7678 = vpop.f32.mrf.mxu0
        %7679 = vmatprep.mubr.f32.mxu0 0.0
        %7680 = vmatmul.mubr.f32.gmra.mxu0 %v5996
        %v7681 = vpop.f32.mrf.mxu0
        %v7682 = vadd.f32 %v3520, %v7681
        %v7683 = vpop.f32.mrf.mxu0
        %7684 = vmatprep.mubr.f32.mxu0 0.0
        %7685 = vmatmul.mubr.f32.gmra.mxu0 %v5999
        %v7686 = vpop.f32.mrf.mxu0
        %v7687 = vadd.f32 %v3525, %v7686
        %v7688 = vpop.f32.mrf.mxu0
        %7689 = vmatprep.mubr.f32.mxu0 0.0
        %7690 = vmatmul.mubr.f32.gmra.mxu0 %v6002
        %v7691 = vpop.f32.mrf.mxu0
        %v7692 = vadd.f32 %v3530, %v7691
        %v7693 = vpop.f32.mrf.mxu0
        %7694 = vmatprep.mubr.f32.mxu0 0.0
        %7695 = vmatmul.mubr.f32.gmra.mxu0 %v6005
        %v7696 = vpop.f32.mrf.mxu0
        %v7697 = vadd.f32 %v3535, %v7696
        %v7698 = vpop.f32.mrf.mxu0
        %7699 = vmatprep.mubr.f32.mxu0 0.0
        %7700 = vmatmul.mubr.f32.gmra.mxu0 %v6008
        %v7701 = vpop.f32.mrf.mxu0
        %v7702 = vadd.f32 %v3540, %v7701
        %v7703 = vpop.f32.mrf.mxu0
        %7704 = vmatprep.mubr.f32.mxu0 0.0
        %7705 = vmatmul.mubr.f32.gmra.mxu0 %v6011
        %v7706 = vpop.f32.mrf.mxu0
        %v7707 = vadd.f32 %v3545, %v7706
        %v7708 = vpop.f32.mrf.mxu0
        %7709 = vmatprep.mubr.f32.mxu0 0.0
        %7710 = vmatmul.mubr.f32.gmra.mxu0 %v6014
        %v7711 = vpop.f32.mrf.mxu0
        %v7712 = vadd.f32 %v3550, %v7711
        %v7713 = vpop.f32.mrf.mxu0
        %7714 = vmatprep.mubr.f32.mxu0 0.0
        %7715 = vmatmul.mubr.f32.gmra.mxu0 %v6017
        %v7716 = vpop.f32.mrf.mxu0
        %v7717 = vadd.f32 %v3555, %v7716
        %v7718 = vpop.f32.mrf.mxu0
        %7719 = vmatprep.mubr.f32.mxu0 0.0
        %7720 = vmatmul.mubr.f32.gmra.mxu0 %v6020
        %v7721 = vpop.f32.mrf.mxu0
        %v7722 = vadd.f32 %v3560, %v7721
        %v7723 = vpop.f32.mrf.mxu0
        %7724 = vmatprep.mubr.f32.mxu0 0.0
        %7725 = vmatmul.mubr.f32.gmra.mxu0 %v6023
        %v7726 = vpop.f32.mrf.mxu0
        %v7727 = vadd.f32 %v3565, %v7726
        %v7728 = vpop.f32.mrf.mxu0
        %7729 = vmatprep.mubr.f32.mxu0 0.0
        %7730 = vmatmul.mubr.f32.gmra.mxu0 %v6026
        %v7731 = vpop.f32.mrf.mxu0
        %v7732 = vadd.f32 %v3570, %v7731
        %v7733 = vpop.f32.mrf.mxu0
        %7734 = vmatprep.mubr.f32.mxu0 0.0
        %7735 = vmatmul.mubr.f32.gmra.mxu0 %v6029
        %v7736 = vpop.f32.mrf.mxu0
        %v7737 = vadd.f32 %v3575, %v7736
        %v7738 = vpop.f32.mrf.mxu0
        %7739 = vmatprep.mubr.f32.mxu0 0.0
        %7740 = vmatmul.mubr.f32.gmra.mxu0 %v6032
        %v7741 = vpop.f32.mrf.mxu0
        %v7742 = vadd.f32 %v3580, %v7741
        %v7743 = vpop.f32.mrf.mxu0
        %7744 = vmatprep.mubr.f32.mxu0 0.0
        %7745 = vmatmul.mubr.f32.gmra.mxu0 %v6035
        %v7746 = vpop.f32.mrf.mxu0
        %v7747 = vadd.f32 %v3585, %v7746
        %v7748 = vpop.f32.mrf.mxu0
        %7749 = vmatprep.mubr.f32.mxu0 0.0
        %7750 = vmatmul.mubr.f32.gmra.mxu0 %v6038
        %v7751 = vpop.f32.mrf.mxu0
        %v7752 = vadd.f32 %v3590, %v7751
        %v7753 = vpop.f32.mrf.mxu0
        %7754 = vmatprep.mubr.f32.mxu0 0.0
        %7755 = vmatmul.mubr.f32.gmra.mxu0 %v6041
        %v7756 = vpop.f32.mrf.mxu0
        %v7757 = vadd.f32 %v3595, %v7756
        %v7758 = vpop.f32.mrf.mxu0
        %7759 = vmatprep.mubr.f32.mxu0 0.0
        %7760 = vmatmul.mubr.f32.gmra.mxu0 %v6044
        %v7761 = vpop.f32.mrf.mxu0
        %v7762 = vadd.f32 %v3600, %v7761
        %v7763 = vpop.f32.mrf.mxu0
        %7764 = vmatprep.mubr.f32.mxu0 0.0
        %7765 = vmatmul.mubr.f32.gmra.mxu0 %v6047
        %v7766 = vpop.f32.mrf.mxu0
        %v7767 = vadd.f32 %v3605, %v7766
        %v7768 = vpop.f32.mrf.mxu0
        %7769 = vmatprep.mubr.f32.mxu0 0.0
        %7770 = vmatmul.mubr.f32.gmra.mxu0 %v6050
        %v7771 = vpop.f32.mrf.mxu0
        %v7772 = vadd.f32 %v3610, %v7771
        %v7773 = vpop.f32.mrf.mxu0
        %7774 = vmatprep.mubr.f32.mxu0 0.0
        %7775 = vmatmul.mubr.f32.gmra.mxu0 %v6053
        %v7776 = vpop.f32.mrf.mxu0
        %v7777 = vadd.f32 %v3615, %v7776
        %v7778 = vpop.f32.mrf.mxu0
        %7779 = vmatprep.mubr.f32.mxu0 0.0
        %7780 = vmatmul.mubr.f32.gmra.mxu0 %v6056
        %v7781 = vpop.f32.mrf.mxu0
        %v7782 = vadd.f32 %v3620, %v7781
        %v7783 = vpop.f32.mrf.mxu0
        %7784 = vmatprep.mubr.f32.mxu0 0.0
        %7785 = vmatmul.mubr.f32.gmra.mxu0 %v6059
        %v7786 = vpop.f32.mrf.mxu0
        %v7787 = vadd.f32 %v3625, %v7786
        %v7788 = vpop.f32.mrf.mxu0
        %7789 = vmatprep.mubr.f32.mxu0 0.0
        %7790 = vmatmul.mubr.f32.gmra.mxu0 %v6062
        %v7791 = vpop.f32.mrf.mxu0
        %v7792 = vadd.f32 %v3630, %v7791
        %v7793 = vpop.f32.mrf.mxu0
        %7794 = vmatprep.mubr.f32.mxu0 0.0
        %7795 = vmatmul.mubr.f32.gmra.mxu0 %v6065
        %v7796 = vpop.f32.mrf.mxu0
        %v7797 = vadd.f32 %v3635, %v7796
        %v7798 = vpop.f32.mrf.mxu0
        %7799 = vmatprep.mubr.f32.mxu0 0.0
        %7800 = vmatmul.mubr.f32.gmra.mxu0 %v6068
        %v7801 = vpop.f32.mrf.mxu0
        %v7802 = vadd.f32 %v3640, %v7801
        %v7803 = vpop.f32.mrf.mxu0
        %7804 = vmatprep.mubr.f32.mxu0 0.0
        %7805 = vmatmul.mubr.f32.gmra.mxu0 %v6071
        %v7806 = vpop.f32.mrf.mxu0
        %v7807 = vadd.f32 %v3645, %v7806
        %v7808 = vpop.f32.mrf.mxu0
        %7809 = vmatprep.mubr.f32.mxu0 0.0
        %7810 = vmatmul.mubr.f32.gmra.mxu0 %v6074
        %v7811 = vpop.f32.mrf.mxu0
        %v7812 = vadd.f32 %v3650, %v7811
        %v7813 = vpop.f32.mrf.mxu0
        %7814 = vmatprep.mubr.f32.mxu0 0.0
        %7815 = vmatmul.mubr.f32.gmra.mxu0 %v6077
        %v7816 = vpop.f32.mrf.mxu0
        %v7817 = vadd.f32 %v3655, %v7816
        %v7818 = vpop.f32.mrf.mxu0
        %7819 = vmatprep.mubr.f32.mxu0 0.0
        %7820 = vmatmul.mubr.f32.gmra.mxu0 %v6080
        %v7821 = vpop.f32.mrf.mxu0
        %v7822 = vadd.f32 %v3660, %v7821
        %v7823 = vpop.f32.mrf.mxu0
        %7824 = vmatprep.mubr.f32.mxu0 0.0
        %7825 = vmatmul.mubr.f32.gmra.mxu0 %v6083
        %v7826 = vpop.f32.mrf.mxu0
        %v7827 = vadd.f32 %v3665, %v7826
        %v7828 = vpop.f32.mrf.mxu0
        %7829 = vmatprep.mubr.f32.mxu0 0.0
        %7830 = vmatmul.mubr.f32.gmra.mxu0 %v6086
        %v7831 = vpop.f32.mrf.mxu0
        %v7832 = vadd.f32 %v3670, %v7831
        %v7833 = vpop.f32.mrf.mxu0
        %7834 = vmatprep.mubr.f32.mxu0 0.0
        %7835 = vmatmul.mubr.f32.gmra.mxu0 %v6089
        %v7836 = vpop.f32.mrf.mxu0
        %v7837 = vadd.f32 %v3675, %v7836
        %v7838 = vpop.f32.mrf.mxu0
        %7839 = vmatprep.mubr.f32.mxu0 0.0
        %7840 = vmatmul.mubr.f32.gmra.mxu0 %v6092
        %v7841 = vpop.f32.mrf.mxu0
        %v7842 = vadd.f32 %v3680, %v7841
        %v7843 = vpop.f32.mrf.mxu0
        %7844 = vmatprep.mubr.f32.mxu0 0.0
        %7845 = vmatmul.mubr.f32.gmra.mxu0 %v6095
        %v7846 = vpop.f32.mrf.mxu0
        %v7847 = vadd.f32 %v3685, %v7846
        %v7848 = vpop.f32.mrf.mxu0
        %7849 = vmatprep.mubr.f32.mxu0 0.0
        %7850 = vmatmul.mubr.f32.gmra.mxu0 %v6098
        %v7851 = vpop.f32.mrf.mxu0
        %v7852 = vadd.f32 %v3690, %v7851
        %v7853 = vpop.f32.mrf.mxu0
        %7854 = vmatprep.mubr.f32.mxu0 0.0
        %7855 = vmatmul.mubr.f32.gmra.mxu0 %v6101
        %v7856 = vpop.f32.mrf.mxu0
        %v7857 = vadd.f32 %v3695, %v7856
        %v7858 = vpop.f32.mrf.mxu0
        %7859 = vmatprep.mubr.f32.mxu0 0.0
        %7860 = vmatmul.mubr.f32.gmra.mxu0 %v6104
        %v7861 = vpop.f32.mrf.mxu0
        %v7862 = vadd.f32 %v3700, %v7861
        %v7863 = vpop.f32.mrf.mxu0
        %7864 = vmatprep.mubr.f32.mxu0 0.0
        %7865 = vmatmul.mubr.f32.gmra.mxu0 %v6107
        %v7866 = vpop.f32.mrf.mxu0
        %v7867 = vadd.f32 %v3705, %v7866
        %v7868 = vpop.f32.mrf.mxu0
        %7869 = vmatprep.mubr.f32.mxu0 0.0
        %7870 = vmatmul.mubr.f32.gmra.mxu0 %v6110
        %v7871 = vpop.f32.mrf.mxu0
        %v7872 = vadd.f32 %v3710, %v7871
        %v7873 = vpop.f32.mrf.mxu0
        %7874 = vmatprep.mubr.f32.mxu0 0.0
        %7875 = vmatmul.mubr.f32.gmra.mxu0 %v6113
        %v7876 = vpop.f32.mrf.mxu0
        %v7877 = vadd.f32 %v3715, %v7876
        %v7878 = vpop.f32.mrf.mxu0
        %7879 = vmatprep.mubr.f32.mxu0 0.0
        %7880 = vmatmul.mubr.f32.gmra.mxu0 %v6116
        %v7881 = vpop.f32.mrf.mxu0
        %v7882 = vadd.f32 %v3720, %v7881
        %v7883 = vpop.f32.mrf.mxu0
        %7884 = vmatprep.mubr.f32.mxu0 0.0
        %7885 = vmatmul.mubr.f32.gmra.mxu0 %v6119
        %v7886 = vpop.f32.mrf.mxu0
        %v7887 = vadd.f32 %v3725, %v7886
        %v7888 = vpop.f32.mrf.mxu0
        %7889 = vmatprep.mubr.f32.mxu0 0.0
        %7890 = vmatmul.mubr.f32.gmra.mxu0 %v6122
        %v7891 = vpop.f32.mrf.mxu0
        %v7892 = vadd.f32 %v3730, %v7891
        %v7893 = vpop.f32.mrf.mxu0
        %7894 = vmatprep.mubr.f32.mxu0 0.0
        %7895 = vmatmul.mubr.f32.gmra.mxu0 %v6125
        %v7896 = vpop.f32.mrf.mxu0
        %v7897 = vadd.f32 %v3735, %v7896
        %v7898 = vpop.f32.mrf.mxu0
        %7899 = vmatprep.mubr.f32.mxu0 0.0
        %7900 = vmatmul.mubr.f32.gmra.mxu0 %v6128
        %v7901 = vpop.f32.mrf.mxu0
        %v7902 = vadd.f32 %v3740, %v7901
        %v7903 = vpop.f32.mrf.mxu0
        %7904 = vmatprep.mubr.f32.mxu0 0.0
        %7905 = vmatmul.mubr.f32.gmra.mxu0 %v6131
        %v7906 = vpop.f32.mrf.mxu0
        %v7907 = vadd.f32 %v3745, %v7906
        %v7908 = vpop.f32.mrf.mxu0
        %7909 = vmatprep.mubr.f32.mxu0 0.0
        %7910 = vmatmul.mubr.f32.gmra.mxu0 %v6134
        %v7911 = vpop.f32.mrf.mxu0
        %v7912 = vadd.f32 %v3750, %v7911
        %v7913 = vpop.f32.mrf.mxu0
        %7914 = vmatprep.mubr.f32.mxu0 0.0
        %7915 = vmatmul.mubr.f32.gmra.mxu0 %v6137
        %v7916 = vpop.f32.mrf.mxu0
        %v7917 = vadd.f32 %v3755, %v7916
        %v7918 = vpop.f32.mrf.mxu0
        %7919 = vmatprep.mubr.f32.mxu0 0.0
        %7920 = vmatmul.mubr.f32.gmra.mxu0 %v6140
        %v7921 = vpop.f32.mrf.mxu0
        %v7922 = vadd.f32 %v3760, %v7921
        %v7923 = vpop.f32.mrf.mxu0
        %7924 = vmatprep.mubr.f32.mxu0 0.0
        %7925 = vmatmul.mubr.f32.gmra.mxu0 %v6143
        %v7926 = vpop.f32.mrf.mxu0
        %v7927 = vadd.f32 %v3765, %v7926
        %v7928 = vpop.f32.mrf.mxu0
        %7929 = vmatprep.mubr.f32.mxu0 0.0
        %7930 = vmatmul.mubr.f32.gmra.mxu0 %v6146
        %v7931 = vpop.f32.mrf.mxu0
        %v7932 = vadd.f32 %v3770, %v7931
        %v7933 = vpop.f32.mrf.mxu0
        %7934 = vmatprep.mubr.f32.mxu0 0.0
        %7935 = vmatmul.mubr.f32.gmra.mxu0 %v6149
        %v7936 = vpop.f32.mrf.mxu0
        %v7937 = vadd.f32 %v3775, %v7936
        %v7938 = vpop.f32.mrf.mxu0
        %7939 = vmatprep.mubr.f32.mxu0 0.0
        %7940 = vmatmul.mubr.f32.gmra.mxu0 %v6152
        %v7941 = vpop.f32.mrf.mxu0
        %v7942 = vadd.f32 %v3780, %v7941
        %v7943 = vpop.f32.mrf.mxu0
        %7944 = vmatprep.mubr.f32.mxu0 0.0
        %7945 = vmatmul.mubr.f32.gmra.mxu0 %v6155
        %v7946 = vpop.f32.mrf.mxu0
        %v7947 = vadd.f32 %v3785, %v7946
        %v7948 = vpop.f32.mrf.mxu0
        %7949 = vmatprep.mubr.f32.mxu0 0.0
        %7950 = vmatmul.mubr.f32.gmra.mxu0 %v6158
        %v7951 = vpop.f32.mrf.mxu0
        %v7952 = vadd.f32 %v3790, %v7951
        %v7953 = vpop.f32.mrf.mxu0
        %7954 = vmatprep.mubr.f32.mxu0 0.0
        %7955 = vmatmul.mubr.f32.gmra.mxu0 %v6161
        %v7956 = vpop.f32.mrf.mxu0
        %v7957 = vadd.f32 %v3795, %v7956
        %v7958 = vpop.f32.mrf.mxu0
        %7959 = vmatprep.mubr.f32.mxu0 0.0
        %7960 = vmatmul.mubr.f32.gmra.mxu0 %v6164
        %v7961 = vpop.f32.mrf.mxu0
        %v7962 = vadd.f32 %v3800, %v7961
        %v7963 = vpop.f32.mrf.mxu0
        %7964 = vmatprep.mubr.f32.mxu0 0.0
        %7965 = vmatmul.mubr.f32.gmra.mxu0 %v6167
        %v7966 = vpop.f32.mrf.mxu0
        %v7967 = vadd.f32 %v3805, %v7966
        %v7968 = vpop.f32.mrf.mxu0
        %7969 = vmatprep.mubr.f32.mxu0 0.0
        %7970 = vmatmul.mubr.f32.gmra.mxu0 %v6170
        %v7971 = vpop.f32.mrf.mxu0
        %v7972 = vadd.f32 %v3810, %v7971
        %v7973 = vpop.f32.mrf.mxu0
        %7974 = vmatprep.mubr.f32.mxu0 0.0
        %7975 = vmatmul.mubr.f32.gmra.mxu0 %v6173
        %v7976 = vpop.f32.mrf.mxu0
        %v7977 = vadd.f32 %v3815, %v7976
        %v7978 = vpop.f32.mrf.mxu0
        %7979 = vmatprep.mubr.f32.mxu0 0.0
        %7980 = vmatmul.mubr.f32.gmra.mxu0 %v6176
        %v7981 = vpop.f32.mrf.mxu0
        %v7982 = vadd.f32 %v3820, %v7981
        %v7983 = vpop.f32.mrf.mxu0
        %7984 = vmatprep.mubr.f32.mxu0 0.0
        %7985 = vmatmul.mubr.f32.gmra.mxu0 %v6179
        %v7986 = vpop.f32.mrf.mxu0
        %v7987 = vadd.f32 %v3825, %v7986
        %v7988 = vpop.f32.mrf.mxu0
        %7989 = vmatprep.mubr.f32.mxu0 0.0
        %7990 = vmatmul.mubr.f32.gmra.mxu0 %v6182
        %v7991 = vpop.f32.mrf.mxu0
        %v7992 = vadd.f32 %v3830, %v7991
        %v7993 = vpop.f32.mrf.mxu0
        %7994 = vmatprep.mubr.f32.mxu0 0.0
        %7995 = vmatmul.mubr.f32.gmra.mxu0 %v6185
        %v7996 = vpop.f32.mrf.mxu0
        %v7997 = vadd.f32 %v3835, %v7996
        %v7998 = vpop.f32.mrf.mxu0
        %7999 = vmatprep.mubr.f32.mxu0 0.0
        %8000 = vmatmul.mubr.f32.gmra.mxu0 %v6188
        %v8001 = vpop.f32.mrf.mxu0
        %v8002 = vadd.f32 %v3840, %v8001
        %v8003 = vpop.f32.mrf.mxu0
        %8004 = vmatprep.mubr.f32.mxu0 0.0
        %8005 = vmatmul.mubr.f32.gmra.mxu0 %v6191
        %v8006 = vpop.f32.mrf.mxu0
        %v8007 = vadd.f32 %v3845, %v8006
        %v8008 = vpop.f32.mrf.mxu0
        %8009 = vmatprep.mubr.f32.mxu0 0.0
        %8010 = vmatmul.mubr.f32.gmra.mxu0 %v6194
        %v8011 = vpop.f32.mrf.mxu0
        %v8012 = vadd.f32 %v3850, %v8011
        %v8013 = vpop.f32.mrf.mxu0
        %8014 = vmatprep.mubr.f32.mxu0 0.0
        %8015 = vmatmul.mubr.f32.gmra.mxu0 %v6197
        %v8016 = vpop.f32.mrf.mxu0
        %v8017 = vadd.f32 %v3855, %v8016
        %v8018 = vpop.f32.mrf.mxu0
        %8019 = vmatprep.mubr.f32.mxu0 0.0
        %8020 = vmatmul.mubr.f32.gmra.mxu0 %v6200
        %v8021 = vpop.f32.mrf.mxu0
        %v8022 = vadd.f32 %v3860, %v8021
        %v8023 = vpop.f32.mrf.mxu0
        %8024 = vmatprep.mubr.f32.mxu0 0.0
        %8025 = vmatmul.mubr.f32.gmra.mxu0 %v6203
        %v8026 = vpop.f32.mrf.mxu0
        %v8027 = vadd.f32 %v3865, %v8026
        %v8028 = vpop.f32.mrf.mxu0
        %8029 = vmatprep.mubr.f32.mxu0 0.0
        %8030 = vmatmul.mubr.f32.gmra.mxu0 %v6206
        %v8031 = vpop.f32.mrf.mxu0
        %v8032 = vadd.f32 %v3870, %v8031
        %v8033 = vpop.f32.mrf.mxu0
        %8034 = vmatprep.mubr.f32.mxu0 0.0
        %8035 = vmatmul.mubr.f32.gmra.mxu0 %v6209
        %v8036 = vpop.f32.mrf.mxu0
        %v8037 = vadd.f32 %v3875, %v8036
        %v8038 = vpop.f32.mrf.mxu0
        %8039 = vmatprep.mubr.f32.mxu0 0.0
        %8040 = vmatmul.mubr.f32.gmra.mxu0 %v6212
        %v8041 = vpop.f32.mrf.mxu0
        %v8042 = vadd.f32 %v3880, %v8041
        %v8043 = vpop.f32.mrf.mxu0
        %8044 = vmatprep.mubr.f32.mxu0 0.0
        %8045 = vmatmul.mubr.f32.gmra.mxu0 %v6215
        %v8046 = vpop.f32.mrf.mxu0
        %v8047 = vadd.f32 %v3885, %v8046
        %v8048 = vpop.f32.mrf.mxu0
        %8049 = vmatprep.mubr.f32.mxu0 0.0
        %8050 = vmatmul.mubr.f32.gmra.mxu0 %v6218
        %v8051 = vpop.f32.mrf.mxu0
        %v8052 = vadd.f32 %v3890, %v8051
        %v8053 = vpop.f32.mrf.mxu0
        %8054 = vmatprep.mubr.f32.mxu0 0.0
        %8055 = vmatmul.mubr.f32.gmra.mxu0 %v6221
        %v8056 = vpop.f32.mrf.mxu0
        %v8057 = vadd.f32 %v3895, %v8056
        %v8058 = vpop.f32.mrf.mxu0
        %8059 = vmatprep.mubr.f32.mxu0 0.0
        %8060 = vmatmul.mubr.f32.gmra.mxu0 %v6224
        %v8061 = vpop.f32.mrf.mxu0
        %v8062 = vadd.f32 %v3900, %v8061
        %v8063 = vpop.f32.mrf.mxu0
        %8064 = vmatprep.mubr.f32.mxu0 0.0
        %8065 = vmatmul.mubr.f32.gmra.mxu0 %v6227
        %v8066 = vpop.f32.mrf.mxu0
        %v8067 = vadd.f32 %v3905, %v8066
        %v8068 = vpop.f32.mrf.mxu0
        %8069 = vmatprep.mubr.f32.mxu0 0.0
        %8070 = vmatmul.mubr.f32.gmra.mxu0 %v6230
        %v8071 = vpop.f32.mrf.mxu0
        %v8072 = vadd.f32 %v3910, %v8071
        %v8073 = vpop.f32.mrf.mxu0
        %8074 = vmatprep.mubr.f32.mxu0 0.0
        %8075 = vmatmul.mubr.f32.gmra.mxu0 %v6233
        %v8076 = vpop.f32.mrf.mxu0
        %v8077 = vadd.f32 %v3915, %v8076
        %v8078 = vpop.f32.mrf.mxu0
        %8079 = vmatprep.mubr.f32.mxu0 0.0
        %8080 = vmatmul.mubr.f32.gmra.mxu0 %v6236
        %v8081 = vpop.f32.mrf.mxu0
        %v8082 = vadd.f32 %v3920, %v8081
        %v8083 = vpop.f32.mrf.mxu0
        %8084 = vmatprep.mubr.f32.mxu0 0.0
        %8085 = vmatmul.mubr.f32.gmra.mxu0 %v6239
        %v8086 = vpop.f32.mrf.mxu0
        %v8087 = vadd.f32 %v3925, %v8086
        %v8088 = vpop.f32.mrf.mxu0
        %8089 = vmatprep.mubr.f32.mxu0 0.0
        %8090 = vmatmul.mubr.f32.gmra.mxu0 %v6242
        %v8091 = vpop.f32.mrf.mxu0
        %v8092 = vadd.f32 %v3930, %v8091
        %v8093 = vpop.f32.mrf.mxu0
        %8094 = vmatprep.mubr.f32.mxu0 0.0
        %8095 = vmatmul.mubr.f32.gmra.mxu0 %v6245
        %v8096 = vpop.f32.mrf.mxu0
        %v8097 = vadd.f32 %v3935, %v8096
        %v8098 = vpop.f32.mrf.mxu0
        %8099 = vmatprep.mubr.f32.mxu0 0.0
        %8100 = vmatmul.mubr.f32.gmra.mxu0 %v6248
        %v8101 = vpop.f32.mrf.mxu0
        %v8102 = vadd.f32 %v3940, %v8101
        %v8103 = vpop.f32.mrf.mxu0
        %8104 = vmatprep.mubr.f32.mxu0 0.0
        %8105 = vmatmul.mubr.f32.gmra.mxu0 %v6251
        %v8106 = vpop.f32.mrf.mxu0
        %v8107 = vadd.f32 %v3945, %v8106
        %v8108 = vpop.f32.mrf.mxu0
        %8109 = vmatprep.mubr.f32.mxu0 0.0
        %8110 = vmatmul.mubr.f32.gmra.mxu0 %v6254
        %v8111 = vpop.f32.mrf.mxu0
        %v8112 = vadd.f32 %v3950, %v8111
        %v8113 = vpop.f32.mrf.mxu0
        %8114 = vmatprep.mubr.f32.mxu0 0.0
        %8115 = vmatmul.mubr.f32.gmra.mxu0 %v6257
        %v8116 = vpop.f32.mrf.mxu0
        %v8117 = vadd.f32 %v3955, %v8116
        %v8118 = vpop.f32.mrf.mxu0
        %8119 = vmatprep.mubr.f32.mxu0 0.0
        %8120 = vmatmul.mubr.f32.gmra.mxu0 %v6260
        %v8121 = vpop.f32.mrf.mxu0
        %v8122 = vadd.f32 %v3960, %v8121
        %v8123 = vpop.f32.mrf.mxu0
        %8124 = vmatprep.mubr.f32.mxu0 0.0
        %8125 = vmatmul.mubr.f32.gmra.mxu0 %v6263
        %v8126 = vpop.f32.mrf.mxu0
        %v8127 = vadd.f32 %v3965, %v8126
        %v8128 = vpop.f32.mrf.mxu0
        %8129 = vmatprep.mubr.f32.mxu0 0.0
        %8130 = vmatmul.mubr.f32.gmra.mxu0 %v6266
        %v8131 = vpop.f32.mrf.mxu0
        %v8132 = vadd.f32 %v3970, %v8131
        %v8133 = vpop.f32.mrf.mxu0
        %8134 = vmatprep.mubr.f32.mxu0 0.0
        %8135 = vmatmul.mubr.f32.gmra.mxu0 %v6269
        %v8136 = vpop.f32.mrf.mxu0
        %v8137 = vadd.f32 %v3975, %v8136
        %v8138 = vpop.f32.mrf.mxu0
        %8139 = vmatprep.mubr.f32.mxu0 0.0
        %8140 = vmatmul.mubr.f32.gmra.mxu0 %v6272
        %v8141 = vpop.f32.mrf.mxu0
        %v8142 = vadd.f32 %v3980, %v8141
        %v8143 = vpop.f32.mrf.mxu0
        %8144 = vmatprep.mubr.f32.mxu0 0.0
        %8145 = vmatmul.mubr.f32.gmra.mxu0 %v6275
        %v8146 = vpop.f32.mrf.mxu0
        %v8147 = vadd.f32 %v3985, %v8146
        %v8148 = vpop.f32.mrf.mxu0
        %8149 = vmatprep.mubr.f32.mxu0 0.0
        %8150 = vmatmul.mubr.f32.gmra.mxu0 %v6278
        %v8151 = vpop.f32.mrf.mxu0
        %v8152 = vadd.f32 %v3990, %v8151
        %v8153 = vpop.f32.mrf.mxu0
        %8154 = vmatprep.mubr.f32.mxu0 0.0
        %8155 = vmatmul.mubr.f32.gmra.mxu0 %v6281
        %v8156 = vpop.f32.mrf.mxu0
        %v8157 = vadd.f32 %v3995, %v8156
        %v8158 = vpop.f32.mrf.mxu0
        %8159 = vmatprep.mubr.f32.mxu0 0.0
        %8160 = vmatmul.mubr.f32.gmra.mxu0 %v6284
        %v8161 = vpop.f32.mrf.mxu0
        %v8162 = vadd.f32 %v4000, %v8161
        %v8163 = vpop.f32.mrf.mxu0
        %8164 = vmatprep.mubr.f32.mxu0 0.0
        %8165 = vmatmul.mubr.f32.gmra.mxu0 %v6287
        %v8166 = vpop.f32.mrf.mxu0
        %v8167 = vadd.f32 %v4005, %v8166
        %v8168 = vpop.f32.mrf.mxu0
        %8169 = vmatprep.mubr.f32.mxu0 0.0
        %8170 = vmatmul.mubr.f32.gmra.mxu0 %v6290
        %v8171 = vpop.f32.mrf.mxu0
        %v8172 = vadd.f32 %v4010, %v8171
        %v8173 = vpop.f32.mrf.mxu0
        %8174 = vmatprep.mubr.f32.mxu0 0.0
        %8175 = vmatmul.mubr.f32.gmra.mxu0 %v6293
        %v8176 = vpop.f32.mrf.mxu0
        %v8177 = vadd.f32 %v4015, %v8176
        %v8178 = vpop.f32.mrf.mxu0
        %8179 = vmatprep.mubr.f32.mxu0 0.0
        %8180 = vmatmul.mubr.f32.gmra.mxu0 %v6296
        %v8181 = vpop.f32.mrf.mxu0
        %v8182 = vadd.f32 %v4020, %v8181
        %v8183 = vpop.f32.mrf.mxu0
        %8184 = vmatprep.mubr.f32.mxu0 0.0
        %8185 = vmatmul.mubr.f32.gmra.mxu0 %v6299
        %v8186 = vpop.f32.mrf.mxu0
        %v8187 = vadd.f32 %v4025, %v8186
        %v8188 = vpop.f32.mrf.mxu0
        %8189 = vmatprep.mubr.f32.mxu0 0.0
        %8190 = vmatmul.mubr.f32.gmra.mxu0 %v6302
        %v8191 = vpop.f32.mrf.mxu0
        %v8192 = vadd.f32 %v4030, %v8191
        %v8193 = vpop.f32.mrf.mxu0
        %8194 = vmatprep.mubr.f32.mxu0 0.0
        %8195 = vmatmul.mubr.f32.gmra.mxu0 %v6305
        %v8196 = vpop.f32.mrf.mxu0
        %v8197 = vadd.f32 %v4035, %v8196
        %v8198 = vpop.f32.mrf.mxu0
        %8199 = vmatprep.mubr.f32.mxu0 0.0
        %8200 = vmatmul.mubr.f32.gmra.mxu0 %v6308
        %v8201 = vpop.f32.mrf.mxu0
        %v8202 = vadd.f32 %v4040, %v8201
        %v8203 = vpop.f32.mrf.mxu0
        %8204 = vmatprep.mubr.f32.mxu0 0.0
        %8205 = vmatmul.mubr.f32.gmra.mxu0 %v6311
        %v8206 = vpop.f32.mrf.mxu0
        %v8207 = vadd.f32 %v4045, %v8206
        %v8208 = vpop.f32.mrf.mxu0
        %8209 = vmatprep.mubr.f32.mxu0 0.0
        %8210 = vmatmul.mubr.f32.gmra.mxu0 %v6314
        %v8211 = vpop.f32.mrf.mxu0
        %v8212 = vadd.f32 %v4050, %v8211
        %v8213 = vpop.f32.mrf.mxu0
        %8214 = vmatprep.mubr.f32.mxu0 0.0
        %8215 = vmatmul.mubr.f32.gmra.mxu0 %v6317
        %v8216 = vpop.f32.mrf.mxu0
        %v8217 = vadd.f32 %v4055, %v8216
        %v8218 = vpop.f32.mrf.mxu0
        %8219 = vmatprep.mubr.f32.mxu0 0.0
        %8220 = vmatmul.mubr.f32.gmra.mxu0 %v6320
        %v8221 = vpop.f32.mrf.mxu0
        %v8222 = vadd.f32 %v4060, %v8221
        %v8223 = vpop.f32.mrf.mxu0
        %8224 = vmatprep.mubr.f32.mxu0 0.0
        %8225 = vmatmul.mubr.f32.gmra.mxu0 %v6323
        %v8226 = vpop.f32.mrf.mxu0
        %v8227 = vadd.f32 %v4065, %v8226
        %v8228 = vpop.f32.mrf.mxu0
        %8229 = vmatprep.mubr.f32.mxu0 0.0
        %8230 = vmatmul.mubr.f32.gmra.mxu0 %v6326
        %v8231 = vpop.f32.mrf.mxu0
        %v8232 = vadd.f32 %v4070, %v8231
        %v8233 = vpop.f32.mrf.mxu0
        %8234 = vmatprep.mubr.f32.mxu0 0.0
        %8235 = vmatmul.mubr.f32.gmra.mxu0 %v6329
        %v8236 = vpop.f32.mrf.mxu0
        %v8237 = vadd.f32 %v4075, %v8236
        %v8238 = vpop.f32.mrf.mxu0
        %8239 = vmatprep.mubr.f32.mxu0 0.0
        %8240 = vmatmul.mubr.f32.gmra.mxu0 %v6332
        %v8241 = vpop.f32.mrf.mxu0
        %v8242 = vadd.f32 %v4080, %v8241
        %v8243 = vpop.f32.mrf.mxu0
        %8244 = vmatprep.mubr.f32.mxu0 0.0
        %8245 = vmatmul.mubr.f32.gmra.mxu0 %v6335
        %v8246 = vpop.f32.mrf.mxu0
        %v8247 = vadd.f32 %v4085, %v8246
        %v8248 = vpop.f32.mrf.mxu0
        %8249 = vmatprep.mubr.f32.mxu0 0.0
        %8250 = vmatmul.mubr.f32.gmra.mxu0 %v6338
        %v8251 = vpop.f32.mrf.mxu0
        %v8252 = vadd.f32 %v4090, %v8251
        %v8253 = vpop.f32.mrf.mxu0
        %8254 = vmatprep.mubr.f32.mxu0 0.0
        %8255 = vmatmul.mubr.f32.gmra.mxu0 %v6341
        %v8256 = vpop.f32.mrf.mxu0
        %v8257 = vadd.f32 %v4095, %v8256
        %v8258 = vpop.f32.mrf.mxu0
        %8259 = vmatprep.mubr.f32.mxu0 0.0
        %8260 = vmatmul.mubr.f32.gmra.mxu0 %v6344
        %v8261 = vpop.f32.mrf.mxu0
        %v8262 = vadd.f32 %v4100, %v8261
        %v8263 = vpop.f32.mrf.mxu0
        %8264 = vmatprep.mubr.f32.mxu0 0.0
        %8265 = vmatmul.mubr.f32.gmra.mxu0 %v6347
        %v8266 = vpop.f32.mrf.mxu0
        %v8267 = vadd.f32 %v4105, %v8266
        %v8268 = vpop.f32.mrf.mxu0
        %8269 = vmatprep.mubr.f32.mxu0 0.0
        %8270 = vmatmul.mubr.f32.gmra.mxu0 %v6350
        %v8271 = vpop.f32.mrf.mxu0
        %v8272 = vadd.f32 %v4110, %v8271
        %v8273 = vpop.f32.mrf.mxu0
        %8274 = vmatprep.mubr.f32.mxu0 0.0
        %8275 = vmatmul.mubr.f32.gmra.mxu0 %v6353
        %v8276 = vpop.f32.mrf.mxu0
        %v8277 = vadd.f32 %v4115, %v8276
        %v8278 = vpop.f32.mrf.mxu0
        %8279 = vmatprep.mubr.f32.mxu0 0.0
        %8280 = vmatmul.mubr.f32.gmra.mxu0 %v6356
        %v8281 = vpop.f32.mrf.mxu0
        %v8282 = vadd.f32 %v4120, %v8281
        %v8283 = vpop.f32.mrf.mxu0
        %8284 = vmatprep.mubr.f32.mxu0 0.0
        %8285 = vmatmul.mubr.f32.gmra.mxu0 %v6359
        %v8286 = vpop.f32.mrf.mxu0
        %v8287 = vadd.f32 %v4125, %v8286
        %v8288 = vpop.f32.mrf.mxu0
        %8289 = vmatprep.mubr.f32.mxu0 0.0
        %8290 = vmatmul.mubr.f32.gmra.mxu0 %v6362
        %v8291 = vpop.f32.mrf.mxu0
        %v8292 = vadd.f32 %v4130, %v8291
        %v8293 = vpop.f32.mrf.mxu0
        %8294 = vmatprep.mubr.f32.mxu0 0.0
        %8295 = vmatmul.mubr.f32.gmra.mxu0 %v6365
        %v8296 = vpop.f32.mrf.mxu0
        %v8297 = vadd.f32 %v4135, %v8296
        %v8298 = vpop.f32.mrf.mxu0
        %8299 = vmatprep.mubr.f32.mxu0 0.0
        %8300 = vmatmul.mubr.f32.gmra.mxu0 %v6368
        %v8301 = vpop.f32.mrf.mxu0
        %v8302 = vadd.f32 %v4140, %v8301
        %v8303 = vpop.f32.mrf.mxu0
        %8304 = vmatprep.mubr.f32.mxu0 0.0
        %8305 = vmatmul.mubr.f32.gmra.mxu0 %v6371
        %v8306 = vpop.f32.mrf.mxu0
        %v8307 = vadd.f32 %v4145, %v8306
        %v8308 = vpop.f32.mrf.mxu0
        %8309 = vmatprep.mubr.f32.mxu0 0.0
        %8310 = vmatmul.mubr.f32.gmra.mxu0 %v6374
        %v8311 = vpop.f32.mrf.mxu0
        %v8312 = vadd.f32 %v4150, %v8311
        %v8313 = vpop.f32.mrf.mxu0
        %8314 = vmatprep.mubr.f32.mxu0 0.0
        %8315 = vmatmul.mubr.f32.gmra.mxu0 %v6377
        %v8316 = vpop.f32.mrf.mxu0
        %v8317 = vadd.f32 %v4155, %v8316
        %v8318 = vpop.f32.mrf.mxu0
        %8319 = vmatprep.mubr.f32.mxu0 0.0
        %8320 = vmatmul.mubr.f32.gmra.mxu0 %v6380
        %v8321 = vpop.f32.mrf.mxu0
        %v8322 = vadd.f32 %v4160, %v8321
        %v8323 = vpop.f32.mrf.mxu0
        %8324 = vmatprep.mubr.f32.mxu0 0.0
        %8325 = vmatmul.mubr.f32.gmra.mxu0 %v6383
        %v8326 = vpop.f32.mrf.mxu0
        %v8327 = vadd.f32 %v4165, %v8326
        %v8328 = vpop.f32.mrf.mxu0
        %8329 = vmatprep.mubr.f32.mxu0 0.0
        %8330 = vmatmul.mubr.f32.gmra.mxu0 %v6386
        %v8331 = vpop.f32.mrf.mxu0
        %v8332 = vadd.f32 %v4170, %v8331
        %v8333 = vpop.f32.mrf.mxu0
        %8334 = vmatprep.mubr.f32.mxu0 0.0
        %8335 = vmatmul.mubr.f32.gmra.mxu0 %v6389
        %v8336 = vpop.f32.mrf.mxu0
        %v8337 = vadd.f32 %v4175, %v8336
        %v8338 = vpop.f32.mrf.mxu0
        %8339 = vmatprep.mubr.f32.mxu0 0.0
        %8340 = vmatmul.mubr.f32.gmra.mxu0 %v6392
        %v8341 = vpop.f32.mrf.mxu0
        %v8342 = vadd.f32 %v4180, %v8341
        %v8343 = vpop.f32.mrf.mxu0
        %8344 = vmatprep.mubr.f32.mxu0 0.0
        %8345 = vmatmul.mubr.f32.gmra.mxu0 %v6395
        %v8346 = vpop.f32.mrf.mxu0
        %v8347 = vadd.f32 %v4185, %v8346
        %v8348 = vpop.f32.mrf.mxu0
        %8349 = vmatprep.mubr.f32.mxu0 0.0
        %8350 = vmatmul.mubr.f32.gmra.mxu0 %v6398
        %v8351 = vpop.f32.mrf.mxu0
        %v8352 = vadd.f32 %v4190, %v8351
        %v8353 = vpop.f32.mrf.mxu0
        %8354 = vmatprep.mubr.f32.mxu0 0.0
        %8355 = vmatmul.mubr.f32.gmra.mxu0 %v6401
        %v8356 = vpop.f32.mrf.mxu0
        %v8357 = vadd.f32 %v4195, %v8356
        %v8358 = vpop.f32.mrf.mxu0
        %8359 = vmatprep.mubr.f32.mxu0 0.0
        %8360 = vmatmul.mubr.f32.gmra.mxu0 %v6404
        %v8361 = vpop.f32.mrf.mxu0
        %v8362 = vadd.f32 %v4200, %v8361
        %v8363 = vpop.f32.mrf.mxu0
        %8364 = vmatprep.mubr.f32.mxu0 0.0
        %8365 = vmatmul.mubr.f32.gmra.mxu0 %v6407
        %v8366 = vpop.f32.mrf.mxu0
        %v8367 = vadd.f32 %v4205, %v8366
        %v8368 = vpop.f32.mrf.mxu0
        %8369 = vmatprep.mubr.f32.mxu0 0.0
        %8370 = vmatmul.mubr.f32.gmra.mxu0 %v6410
        %v8371 = vpop.f32.mrf.mxu0
        %v8372 = vadd.f32 %v4210, %v8371
        %v8373 = vpop.f32.mrf.mxu0
        %8374 = vmatprep.mubr.f32.mxu0 0.0
        %8375 = vmatmul.mubr.f32.gmra.mxu0 %v6413
        %v8376 = vpop.f32.mrf.mxu0
        %v8377 = vadd.f32 %v4215, %v8376
        %v8378 = vpop.f32.mrf.mxu0
        %8379 = vmatprep.mubr.f32.mxu0 0.0
        %8380 = vmatmul.mubr.f32.gmra.mxu0 %v6416
        %v8381 = vpop.f32.mrf.mxu0
        %v8382 = vadd.f32 %v4220, %v8381
        %v8383 = vpop.f32.mrf.mxu0
        %8384 = vmatprep.mubr.f32.mxu0 0.0
        %8385 = vmatmul.mubr.f32.gmra.mxu0 %v6419
        %v8386 = vpop.f32.mrf.mxu0
        %v8387 = vadd.f32 %v4225, %v8386
        %v8388 = vpop.f32.mrf.mxu0
        %8389 = vmatprep.mubr.f32.mxu0 0.0
        %8390 = vmatmul.mubr.f32.gmra.mxu0 %v6422
        %v8391 = vpop.f32.mrf.mxu0
        %v8392 = vadd.f32 %v4230, %v8391
        %v8393 = vpop.f32.mrf.mxu0
        %8394 = vmatprep.mubr.f32.mxu0 0.0
        %8395 = vmatmul.mubr.f32.gmra.mxu0 %v6425
        %v8396 = vpop.f32.mrf.mxu0
        %v8397 = vadd.f32 %v4235, %v8396
        %v8398 = vpop.f32.mrf.mxu0
        %8399 = vmatprep.mubr.f32.mxu0 0.0
        %8400 = vmatmul.mubr.f32.gmra.mxu0 %v6428
        %v8401 = vpop.f32.mrf.mxu0
        %v8402 = vadd.f32 %v4240, %v8401
        %v8403 = vpop.f32.mrf.mxu0
        %8404 = vmatprep.mubr.f32.mxu0 0.0
        %8405 = vmatmul.mubr.f32.gmra.mxu0 %v6431
        %v8406 = vpop.f32.mrf.mxu0
        %v8407 = vadd.f32 %v4245, %v8406
        %v8408 = vpop.f32.mrf.mxu0
        %8409 = vmatprep.mubr.f32.mxu0 0.0
        %8410 = vmatmul.mubr.f32.gmra.mxu0 %v6434
        %v8411 = vpop.f32.mrf.mxu0
        %v8412 = vadd.f32 %v4250, %v8411
        %v8413 = vpop.f32.mrf.mxu0
        %8414 = vmatprep.mubr.f32.mxu0 0.0
        %8415 = vmatmul.mubr.f32.gmra.mxu0 %v6437
        %v8416 = vpop.f32.mrf.mxu0
        %v8417 = vadd.f32 %v4255, %v8416
        %v8418 = vpop.f32.mrf.mxu0
        %8419 = vmatprep.mubr.f32.mxu0 0.0
        %8420 = vmatmul.mubr.f32.gmra.mxu0 %v6440
        %v8421 = vpop.f32.mrf.mxu0
        %v8422 = vadd.f32 %v4260, %v8421
        %v8423 = vpop.f32.mrf.mxu0
        %8424 = vmatprep.mubr.f32.mxu0 0.0
        %8425 = vmatmul.mubr.f32.gmra.mxu0 %v6443
        %v8426 = vpop.f32.mrf.mxu0
        %v8427 = vadd.f32 %v4265, %v8426
        %v8428 = vpop.f32.mrf.mxu0
        %8429 = vmatprep.mubr.f32.mxu0 0.0
        %8430 = vmatmul.mubr.f32.gmra.mxu0 %v6446
        %v8431 = vpop.f32.mrf.mxu0
        %v8432 = vadd.f32 %v4270, %v8431
        %v8433 = vpop.f32.mrf.mxu0
        %8434 = vmatprep.mubr.f32.mxu0 0.0
        %8435 = vmatmul.mubr.f32.gmra.mxu0 %v6449
        %v8436 = vpop.f32.mrf.mxu0
        %v8437 = vadd.f32 %v4275, %v8436
        %v8438 = vpop.f32.mrf.mxu0
        %8439 = vmatprep.mubr.f32.mxu0 0.0
        %8440 = vmatmul.mubr.f32.gmra.mxu0 %v6452
        %v8441 = vpop.f32.mrf.mxu0
        %v8442 = vadd.f32 %v4280, %v8441
        %v8443 = vpop.f32.mrf.mxu0
        %8444 = vmatprep.mubr.f32.mxu0 0.0
        %8445 = vmatmul.mubr.f32.gmra.mxu0 %v6455
        %v8446 = vpop.f32.mrf.mxu0
        %v8447 = vadd.f32 %v4285, %v8446
        %v8448 = vpop.f32.mrf.mxu0
        %8449 = vmatprep.mubr.f32.mxu0 0.0
        %8450 = vmatmul.mubr.f32.gmra.mxu0 %v6458
        %v8451 = vpop.f32.mrf.mxu0
        %v8452 = vadd.f32 %v4290, %v8451
        %v8453 = vpop.f32.mrf.mxu0
        %8454 = vmatprep.mubr.f32.mxu0 0.0
        %8455 = vmatmul.mubr.f32.gmra.mxu0 %v6461
        %v8456 = vpop.f32.mrf.mxu0
        %v8457 = vadd.f32 %v4295, %v8456
        %v8458 = vpop.f32.mrf.mxu0
        %8459 = vmatprep.mubr.f32.mxu0 0.0
        %8460 = vmatmul.mubr.f32.gmra.mxu0 %v6464
        %v8461 = vpop.f32.mrf.mxu0
        %v8462 = vadd.f32 %v4300, %v8461
        %v8463 = vpop.f32.mrf.mxu0
        %8464 = vmatprep.mubr.f32.mxu0 0.0
        %8465 = vmatmul.mubr.f32.gmra.mxu0 %v6467
        %v8466 = vpop.f32.mrf.mxu0
        %v8467 = vadd.f32 %v4305, %v8466
        %v8468 = vpop.f32.mrf.mxu0
        %8469 = vmatprep.mubr.f32.mxu0 0.0
        %8470 = vmatmul.mubr.f32.gmra.mxu0 %v6470
        %v8471 = vpop.f32.mrf.mxu0
        %v8472 = vadd.f32 %v4310, %v8471
        %v8473 = vpop.f32.mrf.mxu0
        %8474 = vmatprep.mubr.f32.mxu0 0.0
        %8475 = vmatmul.mubr.f32.gmra.mxu0 %v6473
        %v8476 = vpop.f32.mrf.mxu0
        %v8477 = vadd.f32 %v4315, %v8476
        %v8478 = vpop.f32.mrf.mxu0
        %8479 = vmatprep.mubr.f32.mxu0 0.0
        %8480 = vmatmul.mubr.f32.gmra.mxu0 %v6476
        %v8481 = vpop.f32.mrf.mxu0
        %v8482 = vadd.f32 %v4320, %v8481
        %v8483 = vpop.f32.mrf.mxu0
        %8484 = vmatprep.mubr.f32.mxu0 0.0
        %8485 = vmatmul.mubr.f32.gmra.mxu0 %v6479
        %v8486 = vpop.f32.mrf.mxu0
        %v8487 = vadd.f32 %v4325, %v8486
        %v8488 = vpop.f32.mrf.mxu0
        %8489 = vmatprep.mubr.f32.mxu0 0.0
        %8490 = vmatmul.mubr.f32.gmra.mxu0 %v6482
        %v8491 = vpop.f32.mrf.mxu0
        %v8492 = vadd.f32 %v4330, %v8491
        %v8493 = vpop.f32.mrf.mxu0
        %8494 = vmatprep.mubr.f32.mxu0 0.0
        %8495 = vmatmul.mubr.f32.gmra.mxu0 %v6485
        %v8496 = vpop.f32.mrf.mxu0
        %v8497 = vadd.f32 %v4335, %v8496
        %v8498 = vpop.f32.mrf.mxu0
        %8499 = vmatprep.mubr.f32.mxu0 0.0
        %8500 = vmatmul.mubr.f32.gmra.mxu0 %v6488
        %v8501 = vpop.f32.mrf.mxu0
        %v8502 = vadd.f32 %v4340, %v8501
        %v8503 = vpop.f32.mrf.mxu0
        %8504 = vmatprep.mubr.f32.mxu0 0.0
        %8505 = vmatmul.mubr.f32.gmra.mxu0 %v6491
        %v8506 = vpop.f32.mrf.mxu0
        %v8507 = vadd.f32 %v4345, %v8506
        %v8508 = vpop.f32.mrf.mxu0
        %8509 = vmatprep.mubr.f32.mxu0 0.0
        %8510 = vmatmul.mubr.f32.gmra.mxu0 %v6494
        %v8511 = vpop.f32.mrf.mxu0
        %v8512 = vadd.f32 %v4350, %v8511
        %v8513 = vpop.f32.mrf.mxu0
        %8514 = vmatprep.mubr.f32.mxu0 0.0
        %8515 = vmatmul.mubr.f32.gmra.mxu0 %v6497
        %v8516 = vpop.f32.mrf.mxu0
        %v8517 = vadd.f32 %v4355, %v8516
        %v8518 = vpop.f32.mrf.mxu0
        %8519 = vmatprep.mubr.f32.mxu0 0.0
        %8520 = vmatmul.mubr.f32.gmra.mxu0 %v6500
        %v8521 = vpop.f32.mrf.mxu0
        %v8522 = vadd.f32 %v4360, %v8521
        %v8523 = vpop.f32.mrf.mxu0
        %8524 = vmatprep.mubr.f32.mxu0 0.0
        %8525 = vmatmul.mubr.f32.gmra.mxu0 %v6503
        %v8526 = vpop.f32.mrf.mxu0
        %v8527 = vadd.f32 %v4365, %v8526
        %v8528 = vpop.f32.mrf.mxu0
        %8529 = vmatprep.mubr.f32.mxu0 0.0
        %8530 = vmatmul.mubr.f32.gmra.mxu0 %v6506
        %v8531 = vpop.f32.mrf.mxu0
        %v8532 = vadd.f32 %v4370, %v8531
        %v8533 = vpop.f32.mrf.mxu0
        %8534 = vmatprep.mubr.f32.mxu0 0.0
        %8535 = vmatmul.mubr.f32.gmra.mxu0 %v6509
        %v8536 = vpop.f32.mrf.mxu0
        %v8537 = vadd.f32 %v4375, %v8536
        %v8538 = vpop.f32.mrf.mxu0
        %8539 = vmatprep.mubr.f32.mxu0 0.0
        %8540 = vmatmul.mubr.f32.gmra.mxu0 %v6512
        %v8541 = vpop.f32.mrf.mxu0
        %v8542 = vadd.f32 %v4380, %v8541
        %v8543 = vpop.f32.mrf.mxu0
        %8544 = vmatprep.mubr.f32.mxu0 0.0
        %8545 = vmatmul.mubr.f32.gmra.mxu0 %v6515
        %v8546 = vpop.f32.mrf.mxu0
        %v8547 = vadd.f32 %v4385, %v8546
        %v8548 = vpop.f32.mrf.mxu0
        %8549 = vmatprep.mubr.f32.mxu0 0.0
        %8550 = vmatmul.mubr.f32.gmra.mxu0 %v6518
        %v8551 = vpop.f32.mrf.mxu0
        %v8552 = vadd.f32 %v4390, %v8551
        %v8553 = vpop.f32.mrf.mxu0
        %8554 = vmatprep.mubr.f32.mxu0 0.0
        %8555 = vmatmul.mubr.f32.gmra.mxu0 %v6521
        %v8556 = vpop.f32.mrf.mxu0
        %v8557 = vadd.f32 %v4395, %v8556
        %v8558 = vpop.f32.mrf.mxu0
        %8559 = vmatprep.mubr.f32.mxu0 0.0
        %8560 = vmatmul.mubr.f32.gmra.mxu0 %v6524
        %v8561 = vpop.f32.mrf.mxu0
        %v8562 = vadd.f32 %v4400, %v8561
        %v8563 = vpop.f32.mrf.mxu0
        %8564 = vmatprep.mubr.f32.mxu0 0.0
        %8565 = vmatmul.mubr.f32.gmra.mxu0 %v6527
        %v8566 = vpop.f32.mrf.mxu0
        %v8567 = vadd.f32 %v4405, %v8566
        %v8568 = vpop.f32.mrf.mxu0
        %8569 = vmatprep.mubr.f32.mxu0 0.0
        %8570 = vmatmul.mubr.f32.gmra.mxu0 %v6530
        %v8571 = vpop.f32.mrf.mxu0
        %v8572 = vadd.f32 %v4410, %v8571
        %v8573 = vpop.f32.mrf.mxu0
        %8574 = vmatprep.mubr.f32.mxu0 0.0
        %8575 = vmatmul.mubr.f32.gmra.mxu0 %v6533
        %v8576 = vpop.f32.mrf.mxu0
        %v8577 = vadd.f32 %v4415, %v8576
        %v8578 = vpop.f32.mrf.mxu0
        %8579 = vmatprep.mubr.f32.mxu0 0.0
        %8580 = vmatmul.mubr.f32.gmra.mxu0 %v6536
        %v8581 = vpop.f32.mrf.mxu0
        %v8582 = vadd.f32 %v4420, %v8581
        %v8583 = vpop.f32.mrf.mxu0
        %8584 = vmatprep.mubr.f32.mxu0 0.0
        %8585 = vmatmul.mubr.f32.gmra.mxu0 %v6539
        %v8586 = vpop.f32.mrf.mxu0
        %v8587 = vadd.f32 %v4425, %v8586
        %v8588 = vpop.f32.mrf.mxu0
        %8589 = vmatprep.mubr.f32.mxu0 0.0
        %8590 = vmatmul.mubr.f32.gmra.mxu0 %v6542
        %v8591 = vpop.f32.mrf.mxu0
        %v8592 = vadd.f32 %v4430, %v8591
        %v8593 = vpop.f32.mrf.mxu0
        %8594 = vmatprep.mubr.f32.mxu0 0.0
        %8595 = vmatmul.mubr.f32.gmra.mxu0 %v6545
        %v8596 = vpop.f32.mrf.mxu0
        %v8597 = vadd.f32 %v4435, %v8596
        %v8598 = vpop.f32.mrf.mxu0
        %8599 = vmatprep.mubr.f32.mxu0 0.0
        %8600 = vmatmul.mubr.f32.gmra.mxu0 %v6548
        %v8601 = vpop.f32.mrf.mxu0
        %v8602 = vadd.f32 %v4440, %v8601
        %v8603 = vpop.f32.mrf.mxu0
        %8604 = vmatprep.mubr.f32.mxu0 0.0
        %8605 = vmatmul.mubr.f32.gmra.mxu0 %v6551
        %v8606 = vpop.f32.mrf.mxu0
        %v8607 = vadd.f32 %v4445, %v8606
        %v8608 = vpop.f32.mrf.mxu0
        %8609 = vmatprep.mubr.f32.mxu0 0.0
        %8610 = vmatmul.mubr.f32.gmra.mxu0 %v6554
        %v8611 = vpop.f32.mrf.mxu0
        %v8612 = vadd.f32 %v4450, %v8611
        %v8613 = vpop.f32.mrf.mxu0
        %8614 = vmatprep.mubr.f32.mxu0 0.0
        %8615 = vmatmul.mubr.f32.gmra.mxu0 %v6557
        %v8616 = vpop.f32.mrf.mxu0
        %v8617 = vadd.f32 %v4455, %v8616
        %v8618 = vpop.f32.mrf.mxu0
        %8619 = vmatprep.mubr.f32.mxu0 0.0
        %8620 = vmatmul.mubr.f32.gmra.mxu0 %v6560
        %v8621 = vpop.f32.mrf.mxu0
        %v8622 = vadd.f32 %v4460, %v8621
        %v8623 = vpop.f32.mrf.mxu0
        %8624 = vmatprep.mubr.f32.mxu0 0.0
        %8625 = vmatmul.mubr.f32.gmra.mxu0 %v6563
        %v8626 = vpop.f32.mrf.mxu0
        %v8627 = vadd.f32 %v4465, %v8626
        %v8628 = vpop.f32.mrf.mxu0
        %8629 = vmatprep.mubr.f32.mxu0 0.0
        %8630 = vmatmul.mubr.f32.gmra.mxu0 %v6566
        %v8631 = vpop.f32.mrf.mxu0
        %v8632 = vadd.f32 %v4470, %v8631
        %v8633 = vpop.f32.mrf.mxu0
        %8634 = vmatprep.mubr.f32.mxu0 0.0
        %8635 = vmatmul.mubr.f32.gmra.mxu0 %v6569
        %v8636 = vpop.f32.mrf.mxu0
        %v8637 = vadd.f32 %v4475, %v8636
        %v8638 = vpop.f32.mrf.mxu0
        %8639 = vmatprep.mubr.f32.mxu0 0.0
        %8640 = vmatmul.mubr.f32.gmra.mxu0 %v6572
        %v8641 = vpop.f32.mrf.mxu0
        %v8642 = vadd.f32 %v4480, %v8641
        %v8643 = vpop.f32.mrf.mxu0
        %8644 = vmatprep.mubr.f32.mxu0 0.0
        %8645 = vmatmul.mubr.f32.gmra.mxu0 %v6575
        %v8646 = vpop.f32.mrf.mxu0
        %v8647 = vadd.f32 %v4485, %v8646
        %v8648 = vpop.f32.mrf.mxu0
        %8649 = vmatprep.mubr.f32.mxu0 0.0
        %8650 = vmatmul.mubr.f32.gmra.mxu0 %v6578
        %v8651 = vpop.f32.mrf.mxu0
        %v8652 = vadd.f32 %v4490, %v8651
        %v8653 = vpop.f32.mrf.mxu0
        %8654 = vmatprep.mubr.f32.mxu0 0.0
        %8655 = vmatmul.mubr.f32.gmra.mxu0 %v6581
        %v8656 = vpop.f32.mrf.mxu0
        %v8657 = vadd.f32 %v4495, %v8656
        %v8658 = vpop.f32.mrf.mxu0
        %8659 = vmatprep.mubr.f32.mxu0 0.0
        %8660 = vmatmul.mubr.f32.gmra.mxu0 %v6584
        %v8661 = vpop.f32.mrf.mxu0
        %v8662 = vadd.f32 %v4500, %v8661
        %v8663 = vpop.f32.mrf.mxu0
        %8664 = vmatprep.mubr.f32.mxu0 0.0
        %8665 = vmatmul.mubr.f32.gmra.mxu0 %v6587
        %v8666 = vpop.f32.mrf.mxu0
        %v8667 = vadd.f32 %v4505, %v8666
        %v8668 = vpop.f32.mrf.mxu0
        %8669 = vmatprep.mubr.f32.mxu0 0.0
        %8670 = vmatmul.mubr.f32.gmra.mxu0 %v6590
        %v8671 = vpop.f32.mrf.mxu0
        %v8672 = vadd.f32 %v4510, %v8671
        %v8673 = vpop.f32.mrf.mxu0
        %8674 = vmatprep.mubr.f32.mxu0 0.0
        %8675 = vmatmul.mubr.f32.gmra.mxu0 %v6593
        %v8676 = vpop.f32.mrf.mxu0
        %v8677 = vadd.f32 %v4515, %v8676
        %v8678 = vpop.f32.mrf.mxu0
        %8679 = vmatprep.mubr.f32.mxu0 0.0
        %8680 = vmatmul.mubr.f32.gmra.mxu0 %v6596
        %v8681 = vpop.f32.mrf.mxu0
        %v8682 = vadd.f32 %v4520, %v8681
        %v8683 = vpop.f32.mrf.mxu0
        %8684 = vmatprep.mubr.f32.mxu0 0.0
        %8685 = vmatmul.mubr.f32.gmra.mxu0 %v6599
        %v8686 = vpop.f32.mrf.mxu0
        %v8687 = vadd.f32 %v4525, %v8686
        %v8688 = vpop.f32.mrf.mxu0
        %8689 = vmatprep.mubr.f32.mxu0 0.0
        %8690 = vmatmul.mubr.f32.gmra.mxu0 %v6602
        %v8691 = vpop.f32.mrf.mxu0
        %v8692 = vadd.f32 %v4530, %v8691
        %v8693 = vpop.f32.mrf.mxu0
        %8694 = vmatprep.mubr.f32.mxu0 0.0
        %8695 = vmatmul.mubr.f32.gmra.mxu0 %v6605
        %v8696 = vpop.f32.mrf.mxu0
        %v8697 = vadd.f32 %v4535, %v8696
        %v8698 = vpop.f32.mrf.mxu0
        %8699 = vmatprep.mubr.f32.mxu0 0.0
        %8700 = vmatmul.mubr.f32.gmra.mxu0 %v6608
        %v8701 = vpop.f32.mrf.mxu0
        %v8702 = vadd.f32 %v4540, %v8701
        %v8703 = vpop.f32.mrf.mxu0
        %8704 = vmatprep.mubr.f32.mxu0 0.0
        %8705 = vmatmul.mubr.f32.gmra.mxu0 %v6611
        %v8706 = vpop.f32.mrf.mxu0
        %v8707 = vadd.f32 %v4545, %v8706
        %v8708 = vpop.f32.mrf.mxu0
        %8709 = vmatprep.mubr.f32.mxu0 0.0
        %8710 = vmatmul.mubr.f32.gmra.mxu0 %v6614
        %v8711 = vpop.f32.mrf.mxu0
        %v8712 = vadd.f32 %v4550, %v8711
        %v8713 = vpop.f32.mrf.mxu0
        %8714 = vmatprep.mubr.f32.mxu0 0.0
        %8715 = vmatmul.mubr.f32.gmra.mxu0 %v6617
        %v8716 = vpop.f32.mrf.mxu0
        %v8717 = vadd.f32 %v4555, %v8716
        %v8718 = vpop.f32.mrf.mxu0
        %8719 = vmatprep.mubr.f32.mxu0 0.0
        %8720 = vmatmul.mubr.f32.gmra.mxu0 %v6620
        %v8721 = vpop.f32.mrf.mxu0
        %v8722 = vadd.f32 %v4560, %v8721
        %v8723 = vpop.f32.mrf.mxu0
        %8724 = vmatprep.mubr.f32.mxu0 0.0
        %8725 = vmatmul.mubr.f32.gmra.mxu0 %v6623
        %v8726 = vpop.f32.mrf.mxu0
        %v8727 = vadd.f32 %v4565, %v8726
        %v8728 = vpop.f32.mrf.mxu0
        %8729 = vmatprep.mubr.f32.mxu0 0.0
        %8730 = vmatmul.mubr.f32.gmra.mxu0 %v6626
        %v8731 = vpop.f32.mrf.mxu0
        %v8732 = vadd.f32 %v4570, %v8731
        %v8733 = vpop.f32.mrf.mxu0
        %8734 = vmatprep.mubr.f32.mxu0 0.0
        %8735 = vmatmul.mubr.f32.gmra.mxu0 %v6629
        %v8736 = vpop.f32.mrf.mxu0
        %v8737 = vadd.f32 %v4575, %v8736
        %v8738 = vpop.f32.mrf.mxu0
        %8739 = vmatprep.mubr.f32.mxu0 0.0
        %8740 = vmatmul.mubr.f32.gmra.mxu0 %v6632
        %v8741 = vpop.f32.mrf.mxu0
        %v8742 = vadd.f32 %v4580, %v8741
        %v8743 = vpop.f32.mrf.mxu0
        %8744 = vmatprep.mubr.f32.mxu0 0.0
        %8745 = vmatmul.mubr.f32.gmra.mxu0 %v6635
        %v8746 = vpop.f32.mrf.mxu0
        %v8747 = vadd.f32 %v4585, %v8746
        %v8748 = vpop.f32.mrf.mxu0
        %8749 = vmatprep.mubr.f32.mxu0 0.0
        %8750 = vmatmul.mubr.f32.gmra.mxu0 %v6638
        %v8751 = vpop.f32.mrf.mxu0
        %v8752 = vadd.f32 %v4590, %v8751
        %v8753 = vpop.f32.mrf.mxu0
        %8754 = vmatprep.mubr.f32.mxu0 0.0
        %8755 = vmatmul.mubr.f32.gmra.mxu0 %v6641
        %v8756 = vpop.f32.mrf.mxu0
        %v8757 = vadd.f32 %v4595, %v8756
        %v8758 = vpop.f32.mrf.mxu0
        %8759 = vmatprep.mubr.f32.mxu0 0.0
        %8760 = vmatmul.mubr.f32.gmra.mxu0 %v6644
        %v8761 = vpop.f32.mrf.mxu0
        %v8762 = vadd.f32 %v4600, %v8761
        %v8763 = vpop.f32.mrf.mxu0
        %8764 = vmatprep.mubr.f32.mxu0 0.0
        %8765 = vmatmul.mubr.f32.gmra.mxu0 %v6647
        %v8766 = vpop.f32.mrf.mxu0
        %v8767 = vadd.f32 %v4605, %v8766
        %v8768 = vpop.f32.mrf.mxu0
        %8769 = vmatprep.mubr.f32.mxu0 0.0
        %8770 = vmatmul.mubr.f32.gmra.mxu0 %v6650
        %v8771 = vpop.f32.mrf.mxu0
        %v8772 = vadd.f32 %v4610, %v8771
        %v8773 = vpop.f32.mrf.mxu0
        %8774 = vmatprep.mubr.f32.mxu0 0.0
        %8775 = vmatmul.mubr.f32.gmra.mxu0 %v6653
        %v8776 = vpop.f32.mrf.mxu0
        %v8777 = vadd.f32 %v4615, %v8776
        %v8778 = vpop.f32.mrf.mxu0
        %8779 = vmatprep.mubr.f32.mxu0 0.0
        %8780 = vmatmul.mubr.f32.gmra.mxu0 %v6656
        %v8781 = vpop.f32.mrf.mxu0
        %v8782 = vadd.f32 %v4620, %v8781
        %v8783 = vpop.f32.mrf.mxu0
        %8784 = vmatprep.mubr.f32.mxu0 0.0
        %8785 = vmatmul.mubr.f32.gmra.mxu0 %v6659
        %v8786 = vpop.f32.mrf.mxu0
        %v8787 = vadd.f32 %v4625, %v8786
        %v8788 = vpop.f32.mrf.mxu0
        %8789 = vmatprep.mubr.f32.mxu0 0.0
        %8790 = vmatmul.mubr.f32.gmra.mxu0 %v6662
        %v8791 = vpop.f32.mrf.mxu0
        %v8792 = vadd.f32 %v4630, %v8791
        %v8793 = vpop.f32.mrf.mxu0
        %8794 = vmatprep.mubr.f32.mxu0 0.0
        %8795 = vmatmul.mubr.f32.gmra.mxu0 %v6665
        %v8796 = vpop.f32.mrf.mxu0
        %v8797 = vadd.f32 %v4635, %v8796
        %v8798 = vpop.f32.mrf.mxu0
        %8799 = vmatprep.mubr.f32.mxu0 0.0
        %8800 = vmatmul.mubr.f32.gmra.mxu0 %v6668
        %v8801 = vpop.f32.mrf.mxu0
        %v8802 = vadd.f32 %v4640, %v8801
        %v8803 = vpop.f32.mrf.mxu0
        %8804 = vmatprep.mubr.f32.mxu0 0.0
        %8805 = vmatmul.mubr.f32.gmra.mxu0 %v6671
        %v8806 = vpop.f32.mrf.mxu0
        %v8807 = vadd.f32 %v4645, %v8806
        %v8808 = vpop.f32.mrf.mxu0
        %8809 = vmatprep.mubr.f32.mxu0 0.0
        %8810 = vmatmul.mubr.f32.gmra.mxu0 %v6674
        %v8811 = vpop.f32.mrf.mxu0
        %v8812 = vadd.f32 %v4650, %v8811
        %v8813 = vpop.f32.mrf.mxu0
        %8814 = vmatprep.mubr.f32.mxu0 0.0
        %8815 = vmatmul.mubr.f32.gmra.mxu0 %v6677
        %v8816 = vpop.f32.mrf.mxu0
        %v8817 = vadd.f32 %v4655, %v8816
        %v8818 = vpop.f32.mrf.mxu0
        %8819 = vmatprep.mubr.f32.mxu0 0.0
        %8820 = vmatmul.mubr.f32.gmra.mxu0 %v6680
        %v8821 = vpop.f32.mrf.mxu0
        %v8822 = vadd.f32 %v4660, %v8821
        %v8823 = vpop.f32.mrf.mxu0
        %8824 = vmatprep.mubr.f32.mxu0 0.0
        %8825 = vmatmul.mubr.f32.gmra.mxu0 %v6683
        %v8826 = vpop.f32.mrf.mxu0
        %v8827 = vadd.f32 %v4665, %v8826
        %v8828 = vpop.f32.mrf.mxu0
        %8829 = vmatprep.mubr.f32.mxu0 0.0
        %8830 = vmatmul.mubr.f32.gmra.mxu0 %v6686
        %v8831 = vpop.f32.mrf.mxu0
        %v8832 = vadd.f32 %v4670, %v8831
        %v8833 = vpop.f32.mrf.mxu0
        %8834 = vmatprep.mubr.f32.mxu0 0.0
        %8835 = vmatmul.mubr.f32.gmra.mxu0 %v6689
        %v8836 = vpop.f32.mrf.mxu0
        %v8837 = vadd.f32 %v4675, %v8836
        %v8838 = vpop.f32.mrf.mxu0
        %8839 = vmatprep.mubr.f32.mxu0 0.0
        %8840 = vmatmul.mubr.f32.gmra.mxu0 %v6692
        %v8841 = vpop.f32.mrf.mxu0
        %v8842 = vadd.f32 %v4680, %v8841
        %v8843 = vpop.f32.mrf.mxu0
        %8844 = vmatprep.mubr.f32.mxu0 0.0
        %8845 = vmatmul.mubr.f32.gmra.mxu0 %v6695
        %v8846 = vpop.f32.mrf.mxu0
        %v8847 = vadd.f32 %v4685, %v8846
        %v8848 = vpop.f32.mrf.mxu0
        %8849 = vmatprep.mubr.f32.mxu0 0.0
        %8850 = vmatmul.mubr.f32.gmra.mxu0 %v6698
        %v8851 = vpop.f32.mrf.mxu0
        %v8852 = vadd.f32 %v4690, %v8851
        %v8853 = vpop.f32.mrf.mxu0
        %8854 = vmatprep.mubr.f32.mxu0 0.0
        %8855 = vmatmul.mubr.f32.gmra.mxu0 %v6701
        %v8856 = vpop.f32.mrf.mxu0
        %v8857 = vadd.f32 %v4695, %v8856
        %v8858 = vpop.f32.mrf.mxu0
        %8859 = vmatprep.mubr.f32.mxu0 0.0
        %8860 = vmatmul.mubr.f32.gmra.mxu0 %v6704
        %v8861 = vpop.f32.mrf.mxu0
        %v8862 = vadd.f32 %v4700, %v8861
        %v8863 = vpop.f32.mrf.mxu0
        %8864 = vmatprep.mubr.f32.mxu0 0.0
        %8865 = vmatmul.mubr.f32.gmra.mxu0 %v6707
        %v8866 = vpop.f32.mrf.mxu0
        %v8867 = vadd.f32 %v4705, %v8866
        %v8868 = vpop.f32.mrf.mxu0
        %8869 = vmatprep.mubr.f32.mxu0 0.0
        %8870 = vmatmul.mubr.f32.gmra.mxu0 %v6710
        %v8871 = vpop.f32.mrf.mxu0
        %v8872 = vadd.f32 %v4710, %v8871
        %v8873 = vpop.f32.mrf.mxu0
        %8874 = vmatprep.mubr.f32.mxu0 0.0
        %8875 = vmatmul.mubr.f32.gmra.mxu0 %v6713
        %v8876 = vpop.f32.mrf.mxu0
        %v8877 = vadd.f32 %v4715, %v8876
        %v8878 = vpop.f32.mrf.mxu0
        %8879 = vmatprep.mubr.f32.mxu0 0.0
        %8880 = vmatmul.mubr.f32.gmra.mxu0 %v6716
        %v8881 = vpop.f32.mrf.mxu0
        %v8882 = vadd.f32 %v4720, %v8881
        %v8883 = vpop.f32.mrf.mxu0
        %8884 = vmatprep.mubr.f32.mxu0 0.0
        %8885 = vmatmul.mubr.f32.gmra.mxu0 %v6719
        %v8886 = vpop.f32.mrf.mxu0
        %v8887 = vadd.f32 %v4725, %v8886
        %v8888 = vpop.f32.mrf.mxu0
        %8889 = vmatprep.mubr.f32.mxu0 0.0
        %8890 = vmatmul.mubr.f32.gmra.mxu0 %v6722
        %v8891 = vpop.f32.mrf.mxu0
        %v8892 = vadd.f32 %v4730, %v8891
        %v8893 = vpop.f32.mrf.mxu0
        %8894 = vmatprep.mubr.f32.mxu0 0.0
        %8895 = vmatmul.mubr.f32.gmra.mxu0 %v6725
        %v8896 = vpop.f32.mrf.mxu0
        %v8897 = vadd.f32 %v4735, %v8896
        %v8898 = vpop.f32.mrf.mxu0
        %8899 = vmatprep.mubr.f32.mxu0 0.0
        %8900 = vmatmul.mubr.f32.gmra.mxu0 %v6728
        %v8901 = vpop.f32.mrf.mxu0
        %v8902 = vadd.f32 %v4740, %v8901
        %v8903 = vpop.f32.mrf.mxu0
        %8904 = vmatprep.mubr.f32.mxu0 0.0
        %8905 = vmatmul.mubr.f32.gmra.mxu0 %v6731
        %v8906 = vpop.f32.mrf.mxu0
        %v8907 = vadd.f32 %v4745, %v8906
        %v8908 = vpop.f32.mrf.mxu0
        %8909 = vmatprep.mubr.f32.mxu0 0.0
        %8910 = vmatmul.mubr.f32.gmra.mxu0 %v6734
        %v8911 = vpop.f32.mrf.mxu0
        %v8912 = vadd.f32 %v4750, %v8911
        %v8913 = vpop.f32.mrf.mxu0
        %8914 = vmatprep.mubr.f32.mxu0 0.0
        %8915 = vmatmul.mubr.f32.gmra.mxu0 %v6737
        %v8916 = vpop.f32.mrf.mxu0
        %v8917 = vadd.f32 %v4755, %v8916
        %v8918 = vpop.f32.mrf.mxu0
        %8919 = vmatprep.mubr.f32.mxu0 0.0
        %8920 = vmatmul.mubr.f32.gmra.mxu0 %v6740
        %v8921 = vpop.f32.mrf.mxu0
        %v8922 = vadd.f32 %v4760, %v8921
        %v8923 = vpop.f32.mrf.mxu0
        %8924 = vmatprep.mubr.f32.mxu0 0.0
        %8925 = vmatmul.mubr.f32.gmra.mxu0 %v6743
        %v8926 = vpop.f32.mrf.mxu0
        %v8927 = vadd.f32 %v4765, %v8926
        %v8928 = vpop.f32.mrf.mxu0
        %8929 = vmatprep.mubr.f32.mxu0 0.0
        %8930 = vmatmul.mubr.f32.gmra.mxu0 %v6746
        %v8931 = vpop.f32.mrf.mxu0
        %v8932 = vadd.f32 %v4770, %v8931
        %v8933 = vpop.f32.mrf.mxu0
        %8934 = vmatprep.mubr.f32.mxu0 0.0
        %8935 = vmatmul.mubr.f32.gmra.mxu0 %v6749
        %v8936 = vpop.f32.mrf.mxu0
        %v8937 = vadd.f32 %v4775, %v8936
        %v8938 = vpop.f32.mrf.mxu0
        %8939 = vmatprep.mubr.f32.mxu0 0.0
        %8940 = vmatmul.mubr.f32.gmra.mxu0 %v6752
        %v8941 = vpop.f32.mrf.mxu0
        %v8942 = vadd.f32 %v4780, %v8941
        %v8943 = vpop.f32.mrf.mxu0
        %8944 = vmatprep.mubr.f32.mxu0 0.0
        %8945 = vmatmul.mubr.f32.gmra.mxu0 %v6755
        %v8946 = vpop.f32.mrf.mxu0
        %v8947 = vadd.f32 %v4785, %v8946
        %v8948 = vpop.f32.mrf.mxu0
        %8949 = vmatprep.mubr.f32.mxu0 0.0
        %8950 = vmatmul.mubr.f32.gmra.mxu0 %v6758
        %v8951 = vpop.f32.mrf.mxu0
        %v8952 = vadd.f32 %v4790, %v8951
        %v8953 = vpop.f32.mrf.mxu0
        %8954 = vmatprep.mubr.f32.mxu0 0.0
        %8955 = vmatmul.mubr.f32.gmra.mxu0 %v6761
        %v8956 = vpop.f32.mrf.mxu0
        %v8957 = vadd.f32 %v4795, %v8956
        %v8958 = vpop.f32.mrf.mxu0
        %8959 = vmatprep.mubr.f32.mxu0 0.0
        %8960 = vmatmul.mubr.f32.gmra.mxu0 %v6764
        %v8961 = vpop.f32.mrf.mxu0
        %v8962 = vadd.f32 %v4800, %v8961
        %v8963 = vpop.f32.mrf.mxu0
        %8964 = vmatprep.mubr.f32.mxu0 0.0
        %8965 = vmatmul.mubr.f32.gmra.mxu0 %v6767
        %v8966 = vpop.f32.mrf.mxu0
        %v8967 = vadd.f32 %v4805, %v8966
        %v8968 = vpop.f32.mrf.mxu0
        %8969 = vmatprep.mubr.f32.mxu0 0.0
        %8970 = vmatmul.mubr.f32.gmra.mxu0 %v6770
        %v8971 = vpop.f32.mrf.mxu0
        %v8972 = vadd.f32 %v4810, %v8971
        %v8973 = vpop.f32.mrf.mxu0
        %8974 = vmatprep.mubr.f32.mxu0 0.0
        %8975 = vmatmul.mubr.f32.gmra.mxu0 %v6773
        %v8976 = vpop.f32.mrf.mxu0
        %v8977 = vadd.f32 %v4815, %v8976
        %v8978 = vpop.f32.mrf.mxu0
        %8979 = vmatprep.mubr.f32.mxu0 0.0
        %8980 = vmatmul.mubr.f32.gmra.mxu0 %v6776
        %v8981 = vpop.f32.mrf.mxu0
        %v8982 = vadd.f32 %v4820, %v8981
        %v8983 = vpop.f32.mrf.mxu0
        %8984 = vmatprep.mubr.f32.mxu0 0.0
        %8985 = vmatmul.mubr.f32.gmra.mxu0 %v6779
        %v8986 = vpop.f32.mrf.mxu0
        %v8987 = vadd.f32 %v4825, %v8986
        %v8988 = vpop.f32.mrf.mxu0
        %8989 = vmatprep.mubr.f32.mxu0 0.0
        %8990 = vmatmul.mubr.f32.gmra.mxu0 %v6782
        %v8991 = vpop.f32.mrf.mxu0
        %v8992 = vadd.f32 %v4830, %v8991
        %v8993 = vpop.f32.mrf.mxu0
        %8994 = vmatprep.mubr.f32.mxu0 0.0
        %8995 = vmatmul.mubr.f32.gmra.mxu0 %v6785
        %v8996 = vpop.f32.mrf.mxu0
        %v8997 = vadd.f32 %v4835, %v8996
        %v8998 = vpop.f32.mrf.mxu0
        %8999 = vmatprep.mubr.f32.mxu0 0.0
        %9000 = vmatmul.mubr.f32.gmra.mxu0 %v6788
        %v9001 = vpop.f32.mrf.mxu0
        %v9002 = vadd.f32 %v4840, %v9001
        %v9003 = vpop.f32.mrf.mxu0
        %9004 = vmatprep.mubr.f32.mxu0 0.0
        %9005 = vmatmul.mubr.f32.gmra.mxu0 %v6791
        %v9006 = vpop.f32.mrf.mxu0
        %v9007 = vadd.f32 %v4845, %v9006
        %v9008 = vpop.f32.mrf.mxu0
        %9009 = vmatprep.mubr.f32.mxu0 0.0
        %9010 = vmatmul.mubr.f32.gmra.mxu0 %v6794
        %v9011 = vpop.f32.mrf.mxu0
        %v9012 = vadd.f32 %v4850, %v9011
        %v9013 = vpop.f32.mrf.mxu0
        %9014 = vmatprep.mubr.f32.mxu0 0.0
        %9015 = vmatmul.mubr.f32.gmra.mxu0 %v6797
        %v9016 = vpop.f32.mrf.mxu0
        %v9017 = vadd.f32 %v4855, %v9016
        %v9018 = vpop.f32.mrf.mxu0
        %9019 = vmatprep.mubr.f32.mxu0 0.0
        %9020 = vmatmul.mubr.f32.gmra.mxu0 %v6800
        %v9021 = vpop.f32.mrf.mxu0
        %v9022 = vadd.f32 %v4860, %v9021
        %v9023 = vpop.f32.mrf.mxu0
        %9024 = vmatprep.mubr.f32.mxu0 0.0
        %9025 = vmatmul.mubr.f32.gmra.mxu0 %v6803
        %v9026 = vpop.f32.mrf.mxu0
        %v9027 = vadd.f32 %v4865, %v9026
        %v9028 = vpop.f32.mrf.mxu0
        %9029 = vmatprep.mubr.f32.mxu0 0.0
        %9030 = vmatmul.mubr.f32.gmra.mxu0 %v6806
        %v9031 = vpop.f32.mrf.mxu0
        %v9032 = vadd.f32 %v4870, %v9031
        %v9033 = vpop.f32.mrf.mxu0
        %9034 = vmatprep.mubr.f32.mxu0 0.0
        %9035 = vmatmul.mubr.f32.gmra.mxu0 %v6809
        %v9036 = vpop.f32.mrf.mxu0
        %v9037 = vadd.f32 %v4875, %v9036
        %v9038 = vpop.f32.mrf.mxu0
        %9039 = vmatprep.mubr.f32.mxu0 0.0
        %9040 = vmatmul.mubr.f32.gmra.mxu0 %v6812
        %v9041 = vpop.f32.mrf.mxu0
        %v9042 = vadd.f32 %v4880, %v9041
        %v9043 = vpop.f32.mrf.mxu0
        %9044 = vmatprep.mubr.f32.mxu0 0.0
        %9045 = vmatmul.mubr.f32.gmra.mxu0 %v6815
        %v9046 = vpop.f32.mrf.mxu0
        %v9047 = vadd.f32 %v4885, %v9046
        %v9048 = vpop.f32.mrf.mxu0
        %9049 = vmatprep.mubr.f32.mxu0 0.0
        %9050 = vmatmul.mubr.f32.gmra.mxu0 %v6818
        %v9051 = vpop.f32.mrf.mxu0
        %v9052 = vadd.f32 %v4890, %v9051
        %v9053 = vpop.f32.mrf.mxu0
        %9054 = vmatprep.mubr.f32.mxu0 0.0
        %9055 = vmatmul.mubr.f32.gmra.mxu0 %v6821
        %v9056 = vpop.f32.mrf.mxu0
        %v9057 = vadd.f32 %v4895, %v9056
        %v9058 = vpop.f32.mrf.mxu0
        %9059 = vmatprep.mubr.f32.mxu0 0.0
        %9060 = vmatmul.mubr.f32.gmra.mxu0 %v6824
        %v9061 = vpop.f32.mrf.mxu0
        %v9062 = vadd.f32 %v4900, %v9061
        %v9063 = vpop.f32.mrf.mxu0
        %9064 = vmatprep.mubr.f32.mxu0 0.0
        %9065 = vmatmul.mubr.f32.gmra.mxu0 %v6827
        %v9066 = vpop.f32.mrf.mxu0
        %v9067 = vadd.f32 %v4905, %v9066
        %v9068 = vpop.f32.mrf.mxu0
        %9069 = vmatprep.mubr.f32.mxu0 0.0
        %9070 = vmatmul.mubr.f32.gmra.mxu0 %v6830
        %v9071 = vpop.f32.mrf.mxu0
        %v9072 = vadd.f32 %v4910, %v9071
        %v9073 = vpop.f32.mrf.mxu0
        %9074 = vmatprep.mubr.f32.mxu0 0.0
        %9075 = vmatmul.mubr.f32.gmra.mxu0 %v6833
        %v9076 = vpop.f32.mrf.mxu0
        %v9077 = vadd.f32 %v4915, %v9076
        %v9078 = vpop.f32.mrf.mxu0
        %9079 = vmatprep.mubr.f32.mxu0 0.0
        %9080 = vmatmul.mubr.f32.gmra.mxu0 %v6836
        %v9081 = vpop.f32.mrf.mxu0
        %v9082 = vadd.f32 %v4920, %v9081
        %v9083 = vpop.f32.mrf.mxu0
        %9084 = vmatprep.mubr.f32.mxu0 0.0
        %9085 = vmatmul.mubr.f32.gmra.mxu0 %v6839
        %v9086 = vpop.f32.mrf.mxu0
        %v9087 = vadd.f32 %v4925, %v9086
        %v9088 = vpop.f32.mrf.mxu0
        %9089 = vmatprep.mubr.f32.mxu0 0.0
        %9090 = vmatmul.mubr.f32.gmra.mxu0 %v6842
        %v9091 = vpop.f32.mrf.mxu0
        %v9092 = vadd.f32 %v4930, %v9091
        %v9093 = vpop.f32.mrf.mxu0
        %9094 = vmatprep.mubr.f32.mxu0 0.0
        %9095 = vmatmul.mubr.f32.gmra.mxu0 %v6845
        %v9096 = vpop.f32.mrf.mxu0
        %v9097 = vadd.f32 %v4935, %v9096
        %v9098 = vpop.f32.mrf.mxu0
        %9099 = vmatprep.mubr.f32.mxu0 0.0
        %9100 = vmatmul.mubr.f32.gmra.mxu0 %v6848
        %v9101 = vpop.f32.mrf.mxu0
        %v9102 = vadd.f32 %v4940, %v9101
        %v9103 = vpop.f32.mrf.mxu0
        %9104 = vmatprep.mubr.f32.mxu0 0.0
        %9105 = vmatmul.mubr.f32.gmra.mxu0 %v6851
        %v9106 = vpop.f32.mrf.mxu0
        %v9107 = vadd.f32 %v4945, %v9106
        %v9108 = vpop.f32.mrf.mxu0
        %9109 = vmatprep.mubr.f32.mxu0 0.0
        %9110 = vmatmul.mubr.f32.gmra.mxu0 %v6854
        %v9111 = vpop.f32.mrf.mxu0
        %v9112 = vadd.f32 %v4950, %v9111
        %v9113 = vpop.f32.mrf.mxu0
        %9114 = vmatprep.mubr.f32.mxu0 0.0
        %9115 = vmatmul.mubr.f32.gmra.mxu0 %v6857
        %v9116 = vpop.f32.mrf.mxu0
        %v9117 = vadd.f32 %v4955, %v9116
        %v9118 = vpop.f32.mrf.mxu0
        %9119 = vmatprep.mubr.f32.mxu0 0.0
        %9120 = vmatmul.mubr.f32.gmra.mxu0 %v6860
        %v9121 = vpop.f32.mrf.mxu0
        %v9122 = vadd.f32 %v4960, %v9121
        %v9123 = vpop.f32.mrf.mxu0
        %9124 = vmatprep.mubr.f32.mxu0 0.0
        %9125 = vmatmul.mubr.f32.gmra.mxu0 %v6863
        %v9126 = vpop.f32.mrf.mxu0
        %v9127 = vadd.f32 %v4965, %v9126
        %v9128 = vpop.f32.mrf.mxu0
        %9129 = vmatprep.mubr.f32.mxu0 0.0
        %9130 = vmatmul.mubr.f32.gmra.mxu0 %v6866
        %v9131 = vpop.f32.mrf.mxu0
        %v9132 = vadd.f32 %v4970, %v9131
        %v9133 = vpop.f32.mrf.mxu0
        %9134 = vmatprep.mubr.f32.mxu0 0.0
        %9135 = vmatmul.mubr.f32.gmra.mxu0 %v6869
        %v9136 = vpop.f32.mrf.mxu0
        %v9137 = vadd.f32 %v4975, %v9136
        %v9138 = vpop.f32.mrf.mxu0
        %9139 = vmatprep.mubr.f32.mxu0 0.0
        %9140 = vmatmul.mubr.f32.gmra.mxu0 %v6872
        %v9141 = vpop.f32.mrf.mxu0
        %v9142 = vadd.f32 %v4980, %v9141
        %v9143 = vpop.f32.mrf.mxu0
        %9144 = vmatprep.mubr.f32.mxu0 0.0
        %9145 = vmatmul.mubr.f32.gmra.mxu0 %v6875
        %v9146 = vpop.f32.mrf.mxu0
        %v9147 = vadd.f32 %v4985, %v9146
        %v9148 = vpop.f32.mrf.mxu0
        %9149 = vmatprep.mubr.f32.mxu0 0.0
        %9150 = vmatmul.mubr.f32.gmra.mxu0 %v6878
        %v9151 = vpop.f32.mrf.mxu0
        %v9152 = vadd.f32 %v4990, %v9151
        %v9153 = vpop.f32.mrf.mxu0
        %9154 = vmatprep.mubr.f32.mxu0 0.0
        %9155 = vmatmul.mubr.f32.gmra.mxu0 %v6881
        %v9156 = vpop.f32.mrf.mxu0
        %v9157 = vadd.f32 %v4995, %v9156
        %v9158 = vpop.f32.mrf.mxu0
        %9159 = vmatprep.mubr.f32.mxu0 0.0
        %9160 = vmatmul.mubr.f32.gmra.mxu0 %v6884
        %v9161 = vpop.f32.mrf.mxu0
        %v9162 = vadd.f32 %v5000, %v9161
        %v9163 = vpop.f32.mrf.mxu0
        %9164 = vmatprep.mubr.f32.mxu0 0.0
        %9165 = vmatmul.mubr.f32.gmra.mxu0 %v6887
        %v9166 = vpop.f32.mrf.mxu0
        %v9167 = vadd.f32 %v5005, %v9166
        %v9168 = vpop.f32.mrf.mxu0
        %9169 = vmatprep.mubr.f32.mxu0 0.0
        %9170 = vmatmul.mubr.f32.gmra.mxu0 %v6890
        %v9171 = vpop.f32.mrf.mxu0
        %v9172 = vadd.f32 %v5010, %v9171
        %v9173 = vpop.f32.mrf.mxu0
        %9174 = vmatprep.mubr.f32.mxu0 0.0
        %9175 = vmatmul.mubr.f32.gmra.mxu0 %v6893
        %v9176 = vpop.f32.mrf.mxu0
        %v9177 = vadd.f32 %v5015, %v9176
        %v9178 = vpop.f32.mrf.mxu0
        %9179 = vmatprep.mubr.f32.mxu0 0.0
        %9180 = vmatmul.mubr.f32.gmra.mxu0 %v6896
        %v9181 = vpop.f32.mrf.mxu0
        %v9182 = vadd.f32 %v5020, %v9181
        %v9183 = vpop.f32.mrf.mxu0
        %9184 = vmatprep.mubr.f32.mxu0 0.0
        %9185 = vmatmul.mubr.f32.gmra.mxu0 %v6899
        %v9186 = vpop.f32.mrf.mxu0
        %v9187 = vadd.f32 %v5025, %v9186
        %v9188 = vpop.f32.mrf.mxu0
        %9189 = vmatprep.mubr.f32.mxu0 0.0
        %9190 = vmatmul.mubr.f32.gmra.mxu0 %v6902
        %v9191 = vpop.f32.mrf.mxu0
        %v9192 = vadd.f32 %v5030, %v9191
        %v9193 = vpop.f32.mrf.mxu0
        %9194 = vmatprep.mubr.f32.mxu0 0.0
        %9195 = vmatmul.mubr.f32.gmra.mxu0 %v6905
        %v9196 = vpop.f32.mrf.mxu0
        %v9197 = vadd.f32 %v5035, %v9196
        %v9198 = vpop.f32.mrf.mxu0
        %9199 = vmatprep.mubr.f32.mxu0 0.0
        %9200 = vmatmul.mubr.f32.gmra.mxu0 %v6908
        %v9201 = vpop.f32.mrf.mxu0
        %v9202 = vadd.f32 %v5040, %v9201
        %v9203 = vpop.f32.mrf.mxu0
        %9204 = vmatprep.mubr.f32.mxu0 0.0
        %9205 = vmatmul.mubr.f32.gmra.mxu0 %v6911
        %v9206 = vpop.f32.mrf.mxu0
        %v9207 = vadd.f32 %v5045, %v9206
        %v9208 = vpop.f32.mrf.mxu0
        %9209 = vmatprep.mubr.f32.mxu0 0.0
        %9210 = vmatmul.mubr.f32.gmra.mxu0 %v6914
        %v9211 = vpop.f32.mrf.mxu0
        %v9212 = vadd.f32 %v5050, %v9211
        %v9213 = vpop.f32.mrf.mxu0
        %9214 = vmatprep.mubr.f32.mxu0 0.0
        %9215 = vmatmul.mubr.f32.gmra.mxu0 %v6917
        %v9216 = vpop.f32.mrf.mxu0
        %v9217 = vadd.f32 %v5055, %v9216
        %v9218 = vpop.f32.mrf.mxu0
        %9219 = vmatprep.mubr.f32.mxu0 0.0
        %9220 = vmatmul.mubr.f32.gmra.mxu0 %v6920
        %v9221 = vpop.f32.mrf.mxu0
        %v9222 = vadd.f32 %v5060, %v9221
        %v9223 = vpop.f32.mrf.mxu0
        %9224 = vmatprep.mubr.f32.mxu0 0.0
        %9225 = vmatmul.mubr.f32.gmra.mxu0 %v6923
        %v9226 = vpop.f32.mrf.mxu0
        %v9227 = vadd.f32 %v5065, %v9226
        %v9228 = vpop.f32.mrf.mxu0
        %9229 = vmatprep.mubr.f32.mxu0 0.0
        %9230 = vmatmul.mubr.f32.gmra.mxu0 %v6926
        %v9231 = vpop.f32.mrf.mxu0
        %v9232 = vadd.f32 %v5070, %v9231
        %v9233 = vpop.f32.mrf.mxu0
        %9234 = vmatprep.mubr.f32.mxu0 0.0
        %9235 = vmatmul.mubr.f32.gmra.mxu0 %v6929
        %v9236 = vpop.f32.mrf.mxu0
        %v9237 = vadd.f32 %v5075, %v9236
        %v9238 = vpop.f32.mrf.mxu0
        %9239 = vmatprep.mubr.f32.mxu0 0.0
        %9240 = vmatmul.mubr.f32.gmra.mxu0 %v6932
        %v9241 = vpop.f32.mrf.mxu0
        %v9242 = vadd.f32 %v5080, %v9241
        %v9243 = vpop.f32.mrf.mxu0
        %9244 = vmatprep.mubr.f32.mxu0 0.0
        %9245 = vmatmul.mubr.f32.gmra.mxu0 %v6935
        %v9246 = vpop.f32.mrf.mxu0
        %v9247 = vadd.f32 %v5085, %v9246
        %v9248 = vpop.f32.mrf.mxu0
        %9249 = vmatprep.mubr.f32.mxu0 0.0
        %9250 = vmatmul.mubr.f32.gmra.mxu0 %v6938
        %v9251 = vpop.f32.mrf.mxu0
        %v9252 = vadd.f32 %v5090, %v9251
        %v9253 = vpop.f32.mrf.mxu0
        %9254 = vmatprep.mubr.f32.mxu0 0.0
        %9255 = vmatmul.mubr.f32.gmra.mxu0 %v6941
        %v9256 = vpop.f32.mrf.mxu0
        %v9257 = vadd.f32 %v5095, %v9256
        %v9258 = vpop.f32.mrf.mxu0
        %9259 = vmatprep.mubr.f32.mxu0 0.0
        %9260 = vmatmul.mubr.f32.gmra.mxu0 %v6944
        %v9261 = vpop.f32.mrf.mxu0
        %v9262 = vadd.f32 %v5100, %v9261
        %v9263 = vpop.f32.mrf.mxu0
        %9264 = vmatprep.mubr.f32.mxu0 0.0
        %9265 = vmatmul.mubr.f32.gmra.mxu0 %v6947
        %v9266 = vpop.f32.mrf.mxu0
        %v9267 = vadd.f32 %v5105, %v9266
        %v9268 = vpop.f32.mrf.mxu0
        %9269 = vmatprep.mubr.f32.mxu0 0.0
        %9270 = vmatmul.mubr.f32.gmra.mxu0 %v6950
        %v9271 = vpop.f32.mrf.mxu0
        %v9272 = vadd.f32 %v5110, %v9271
        %v9273 = vpop.f32.mrf.mxu0
        %9274 = vmatprep.mubr.f32.mxu0 0.0
        %9275 = vmatmul.mubr.f32.gmra.mxu0 %v6953
        %v9276 = vpop.f32.mrf.mxu0
        %v9277 = vadd.f32 %v5115, %v9276
        %v9278 = vpop.f32.mrf.mxu0
        %9279 = vmatprep.mubr.f32.mxu0 0.0
        %9280 = vmatmul.mubr.f32.gmra.mxu0 %v6956
        %v9281 = vpop.f32.mrf.mxu0
        %v9282 = vadd.f32 %v5120, %v9281
        %v9283 = vpop.f32.mrf.mxu0
        %9284 = vmatprep.mubr.f32.mxu0 0.0
        %9285 = vmatmul.mubr.f32.gmra.mxu0 %v6959
        %v9286 = vpop.f32.mrf.mxu0
        %v9287 = vadd.f32 %v5125, %v9286
        %v9288 = vpop.f32.mrf.mxu0
        %9289 = vmatprep.mubr.f32.mxu0 0.0
        %9290 = vmatmul.mubr.f32.gmra.mxu0 %v6962
        %v9291 = vpop.f32.mrf.mxu0
        %v9292 = vadd.f32 %v5130, %v9291
        %v9293 = vpop.f32.mrf.mxu0
        %9294 = vmatprep.mubr.f32.mxu0 0.0
        %9295 = vmatmul.mubr.f32.gmra.mxu0 %v6965
        %v9296 = vpop.f32.mrf.mxu0
        %v9297 = vadd.f32 %v5135, %v9296
        %v9298 = vpop.f32.mrf.mxu0
        %9299 = vmatprep.mubr.f32.mxu0 0.0
        %9300 = vmatmul.mubr.f32.gmra.mxu0 %v6968
        %v9301 = vpop.f32.mrf.mxu0
        %v9302 = vadd.f32 %v5140, %v9301
        %v9303 = vpop.f32.mrf.mxu0
        %9304 = vmatprep.mubr.f32.mxu0 0.0
        %9305 = vmatmul.mubr.f32.gmra.mxu0 %v6971
        %v9306 = vpop.f32.mrf.mxu0
        %v9307 = vadd.f32 %v5145, %v9306
        %v9308 = vpop.f32.mrf.mxu0
        %9309 = vmatprep.mubr.f32.mxu0 0.0
        %9310 = vmatmul.mubr.f32.gmra.mxu0 %v6974
        %v9311 = vpop.f32.mrf.mxu0
        %v9312 = vadd.f32 %v5150, %v9311
        %v9313 = vpop.f32.mrf.mxu0
        %9314 = vmatprep.mubr.f32.mxu0 0.0
        %9315 = vmatmul.mubr.f32.gmra.mxu0 %v6977
        %v9316 = vpop.f32.mrf.mxu0
        %v9317 = vadd.f32 %v5155, %v9316
        %v9318 = vpop.f32.mrf.mxu0
        %9319 = vmatprep.mubr.f32.mxu0 0.0
        %9320 = vmatmul.mubr.f32.gmra.mxu0 %v6980
        %v9321 = vpop.f32.mrf.mxu0
        %v9322 = vadd.f32 %v5160, %v9321
        %v9323 = vpop.f32.mrf.mxu0
        %9324 = vmatprep.mubr.f32.mxu0 0.0
        %9325 = vmatmul.mubr.f32.gmra.mxu0 %v6983
        %v9326 = vpop.f32.mrf.mxu0
        %v9327 = vadd.f32 %v5165, %v9326
        %v9328 = vpop.f32.mrf.mxu0
        %9329 = vmatprep.mubr.f32.mxu0 0.0
        %9330 = vmatmul.mubr.f32.gmra.mxu0 %v6986
        %v9331 = vpop.f32.mrf.mxu0
        %v9332 = vadd.f32 %v5170, %v9331
        %v9333 = vpop.f32.mrf.mxu0
        %9334 = vmatprep.mubr.f32.mxu0 0.0
        %9335 = vmatmul.mubr.f32.gmra.mxu0 %v6989
        %v9336 = vpop.f32.mrf.mxu0
        %v9337 = vadd.f32 %v5175, %v9336
        %v9338 = vpop.f32.mrf.mxu0
        %9339 = vmatprep.mubr.f32.mxu0 0.0
        %9340 = vmatmul.mubr.f32.gmra.mxu0 %v6992
        %v9341 = vpop.f32.mrf.mxu0
        %v9342 = vadd.f32 %v5180, %v9341
        %v9343 = vpop.f32.mrf.mxu0
        %9344 = vmatprep.mubr.f32.mxu0 0.0
        %9345 = vmatmul.mubr.f32.gmra.mxu0 %v6995
        %v9346 = vpop.f32.mrf.mxu0
        %v9347 = vadd.f32 %v5185, %v9346
        %v9348 = vpop.f32.mrf.mxu0
        %9349 = vmatprep.mubr.f32.mxu0 0.0
        %9350 = vmatmul.mubr.f32.gmra.mxu0 %v6998
        %v9351 = vpop.f32.mrf.mxu0
        %v9352 = vadd.f32 %v5190, %v9351
        %v9353 = vpop.f32.mrf.mxu0
        %9354 = vmatprep.mubr.f32.mxu0 0.0
        %9355 = vmatmul.mubr.f32.gmra.mxu0 %v7001
        %v9356 = vpop.f32.mrf.mxu0
        %v9357 = vadd.f32 %v5195, %v9356
        %v9358 = vpop.f32.mrf.mxu0
        %9359 = vmatprep.mubr.f32.mxu0 0.0
        %9360 = vmatmul.mubr.f32.gmra.mxu0 %v7004
        %v9361 = vpop.f32.mrf.mxu0
        %v9362 = vadd.f32 %v5200, %v9361
        %v9363 = vpop.f32.mrf.mxu0
        %9364 = vmatprep.mubr.f32.mxu0 0.0
        %9365 = vmatmul.mubr.f32.gmra.mxu0 %v7007
        %v9366 = vpop.f32.mrf.mxu0
        %v9367 = vadd.f32 %v5205, %v9366
        %v9368 = vpop.f32.mrf.mxu0
        %9369 = vmatprep.mubr.f32.mxu0 0.0
        %9370 = vmatmul.mubr.f32.gmra.mxu0 %v7010
        %v9371 = vpop.f32.mrf.mxu0
        %v9372 = vadd.f32 %v5210, %v9371
        %v9373 = vpop.f32.mrf.mxu0
        %9374 = vmatprep.mubr.f32.mxu0 0.0
        %9375 = vmatmul.mubr.f32.gmra.mxu0 %v7013
        %v9376 = vpop.f32.mrf.mxu0
        %v9377 = vadd.f32 %v5215, %v9376
        %v9378 = vpop.f32.mrf.mxu0
        %9379 = vmatprep.mubr.f32.mxu0 0.0
        %9380 = vmatmul.mubr.f32.gmra.mxu0 %v7016
        %v9381 = vpop.f32.mrf.mxu0
        %v9382 = vadd.f32 %v5220, %v9381
        %v9383 = vpop.f32.mrf.mxu0
        %9384 = vmatprep.mubr.f32.mxu0 0.0
        %9385 = vmatmul.mubr.f32.gmra.mxu0 %v7019
        %v9386 = vpop.f32.mrf.mxu0
        %v9387 = vadd.f32 %v5225, %v9386
        %v9388 = vpop.f32.mrf.mxu0
        %9389 = vmatprep.mubr.f32.mxu0 0.0
        %9390 = vmatmul.mubr.f32.gmra.mxu0 %v7022
        %v9391 = vpop.f32.mrf.mxu0
        %v9392 = vadd.f32 %v5230, %v9391
        %v9393 = vpop.f32.mrf.mxu0
        %9394 = vmatprep.mubr.f32.mxu0 0.0
        %9395 = vmatmul.mubr.f32.gmra.mxu0 %v7025
        %v9396 = vpop.f32.mrf.mxu0
        %v9397 = vadd.f32 %v5235, %v9396
        %v9398 = vpop.f32.mrf.mxu0
        %9399 = vmatprep.mubr.f32.mxu0 0.0
        %9400 = vmatmul.mubr.f32.gmra.mxu0 %v7028
        %v9401 = vpop.f32.mrf.mxu0
        %v9402 = vadd.f32 %v5240, %v9401
        %v9403 = vpop.f32.mrf.mxu0
        %9404 = vmatprep.mubr.f32.mxu0 0.0
        %9405 = vmatmul.mubr.f32.gmra.mxu0 %v7031
        %v9406 = vpop.f32.mrf.mxu0
        %v9407 = vadd.f32 %v5245, %v9406
        %v9408 = vpop.f32.mrf.mxu0
        %9409 = vmatprep.mubr.f32.mxu0 0.0
        %9410 = vmatmul.mubr.f32.gmra.mxu0 %v7034
        %v9411 = vpop.f32.mrf.mxu0
        %v9412 = vadd.f32 %v5250, %v9411
        %v9413 = vpop.f32.mrf.mxu0
        %9414 = vmatprep.mubr.f32.mxu0 0.0
        %9415 = vmatmul.mubr.f32.gmra.mxu0 %v7037
        %v9416 = vpop.f32.mrf.mxu0
        %v9417 = vadd.f32 %v5255, %v9416
        %v9418 = vpop.f32.mrf.mxu0
        %9419 = vmatprep.mubr.f32.mxu0 0.0
        %9420 = vmatmul.mubr.f32.gmra.mxu0 %v7040
        %v9421 = vpop.f32.mrf.mxu0
        %v9422 = vadd.f32 %v5260, %v9421
        %v9423 = vpop.f32.mrf.mxu0
        %9424 = vmatprep.mubr.f32.mxu0 0.0
        %9425 = vmatmul.mubr.f32.gmra.mxu0 %v7043
        %v9426 = vpop.f32.mrf.mxu0
        %v9427 = vadd.f32 %v5265, %v9426
        %v9428 = vpop.f32.mrf.mxu0
        %9429 = vmatprep.mubr.f32.mxu0 0.0
        %9430 = vmatmul.mubr.f32.gmra.mxu0 %v7046
        %v9431 = vpop.f32.mrf.mxu0
        %v9432 = vadd.f32 %v5270, %v9431
        %v9433 = vpop.f32.mrf.mxu0
        %9434 = vmatprep.mubr.f32.mxu0 0.0
        %9435 = vmatmul.mubr.f32.gmra.mxu0 %v7049
        %v9436 = vpop.f32.mrf.mxu0
        %v9437 = vadd.f32 %v5275, %v9436
        %v9438 = vpop.f32.mrf.mxu0
        %9439 = vmatprep.mubr.f32.mxu0 0.0
        %9440 = vmatmul.mubr.f32.gmra.mxu0 %v7052
        %v9441 = vpop.f32.mrf.mxu0
        %v9442 = vadd.f32 %v5280, %v9441
        %v9443 = vpop.f32.mrf.mxu0
        %9444 = vmatprep.mubr.f32.mxu0 0.0
        %9445 = vmatmul.mubr.f32.gmra.mxu0 %v7055
        %v9446 = vpop.f32.mrf.mxu0
        %v9447 = vadd.f32 %v5285, %v9446
        %v9448 = vpop.f32.mrf.mxu0
        %9449 = vmatprep.mubr.f32.mxu0 0.0
        %9450 = vmatmul.mubr.f32.gmra.mxu0 %v7058
        %v9451 = vpop.f32.mrf.mxu0
        %v9452 = vadd.f32 %v5290, %v9451
        %v9453 = vpop.f32.mrf.mxu0
        %9454 = vmatprep.mubr.f32.mxu0 0.0
        %9455 = vmatmul.mubr.f32.gmra.mxu0 %v7061
        %v9456 = vpop.f32.mrf.mxu0
        %v9457 = vadd.f32 %v5295, %v9456
        %v9458 = vpop.f32.mrf.mxu0
        %9459 = vmatprep.mubr.f32.mxu0 0.0
        %9460 = vmatmul.mubr.f32.gmra.mxu0 %v7064
        %v9461 = vpop.f32.mrf.mxu0
        %v9462 = vadd.f32 %v5300, %v9461
        %v9463 = vpop.f32.mrf.mxu0
        %9464 = vmatprep.mubr.f32.mxu0 0.0
        %9465 = vmatmul.mubr.f32.gmra.mxu0 %v7067
        %v9466 = vpop.f32.mrf.mxu0
        %v9467 = vadd.f32 %v5305, %v9466
        %v9468 = vpop.f32.mrf.mxu0
        %9469 = vmatprep.mubr.f32.mxu0 0.0
        %9470 = vmatmul.mubr.f32.gmra.mxu0 %v7070
        %v9471 = vpop.f32.mrf.mxu0
        %v9472 = vadd.f32 %v5310, %v9471
        %v9473 = vpop.f32.mrf.mxu0
        %9474 = vmatprep.mubr.f32.mxu0 0.0
        %9475 = vmatmul.mubr.f32.gmra.mxu0 %v7073
        %v9476 = vpop.f32.mrf.mxu0
        %v9477 = vadd.f32 %v5315, %v9476
        %v9478 = vpop.f32.mrf.mxu0
        %9479 = vmatprep.mubr.f32.mxu0 0.0
        %9480 = vmatmul.mubr.f32.gmra.mxu0 %v7076
        %v9481 = vpop.f32.mrf.mxu0
        %v9482 = vadd.f32 %v5320, %v9481
        %v9483 = vpop.f32.mrf.mxu0
        %9484 = vmatprep.mubr.f32.mxu0 0.0
        %9485 = vmatmul.mubr.f32.gmra.mxu0 %v7079
        %v9486 = vpop.f32.mrf.mxu0
        %v9487 = vadd.f32 %v5325, %v9486
        %v9488 = vpop.f32.mrf.mxu0
        %9489 = vmatprep.mubr.f32.mxu0 0.0
        %9490 = vmatmul.mubr.f32.gmra.mxu0 %v7082
        %v9491 = vpop.f32.mrf.mxu0
        %v9492 = vadd.f32 %v5330, %v9491
        %v9493 = vpop.f32.mrf.mxu0
        %9494 = vmatprep.mubr.f32.mxu0 0.0
        %9495 = vmatmul.mubr.f32.gmra.mxu0 %v7085
        %v9496 = vpop.f32.mrf.mxu0
        %v9497 = vadd.f32 %v5335, %v9496
        %v9498 = vpop.f32.mrf.mxu0
        %9499 = vmatprep.mubr.f32.mxu0 0.0
        %9500 = vmatmul.mubr.f32.gmra.mxu0 %v7088
        %v9501 = vpop.f32.mrf.mxu0
        %v9502 = vadd.f32 %v5340, %v9501
        %v9503 = vpop.f32.mrf.mxu0
        %9504 = vmatprep.mubr.f32.mxu0 0.0
        %9505 = vmatmul.mubr.f32.gmra.mxu0 %v7091
        %v9506 = vpop.f32.mrf.mxu0
        %v9507 = vadd.f32 %v5345, %v9506
        %v9508 = vpop.f32.mrf.mxu0
        %9509 = vmatprep.mubr.f32.mxu0 0.0
        %9510 = vmatmul.mubr.f32.gmra.mxu0 %v7094
        %v9511 = vpop.f32.mrf.mxu0
        %v9512 = vadd.f32 %v5350, %v9511
        %v9513 = vpop.f32.mrf.mxu0
        %9514 = vmatprep.mubr.f32.mxu0 0.0
        %9515 = vmatmul.mubr.f32.gmra.mxu0 %v7097
        %v9516 = vpop.f32.mrf.mxu0
        %v9517 = vadd.f32 %v5355, %v9516
        %v9518 = vpop.f32.mrf.mxu0
        %9519 = vmatprep.mubr.f32.mxu0 0.0
        %9520 = vmatmul.mubr.f32.gmra.mxu0 %v7100
        %v9521 = vpop.f32.mrf.mxu0
        %v9522 = vadd.f32 %v5360, %v9521
        %v9523 = vpop.f32.mrf.mxu0
        %9524 = vmatprep.mubr.f32.mxu0 0.0
        %9525 = vmatmul.mubr.f32.gmra.mxu0 %v7103
        %v9526 = vpop.f32.mrf.mxu0
        %v9527 = vadd.f32 %v5365, %v9526
        %v9528 = vpop.f32.mrf.mxu0
        %9529 = vmatprep.mubr.f32.mxu0 0.0
        %9530 = vmatmul.mubr.f32.gmra.mxu0 %v7106
        %v9531 = vpop.f32.mrf.mxu0
        %v9532 = vadd.f32 %v5370, %v9531
        %v9533 = vpop.f32.mrf.mxu0
        %9534 = vmatprep.mubr.f32.mxu0 0.0
        %9535 = vmatmul.mubr.f32.gmra.mxu0 %v7109
        %v9536 = vpop.f32.mrf.mxu0
        %v9537 = vadd.f32 %v5375, %v9536
        %v9538 = vpop.f32.mrf.mxu0
        %9539 = vmatprep.mubr.f32.mxu0 0.0
        %9540 = vmatmul.mubr.f32.gmra.mxu0 %v7112
        %v9541 = vpop.f32.mrf.mxu0
        %v9542 = vadd.f32 %v5380, %v9541
        %v9543 = vpop.f32.mrf.mxu0
        %9544 = vmatprep.mubr.f32.mxu0 0.0
        %9545 = vmatmul.mubr.f32.gmra.mxu0 %v7115
        %v9546 = vpop.f32.mrf.mxu0
        %v9547 = vadd.f32 %v5385, %v9546
        %v9548 = vpop.f32.mrf.mxu0
        %9549 = vmatprep.mubr.f32.mxu0 0.0
        %9550 = vmatmul.mubr.f32.gmra.mxu0 %v7118
        %v9551 = vpop.f32.mrf.mxu0
        %v9552 = vadd.f32 %v5390, %v9551
        %v9553 = vpop.f32.mrf.mxu0
        %9554 = vmatprep.mubr.f32.mxu0 0.0
        %9555 = vmatmul.mubr.f32.gmra.mxu0 %v7121
        %v9556 = vpop.f32.mrf.mxu0
        %v9557 = vadd.f32 %v5395, %v9556
        %v9558 = vpop.f32.mrf.mxu0
        %9559 = vmatprep.mubr.f32.mxu0 0.0
        %9560 = vmatmul.mubr.f32.gmra.mxu0 %v7124
        %v9561 = vpop.f32.mrf.mxu0
        %v9562 = vadd.f32 %v5400, %v9561
        %v9563 = vpop.f32.mrf.mxu0
        %9564 = vmatprep.mubr.f32.mxu0 0.0
        %9565 = vmatmul.mubr.f32.gmra.mxu0 %v7127
        %v9566 = vpop.f32.mrf.mxu0
        %v9567 = vadd.f32 %v5405, %v9566
        %v9568 = vpop.f32.mrf.mxu0
        %9569 = vmatprep.mubr.f32.mxu0 0.0
        %9570 = vmatmul.mubr.f32.gmra.mxu0 %v7130
        %v9571 = vpop.f32.mrf.mxu0
        %v9572 = vadd.f32 %v5410, %v9571
        %v9573 = vpop.f32.mrf.mxu0
        %9574 = vmatprep.mubr.f32.mxu0 0.0
        %9575 = vmatmul.mubr.f32.gmra.mxu0 %v7133
        %v9576 = vpop.f32.mrf.mxu0
        %v9577 = vadd.f32 %v5415, %v9576
        %v9578 = vpop.f32.mrf.mxu0
        %9579 = vmatprep.mubr.f32.mxu0 0.0
        %9580 = vmatmul.mubr.f32.gmra.mxu0 %v7136
        %v9581 = vpop.f32.mrf.mxu0
        %v9582 = vadd.f32 %v5420, %v9581
        %v9583 = vpop.f32.mrf.mxu0
        %9584 = vmatprep.mubr.f32.mxu0 0.0
        %9585 = vmatmul.mubr.f32.gmra.mxu0 %v7139
        %v9586 = vpop.f32.mrf.mxu0
        %v9587 = vadd.f32 %v5425, %v9586
        %v9588 = vpop.f32.mrf.mxu0
        %9589 = vmatprep.mubr.f32.mxu0 0.0
        %9590 = vmatmul.mubr.f32.gmra.mxu0 %v7142
        %v9591 = vpop.f32.mrf.mxu0
        %v9592 = vadd.f32 %v5430, %v9591
        %v9593 = vpop.f32.mrf.mxu0
        %9594 = vmatprep.mubr.f32.mxu0 0.0
        %9595 = vmatmul.mubr.f32.gmra.mxu0 %v7145
        %v9596 = vpop.f32.mrf.mxu0
        %v9597 = vadd.f32 %v5435, %v9596
        %v9598 = vpop.f32.mrf.mxu0
        %9599 = vmatprep.mubr.f32.mxu0 0.0
        %9600 = vmatmul.mubr.f32.gmra.mxu0 %v7148
        %v9601 = vpop.f32.mrf.mxu0
        %v9602 = vadd.f32 %v5440, %v9601
        %v9603 = vpop.f32.mrf.mxu0
        %9604 = vmatprep.mubr.f32.mxu0 0.0
        %9605 = vmatmul.mubr.f32.gmra.mxu0 %v7151
        %v9606 = vpop.f32.mrf.mxu0
        %v9607 = vadd.f32 %v5445, %v9606
        %v9608 = vpop.f32.mrf.mxu0
        %9609 = vmatprep.mubr.f32.mxu0 0.0
        %9610 = vmatmul.mubr.f32.gmra.mxu0 %v7154
        %v9611 = vpop.f32.mrf.mxu0
        %v9612 = vadd.f32 %v5450, %v9611
        %v9613 = vpop.f32.mrf.mxu0
        %9614 = vmatprep.mubr.f32.mxu0 0.0
        %9615 = vmatmul.mubr.f32.gmra.mxu0 %v7157
        %v9616 = vpop.f32.mrf.mxu0
        %v9617 = vadd.f32 %v5455, %v9616
        %v9618 = vpop.f32.mrf.mxu0
        %9619 = vmatprep.mubr.f32.mxu0 0.0
        %9620 = vmatmul.mubr.f32.gmra.mxu0 %v7160
        %v9621 = vpop.f32.mrf.mxu0
        %v9622 = vadd.f32 %v5460, %v9621
        %v9623 = vpop.f32.mrf.mxu0
        %9624 = vmatprep.mubr.f32.mxu0 0.0
        %9625 = vmatmul.mubr.f32.gmra.mxu0 %v7163
        %v9626 = vpop.f32.mrf.mxu0
        %v9627 = vadd.f32 %v5465, %v9626
        %v9628 = vpop.f32.mrf.mxu0
        %9629 = vmatprep.mubr.f32.mxu0 0.0
        %9630 = vmatmul.mubr.f32.gmra.mxu0 %v7166
        %v9631 = vpop.f32.mrf.mxu0
        %v9632 = vadd.f32 %v5470, %v9631
        %v9633 = vpop.f32.mrf.mxu0
        %9634 = vmatprep.mubr.f32.mxu0 0.0
        %9635 = vmatmul.mubr.f32.gmra.mxu0 %v7169
        %v9636 = vpop.f32.mrf.mxu0
        %v9637 = vadd.f32 %v5475, %v9636
        %v9638 = vpop.f32.mrf.mxu0
        %9639 = vmatprep.mubr.f32.mxu0 0.0
        %9640 = vmatmul.mubr.f32.gmra.mxu0 %v7172
        %v9641 = vpop.f32.mrf.mxu0
        %v9642 = vadd.f32 %v5480, %v9641
        %v9643 = vpop.f32.mrf.mxu0
        %9644 = vmatprep.mubr.f32.mxu0 0.0
        %9645 = vmatmul.mubr.f32.gmra.mxu0 %v7175
        %v9646 = vpop.f32.mrf.mxu0
        %v9647 = vadd.f32 %v5485, %v9646
        %v9648 = vpop.f32.mrf.mxu0
        %9649 = vmatprep.mubr.f32.mxu0 0.0
        %9650 = vmatmul.mubr.f32.gmra.mxu0 %v7178
        %v9651 = vpop.f32.mrf.mxu0
        %v9652 = vadd.f32 %v5490, %v9651
        %v9653 = vpop.f32.mrf.mxu0
        %9654 = vmatprep.mubr.f32.mxu0 0.0
        %9655 = vmatmul.mubr.f32.gmra.mxu0 %v7181
        %v9656 = vpop.f32.mrf.mxu0
        %v9657 = vadd.f32 %v5495, %v9656
        %v9658 = vpop.f32.mrf.mxu0
        %9659 = vmatprep.mubr.f32.mxu0 0.0
        %9660 = vmatmul.mubr.f32.gmra.mxu0 %v7184
        %v9661 = vpop.f32.mrf.mxu0
        %v9662 = vadd.f32 %v5500, %v9661
        %v9663 = vpop.f32.mrf.mxu0
        %9664 = vmatprep.mubr.f32.mxu0 0.0
        %9665 = vmatmul.mubr.f32.gmra.mxu0 %v7187
        %v9666 = vpop.f32.mrf.mxu0
        %v9667 = vadd.f32 %v5505, %v9666
        %v9668 = vpop.f32.mrf.mxu0
        %9669 = vmatprep.mubr.f32.mxu0 0.0
        %9670 = vmatmul.mubr.f32.gmra.mxu0 %v7190
        %v9671 = vpop.f32.mrf.mxu0
        %v9672 = vadd.f32 %v5510, %v9671
        %v9673 = vpop.f32.mrf.mxu0
        %9674 = vmatprep.mubr.f32.mxu0 0.0
        %9675 = vmatmul.mubr.f32.gmra.mxu0 %v7193
        %v9676 = vpop.f32.mrf.mxu0
        %v9677 = vadd.f32 %v5515, %v9676
        %v9678 = vpop.f32.mrf.mxu0
        %9679 = vmatprep.mubr.f32.mxu0 0.0
        %9680 = vmatmul.mubr.f32.gmra.mxu0 %v7196
        %v9681 = vpop.f32.mrf.mxu0
        %v9682 = vadd.f32 %v5520, %v9681
        %v9683 = vpop.f32.mrf.mxu0
        %9684 = vmatprep.mubr.f32.mxu0 0.0
        %9685 = vmatmul.mubr.f32.gmra.mxu0 %v7199
        %v9686 = vpop.f32.mrf.mxu0
        %v9687 = vadd.f32 %v5525, %v9686
        %v9688 = vpop.f32.mrf.mxu0
        %9689 = vmatprep.mubr.f32.mxu0 0.0
        %9690 = vmatmul.mubr.f32.gmra.mxu0 %v7202
        %v9691 = vpop.f32.mrf.mxu0
        %v9692 = vadd.f32 %v5530, %v9691
        %v9693 = vpop.f32.mrf.mxu0
        %9694 = vmatprep.mubr.f32.mxu0 0.0
        %9695 = vmatmul.mubr.f32.gmra.mxu0 %v7205
        %v9696 = vpop.f32.mrf.mxu0
        %v9697 = vadd.f32 %v5535, %v9696
        %v9698 = vpop.f32.mrf.mxu0
        %9699 = vmatprep.mubr.f32.mxu0 0.0
        %9700 = vmatmul.mubr.f32.gmra.mxu0 %v7208
        %v9701 = vpop.f32.mrf.mxu0
        %v9702 = vadd.f32 %v5540, %v9701
        %v9703 = vpop.f32.mrf.mxu0
        %9704 = vmatprep.mubr.f32.mxu0 0.0
        %9705 = vmatmul.mubr.f32.gmra.mxu0 %v7211
        %v9706 = vpop.f32.mrf.mxu0
        %v9707 = vadd.f32 %v5545, %v9706
        %v9708 = vpop.f32.mrf.mxu0
        %9709 = vmatprep.mubr.f32.mxu0 0.0
        %9710 = vmatmul.mubr.f32.gmra.mxu0 %v7214
        %v9711 = vpop.f32.mrf.mxu0
        %v9712 = vadd.f32 %v5550, %v9711
        %v9713 = vpop.f32.mrf.mxu0
        %9714 = vmatprep.mubr.f32.mxu0 0.0
        %9715 = vmatmul.mubr.f32.gmra.mxu0 %v7217
        %v9716 = vpop.f32.mrf.mxu0
        %v9717 = vadd.f32 %v5555, %v9716
        %v9718 = vpop.f32.mrf.mxu0
        %9719 = vmatprep.mubr.f32.mxu0 0.0
        %9720 = vmatmul.mubr.f32.gmra.mxu0 %v7220
        %v9721 = vpop.f32.mrf.mxu0
        %v9722 = vadd.f32 %v5560, %v9721
        %v9723 = vpop.f32.mrf.mxu0
        %9724 = vmatprep.mubr.f32.mxu0 0.0
        %9725 = vmatmul.mubr.f32.gmra.mxu0 %v7223
        %v9726 = vpop.f32.mrf.mxu0
        %v9727 = vadd.f32 %v5565, %v9726
        %v9728 = vpop.f32.mrf.mxu0
        %9729 = vmatprep.mubr.f32.mxu0 0.0
        %9730 = vmatmul.mubr.f32.gmra.mxu0 %v7226
        %v9731 = vpop.f32.mrf.mxu0
        %v9732 = vadd.f32 %v5570, %v9731
        %v9733 = vpop.f32.mrf.mxu0
        %9734 = vmatprep.mubr.f32.mxu0 0.0
        %9735 = vmatmul.mubr.f32.gmra.mxu0 %v7229
        %v9736 = vpop.f32.mrf.mxu0
        %v9737 = vadd.f32 %v5575, %v9736
        %v9738 = vpop.f32.mrf.mxu0
        %9739 = vmatprep.mubr.f32.mxu0 0.0
        %9740 = vmatmul.mubr.f32.gmra.mxu0 %v7232
        %v9741 = vpop.f32.mrf.mxu0
        %v9742 = vadd.f32 %v5580, %v9741
        %v9743 = vpop.f32.mrf.mxu0
        %9744 = vmatprep.mubr.f32.mxu0 0.0
        %9745 = vmatmul.mubr.f32.gmra.mxu0 %v7235
        %v9746 = vpop.f32.mrf.mxu0
        %v9747 = vadd.f32 %v5585, %v9746
        %v9748 = vpop.f32.mrf.mxu0
        %9749 = vmatprep.mubr.f32.mxu0 0.0
        %9750 = vmatmul.mubr.f32.gmra.mxu0 %v7238
        %v9751 = vpop.f32.mrf.mxu0
        %v9752 = vadd.f32 %v5590, %v9751
        %v9753 = vpop.f32.mrf.mxu0
        %9754 = vmatprep.mubr.f32.mxu0 0.0
        %9755 = vmatmul.mubr.f32.gmra.mxu0 %v7241
        %v9756 = vpop.f32.mrf.mxu0
        %v9757 = vadd.f32 %v5595, %v9756
        %v9758 = vpop.f32.mrf.mxu0
        %9759 = vmatprep.mubr.f32.mxu0 0.0
        %9760 = vmatmul.mubr.f32.gmra.mxu0 %v7244
        %v9761 = vpop.f32.mrf.mxu0
        %v9762 = vadd.f32 %v5600, %v9761
        %v9763 = vpop.f32.mrf.mxu0
        %9764 = vmatprep.mubr.f32.mxu0 0.0
        %9765 = vmatmul.mubr.f32.gmra.mxu0 %v7247
        %v9766 = vpop.f32.mrf.mxu0
        %v9767 = vadd.f32 %v5605, %v9766
        %v9768 = vpop.f32.mrf.mxu0
        %9769 = vmatprep.mubr.f32.mxu0 0.0
        %9770 = vmatmul.mubr.f32.gmra.mxu0 %v7250
        %v9771 = vpop.f32.mrf.mxu0
        %v9772 = vadd.f32 %v5610, %v9771
        %v9773 = vpop.f32.mrf.mxu0
        %9774 = vmatprep.mubr.f32.mxu0 0.0
        %9775 = vmatmul.mubr.f32.gmra.mxu0 %v7253
        %v9776 = vpop.f32.mrf.mxu0
        %v9777 = vadd.f32 %v5615, %v9776
        %v9778 = vpop.f32.mrf.mxu0
        %9779 = vmatprep.mubr.f32.mxu0 0.0
        %9780 = vmatmul.mubr.f32.gmra.mxu0 %v7256
        %v9781 = vpop.f32.mrf.mxu0
        %v9782 = vadd.f32 %v5620, %v9781
        %v9783 = vpop.f32.mrf.mxu0
        %9784 = vmatprep.mubr.f32.mxu0 0.0
        %9785 = vmatmul.mubr.f32.gmra.mxu0 %v7259
        %v9786 = vpop.f32.mrf.mxu0
        %v9787 = vadd.f32 %v5625, %v9786
        %v9788 = vpop.f32.mrf.mxu0
        %9789 = vmatprep.mubr.f32.mxu0 0.0
        %9790 = vmatmul.mubr.f32.gmra.mxu0 %v7262
        %v9791 = vpop.f32.mrf.mxu0
        %v9792 = vadd.f32 %v5630, %v9791
        %v9793 = vpop.f32.mrf.mxu0
        %9794 = vmatprep.mubr.f32.mxu0 0.0
        %9795 = vmatmul.mubr.f32.gmra.mxu0 %v7265
        %v9796 = vpop.f32.mrf.mxu0
        %v9797 = vadd.f32 %v5635, %v9796
        %v9798 = vpop.f32.mrf.mxu0
        %9799 = vmatprep.mubr.f32.mxu0 0.0
        %9800 = vmatmul.mubr.f32.gmra.mxu0 %v7268
        %v9801 = vpop.f32.mrf.mxu0
        %v9802 = vadd.f32 %v5640, %v9801
        %v9803 = vpop.f32.mrf.mxu0
        %9804 = vmatprep.mubr.f32.mxu0 0.0
        %9805 = vmatmul.mubr.f32.gmra.mxu0 %v7271
        %v9806 = vpop.f32.mrf.mxu0
        %v9807 = vadd.f32 %v5645, %v9806
        %v9808 = vpop.f32.mrf.mxu0
        %9809 = vmatprep.mubr.f32.mxu0 0.0
        %9810 = vmatmul.mubr.f32.gmra.mxu0 %v7274
        %v9811 = vpop.f32.mrf.mxu0
        %v9812 = vadd.f32 %v5650, %v9811
        %v9813 = vpop.f32.mrf.mxu0
        %9814 = vmatprep.mubr.f32.mxu0 0.0
        %9815 = vmatmul.mubr.f32.gmra.mxu0 %v7277
        %v9816 = vpop.f32.mrf.mxu0
        %v9817 = vadd.f32 %v5655, %v9816
        %v9818 = vpop.f32.mrf.mxu0
        %9819 = vmatprep.mubr.f32.mxu0 0.0
        %9820 = vmatmul.mubr.f32.gmra.mxu0 %v7280
        %v9821 = vpop.f32.mrf.mxu0
        %v9822 = vadd.f32 %v5660, %v9821
        %v9823 = vpop.f32.mrf.mxu0
        %9824 = vmatprep.mubr.f32.mxu0 0.0
        %9825 = vmatmul.mubr.f32.gmra.mxu0 %v7283
        %v9826 = vpop.f32.mrf.mxu0
        %v9827 = vadd.f32 %v5665, %v9826
        %v9828 = vpop.f32.mrf.mxu0
        %9829 = vmatprep.mubr.f32.mxu0 0.0
        %9830 = vmatmul.mubr.f32.gmra.mxu0 %v7286
        %v9831 = vpop.f32.mrf.mxu0
        %v9832 = vadd.f32 %v5670, %v9831
        %v9833 = vpop.f32.mrf.mxu0
        %9834 = vmatprep.mubr.f32.mxu0 0.0
        %9835 = vmatmul.mubr.f32.gmra.mxu0 %v7289
        %v9836 = vpop.f32.mrf.mxu0
        %v9837 = vadd.f32 %v5675, %v9836
        %v9838 = vpop.f32.mrf.mxu0
        %9839 = vmatprep.mubr.f32.mxu0 0.0
        %9840 = vmatmul.mubr.f32.gmra.mxu0 %v7292
        %v9841 = vpop.f32.mrf.mxu0
        %v9842 = vadd.f32 %v5680, %v9841
        %v9843 = vpop.f32.mrf.mxu0
        %9844 = vmatprep.mubr.f32.mxu0 0.0
        %9845 = vmatmul.mubr.f32.gmra.mxu0 %v7295
        %v9846 = vpop.f32.mrf.mxu0
        %v9847 = vadd.f32 %v5685, %v9846
        %v9848 = vpop.f32.mrf.mxu0
        %9849 = vmatprep.mubr.f32.mxu0 0.0
        %9850 = vmatmul.mubr.f32.gmra.mxu0 %v7298
        %v9851 = vpop.f32.mrf.mxu0
        %v9852 = vadd.f32 %v5690, %v9851
        %v9853 = vpop.f32.mrf.mxu0
        %9854 = vmatprep.mubr.f32.mxu0 0.0
        %9855 = vmatmul.mubr.f32.gmra.mxu0 %v7301
        %v9856 = vpop.f32.mrf.mxu0
        %v9857 = vadd.f32 %v5695, %v9856
        %v9858 = vpop.f32.mrf.mxu0
        %9859 = vmatprep.mubr.f32.mxu0 0.0
        %9860 = vmatmul.mubr.f32.gmra.mxu0 %v7304
        %v9861 = vpop.f32.mrf.mxu0
        %v9862 = vadd.f32 %v5700, %v9861
        %v9863 = vpop.f32.mrf.mxu0
        %9864 = vmatprep.mubr.f32.mxu0 0.0
        %9865 = vmatmul.mubr.f32.gmra.mxu0 %v7307
        %v9866 = vpop.f32.mrf.mxu0
        %v9867 = vadd.f32 %v5705, %v9866
        %v9868 = vpop.f32.mrf.mxu0
        %9869 = vmatprep.mubr.f32.mxu0 0.0
        %9870 = vmatmul.mubr.f32.gmra.mxu0 %v7310
        %v9871 = vpop.f32.mrf.mxu0
        %v9872 = vadd.f32 %v5710, %v9871
        %v9873 = vpop.f32.mrf.mxu0
        %9874 = vmatprep.mubr.f32.mxu0 0.0
        %9875 = vmatmul.mubr.f32.gmra.mxu0 %v7313
        %v9876 = vpop.f32.mrf.mxu0
        %v9877 = vadd.f32 %v5715, %v9876
        %v9878 = vpop.f32.mrf.mxu0
        %9879 = vmatprep.mubr.f32.mxu0 0.0
        %9880 = vmatmul.mubr.f32.gmra.mxu0 %v7316
        %v9881 = vpop.f32.mrf.mxu0
        %v9882 = vadd.f32 %v5720, %v9881
        %v9883 = vpop.f32.mrf.mxu0
        %9884 = vmatprep.mubr.f32.mxu0 0.0
        %9885 = vmatmul.mubr.f32.gmra.mxu0 %v7319
        %v9886 = vpop.f32.mrf.mxu0
        %v9887 = vadd.f32 %v5725, %v9886
        %v9888 = vpop.f32.mrf.mxu0
        %9889 = vmatprep.mubr.f32.mxu0 0.0
        %9890 = vmatmul.mubr.f32.gmra.mxu0 %v7322
        %v9891 = vpop.f32.mrf.mxu0
        %v9892 = vadd.f32 %v5730, %v9891
        %v9893 = vpop.f32.mrf.mxu0
        %9894 = vmatprep.mubr.f32.mxu0 0.0
        %9895 = vmatmul.mubr.f32.gmra.mxu0 %v7325
        %v9896 = vpop.f32.mrf.mxu0
        %v9897 = vadd.f32 %v5735, %v9896
        %v9898 = vpop.f32.mrf.mxu0
        %9899 = vmatprep.mubr.f32.mxu0 0.0
        %9900 = vmatmul.mubr.f32.gmra.mxu0 %v7328
        %v9901 = vpop.f32.mrf.mxu0
        %v9902 = vadd.f32 %v5740, %v9901
        %v9903 = vpop.f32.mrf.mxu0
        %9904 = vmatprep.mubr.f32.mxu0 0.0
        %9905 = vmatmul.mubr.f32.gmra.mxu0 %v7331
        %v9906 = vpop.f32.mrf.mxu0
        %v9907 = vadd.f32 %v5745, %v9906
        %v9908 = vpop.f32.mrf.mxu0
        %9909 = vmatprep.mubr.f32.mxu0 0.0
        %9910 = vmatmul.mubr.f32.gmra.mxu0 %v7334
        %v9911 = vpop.f32.mrf.mxu0
        %v9912 = vadd.f32 %v5750, %v9911
        %v9913 = vpop.f32.mrf.mxu0
        %9914 = vmatprep.mubr.f32.mxu0 0.0
        %9915 = vmatmul.mubr.f32.gmra.mxu0 %v7337
        %v9916 = vpop.f32.mrf.mxu0
        %v9917 = vadd.f32 %v5755, %v9916
        %v9918 = vpop.f32.mrf.mxu0
        %9919 = vmatprep.mubr.f32.mxu0 0.0
        %9920 = vmatmul.mubr.f32.gmra.mxu0 %v7340
        %v9921 = vpop.f32.mrf.mxu0
        %v9922 = vadd.f32 %v5760, %v9921
        %v9923 = vpop.f32.mrf.mxu0
        %9924 = vmatprep.mubr.f32.mxu0 0.0
        %9925 = vmatmul.mubr.f32.gmra.mxu0 %v7343
        %v9926 = vpop.f32.mrf.mxu0
        %v9927 = vadd.f32 %v5765, %v9926
        %v9928 = vpop.f32.mrf.mxu0
        %9929 = vmatprep.mubr.f32.mxu0 0.0
        %9930 = vmatmul.mubr.f32.gmra.mxu0 %v7346
        %v9931 = vpop.f32.mrf.mxu0
        %v9932 = vadd.f32 %v5770, %v9931
        %v9933 = vpop.f32.mrf.mxu0
        %9934 = vmatprep.mubr.f32.mxu0 0.0
        %9935 = vmatmul.mubr.f32.gmra.mxu0 %v7349
        %v9936 = vpop.f32.mrf.mxu0
        %v9937 = vadd.f32 %v5775, %v9936
        %v9938 = vpop.f32.mrf.mxu0
        %9939 = vmatprep.mubr.f32.mxu0 0.0
        %9940 = vmatmul.mubr.f32.gmra.mxu0 %v7352
        %v9941 = vpop.f32.mrf.mxu0
        %v9942 = vadd.f32 %v5780, %v9941
        %v9943 = vpop.f32.mrf.mxu0
        %9944 = vmatprep.mubr.f32.mxu0 0.0
        %9945 = vmatmul.mubr.f32.gmra.mxu0 %v7355
        %v9946 = vpop.f32.mrf.mxu0
        %v9947 = vadd.f32 %v5785, %v9946
        %v9948 = vpop.f32.mrf.mxu0
        %9949 = vmatprep.mubr.f32.mxu0 0.0
        %9950 = vmatmul.mubr.f32.gmra.mxu0 %v7358
        %v9951 = vpop.f32.mrf.mxu0
        %v9952 = vadd.f32 %v5790, %v9951
        %v9953 = vpop.f32.mrf.mxu0
        %9954 = vmatprep.mubr.f32.mxu0 0.0
        %9955 = vmatmul.mubr.f32.gmra.mxu0 %v7361
        %v9956 = vpop.f32.mrf.mxu0
        %v9957 = vadd.f32 %v5795, %v9956
        %v9958 = vpop.f32.mrf.mxu0
        %9959 = vmatprep.mubr.f32.mxu0 0.0
        %9960 = vmatmul.mubr.f32.gmra.mxu0 %v7364
        %v9961 = vpop.f32.mrf.mxu0
        %v9962 = vadd.f32 %v5800, %v9961
        %v9963 = vpop.f32.mrf.mxu0
        %9964 = vmatprep.mubr.f32.mxu0 0.0
        %9965 = vmatmul.mubr.f32.gmra.mxu0 %v7367
        %v9966 = vpop.f32.mrf.mxu0
        %v9967 = vadd.f32 %v5805, %v9966
        %v9968 = vpop.f32.mrf.mxu0
        %9969 = vmatprep.mubr.f32.mxu0 0.0
        %9970 = vmatmul.mubr.f32.gmra.mxu0 %v7370
        %v9971 = vpop.f32.mrf.mxu0
        %v9972 = vadd.f32 %v5810, %v9971
        %v9973 = vpop.f32.mrf.mxu0
        %9974 = vmatprep.mubr.f32.mxu0 0.0
        %9975 = vmatmul.mubr.f32.gmra.mxu0 %v7373
        %v9976 = vpop.f32.mrf.mxu0
        %v9977 = vadd.f32 %v5815, %v9976
        %v9978 = vpop.f32.mrf.mxu0
        %9979 = vmatprep.mubr.f32.mxu0 0.0
        %9980 = vmatmul.mubr.f32.gmra.mxu0 %v7376
        %v9981 = vpop.f32.mrf.mxu0
        %v9982 = vadd.f32 %v5820, %v9981
        %v9983 = vpop.f32.mrf.mxu0
        %9984 = vmatprep.mubr.f32.mxu0 0.0
        %9985 = vmatmul.mubr.f32.gmra.mxu0 %v7379
        %v9986 = vpop.f32.mrf.mxu0
        %v9987 = vadd.f32 %v5825, %v9986
        %v9988 = vpop.f32.mrf.mxu0
        %9989 = vmatprep.mubr.f32.mxu0 0.0
        %9990 = vmatmul.mubr.f32.gmra.mxu0 %v7382
        %v9991 = vpop.f32.mrf.mxu0
        %v9992 = vadd.f32 %v5830, %v9991
        %v9993 = vpop.f32.mrf.mxu0
        %9994 = vmatprep.mubr.f32.mxu0 0.0
        %9995 = vmatmul.mubr.f32.gmra.mxu0 %v7385
        %v9996 = vpop.f32.mrf.mxu0
        %v9997 = vadd.f32 %v5835, %v9996
        %v9998 = vpop.f32.mrf.mxu0
        %9999 = vmatprep.mubr.f32.mxu0 0.0
        %10000 = vmatmul.mubr.f32.gmra.mxu0 %v7388
        %v10001 = vpop.f32.mrf.mxu0
        %v10002 = vadd.f32 %v5840, %v10001
        %v10003 = vpop.f32.mrf.mxu0
        %10004 = vmatprep.mubr.f32.mxu0 0.0
        %10005 = vmatmul.mubr.f32.gmra.mxu0 %v7391
        %v10006 = vpop.f32.mrf.mxu0
        %v10007 = vadd.f32 %v5845, %v10006
        %v10008 = vpop.f32.mrf.mxu0
        %10009 = vmatprep.mubr.f32.mxu0 0.0
        %10010 = vmatmul.mubr.f32.gmra.mxu0 %v7394
        %v10011 = vpop.f32.mrf.mxu0
        %v10012 = vadd.f32 %v5850, %v10011
        %v10013 = vpop.f32.mrf.mxu0
        %10014 = vmatprep.mubr.f32.mxu0 0.0
        %10015 = vmatmul.mubr.f32.gmra.mxu0 %v7397
        %v10016 = vpop.f32.mrf.mxu0
        %v10017 = vadd.f32 %v5855, %v10016
        %v10018 = vpop.f32.mrf.mxu0
        %10019 = vmatprep.mubr.f32.mxu0 0.0
        %10020 = vmatmul.mubr.f32.gmra.mxu0 %v7400
        %v10021 = vpop.f32.mrf.mxu0
        %v10022 = vadd.f32 %v5860, %v10021
        %v10023 = vpop.f32.mrf.mxu0
        %10024 = vmatprep.mubr.f32.mxu0 0.0
        %10025 = vmatmul.mubr.f32.gmra.mxu0 %v7403
        %v10026 = vpop.f32.mrf.mxu0
        %v10027 = vadd.f32 %v5865, %v10026
        %v10028 = vpop.f32.mrf.mxu0
        %10029 = vdwg.mxu0
        %10030 = vst [vmem:[%s340] sm:$0xff] %v7472
        %10031 = vst [vmem:[%s340 + $0x8] sm:$0xff] %v7477
        %10032 = vst [vmem:[%s340 + $0x10] sm:$0xff] %v7482
        %10033 = vst [vmem:[%s340 + $0x18] sm:$0xff] %v7487
        %10034 = vst [vmem:[%s340 + $0x20] sm:$0xff] %v7492
        %10035 = vst [vmem:[%s340 + $0x28] sm:$0xff] %v7497
        %10036 = vst [vmem:[%s340 + $0x30] sm:$0xff] %v7502
        %10037 = vst [vmem:[%s340 + $0x38] sm:$0xff] %v7507
        %10038 = vst [vmem:[%s340 + $0x40] sm:$0xff] %v7512
        %10039 = vst [vmem:[%s340 + $0x48] sm:$0xff] %v7517
        %10040 = vst [vmem:[%s340 + $0x50] sm:$0xff] %v7522
        %10041 = vst [vmem:[%s340 + $0x58] sm:$0xff] %v7527
        %10042 = vst [vmem:[%s340 + $0x60] sm:$0xff] %v7532
        %10043 = vst [vmem:[%s340 + $0x68] sm:$0xff] %v7537
        %10044 = vst [vmem:[%s340 + $0x70] sm:$0xff] %v7542
        %10045 = vst [vmem:[%s340 + $0x78] sm:$0xff] %v7547
        %10046 = vst [vmem:[%s340 + $0x80] sm:$0xff] %v7552
        %10047 = vst [vmem:[%s340 + $0x88] sm:$0xff] %v7557
        %10048 = vst [vmem:[%s340 + $0x90] sm:$0xff] %v7562
        %10049 = vst [vmem:[%s340 + $0x98] sm:$0xff] %v7567
        %10050 = vst [vmem:[%s340 + $0xa0] sm:$0xff] %v7572
        %10051 = vst [vmem:[%s340 + $0xa8] sm:$0xff] %v7577
        %10052 = vst [vmem:[%s340 + $0xb0] sm:$0xff] %v7582
        %10053 = vst [vmem:[%s340 + $0xb8] sm:$0xff] %v7587
        %10054 = vst [vmem:[%s340 + $0xc0] sm:$0xff] %v7592
        %10055 = vst [vmem:[%s340 + $0xc8] sm:$0xff] %v7597
        %10056 = vst [vmem:[%s340 + $0xd0] sm:$0xff] %v7602
        %10057 = vst [vmem:[%s340 + $0xd8] sm:$0xff] %v7607
        %10058 = vst [vmem:[%s340 + $0xe0] sm:$0xff] %v7612
        %10059 = vst [vmem:[%s340 + $0xe8] sm:$0xff] %v7617
        %10060 = vst [vmem:[%s340 + $0xf0] sm:$0xff] %v7622
        %10061 = vst [vmem:[%s340 + $0xf8] sm:$0xff] %v7627
        %10062 = vst [vmem:[%s340 + $0x100] sm:$0xff] %v7632
        %10063 = vst [vmem:[%s340 + $0x108] sm:$0xff] %v7637
        %10064 = vst [vmem:[%s340 + $0x110] sm:$0xff] %v7642
        %10065 = vst [vmem:[%s340 + $0x118] sm:$0xff] %v7647
        %10066 = vst [vmem:[%s340 + $0x120] sm:$0xff] %v7652
        %10067 = vst [vmem:[%s340 + $0x128] sm:$0xff] %v7657
        %10068 = vst [vmem:[%s340 + $0x130] sm:$0xff] %v7662
        %10069 = vst [vmem:[%s340 + $0x138] sm:$0xff] %v7667
        %10070 = vst [vmem:[%s340 + $0x140] sm:$0xff] %v7672
        %10071 = vst [vmem:[%s340 + $0x148] sm:$0xff] %v7677
        %10072 = vst [vmem:[%s340 + $0x150] sm:$0xff] %v7682
        %10073 = vst [vmem:[%s340 + $0x158] sm:$0xff] %v7687
        %10074 = vst [vmem:[%s340 + $0x160] sm:$0xff] %v7692
        %10075 = vst [vmem:[%s340 + $0x168] sm:$0xff] %v7697
        %10076 = vst [vmem:[%s340 + $0x170] sm:$0xff] %v7702
        %10077 = vst [vmem:[%s340 + $0x178] sm:$0xff] %v7707
        %10078 = vst [vmem:[%s340 + $0x180] sm:$0xff] %v7712
        %10079 = vst [vmem:[%s340 + $0x188] sm:$0xff] %v7717
        %10080 = vst [vmem:[%s340 + $0x190] sm:$0xff] %v7722
        %10081 = vst [vmem:[%s340 + $0x198] sm:$0xff] %v7727
        %10082 = vst [vmem:[%s340 + $0x1a0] sm:$0xff] %v7732
        %10083 = vst [vmem:[%s340 + $0x1a8] sm:$0xff] %v7737
        %10084 = vst [vmem:[%s340 + $0x1b0] sm:$0xff] %v7742
        %10085 = vst [vmem:[%s340 + $0x1b8] sm:$0xff] %v7747
        %10086 = vst [vmem:[%s340 + $0x1c0] sm:$0xff] %v7752
        %10087 = vst [vmem:[%s340 + $0x1c8] sm:$0xff] %v7757
        %10088 = vst [vmem:[%s340 + $0x1d0] sm:$0xff] %v7762
        %10089 = vst [vmem:[%s340 + $0x1d8] sm:$0xff] %v7767
        %10090 = vst [vmem:[%s340 + $0x1e0] sm:$0xff] %v7772
        %10091 = vst [vmem:[%s340 + $0x1e8] sm:$0xff] %v7777
        %10092 = vst [vmem:[%s340 + $0x1f0] sm:$0xff] %v7782
        %10093 = vst [vmem:[%s340 + $0x1f8] sm:$0xff] %v7787
        %10094 = vst [vmem:[%s340 + $0x200] sm:$0xff] %v7792
        %10095 = vst [vmem:[%s340 + $0x208] sm:$0xff] %v7797
        %10096 = vst [vmem:[%s340 + $0x210] sm:$0xff] %v7802
        %10097 = vst [vmem:[%s340 + $0x218] sm:$0xff] %v7807
        %10098 = vst [vmem:[%s340 + $0x220] sm:$0xff] %v7812
        %10099 = vst [vmem:[%s340 + $0x228] sm:$0xff] %v7817
        %10100 = vst [vmem:[%s340 + $0x230] sm:$0xff] %v7822
        %10101 = vst [vmem:[%s340 + $0x238] sm:$0xff] %v7827
        %10102 = vst [vmem:[%s340 + $0x240] sm:$0xff] %v7832
        %10103 = vst [vmem:[%s340 + $0x248] sm:$0xff] %v7837
        %10104 = vst [vmem:[%s340 + $0x250] sm:$0xff] %v7842
        %10105 = vst [vmem:[%s340 + $0x258] sm:$0xff] %v7847
        %10106 = vst [vmem:[%s340 + $0x260] sm:$0xff] %v7852
        %10107 = vst [vmem:[%s340 + $0x268] sm:$0xff] %v7857
        %10108 = vst [vmem:[%s340 + $0x270] sm:$0xff] %v7862
        %10109 = vst [vmem:[%s340 + $0x278] sm:$0xff] %v7867
        %10110 = vst [vmem:[%s340 + $0x280] sm:$0xff] %v7872
        %10111 = vst [vmem:[%s340 + $0x288] sm:$0xff] %v7877
        %10112 = vst [vmem:[%s340 + $0x290] sm:$0xff] %v7882
        %10113 = vst [vmem:[%s340 + $0x298] sm:$0xff] %v7887
        %10114 = vst [vmem:[%s340 + $0x2a0] sm:$0xff] %v7892
        %10115 = vst [vmem:[%s340 + $0x2a8] sm:$0xff] %v7897
        %10116 = vst [vmem:[%s340 + $0x2b0] sm:$0xff] %v7902
        %10117 = vst [vmem:[%s340 + $0x2b8] sm:$0xff] %v7907
        %10118 = vst [vmem:[%s340 + $0x2c0] sm:$0xff] %v7912
        %10119 = vst [vmem:[%s340 + $0x2c8] sm:$0xff] %v7917
        %10120 = vst [vmem:[%s340 + $0x2d0] sm:$0xff] %v7922
        %10121 = vst [vmem:[%s340 + $0x2d8] sm:$0xff] %v7927
        %10122 = vst [vmem:[%s340 + $0x2e0] sm:$0xff] %v7932
        %10123 = vst [vmem:[%s340 + $0x2e8] sm:$0xff] %v7937
        %10124 = vst [vmem:[%s340 + $0x2f0] sm:$0xff] %v7942
        %10125 = vst [vmem:[%s340 + $0x2f8] sm:$0xff] %v7947
        %10126 = vst [vmem:[%s340 + $0x300] sm:$0xff] %v7952
        %10127 = vst [vmem:[%s340 + $0x308] sm:$0xff] %v7957
        %10128 = vst [vmem:[%s340 + $0x310] sm:$0xff] %v7962
        %10129 = vst [vmem:[%s340 + $0x318] sm:$0xff] %v7967
        %10130 = vst [vmem:[%s340 + $0x320] sm:$0xff] %v7972
        %10131 = vst [vmem:[%s340 + $0x328] sm:$0xff] %v7977
        %10132 = vst [vmem:[%s340 + $0x330] sm:$0xff] %v7982
        %10133 = vst [vmem:[%s340 + $0x338] sm:$0xff] %v7987
        %10134 = vst [vmem:[%s340 + $0x340] sm:$0xff] %v7992
        %10135 = vst [vmem:[%s340 + $0x348] sm:$0xff] %v7997
        %10136 = vst [vmem:[%s340 + $0x350] sm:$0xff] %v8002
        %10137 = vst [vmem:[%s340 + $0x358] sm:$0xff] %v8007
        %10138 = vst [vmem:[%s340 + $0x360] sm:$0xff] %v8012
        %10139 = vst [vmem:[%s340 + $0x368] sm:$0xff] %v8017
        %10140 = vst [vmem:[%s340 + $0x370] sm:$0xff] %v8022
        %10141 = vst [vmem:[%s340 + $0x378] sm:$0xff] %v8027
        %10142 = vst [vmem:[%s340 + $0x380] sm:$0xff] %v8032
        %10143 = vst [vmem:[%s340 + $0x388] sm:$0xff] %v8037
        %10144 = vst [vmem:[%s340 + $0x390] sm:$0xff] %v8042
        %10145 = vst [vmem:[%s340 + $0x398] sm:$0xff] %v8047
        %10146 = vst [vmem:[%s340 + $0x3a0] sm:$0xff] %v8052
        %10147 = vst [vmem:[%s340 + $0x3a8] sm:$0xff] %v8057
        %10148 = vst [vmem:[%s340 + $0x3b0] sm:$0xff] %v8062
        %10149 = vst [vmem:[%s340 + $0x3b8] sm:$0xff] %v8067
        %10150 = vst [vmem:[%s340 + $0x3c0] sm:$0xff] %v8072
        %10151 = vst [vmem:[%s340 + $0x3c8] sm:$0xff] %v8077
        %10152 = vst [vmem:[%s340 + $0x3d0] sm:$0xff] %v8082
        %10153 = vst [vmem:[%s340 + $0x3d8] sm:$0xff] %v8087
        %10154 = vst [vmem:[%s340 + $0x3e0] sm:$0xff] %v8092
        %10155 = vst [vmem:[%s340 + $0x3e8] sm:$0xff] %v8097
        %10156 = vst [vmem:[%s340 + $0x3f0] sm:$0xff] %v8102
        %10157 = vst [vmem:[%s340 + $0x3f8] sm:$0xff] %v8107
        %10158 = vst [vmem:[%s340 + $0x400] sm:$0xff] %v8112
        %10159 = vst [vmem:[%s340 + $0x408] sm:$0xff] %v8117
        %10160 = vst [vmem:[%s340 + $0x410] sm:$0xff] %v8122
        %10161 = vst [vmem:[%s340 + $0x418] sm:$0xff] %v8127
        %10162 = vst [vmem:[%s340 + $0x420] sm:$0xff] %v8132
        %10163 = vst [vmem:[%s340 + $0x428] sm:$0xff] %v8137
        %10164 = vst [vmem:[%s340 + $0x430] sm:$0xff] %v8142
        %10165 = vst [vmem:[%s340 + $0x438] sm:$0xff] %v8147
        %10166 = vst [vmem:[%s340 + $0x440] sm:$0xff] %v8152
        %10167 = vst [vmem:[%s340 + $0x448] sm:$0xff] %v8157
        %10168 = vst [vmem:[%s340 + $0x450] sm:$0xff] %v8162
        %10169 = vst [vmem:[%s340 + $0x458] sm:$0xff] %v8167
        %10170 = vst [vmem:[%s340 + $0x460] sm:$0xff] %v8172
        %10171 = vst [vmem:[%s340 + $0x468] sm:$0xff] %v8177
        %10172 = vst [vmem:[%s340 + $0x470] sm:$0xff] %v8182
        %10173 = vst [vmem:[%s340 + $0x478] sm:$0xff] %v8187
        %10174 = vst [vmem:[%s340 + $0x480] sm:$0xff] %v8192
        %10175 = vst [vmem:[%s340 + $0x488] sm:$0xff] %v8197
        %10176 = vst [vmem:[%s340 + $0x490] sm:$0xff] %v8202
        %10177 = vst [vmem:[%s340 + $0x498] sm:$0xff] %v8207
        %10178 = vst [vmem:[%s340 + $0x4a0] sm:$0xff] %v8212
        %10179 = vst [vmem:[%s340 + $0x4a8] sm:$0xff] %v8217
        %10180 = vst [vmem:[%s340 + $0x4b0] sm:$0xff] %v8222
        %10181 = vst [vmem:[%s340 + $0x4b8] sm:$0xff] %v8227
        %10182 = vst [vmem:[%s340 + $0x4c0] sm:$0xff] %v8232
        %10183 = vst [vmem:[%s340 + $0x4c8] sm:$0xff] %v8237
        %10184 = vst [vmem:[%s340 + $0x4d0] sm:$0xff] %v8242
        %10185 = vst [vmem:[%s340 + $0x4d8] sm:$0xff] %v8247
        %10186 = vst [vmem:[%s340 + $0x4e0] sm:$0xff] %v8252
        %10187 = vst [vmem:[%s340 + $0x4e8] sm:$0xff] %v8257
        %10188 = vst [vmem:[%s340 + $0x4f0] sm:$0xff] %v8262
        %10189 = vst [vmem:[%s340 + $0x4f8] sm:$0xff] %v8267
        %10190 = vst [vmem:[%s340 + $0x500] sm:$0xff] %v8272
        %10191 = vst [vmem:[%s340 + $0x508] sm:$0xff] %v8277
        %10192 = vst [vmem:[%s340 + $0x510] sm:$0xff] %v8282
        %10193 = vst [vmem:[%s340 + $0x518] sm:$0xff] %v8287
        %10194 = vst [vmem:[%s340 + $0x520] sm:$0xff] %v8292
        %10195 = vst [vmem:[%s340 + $0x528] sm:$0xff] %v8297
        %10196 = vst [vmem:[%s340 + $0x530] sm:$0xff] %v8302
        %10197 = vst [vmem:[%s340 + $0x538] sm:$0xff] %v8307
        %10198 = vst [vmem:[%s340 + $0x540] sm:$0xff] %v8312
        %10199 = vst [vmem:[%s340 + $0x548] sm:$0xff] %v8317
        %10200 = vst [vmem:[%s340 + $0x550] sm:$0xff] %v8322
        %10201 = vst [vmem:[%s340 + $0x558] sm:$0xff] %v8327
        %10202 = vst [vmem:[%s340 + $0x560] sm:$0xff] %v8332
        %10203 = vst [vmem:[%s340 + $0x568] sm:$0xff] %v8337
        %10204 = vst [vmem:[%s340 + $0x570] sm:$0xff] %v8342
        %10205 = vst [vmem:[%s340 + $0x578] sm:$0xff] %v8347
        %10206 = vst [vmem:[%s340 + $0x580] sm:$0xff] %v8352
        %10207 = vst [vmem:[%s340 + $0x588] sm:$0xff] %v8357
        %10208 = vst [vmem:[%s340 + $0x590] sm:$0xff] %v8362
        %10209 = vst [vmem:[%s340 + $0x598] sm:$0xff] %v8367
        %10210 = vst [vmem:[%s340 + $0x5a0] sm:$0xff] %v8372
        %10211 = vst [vmem:[%s340 + $0x5a8] sm:$0xff] %v8377
        %10212 = vst [vmem:[%s340 + $0x5b0] sm:$0xff] %v8382
        %10213 = vst [vmem:[%s340 + $0x5b8] sm:$0xff] %v8387
        %10214 = vst [vmem:[%s340 + $0x5c0] sm:$0xff] %v8392
        %10215 = vst [vmem:[%s340 + $0x5c8] sm:$0xff] %v8397
        %10216 = vst [vmem:[%s340 + $0x5d0] sm:$0xff] %v8402
        %10217 = vst [vmem:[%s340 + $0x5d8] sm:$0xff] %v8407
        %10218 = vst [vmem:[%s340 + $0x5e0] sm:$0xff] %v8412
        %10219 = vst [vmem:[%s340 + $0x5e8] sm:$0xff] %v8417
        %10220 = vst [vmem:[%s340 + $0x5f0] sm:$0xff] %v8422
        %10221 = vst [vmem:[%s340 + $0x5f8] sm:$0xff] %v8427
        %10222 = vst [vmem:[%s340 + $0x600] sm:$0xff] %v8432
        %10223 = vst [vmem:[%s340 + $0x608] sm:$0xff] %v8437
        %10224 = vst [vmem:[%s340 + $0x610] sm:$0xff] %v8442
        %10225 = vst [vmem:[%s340 + $0x618] sm:$0xff] %v8447
        %10226 = vst [vmem:[%s340 + $0x620] sm:$0xff] %v8452
        %10227 = vst [vmem:[%s340 + $0x628] sm:$0xff] %v8457
        %10228 = vst [vmem:[%s340 + $0x630] sm:$0xff] %v8462
        %10229 = vst [vmem:[%s340 + $0x638] sm:$0xff] %v8467
        %10230 = vst [vmem:[%s340 + $0x640] sm:$0xff] %v8472
        %10231 = vst [vmem:[%s340 + $0x648] sm:$0xff] %v8477
        %10232 = vst [vmem:[%s340 + $0x650] sm:$0xff] %v8482
        %10233 = vst [vmem:[%s340 + $0x658] sm:$0xff] %v8487
        %10234 = vst [vmem:[%s340 + $0x660] sm:$0xff] %v8492
        %10235 = vst [vmem:[%s340 + $0x668] sm:$0xff] %v8497
        %10236 = vst [vmem:[%s340 + $0x670] sm:$0xff] %v8502
        %10237 = vst [vmem:[%s340 + $0x678] sm:$0xff] %v8507
        %10238 = vst [vmem:[%s340 + $0x680] sm:$0xff] %v8512
        %10239 = vst [vmem:[%s340 + $0x688] sm:$0xff] %v8517
        %10240 = vst [vmem:[%s340 + $0x690] sm:$0xff] %v8522
        %10241 = vst [vmem:[%s340 + $0x698] sm:$0xff] %v8527
        %10242 = vst [vmem:[%s340 + $0x6a0] sm:$0xff] %v8532
        %10243 = vst [vmem:[%s340 + $0x6a8] sm:$0xff] %v8537
        %10244 = vst [vmem:[%s340 + $0x6b0] sm:$0xff] %v8542
        %10245 = vst [vmem:[%s340 + $0x6b8] sm:$0xff] %v8547
        %10246 = vst [vmem:[%s340 + $0x6c0] sm:$0xff] %v8552
        %10247 = vst [vmem:[%s340 + $0x6c8] sm:$0xff] %v8557
        %10248 = vst [vmem:[%s340 + $0x6d0] sm:$0xff] %v8562
        %10249 = vst [vmem:[%s340 + $0x6d8] sm:$0xff] %v8567
        %10250 = vst [vmem:[%s340 + $0x6e0] sm:$0xff] %v8572
        %10251 = vst [vmem:[%s340 + $0x6e8] sm:$0xff] %v8577
        %10252 = vst [vmem:[%s340 + $0x6f0] sm:$0xff] %v8582
        %10253 = vst [vmem:[%s340 + $0x6f8] sm:$0xff] %v8587
        %10254 = vst [vmem:[%s340 + $0x700] sm:$0xff] %v8592
        %10255 = vst [vmem:[%s340 + $0x708] sm:$0xff] %v8597
        %10256 = vst [vmem:[%s340 + $0x710] sm:$0xff] %v8602
        %10257 = vst [vmem:[%s340 + $0x718] sm:$0xff] %v8607
        %10258 = vst [vmem:[%s340 + $0x720] sm:$0xff] %v8612
        %10259 = vst [vmem:[%s340 + $0x728] sm:$0xff] %v8617
        %10260 = vst [vmem:[%s340 + $0x730] sm:$0xff] %v8622
        %10261 = vst [vmem:[%s340 + $0x738] sm:$0xff] %v8627
        %10262 = vst [vmem:[%s340 + $0x740] sm:$0xff] %v8632
        %10263 = vst [vmem:[%s340 + $0x748] sm:$0xff] %v8637
        %10264 = vst [vmem:[%s340 + $0x750] sm:$0xff] %v8642
        %10265 = vst [vmem:[%s340 + $0x758] sm:$0xff] %v8647
        %10266 = vst [vmem:[%s340 + $0x760] sm:$0xff] %v8652
        %10267 = vst [vmem:[%s340 + $0x768] sm:$0xff] %v8657
        %10268 = vst [vmem:[%s340 + $0x770] sm:$0xff] %v8662
        %10269 = vst [vmem:[%s340 + $0x778] sm:$0xff] %v8667
        %10270 = vst [vmem:[%s340 + $0x780] sm:$0xff] %v8672
        %10271 = vst [vmem:[%s340 + $0x788] sm:$0xff] %v8677
        %10272 = vst [vmem:[%s340 + $0x790] sm:$0xff] %v8682
        %10273 = vst [vmem:[%s340 + $0x798] sm:$0xff] %v8687
        %10274 = vst [vmem:[%s340 + $0x7a0] sm:$0xff] %v8692
        %10275 = vst [vmem:[%s340 + $0x7a8] sm:$0xff] %v8697
        %10276 = vst [vmem:[%s340 + $0x7b0] sm:$0xff] %v8702
        %10277 = vst [vmem:[%s340 + $0x7b8] sm:$0xff] %v8707
        %10278 = vst [vmem:[%s340 + $0x7c0] sm:$0xff] %v8712
        %10279 = vst [vmem:[%s340 + $0x7c8] sm:$0xff] %v8717
        %10280 = vst [vmem:[%s340 + $0x7d0] sm:$0xff] %v8722
        %10281 = vst [vmem:[%s340 + $0x7d8] sm:$0xff] %v8727
        %10282 = vst [vmem:[%s340 + $0x7e0] sm:$0xff] %v8732
        %10283 = vst [vmem:[%s340 + $0x7e8] sm:$0xff] %v8737
        %10284 = vst [vmem:[%s340 + $0x7f0] sm:$0xff] %v8742
        %10285 = vst [vmem:[%s340 + $0x7f8] sm:$0xff] %v8747
        %10286 = vst [vmem:[%s340 + $0x800] sm:$0xff] %v8752
        %10287 = vst [vmem:[%s340 + $0x808] sm:$0xff] %v8757
        %10288 = vst [vmem:[%s340 + $0x810] sm:$0xff] %v8762
        %10289 = vst [vmem:[%s340 + $0x818] sm:$0xff] %v8767
        %10290 = vst [vmem:[%s340 + $0x820] sm:$0xff] %v8772
        %10291 = vst [vmem:[%s340 + $0x828] sm:$0xff] %v8777
        %10292 = vst [vmem:[%s340 + $0x830] sm:$0xff] %v8782
        %10293 = vst [vmem:[%s340 + $0x838] sm:$0xff] %v8787
        %10294 = vst [vmem:[%s340 + $0x840] sm:$0xff] %v8792
        %10295 = vst [vmem:[%s340 + $0x848] sm:$0xff] %v8797
        %10296 = vst [vmem:[%s340 + $0x850] sm:$0xff] %v8802
        %10297 = vst [vmem:[%s340 + $0x858] sm:$0xff] %v8807
        %10298 = vst [vmem:[%s340 + $0x860] sm:$0xff] %v8812
        %10299 = vst [vmem:[%s340 + $0x868] sm:$0xff] %v8817
        %10300 = vst [vmem:[%s340 + $0x870] sm:$0xff] %v8822
        %10301 = vst [vmem:[%s340 + $0x878] sm:$0xff] %v8827
        %10302 = vst [vmem:[%s340 + $0x880] sm:$0xff] %v8832
        %10303 = vst [vmem:[%s340 + $0x888] sm:$0xff] %v8837
        %10304 = vst [vmem:[%s340 + $0x890] sm:$0xff] %v8842
        %10305 = vst [vmem:[%s340 + $0x898] sm:$0xff] %v8847
        %10306 = vst [vmem:[%s340 + $0x8a0] sm:$0xff] %v8852
        %10307 = vst [vmem:[%s340 + $0x8a8] sm:$0xff] %v8857
        %10308 = vst [vmem:[%s340 + $0x8b0] sm:$0xff] %v8862
        %10309 = vst [vmem:[%s340 + $0x8b8] sm:$0xff] %v8867
        %10310 = vst [vmem:[%s340 + $0x8c0] sm:$0xff] %v8872
        %10311 = vst [vmem:[%s340 + $0x8c8] sm:$0xff] %v8877
        %10312 = vst [vmem:[%s340 + $0x8d0] sm:$0xff] %v8882
        %10313 = vst [vmem:[%s340 + $0x8d8] sm:$0xff] %v8887
        %10314 = vst [vmem:[%s340 + $0x8e0] sm:$0xff] %v8892
        %10315 = vst [vmem:[%s340 + $0x8e8] sm:$0xff] %v8897
        %10316 = vst [vmem:[%s340 + $0x8f0] sm:$0xff] %v8902
        %10317 = vst [vmem:[%s340 + $0x8f8] sm:$0xff] %v8907
        %10318 = vst [vmem:[%s340 + $0x900] sm:$0xff] %v8912
        %10319 = vst [vmem:[%s340 + $0x908] sm:$0xff] %v8917
        %10320 = vst [vmem:[%s340 + $0x910] sm:$0xff] %v8922
        %10321 = vst [vmem:[%s340 + $0x918] sm:$0xff] %v8927
        %10322 = vst [vmem:[%s340 + $0x920] sm:$0xff] %v8932
        %10323 = vst [vmem:[%s340 + $0x928] sm:$0xff] %v8937
        %10324 = vst [vmem:[%s340 + $0x930] sm:$0xff] %v8942
        %10325 = vst [vmem:[%s340 + $0x938] sm:$0xff] %v8947
        %10326 = vst [vmem:[%s340 + $0x940] sm:$0xff] %v8952
        %10327 = vst [vmem:[%s340 + $0x948] sm:$0xff] %v8957
        %10328 = vst [vmem:[%s340 + $0x950] sm:$0xff] %v8962
        %10329 = vst [vmem:[%s340 + $0x958] sm:$0xff] %v8967
        %10330 = vst [vmem:[%s340 + $0x960] sm:$0xff] %v8972
        %10331 = vst [vmem:[%s340 + $0x968] sm:$0xff] %v8977
        %10332 = vst [vmem:[%s340 + $0x970] sm:$0xff] %v8982
        %10333 = vst [vmem:[%s340 + $0x978] sm:$0xff] %v8987
        %10334 = vst [vmem:[%s340 + $0x980] sm:$0xff] %v8992
        %10335 = vst [vmem:[%s340 + $0x988] sm:$0xff] %v8997
        %10336 = vst [vmem:[%s340 + $0x990] sm:$0xff] %v9002
        %10337 = vst [vmem:[%s340 + $0x998] sm:$0xff] %v9007
        %10338 = vst [vmem:[%s340 + $0x9a0] sm:$0xff] %v9012
        %10339 = vst [vmem:[%s340 + $0x9a8] sm:$0xff] %v9017
        %10340 = vst [vmem:[%s340 + $0x9b0] sm:$0xff] %v9022
        %10341 = vst [vmem:[%s340 + $0x9b8] sm:$0xff] %v9027
        %10342 = vst [vmem:[%s340 + $0x9c0] sm:$0xff] %v9032
        %10343 = vst [vmem:[%s340 + $0x9c8] sm:$0xff] %v9037
        %10344 = vst [vmem:[%s340 + $0x9d0] sm:$0xff] %v9042
        %10345 = vst [vmem:[%s340 + $0x9d8] sm:$0xff] %v9047
        %10346 = vst [vmem:[%s340 + $0x9e0] sm:$0xff] %v9052
        %10347 = vst [vmem:[%s340 + $0x9e8] sm:$0xff] %v9057
        %10348 = vst [vmem:[%s340 + $0x9f0] sm:$0xff] %v9062
        %10349 = vst [vmem:[%s340 + $0x9f8] sm:$0xff] %v9067
        %10350 = vst [vmem:[%s340 + $0xa00] sm:$0xff] %v9072
        %10351 = vst [vmem:[%s340 + $0xa08] sm:$0xff] %v9077
        %10352 = vst [vmem:[%s340 + $0xa10] sm:$0xff] %v9082
        %10353 = vst [vmem:[%s340 + $0xa18] sm:$0xff] %v9087
        %10354 = vst [vmem:[%s340 + $0xa20] sm:$0xff] %v9092
        %10355 = vst [vmem:[%s340 + $0xa28] sm:$0xff] %v9097
        %10356 = vst [vmem:[%s340 + $0xa30] sm:$0xff] %v9102
        %10357 = vst [vmem:[%s340 + $0xa38] sm:$0xff] %v9107
        %10358 = vst [vmem:[%s340 + $0xa40] sm:$0xff] %v9112
        %10359 = vst [vmem:[%s340 + $0xa48] sm:$0xff] %v9117
        %10360 = vst [vmem:[%s340 + $0xa50] sm:$0xff] %v9122
        %10361 = vst [vmem:[%s340 + $0xa58] sm:$0xff] %v9127
        %10362 = vst [vmem:[%s340 + $0xa60] sm:$0xff] %v9132
        %10363 = vst [vmem:[%s340 + $0xa68] sm:$0xff] %v9137
        %10364 = vst [vmem:[%s340 + $0xa70] sm:$0xff] %v9142
        %10365 = vst [vmem:[%s340 + $0xa78] sm:$0xff] %v9147
        %10366 = vst [vmem:[%s340 + $0xa80] sm:$0xff] %v9152
        %10367 = vst [vmem:[%s340 + $0xa88] sm:$0xff] %v9157
        %10368 = vst [vmem:[%s340 + $0xa90] sm:$0xff] %v9162
        %10369 = vst [vmem:[%s340 + $0xa98] sm:$0xff] %v9167
        %10370 = vst [vmem:[%s340 + $0xaa0] sm:$0xff] %v9172
        %10371 = vst [vmem:[%s340 + $0xaa8] sm:$0xff] %v9177
        %10372 = vst [vmem:[%s340 + $0xab0] sm:$0xff] %v9182
        %10373 = vst [vmem:[%s340 + $0xab8] sm:$0xff] %v9187
        %10374 = vst [vmem:[%s340 + $0xac0] sm:$0xff] %v9192
        %10375 = vst [vmem:[%s340 + $0xac8] sm:$0xff] %v9197
        %10376 = vst [vmem:[%s340 + $0xad0] sm:$0xff] %v9202
        %10377 = vst [vmem:[%s340 + $0xad8] sm:$0xff] %v9207
        %10378 = vst [vmem:[%s340 + $0xae0] sm:$0xff] %v9212
        %10379 = vst [vmem:[%s340 + $0xae8] sm:$0xff] %v9217
        %10380 = vst [vmem:[%s340 + $0xaf0] sm:$0xff] %v9222
        %10381 = vst [vmem:[%s340 + $0xaf8] sm:$0xff] %v9227
        %10382 = vst [vmem:[%s340 + $0xb00] sm:$0xff] %v9232
        %10383 = vst [vmem:[%s340 + $0xb08] sm:$0xff] %v9237
        %10384 = vst [vmem:[%s340 + $0xb10] sm:$0xff] %v9242
        %10385 = vst [vmem:[%s340 + $0xb18] sm:$0xff] %v9247
        %10386 = vst [vmem:[%s340 + $0xb20] sm:$0xff] %v9252
        %10387 = vst [vmem:[%s340 + $0xb28] sm:$0xff] %v9257
        %10388 = vst [vmem:[%s340 + $0xb30] sm:$0xff] %v9262
        %10389 = vst [vmem:[%s340 + $0xb38] sm:$0xff] %v9267
        %10390 = vst [vmem:[%s340 + $0xb40] sm:$0xff] %v9272
        %10391 = vst [vmem:[%s340 + $0xb48] sm:$0xff] %v9277
        %10392 = vst [vmem:[%s340 + $0xb50] sm:$0xff] %v9282
        %10393 = vst [vmem:[%s340 + $0xb58] sm:$0xff] %v9287
        %10394 = vst [vmem:[%s340 + $0xb60] sm:$0xff] %v9292
        %10395 = vst [vmem:[%s340 + $0xb68] sm:$0xff] %v9297
        %10396 = vst [vmem:[%s340 + $0xb70] sm:$0xff] %v9302
        %10397 = vst [vmem:[%s340 + $0xb78] sm:$0xff] %v9307
        %10398 = vst [vmem:[%s340 + $0xb80] sm:$0xff] %v9312
        %10399 = vst [vmem:[%s340 + $0xb88] sm:$0xff] %v9317
        %10400 = vst [vmem:[%s340 + $0xb90] sm:$0xff] %v9322
        %10401 = vst [vmem:[%s340 + $0xb98] sm:$0xff] %v9327
        %10402 = vst [vmem:[%s340 + $0xba0] sm:$0xff] %v9332
        %10403 = vst [vmem:[%s340 + $0xba8] sm:$0xff] %v9337
        %10404 = vst [vmem:[%s340 + $0xbb0] sm:$0xff] %v9342
        %10405 = vst [vmem:[%s340 + $0xbb8] sm:$0xff] %v9347
        %10406 = vst [vmem:[%s340 + $0xbc0] sm:$0xff] %v9352
        %10407 = vst [vmem:[%s340 + $0xbc8] sm:$0xff] %v9357
        %10408 = vst [vmem:[%s340 + $0xbd0] sm:$0xff] %v9362
        %10409 = vst [vmem:[%s340 + $0xbd8] sm:$0xff] %v9367
        %10410 = vst [vmem:[%s340 + $0xbe0] sm:$0xff] %v9372
        %10411 = vst [vmem:[%s340 + $0xbe8] sm:$0xff] %v9377
        %10412 = vst [vmem:[%s340 + $0xbf0] sm:$0xff] %v9382
        %10413 = vst [vmem:[%s340 + $0xbf8] sm:$0xff] %v9387
        %10414 = vst [vmem:[%s340 + $0xc00] sm:$0xff] %v9392
        %10415 = vst [vmem:[%s340 + $0xc08] sm:$0xff] %v9397
        %10416 = vst [vmem:[%s340 + $0xc10] sm:$0xff] %v9402
        %10417 = vst [vmem:[%s340 + $0xc18] sm:$0xff] %v9407
        %10418 = vst [vmem:[%s340 + $0xc20] sm:$0xff] %v9412
        %10419 = vst [vmem:[%s340 + $0xc28] sm:$0xff] %v9417
        %10420 = vst [vmem:[%s340 + $0xc30] sm:$0xff] %v9422
        %10421 = vst [vmem:[%s340 + $0xc38] sm:$0xff] %v9427
        %10422 = vst [vmem:[%s340 + $0xc40] sm:$0xff] %v9432
        %10423 = vst [vmem:[%s340 + $0xc48] sm:$0xff] %v9437
        %10424 = vst [vmem:[%s340 + $0xc50] sm:$0xff] %v9442
        %10425 = vst [vmem:[%s340 + $0xc58] sm:$0xff] %v9447
        %10426 = vst [vmem:[%s340 + $0xc60] sm:$0xff] %v9452
        %10427 = vst [vmem:[%s340 + $0xc68] sm:$0xff] %v9457
        %10428 = vst [vmem:[%s340 + $0xc70] sm:$0xff] %v9462
        %10429 = vst [vmem:[%s340 + $0xc78] sm:$0xff] %v9467
        %10430 = vst [vmem:[%s340 + $0xc80] sm:$0xff] %v9472
        %10431 = vst [vmem:[%s340 + $0xc88] sm:$0xff] %v9477
        %10432 = vst [vmem:[%s340 + $0xc90] sm:$0xff] %v9482
        %10433 = vst [vmem:[%s340 + $0xc98] sm:$0xff] %v9487
        %10434 = vst [vmem:[%s340 + $0xca0] sm:$0xff] %v9492
        %10435 = vst [vmem:[%s340 + $0xca8] sm:$0xff] %v9497
        %10436 = vst [vmem:[%s340 + $0xcb0] sm:$0xff] %v9502
        %10437 = vst [vmem:[%s340 + $0xcb8] sm:$0xff] %v9507
        %10438 = vst [vmem:[%s340 + $0xcc0] sm:$0xff] %v9512
        %10439 = vst [vmem:[%s340 + $0xcc8] sm:$0xff] %v9517
        %10440 = vst [vmem:[%s340 + $0xcd0] sm:$0xff] %v9522
        %10441 = vst [vmem:[%s340 + $0xcd8] sm:$0xff] %v9527
        %10442 = vst [vmem:[%s340 + $0xce0] sm:$0xff] %v9532
        %10443 = vst [vmem:[%s340 + $0xce8] sm:$0xff] %v9537
        %10444 = vst [vmem:[%s340 + $0xcf0] sm:$0xff] %v9542
        %10445 = vst [vmem:[%s340 + $0xcf8] sm:$0xff] %v9547
        %10446 = vst [vmem:[%s340 + $0xd00] sm:$0xff] %v9552
        %10447 = vst [vmem:[%s340 + $0xd08] sm:$0xff] %v9557
        %10448 = vst [vmem:[%s340 + $0xd10] sm:$0xff] %v9562
        %10449 = vst [vmem:[%s340 + $0xd18] sm:$0xff] %v9567
        %10450 = vst [vmem:[%s340 + $0xd20] sm:$0xff] %v9572
        %10451 = vst [vmem:[%s340 + $0xd28] sm:$0xff] %v9577
        %10452 = vst [vmem:[%s340 + $0xd30] sm:$0xff] %v9582
        %10453 = vst [vmem:[%s340 + $0xd38] sm:$0xff] %v9587
        %10454 = vst [vmem:[%s340 + $0xd40] sm:$0xff] %v9592
        %10455 = vst [vmem:[%s340 + $0xd48] sm:$0xff] %v9597
        %10456 = vst [vmem:[%s340 + $0xd50] sm:$0xff] %v9602
        %10457 = vst [vmem:[%s340 + $0xd58] sm:$0xff] %v9607
        %10458 = vst [vmem:[%s340 + $0xd60] sm:$0xff] %v9612
        %10459 = vst [vmem:[%s340 + $0xd68] sm:$0xff] %v9617
        %10460 = vst [vmem:[%s340 + $0xd70] sm:$0xff] %v9622
        %10461 = vst [vmem:[%s340 + $0xd78] sm:$0xff] %v9627
        %10462 = vst [vmem:[%s340 + $0xd80] sm:$0xff] %v9632
        %10463 = vst [vmem:[%s340 + $0xd88] sm:$0xff] %v9637
        %10464 = vst [vmem:[%s340 + $0xd90] sm:$0xff] %v9642
        %10465 = vst [vmem:[%s340 + $0xd98] sm:$0xff] %v9647
        %10466 = vst [vmem:[%s340 + $0xda0] sm:$0xff] %v9652
        %10467 = vst [vmem:[%s340 + $0xda8] sm:$0xff] %v9657
        %10468 = vst [vmem:[%s340 + $0xdb0] sm:$0xff] %v9662
        %10469 = vst [vmem:[%s340 + $0xdb8] sm:$0xff] %v9667
        %10470 = vst [vmem:[%s340 + $0xdc0] sm:$0xff] %v9672
        %10471 = vst [vmem:[%s340 + $0xdc8] sm:$0xff] %v9677
        %10472 = vst [vmem:[%s340 + $0xdd0] sm:$0xff] %v9682
        %10473 = vst [vmem:[%s340 + $0xdd8] sm:$0xff] %v9687
        %10474 = vst [vmem:[%s340 + $0xde0] sm:$0xff] %v9692
        %10475 = vst [vmem:[%s340 + $0xde8] sm:$0xff] %v9697
        %10476 = vst [vmem:[%s340 + $0xdf0] sm:$0xff] %v9702
        %10477 = vst [vmem:[%s340 + $0xdf8] sm:$0xff] %v9707
        %10478 = vst [vmem:[%s340 + $0xe00] sm:$0xff] %v9712
        %10479 = vst [vmem:[%s340 + $0xe08] sm:$0xff] %v9717
        %10480 = vst [vmem:[%s340 + $0xe10] sm:$0xff] %v9722
        %10481 = vst [vmem:[%s340 + $0xe18] sm:$0xff] %v9727
        %10482 = vst [vmem:[%s340 + $0xe20] sm:$0xff] %v9732
        %10483 = vst [vmem:[%s340 + $0xe28] sm:$0xff] %v9737
        %10484 = vst [vmem:[%s340 + $0xe30] sm:$0xff] %v9742
        %10485 = vst [vmem:[%s340 + $0xe38] sm:$0xff] %v9747
        %10486 = vst [vmem:[%s340 + $0xe40] sm:$0xff] %v9752
        %10487 = vst [vmem:[%s340 + $0xe48] sm:$0xff] %v9757
        %10488 = vst [vmem:[%s340 + $0xe50] sm:$0xff] %v9762
        %10489 = vst [vmem:[%s340 + $0xe58] sm:$0xff] %v9767
        %10490 = vst [vmem:[%s340 + $0xe60] sm:$0xff] %v9772
        %10491 = vst [vmem:[%s340 + $0xe68] sm:$0xff] %v9777
        %10492 = vst [vmem:[%s340 + $0xe70] sm:$0xff] %v9782
        %10493 = vst [vmem:[%s340 + $0xe78] sm:$0xff] %v9787
        %10494 = vst [vmem:[%s340 + $0xe80] sm:$0xff] %v9792
        %10495 = vst [vmem:[%s340 + $0xe88] sm:$0xff] %v9797
        %10496 = vst [vmem:[%s340 + $0xe90] sm:$0xff] %v9802
        %10497 = vst [vmem:[%s340 + $0xe98] sm:$0xff] %v9807
        %10498 = vst [vmem:[%s340 + $0xea0] sm:$0xff] %v9812
        %10499 = vst [vmem:[%s340 + $0xea8] sm:$0xff] %v9817
        %10500 = vst [vmem:[%s340 + $0xeb0] sm:$0xff] %v9822
        %10501 = vst [vmem:[%s340 + $0xeb8] sm:$0xff] %v9827
        %10502 = vst [vmem:[%s340 + $0xec0] sm:$0xff] %v9832
        %10503 = vst [vmem:[%s340 + $0xec8] sm:$0xff] %v9837
        %10504 = vst [vmem:[%s340 + $0xed0] sm:$0xff] %v9842
        %10505 = vst [vmem:[%s340 + $0xed8] sm:$0xff] %v9847
        %10506 = vst [vmem:[%s340 + $0xee0] sm:$0xff] %v9852
        %10507 = vst [vmem:[%s340 + $0xee8] sm:$0xff] %v9857
        %10508 = vst [vmem:[%s340 + $0xef0] sm:$0xff] %v9862
        %10509 = vst [vmem:[%s340 + $0xef8] sm:$0xff] %v9867
        %10510 = vst [vmem:[%s340 + $0xf00] sm:$0xff] %v9872
        %10511 = vst [vmem:[%s340 + $0xf08] sm:$0xff] %v9877
        %10512 = vst [vmem:[%s340 + $0xf10] sm:$0xff] %v9882
        %10513 = vst [vmem:[%s340 + $0xf18] sm:$0xff] %v9887
        %10514 = vst [vmem:[%s340 + $0xf20] sm:$0xff] %v9892
        %10515 = vst [vmem:[%s340 + $0xf28] sm:$0xff] %v9897
        %10516 = vst [vmem:[%s340 + $0xf30] sm:$0xff] %v9902
        %10517 = vst [vmem:[%s340 + $0xf38] sm:$0xff] %v9907
        %10518 = vst [vmem:[%s340 + $0xf40] sm:$0xff] %v9912
        %10519 = vst [vmem:[%s340 + $0xf48] sm:$0xff] %v9917
        %10520 = vst [vmem:[%s340 + $0xf50] sm:$0xff] %v9922
        %10521 = vst [vmem:[%s340 + $0xf58] sm:$0xff] %v9927
        %10522 = vst [vmem:[%s340 + $0xf60] sm:$0xff] %v9932
        %10523 = vst [vmem:[%s340 + $0xf68] sm:$0xff] %v9937
        %10524 = vst [vmem:[%s340 + $0xf70] sm:$0xff] %v9942
        %10525 = vst [vmem:[%s340 + $0xf78] sm:$0xff] %v9947
        %10526 = vst [vmem:[%s340 + $0xf80] sm:$0xff] %v9952
        %10527 = vst [vmem:[%s340 + $0xf88] sm:$0xff] %v9957
        %10528 = vst [vmem:[%s340 + $0xf90] sm:$0xff] %v9962
        %10529 = vst [vmem:[%s340 + $0xf98] sm:$0xff] %v9967
        %10530 = vst [vmem:[%s340 + $0xfa0] sm:$0xff] %v9972
        %10531 = vst [vmem:[%s340 + $0xfa8] sm:$0xff] %v9977
        %10532 = vst [vmem:[%s340 + $0xfb0] sm:$0xff] %v9982
        %10533 = vst [vmem:[%s340 + $0xfb8] sm:$0xff] %v9987
        %10534 = vst [vmem:[%s340 + $0xfc0] sm:$0xff] %v9992
        %10535 = vst [vmem:[%s340 + $0xfc8] sm:$0xff] %v9997
        %10536 = vst [vmem:[%s340 + $0xfd0] sm:$0xff] %v10002
        %10537 = vst [vmem:[%s340 + $0xfd8] sm:$0xff] %v10007
        %10538 = vst [vmem:[%s340 + $0xfe0] sm:$0xff] %v10012
        %10539 = vst [vmem:[%s340 + $0xfe8] sm:$0xff] %v10017
        %10540 = vst [vmem:[%s340 + $0xff0] sm:$0xff] %v10022
        %10541 = vst [vmem:[%s340 + $0xff8] sm:$0xff] %v10027
        %p10542 = scmp.lt.s32.totalorder %s20, 1
        %s10543 = scalar_select %p10542, %s20, 1
        %s10544 = smul.addr %s10543, 512
        %s10545 = smul.addr %s10544, 8
        %s10546 = scalar_lea.vmem %s8, %s10545
        // Predicated region
        $region57: #{fcn_forward.7} parent=51 // pred_check
          %p10547 = pneg %p216
        $region58: #{fcn_forward.7} parent=51 // pred_check_branch
          %10549 = sbr.rel (%p10547) target = $region60
        $region59: #{fcn_forward.7} parent=51 // pred_region
          _
        $region60: #{fcn_forward.7} parent=51 // pred_fallthru
          _
      $region52: #{fcn_forward.7} parent=5 // pred_fallthru
        _
      %p10550 = scmp.le.s32.totalorder 2, %s15
      // Predicated region
      $region61: #{fcn_forward.7} parent=5 // pred_check
        %p10551 = pneg %p10550
      $region62: #{fcn_forward.7} parent=5 // pred_check_branch
        %10553 = sbr.rel (%p10551) target = $region64
      $region63: #{fcn_forward.7} parent=5 // pred_region
        %s10554 = ssub.s32 %s15, 2
        // Predicated region
        $region65: #{fcn_forward.7} parent=63 // pred_check
          %p10555 = pneg %p222
        $region66: #{fcn_forward.7} parent=63 // pred_check_branch
          %10557 = sbr.rel (%p10555) target = $region68
        $region67: #{fcn_forward.7} parent=63 // pred_region
          %p10558 = scmp.lt.s32.totalorder %s21, 1
          %s10559 = scalar_select %p10558, %s21, 1
          %s10560 = smul.addr %s10559, 512
          %s10561 = smul.addr %s10560, 8
          %s10562 = scalar_lea.vmem %s8, %s10561
        $region68: #{fcn_forward.7} parent=63 // pred_fallthru
          _
      $region64: #{fcn_forward.7} parent=5 // pred_fallthru
        _
    $region6: #{fcn_forward.7} parent=1 // loop_footer
      %s19 = sadd.s32 1, %s15
    $region7: #{fcn_forward.7} parent=1 // loop_footer_branch
      %14 = sbr.rel target = $region3
    $region8: #{fcn_forward.7} parent=1 // loop_exit
      _
    %10563 = vsyncpa [#allocation3], 1
    %s10564 = scalar_lea.sflag [#allocation3], 1
    %10565 = vsyncpa %s10564, 1

</llo_original>
